<compile_context>
chip_gen: v5e
topology: v5e:2x2
jax: 0.10.0
libtpu: 0.0.40
codegen_flags: <defaults>
</compile_context>

<pallas_src>
import functools

import jax
import jax.numpy as jnp
from jax.experimental import pallas as pl
from jax.experimental.pallas import tpu as pltpu

BN_EPS = 1e-5


# ----------------------------------------------------------------------------
# small static helpers
# ----------------------------------------------------------------------------
def _round_up(x, m):
    return ((x + m - 1) // m) * m


def _pick_m_tile(m, cap=512):
    """Largest divisor of m that is a multiple of 8 and <= cap (fallback: m)."""
    best = m
    d = 8
    while d <= min(m, cap):
        if m % d == 0:
            best = d
        d += 8
    return best


def _lin1_tiles(n_pad, k_pad):
    """Per-generation (tn, tk) for the big linear1 weight stream."""
    kind = jax.devices()[0].device_kind.lower()
    if "7" in kind:          # v7x: two TensorCores -> two "parallel" N blocks
        tn, tk = 256, 4096
    elif "v6" in kind:       # v6e: single TC, full-N, few K steps (8 MB < 32 MiB)
        tn, tk = 512, 4096
    else:                    # v5e / unknown: 2 MB blocks fit the 16 MiB scoped default
        tn, tk = 512, 2048
    tn, tk = min(tn, n_pad), min(tk, k_pad)
    assert n_pad % tn == 0 and k_pad % tk == 0
    return tn, tk


# ----------------------------------------------------------------------------
# Pallas kernels
# ----------------------------------------------------------------------------
def _conv_pool_kernel(p00_ref, p01_ref, p10_ref, p11_ref, w_ref, bss_ref,
                      o_ref, *, mode):
    """Fused conv (im2col GEMM) + bias + ReLU + eval-BN + 2x2 pooling.

    p_ab holds the patches of conv-output pixels whose (row, col) parity inside
    their 2x2 pooling window is (a, b); pooling is therefore an elementwise
    max / mean over the four post-BN GEMM results.  bss packs (bias, scale,
    shift) as rows 0..2 of a single (8, C) f32 operand.
    """
    w = w_ref[...]
    bss = bss_ref[...]
    b, s, t = bss[0:1, :], bss[1:2, :], bss[2:3, :]

    def conv_relu_bn(p_ref):
        z = jnp.dot(p_ref[...], w, preferred_element_type=jnp.float32)
        return jnp.maximum(z + b, 0.0) * s + t          # conv -> ReLU -> BN

    r = conv_relu_bn(p00_ref)
    if mode == "max":
        r = jnp.maximum(r, conv_relu_bn(p01_ref))
        r = jnp.maximum(r, conv_relu_bn(p10_ref))
        r = jnp.maximum(r, conv_relu_bn(p11_ref))
    else:                                               # avg
        r = r + conv_relu_bn(p01_ref) + conv_relu_bn(p10_ref) + conv_relu_bn(p11_ref)
        r = r * 0.25
    o_ref[...] = r.astype(o_ref.dtype)                  # bf16 writeback


def conv_relu_bn_pool(patches4, w, bss, *, mode):
    """patches4: four [Mp, K] bf16 parity patch matrices.  Returns [Mp, C] bf16."""
    Mp, K = patches4[0].shape
    Kw, C = w.shape
    assert K == Kw
    tm = _pick_m_tile(Mp, cap=512)       # <=512 so the parallel axis splits 2 TCs evenly
    grid = (Mp // tm,)
    patch_spec = pl.BlockSpec((tm, K), lambda m: (m, 0))
    return pl.pallas_call(
        functools.partial(_conv_pool_kernel, mode=mode),
        out_shape=jax.ShapeDtypeStruct((Mp, C), jnp.bfloat16),
        grid_spec=pltpu.PrefetchScalarGridSpec(
            num_scalar_prefetch=0,
            grid=grid,
            in_specs=[patch_spec, patch_spec, patch_spec, patch_spec,
                      pl.BlockSpec((K, C), lambda m: (0, 0)),
                      pl.BlockSpec((8, C), lambda m: (0, 0))],
            out_specs=pl.BlockSpec((tm, C), lambda m: (m, 0)),
        ),
        compiler_params=pltpu.CompilerParams(
            dimension_semantics=("parallel",)),
    )(*patches4, w, bss)


def _lin1_kernel(x_ref, w_ref, bss_ref, o_ref, acc_ref):
    """acc += x @ w over the K grid axis; last K step applies bias+ReLU+BN."""
    k = pl.program_id(1)

    @pl.when(k == 0)
    def _():
        acc_ref[...] = jnp.zeros_like(acc_ref)

    acc_ref[...] += jnp.dot(x_ref[...], w_ref[...],
                            preferred_element_type=jnp.float32)

    @pl.when(k == pl.num_programs(1) - 1)
    def _():
        bss = bss_ref[...]
        y = jnp.maximum(acc_ref[...] + bss[0:1, :], 0.0) * bss[1:2, :] + bss[2:3, :]
        o_ref[...] = y.astype(o_ref.dtype)


def linear1_relu_bn(x, w, bss):
    """[M, 20480] bf16 @ [20480, 512] bf16 with fused bias/ReLU/BN -> bf16."""
    M, K = x.shape
    K2, Npad = w.shape
    assert K == K2
    tn, tk = _lin1_tiles(Npad, K)
    grid = (Npad // tn, K // tk)
    return pl.pallas_call(
        _lin1_kernel,
        out_shape=jax.ShapeDtypeStruct((M, Npad), jnp.bfloat16),
        grid_spec=pltpu.PrefetchScalarGridSpec(
            num_scalar_prefetch=0,
            grid=grid,
            in_specs=[pl.BlockSpec((M, tk), lambda n, k: (0, k)),
                      pl.BlockSpec((tk, tn), lambda n, k: (k, n)),
                      pl.BlockSpec((8, tn), lambda n, k: (0, n))],
            out_specs=pl.BlockSpec((M, tn), lambda n, k: (0, n)),
            scratch_shapes=[pltpu.VMEM((M, tn), jnp.float32)]),
        compiler_params=pltpu.CompilerParams(
            dimension_semantics=("parallel", "arbitrary")),
    )(x, w, bss)


def _mlp_tail_kernel(x_ref, w2_ref, bss2_ref, w3_ref, bss3_ref, w4_ref,
                     bss4_ref, o_ref):
    """lin2->ReLU->BN->lin3->ReLU->BN->lin4->sigmoid, all resident in VMEM."""
    def lin_relu_bn(h, w_ref, bss_ref):
        bss = bss_ref[...]
        z = jnp.dot(h, w_ref[...], preferred_element_type=jnp.float32)
        z = jnp.maximum(z + bss[0:1, :], 0.0) * bss[1:2, :] + bss[2:3, :]
        return z.astype(jnp.bfloat16)

    h = lin_relu_bn(x_ref[...], w2_ref, bss2_ref)
    h = lin_relu_bn(h, w3_ref, bss3_ref)
    z = jnp.dot(h, w4_ref[...], preferred_element_type=jnp.float32)
    o_ref[...] = jax.nn.sigmoid(z + bss4_ref[0:1, :])


def mlp_tail(x, w2, bss2, w3, bss3, w4, bss4):
    M = x.shape[0]
    Nout = w4.shape[1]
    # Gridless pallas_call: every operand (~0.7 MB of bf16 weights) lives in VMEM.
    return pl.pallas_call(
        _mlp_tail_kernel,
        out_shape=jax.ShapeDtypeStruct((M, Nout), jnp.float32),
    )(x, w2, bss2, w3, bss3, w4, bss4)


# ----------------------------------------------------------------------------
# Glue (plain JAX, NHWC end-to-end): parity-grouped im2col, BN folding, prep
# ----------------------------------------------------------------------------
def _parity_patches(x_nhwc, kh, kw, pad):
    """NHWC im2col grouped by the 2x2-pooling parity of the conv-output pixel.

    Returns four [N*rows_pad, kh*kw*C] bf16 matrices; row n*rows_pad + h*Wo + w
    holds the patch of conv-output pixel (2h+a, 2w+b).  Rows are padded PER
    SAMPLE to rows_pad so downstream flattens are pure reshapes.  K order is
    (i, j, c), matching weight.reshape(kh*kw*Cin, Cout).
    """
    N, H, W, C = x_nhwc.shape
    Ho, Wo = H // 2, W // 2
    rows = Ho * Wo
    rows_pad = _round_up(rows, 128)
    xp = jnp.pad(x_nhwc, ((0, 0), (pad, pad), (pad, pad), (0, 0)))
    mats = []
    for a in (0, 1):
        for b in (0, 1):
            cols = [xp[:, a + i: a + i + H - 1: 2, b + j: b + j + W - 1: 2, :]
                    for i in range(kh) for j in range(kw)]
            pm = jnp.concatenate(cols, axis=-1).reshape(N, rows, kh * kw * C)
            pm = jnp.pad(pm, ((0, 0), (0, rows_pad - rows), (0, 0)))
            mats.append(pm.reshape(N * rows_pad, kh * kw * C).astype(jnp.bfloat16))
    return mats, (Ho, Wo, rows_pad)


def bn_fold(gamma, beta, mean, var, eps=BN_EPS):
    """Fold eval-mode BatchNorm into a per-channel scale/shift."""
    scale = gamma / jnp.sqrt(var + eps)
    shift = beta - mean * scale
    return scale, shift


def _pack_bss(b, s, t, n_pad):
    """Pack (bias, scale, shift) as rows 0..2 of one (8, n_pad) f32 operand."""
    m = jnp.stack([b, s, t], axis=0).astype(jnp.float32)
    return jnp.pad(m, ((0, 5), (0, n_pad - b.shape[0])))


def prepare_params(p):
    """One-time prep (outside the jitted forward).

    NOTE: weights here use "math" layout ((kh,kw,Cin,Cout) conv, (in,out)
    linear).  A real PyTorch checkpoint stores (Cout,Cin,kh,kw) / (out,in) and
    would need a transpose before this prep.
    """
    q = {}
    q["c1_w"] = p["conv1_w"].reshape(-1, 16).astype(jnp.bfloat16)
    s, t = bn_fold(**p["bn1"])
    q["c1_bss"] = _pack_bss(p["conv1_b"], s, t, 16)
    q["c2_w"] = p["conv2_w"].reshape(-1, 32).astype(jnp.bfloat16)
    s, t = bn_fold(**p["bn2"])
    q["c2_bss"] = _pack_bss(p["conv2_b"], s, t, 32)

    # linear1: fold the torch NCHW flatten (k_torch = c*625 + p) into a row
    # permutation so the kernel consumes the NHWC flatten (k_new = p*32 + c),
    # and bake the per-sample 625 -> 640 pixel-row padding in as zero rows.
    c2, pix_n, pix_pad = 32, 25 * 25, 640
    w1 = p["lin1_w"]                                                    # (20000, 400)
    pix = jnp.arange(pix_pad)
    ch = jnp.arange(c2)
    src = ch[None, :] * pix_n + jnp.minimum(pix, pix_n - 1)[:, None]    # (640, 32)
    w1p = jnp.where((pix < pix_n)[:, None, None], w1[src], 0.0)
    w1p = w1p.reshape(pix_pad * c2, w1.shape[1])                        # (20480, 400)
    n1 = 512
    q["l1_w"] = jnp.pad(w1p, ((0, 0), (0, n1 - w1.shape[1]))).astype(jnp.bfloat16)
    s, t = bn_fold(**p["lbn1"])
    q["l1_bss"] = _pack_bss(p["lin1_b"], s, t, n1)

    def prep_dense(w, b, bn, k_pad, n_pad):
        kk, nn = w.shape
        w2 = jnp.pad(w, ((0, k_pad - kk), (0, n_pad - nn))).astype(jnp.bfloat16)
        if bn is not None:
            ss, tt = bn_fold(**bn)
        else:
            ss, tt = jnp.zeros_like(b), jnp.zeros_like(b)
        return w2, _pack_bss(b, ss, tt, n_pad)

    q["l2_w"], q["l2_bss"] = prep_dense(p["lin2_w"], p["lin2_b"], p["lbn2"], 512, 512)
    q["l3_w"], q["l3_bss"] = prep_dense(p["lin3_w"], p["lin3_b"], p["lbn3"], 512, 512)
    q["l4_w"], q["l4_bss"] = prep_dense(p["lin4_w"], p["lin4_b"], None, 512, 128)
    return q


# ----------------------------------------------------------------------------
# Parameters (deterministic synthetic init; shapes from the PyTorch module)
# ----------------------------------------------------------------------------
def init_params(key):
    ks = iter(jax.random.split(key, 64))

    def normal(shape, std=0.05):
        return (std * jax.random.normal(next(ks), shape)).astype(jnp.float32)

    def bn(c):
        return dict(gamma=1.0 + normal((c,)), beta=normal((c,)),
                    mean=normal((c,)), var=jnp.abs(1.0 + normal((c,))))

    p = {}
    p["conv1_w"] = normal((5, 5, 3, 16))        # (kh, kw, Cin, Cout)
    p["conv1_b"] = normal((16,))
    p["bn1"] = bn(16)
    p["conv2_w"] = normal((3, 3, 16, 32))
    p["conv2_b"] = normal((32,))
    p["bn2"] = bn(32)
    p["lin1_w"] = normal((32 * 25 * 25, 400), std=0.01)
    p["lin1_b"] = normal((400,))
    p["lbn1"] = bn(400)
    p["lin2_w"] = normal((400, 500))
    p["lin2_b"] = normal((500,))
    p["lbn2"] = bn(500)
    p["lin3_w"] = normal((500, 400))
    p["lin3_b"] = normal((400,))
    p["lbn3"] = bn(400)
    p["lin4_w"] = normal((400, 7))
    p["lin4_b"] = normal((7,))
    return p


# ----------------------------------------------------------------------------
# Forward pass (expects NCHW f32 input and *prepared* params)
# ----------------------------------------------------------------------------
def cnn_forward(x_nchw, q):
    N = x_nchw.shape[0]
    x = jnp.transpose(x_nchw.astype(jnp.float32), (0, 2, 3, 1))  # single NHWC transpose

    # stage 1: conv1(5x5, pad 2) -> ReLU -> BN -> MaxPool2x2   (one fused kernel)
    pats, (ho, wo, rp) = _parity_patches(x, 5, 5, 2)
    y = conv_relu_bn_pool(pats, q["c1_w"], q["c1_bss"], mode="max")       # [N*rp, 16] bf16
    y = y.reshape(N, rp, 16)[:, :ho * wo].reshape(N, ho, wo, 16)          # NHWC, no transpose

    # stage 2: conv2(3x3, pad 1) -> ReLU -> BN -> AvgPool2x2   (one fused kernel)
    pats, (ho2, wo2, rp2) = _parity_patches(y, 3, 3, 1)
    y = conv_relu_bn_pool(pats, q["c2_w"], q["c2_bss"], mode="avg")       # [N*rp2, 32] bf16

    # lin1 consumes the NHWC flatten directly: a pure reshape (the NCHW flatten
    # permutation and the per-sample pixel padding live inside q["l1_w"]).
    flat = y.reshape(N, rp2 * 32)                                         # [N, 20480] bf16
    assert flat.shape[1] == q["l1_w"].shape[0]

    # linear1 -> ReLU -> BN   (Dropout(0.1) is the inference identity)
    h = linear1_relu_bn(flat, q["l1_w"], q["l1_bss"])                     # [N, 512] bf16
    # lin2 -> ReLU -> BN -> lin3 -> ReLU -> BN -> lin4 -> sigmoid, one VMEM call
    out = mlp_tail(h, q["l2_w"], q["l2_bss"], q["l3_w"], q["l3_bss"],
                   q["l4_w"], q["l4_bss"])                                # [N, 128] f32
    return out[:, :7]                                                     # [N, 7]


# ----------------------------------------------------------------------------
if __name__ == "__main__":
    key = jax.random.PRNGKey(0)
    k_param, k_x = jax.random.split(key)

    raw_params = init_params(k_param)
    params = prepare_params(raw_params)        # one-time prep, outside the jit

    # synthetic image batch, NCHW uint8-style values, then x = x / 255 as in the script
    x_raw = jax.random.uniform(k_x, (2, 3, 100, 100),
                               minval=0.0, maxval=255.0, dtype=jnp.float32)
    x = x_raw / 255.0

    fwd = jax.jit(cnn_forward)
    out = jax.block_until_ready(fwd(x, params))

    assert out.shape == (2, 7)
    assert bool(jnp.all(jnp.isfinite(out)))
    assert bool(jnp.all((out >= 0.0) & (out <= 1.0)))   # sigmoid output range
    print("KERNEL_OK")
</pallas_src>

<mosaic_0001>
module attributes {stable_mosaic.version = 11 : i64} {
  func.func @_conv_pool_kernel(%arg0: i32, %arg1: memref<512x75xbf16, #tpu.memory_space<vmem>>, %arg2: memref<512x75xbf16, #tpu.memory_space<vmem>>, %arg3: memref<512x75xbf16, #tpu.memory_space<vmem>>, %arg4: memref<512x75xbf16, #tpu.memory_space<vmem>>, %arg5: memref<75x16xbf16, #tpu.memory_space<vmem>>, %arg6: memref<8x16xf32, #tpu.memory_space<vmem>>, %arg7: memref<512x16xbf16, #tpu.memory_space<vmem>>) attributes {dimension_semantics = [#tpu.dimension_semantics<parallel>], iteration_bounds = array<i64: 10>, scalar_prefetch = 0 : i64, scratch_operands = 0 : i64, tpu.core_type = #tpu.core_type<tc>, window_params = [{transform_indices = @transform_0, window_bounds = array<i64: 512, 75>}, {transform_indices = @transform_1, window_bounds = array<i64: 512, 75>}, {transform_indices = @transform_2, window_bounds = array<i64: 512, 75>}, {transform_indices = @transform_3, window_bounds = array<i64: 512, 75>}, {pipeline_mode = #tpu.pipeline_mode<synchronous>, transform_indices = @transform_4, window_bounds = array<i64: 75, 16>}, {pipeline_mode = #tpu.pipeline_mode<synchronous>, transform_indices = @transform_5, window_bounds = array<i64: 8, 16>}, {transform_indices = @transform_6, window_bounds = array<i64: 512, 16>}]} {
    %c0 = arith.constant 0 : index
    %c0_0 = arith.constant 0 : index
    %0 = vector.load %arg5[%c0, %c0_0] : memref<75x16xbf16, #tpu.memory_space<vmem>>, vector<75x16xbf16>
    %c0_1 = arith.constant 0 : index
    %c0_2 = arith.constant 0 : index
    %1 = vector.load %arg6[%c0_1, %c0_2] : memref<8x16xf32, #tpu.memory_space<vmem>>, vector<8x16xf32>
    %2 = vector.extract_strided_slice %1 {offsets = [0, 0], sizes = [1, 16], strides = [1, 1]} : vector<8x16xf32> to vector<1x16xf32>
    %3 = vector.extract_strided_slice %1 {offsets = [1, 0], sizes = [1, 16], strides = [1, 1]} : vector<8x16xf32> to vector<1x16xf32>
    %4 = vector.extract_strided_slice %1 {offsets = [2, 0], sizes = [1, 16], strides = [1, 1]} : vector<8x16xf32> to vector<1x16xf32>
    %c0_3 = arith.constant 0 : index
    %c0_4 = arith.constant 0 : index
    %5 = vector.load %arg1[%c0_3, %c0_4] : memref<512x75xbf16, #tpu.memory_space<vmem>>, vector<512x75xbf16>
    %cst = arith.constant dense<0.000000e+00> : vector<512x16xf32>
    %6 = tpu.matmul %5, %0, %cst {dimension_numbers = #tpu.dot_dimension_numbers<[1], [0], [0], [1], [0, 0, 1, 1], [], []>} : vector<512x75xbf16>, vector<75x16xbf16>, vector<512x16xf32> -> vector<512x16xf32>
    %7 = vector.broadcast %2 : vector<1x16xf32> to vector<512x16xf32>
    %8 = arith.addf %6, %7 : vector<512x16xf32>
    %cst_5 = arith.constant 0.000000e+00 : f32
    %9 = vector.broadcast %cst_5 : f32 to vector<512x16xf32>
    %10 = arith.maximumf %8, %9 : vector<512x16xf32>
    %11 = vector.broadcast %3 : vector<1x16xf32> to vector<512x16xf32>
    %12 = arith.mulf %10, %11 : vector<512x16xf32>
    %13 = vector.broadcast %4 : vector<1x16xf32> to vector<512x16xf32>
    %14 = arith.addf %12, %13 : vector<512x16xf32>
    %c0_6 = arith.constant 0 : index
    %c0_7 = arith.constant 0 : index
    %15 = vector.load %arg2[%c0_6, %c0_7] : memref<512x75xbf16, #tpu.memory_space<vmem>>, vector<512x75xbf16>
    %cst_8 = arith.constant dense<0.000000e+00> : vector<512x16xf32>
    %16 = tpu.matmul %15, %0, %cst_8 {dimension_numbers = #tpu.dot_dimension_numbers<[1], [0], [0], [1], [0, 0, 1, 1], [], []>} : vector<512x75xbf16>, vector<75x16xbf16>, vector<512x16xf32> -> vector<512x16xf32>
    %17 = vector.broadcast %2 : vector<1x16xf32> to vector<512x16xf32>
    %18 = arith.addf %16, %17 : vector<512x16xf32>
    %cst_9 = arith.constant 0.000000e+00 : f32
    %19 = vector.broadcast %cst_9 : f32 to vector<512x16xf32>
    %20 = arith.maximumf %18, %19 : vector<512x16xf32>
    %21 = vector.broadcast %3 : vector<1x16xf32> to vector<512x16xf32>
    %22 = arith.mulf %20, %21 : vector<512x16xf32>
    %23 = vector.broadcast %4 : vector<1x16xf32> to vector<512x16xf32>
    %24 = arith.addf %22, %23 : vector<512x16xf32>
    %25 = arith.maximumf %14, %24 : vector<512x16xf32>
    %c0_10 = arith.constant 0 : index
    %c0_11 = arith.constant 0 : index
    %26 = vector.load %arg3[%c0_10, %c0_11] : memref<512x75xbf16, #tpu.memory_space<vmem>>, vector<512x75xbf16>
    %cst_12 = arith.constant dense<0.000000e+00> : vector<512x16xf32>
    %27 = tpu.matmul %26, %0, %cst_12 {dimension_numbers = #tpu.dot_dimension_numbers<[1], [0], [0], [1], [0, 0, 1, 1], [], []>} : vector<512x75xbf16>, vector<75x16xbf16>, vector<512x16xf32> -> vector<512x16xf32>
    %28 = vector.broadcast %2 : vector<1x16xf32> to vector<512x16xf32>
    %29 = arith.addf %27, %28 : vector<512x16xf32>
    %cst_13 = arith.constant 0.000000e+00 : f32
    %30 = vector.broadcast %cst_13 : f32 to vector<512x16xf32>
    %31 = arith.maximumf %29, %30 : vector<512x16xf32>
    %32 = vector.broadcast %3 : vector<1x16xf32> to vector<512x16xf32>
    %33 = arith.mulf %31, %32 : vector<512x16xf32>
    %34 = vector.broadcast %4 : vector<1x16xf32> to vector<512x16xf32>
    %35 = arith.addf %33, %34 : vector<512x16xf32>
    %36 = arith.maximumf %25, %35 : vector<512x16xf32>
    %c0_14 = arith.constant 0 : index
    %c0_15 = arith.constant 0 : index
    %37 = vector.load %arg4[%c0_14, %c0_15] : memref<512x75xbf16, #tpu.memory_space<vmem>>, vector<512x75xbf16>
    %cst_16 = arith.constant dense<0.000000e+00> : vector<512x16xf32>
    %38 = tpu.matmul %37, %0, %cst_16 {dimension_numbers = #tpu.dot_dimension_numbers<[1], [0], [0], [1], [0, 0, 1, 1], [], []>} : vector<512x75xbf16>, vector<75x16xbf16>, vector<512x16xf32> -> vector<512x16xf32>
    %39 = vector.broadcast %2 : vector<1x16xf32> to vector<512x16xf32>
    %40 = arith.addf %38, %39 : vector<512x16xf32>
    %cst_17 = arith.constant 0.000000e+00 : f32
    %41 = vector.broadcast %cst_17 : f32 to vector<512x16xf32>
    %42 = arith.maximumf %40, %41 : vector<512x16xf32>
    %43 = vector.broadcast %3 : vector<1x16xf32> to vector<512x16xf32>
    %44 = arith.mulf %42, %43 : vector<512x16xf32>
    %45 = vector.broadcast %4 : vector<1x16xf32> to vector<512x16xf32>
    %46 = arith.addf %44, %45 : vector<512x16xf32>
    %47 = arith.maximumf %36, %46 : vector<512x16xf32>
    %48 = arith.truncf %47 : vector<512x16xf32> to vector<512x16xbf16>
    %c0_18 = arith.constant 0 : index
    %c0_19 = arith.constant 0 : index
    %49 = vector.load %arg7[%c0_18, %c0_19] : memref<512x16xbf16, #tpu.memory_space<vmem>>, vector<512x16xbf16>
    tpu.vector_store %arg7[%c0_18, %c0_19], %48 {strides = array<i32>} : memref<512x16xbf16, #tpu.memory_space<vmem>>, vector<512x16xbf16>,
    return
  }
  func.func @transform_0(%arg0: i32) -> (i32, i32) {
    %c0_i32 = arith.constant 0 : i32
    %c0_i32_0 = arith.constant 0 : i32
    return %arg0, %c0_i32 : i32, i32
  }
  func.func @transform_1(%arg0: i32) -> (i32, i32) {
    %c0_i32 = arith.constant 0 : i32
    %c0_i32_0 = arith.constant 0 : i32
    return %arg0, %c0_i32 : i32, i32
  }
  func.func @transform_2(%arg0: i32) -> (i32, i32) {
    %c0_i32 = arith.constant 0 : i32
    %c0_i32_0 = arith.constant 0 : i32
    return %arg0, %c0_i32 : i32, i32
  }
  func.func @transform_3(%arg0: i32) -> (i32, i32) {
    %c0_i32 = arith.constant 0 : i32
    %c0_i32_0 = arith.constant 0 : i32
    return %arg0, %c0_i32 : i32, i32
  }
  func.func @transform_4(%arg0: i32) -> (i32, i32) {
    %c0_i32 = arith.constant 0 : i32
    %c0_i32_0 = arith.constant 0 : i32
    %c0_i32_1 = arith.constant 0 : i32
    return %c0_i32, %c0_i32_0 : i32, i32
  }
  func.func @transform_5(%arg0: i32) -> (i32, i32) {
    %c0_i32 = arith.constant 0 : i32
    %c0_i32_0 = arith.constant 0 : i32
    %c0_i32_1 = arith.constant 0 : i32
    return %c0_i32, %c0_i32_0 : i32, i32
  }
  func.func @transform_6(%arg0: i32) -> (i32, i32) {
    %c0_i32 = arith.constant 0 : i32
    %c0_i32_0 = arith.constant 0 : i32
    return %arg0, %c0_i32 : i32, i32
  }
}

module attributes {stable_mosaic.version = 11 : i64} {
  func.func @_conv_pool_kernel(%arg0: i32, %arg1: memref<320x144xbf16, #tpu.memory_space<vmem>>, %arg2: memref<320x144xbf16, #tpu.memory_space<vmem>>, %arg3: memref<320x144xbf16, #tpu.memory_space<vmem>>, %arg4: memref<320x144xbf16, #tpu.memory_space<vmem>>, %arg5: memref<144x32xbf16, #tpu.memory_space<vmem>>, %arg6: memref<8x32xf32, #tpu.memory_space<vmem>>, %arg7: memref<320x32xbf16, #tpu.memory_space<vmem>>) attributes {dimension_semantics = [#tpu.dimension_semantics<parallel>], iteration_bounds = array<i64: 4>, scalar_prefetch = 0 : i64, scratch_operands = 0 : i64, tpu.core_type = #tpu.core_type<tc>, window_params = [{transform_indices = @transform_0, window_bounds = array<i64: 320, 144>}, {transform_indices = @transform_1, window_bounds = array<i64: 320, 144>}, {transform_indices = @transform_2, window_bounds = array<i64: 320, 144>}, {transform_indices = @transform_3, window_bounds = array<i64: 320, 144>}, {pipeline_mode = #tpu.pipeline_mode<synchronous>, transform_indices = @transform_4, window_bounds = array<i64: 144, 32>}, {pipeline_mode = #tpu.pipeline_mode<synchronous>, transform_indices = @transform_5, window_bounds = array<i64: 8, 32>}, {transform_indices = @transform_6, window_bounds = array<i64: 320, 32>}]} {
    %c0 = arith.constant 0 : index
    %c0_0 = arith.constant 0 : index
    %0 = vector.load %arg5[%c0, %c0_0] : memref<144x32xbf16, #tpu.memory_space<vmem>>, vector<144x32xbf16>
    %c0_1 = arith.constant 0 : index
    %c0_2 = arith.constant 0 : index
    %1 = vector.load %arg6[%c0_1, %c0_2] : memref<8x32xf32, #tpu.memory_space<vmem>>, vector<8x32xf32>
    %2 = vector.extract_strided_slice %1 {offsets = [0, 0], sizes = [1, 32], strides = [1, 1]} : vector<8x32xf32> to vector<1x32xf32>
    %3 = vector.extract_strided_slice %1 {offsets = [1, 0], sizes = [1, 32], strides = [1, 1]} : vector<8x32xf32> to vector<1x32xf32>
    %4 = vector.extract_strided_slice %1 {offsets = [2, 0], sizes = [1, 32], strides = [1, 1]} : vector<8x32xf32> to vector<1x32xf32>
    %c0_3 = arith.constant 0 : index
    %c0_4 = arith.constant 0 : index
    %5 = vector.load %arg1[%c0_3, %c0_4] : memref<320x144xbf16, #tpu.memory_space<vmem>>, vector<320x144xbf16>
    %cst = arith.constant dense<0.000000e+00> : vector<320x32xf32>
    %6 = tpu.matmul %5, %0, %cst {dimension_numbers = #tpu.dot_dimension_numbers<[1], [0], [0], [1], [0, 0, 1, 1], [], []>} : vector<320x144xbf16>, vector<144x32xbf16>, vector<320x32xf32> -> vector<320x32xf32>
    %7 = vector.broadcast %2 : vector<1x32xf32> to vector<320x32xf32>
    %8 = arith.addf %6, %7 : vector<320x32xf32>
    %cst_5 = arith.constant 0.000000e+00 : f32
    %9 = vector.broadcast %cst_5 : f32 to vector<320x32xf32>
    %10 = arith.maximumf %8, %9 : vector<320x32xf32>
    %11 = vector.broadcast %3 : vector<1x32xf32> to vector<320x32xf32>
    %12 = arith.mulf %10, %11 : vector<320x32xf32>
    %13 = vector.broadcast %4 : vector<1x32xf32> to vector<320x32xf32>
    %14 = arith.addf %12, %13 : vector<320x32xf32>
    %c0_6 = arith.constant 0 : index
    %c0_7 = arith.constant 0 : index
    %15 = vector.load %arg2[%c0_6, %c0_7] : memref<320x144xbf16, #tpu.memory_space<vmem>>, vector<320x144xbf16>
    %cst_8 = arith.constant dense<0.000000e+00> : vector<320x32xf32>
    %16 = tpu.matmul %15, %0, %cst_8 {dimension_numbers = #tpu.dot_dimension_numbers<[1], [0], [0], [1], [0, 0, 1, 1], [], []>} : vector<320x144xbf16>, vector<144x32xbf16>, vector<320x32xf32> -> vector<320x32xf32>
    %17 = vector.broadcast %2 : vector<1x32xf32> to vector<320x32xf32>
    %18 = arith.addf %16, %17 : vector<320x32xf32>
    %cst_9 = arith.constant 0.000000e+00 : f32
    %19 = vector.broadcast %cst_9 : f32 to vector<320x32xf32>
    %20 = arith.maximumf %18, %19 : vector<320x32xf32>
    %21 = vector.broadcast %3 : vector<1x32xf32> to vector<320x32xf32>
    %22 = arith.mulf %20, %21 : vector<320x32xf32>
    %23 = vector.broadcast %4 : vector<1x32xf32> to vector<320x32xf32>
    %24 = arith.addf %22, %23 : vector<320x32xf32>
    %25 = arith.addf %14, %24 : vector<320x32xf32>
    %c0_10 = arith.constant 0 : index
    %c0_11 = arith.constant 0 : index
    %26 = vector.load %arg3[%c0_10, %c0_11] : memref<320x144xbf16, #tpu.memory_space<vmem>>, vector<320x144xbf16>
    %cst_12 = arith.constant dense<0.000000e+00> : vector<320x32xf32>
    %27 = tpu.matmul %26, %0, %cst_12 {dimension_numbers = #tpu.dot_dimension_numbers<[1], [0], [0], [1], [0, 0, 1, 1], [], []>} : vector<320x144xbf16>, vector<144x32xbf16>, vector<320x32xf32> -> vector<320x32xf32>
    %28 = vector.broadcast %2 : vector<1x32xf32> to vector<320x32xf32>
    %29 = arith.addf %27, %28 : vector<320x32xf32>
    %cst_13 = arith.constant 0.000000e+00 : f32
    %30 = vector.broadcast %cst_13 : f32 to vector<320x32xf32>
    %31 = arith.maximumf %29, %30 : vector<320x32xf32>
    %32 = vector.broadcast %3 : vector<1x32xf32> to vector<320x32xf32>
    %33 = arith.mulf %31, %32 : vector<320x32xf32>
    %34 = vector.broadcast %4 : vector<1x32xf32> to vector<320x32xf32>
    %35 = arith.addf %33, %34 : vector<320x32xf32>
    %36 = arith.addf %25, %35 : vector<320x32xf32>
    %c0_14 = arith.constant 0 : index
    %c0_15 = arith.constant 0 : index
    %37 = vector.load %arg4[%c0_14, %c0_15] : memref<320x144xbf16, #tpu.memory_space<vmem>>, vector<320x144xbf16>
    %cst_16 = arith.constant dense<0.000000e+00> : vector<320x32xf32>
    %38 = tpu.matmul %37, %0, %cst_16 {dimension_numbers = #tpu.dot_dimension_numbers<[1], [0], [0], [1], [0, 0, 1, 1], [], []>} : vector<320x144xbf16>, vector<144x32xbf16>, vector<320x32xf32> -> vector<320x32xf32>
    %39 = vector.broadcast %2 : vector<1x32xf32> to vector<320x32xf32>
    %40 = arith.addf %38, %39 : vector<320x32xf32>
    %cst_17 = arith.constant 0.000000e+00 : f32
    %41 = vector.broadcast %cst_17 : f32 to vector<320x32xf32>
    %42 = arith.maximumf %40, %41 : vector<320x32xf32>
    %43 = vector.broadcast %3 : vector<1x32xf32> to vector<320x32xf32>
    %44 = arith.mulf %42, %43 : vector<320x32xf32>
    %45 = vector.broadcast %4 : vector<1x32xf32> to vector<320x32xf32>
    %46 = arith.addf %44, %45 : vector<320x32xf32>
    %47 = arith.addf %36, %46 : vector<320x32xf32>
    %cst_18 = arith.constant 2.500000e-01 : f32
    %48 = vector.broadcast %cst_18 : f32 to vector<320x32xf32>
    %49 = arith.mulf %47, %48 : vector<320x32xf32>
    %50 = arith.truncf %49 : vector<320x32xf32> to vector<320x32xbf16>
    %c0_19 = arith.constant 0 : index
    %c0_20 = arith.constant 0 : index
    %51 = vector.load %arg7[%c0_19, %c0_20] : memref<320x32xbf16, #tpu.memory_space<vmem>>, vector<320x32xbf16>
    tpu.vector_store %arg7[%c0_19, %c0_20], %50 {strides = array<i32>} : memref<320x32xbf16, #tpu.memory_space<vmem>>, vector<320x32xbf16>,
    return
  }
  func.func @transform_0(%arg0: i32) -> (i32, i32) {
    %c0_i32 = arith.constant 0 : i32
    %c0_i32_0 = arith.constant 0 : i32
    return %arg0, %c0_i32 : i32, i32
  }
  func.func @transform_1(%arg0: i32) -> (i32, i32) {
    %c0_i32 = arith.constant 0 : i32
    %c0_i32_0 = arith.constant 0 : i32
    return %arg0, %c0_i32 : i32, i32
  }
  func.func @transform_2(%arg0: i32) -> (i32, i32) {
    %c0_i32 = arith.constant 0 : i32
    %c0_i32_0 = arith.constant 0 : i32
    return %arg0, %c0_i32 : i32, i32
  }
  func.func @transform_3(%arg0: i32) -> (i32, i32) {
    %c0_i32 = arith.constant 0 : i32
    %c0_i32_0 = arith.constant 0 : i32
    return %arg0, %c0_i32 : i32, i32
  }
  func.func @transform_4(%arg0: i32) -> (i32, i32) {
    %c0_i32 = arith.constant 0 : i32
    %c0_i32_0 = arith.constant 0 : i32
    %c0_i32_1 = arith.constant 0 : i32
    return %c0_i32, %c0_i32_0 : i32, i32
  }
  func.func @transform_5(%arg0: i32) -> (i32, i32) {
    %c0_i32 = arith.constant 0 : i32
    %c0_i32_0 = arith.constant 0 : i32
    %c0_i32_1 = arith.constant 0 : i32
    return %c0_i32, %c0_i32_0 : i32, i32
  }
  func.func @transform_6(%arg0: i32) -> (i32, i32) {
    %c0_i32 = arith.constant 0 : i32
    %c0_i32_0 = arith.constant 0 : i32
    return %arg0, %c0_i32 : i32, i32
  }
}

module attributes {stable_mosaic.version = 11 : i64} {
  func.func @_lin1_kernel(%arg0: i32, %arg1: i32, %arg2: memref<2x2048xbf16, #tpu.memory_space<vmem>>, %arg3: memref<2048x512xbf16, #tpu.memory_space<vmem>>, %arg4: memref<8x512xf32, #tpu.memory_space<vmem>>, %arg5: memref<2x512xbf16, #tpu.memory_space<vmem>>, %arg6: memref<2x512xf32, #tpu.memory_space<vmem>>) attributes {dimension_semantics = [#tpu.dimension_semantics<parallel>, #tpu.dimension_semantics<arbitrary>], iteration_bounds = array<i64: 1, 10>, scalar_prefetch = 0 : i64, scratch_operands = 1 : i64, tpu.core_type = #tpu.core_type<tc>, window_params = [{transform_indices = @transform_0, window_bounds = array<i64: 2, 2048>}, {transform_indices = @transform_1, window_bounds = array<i64: 2048, 512>}, {transform_indices = @transform_2, window_bounds = array<i64: 8, 512>}, {transform_indices = @transform_3, window_bounds = array<i64: 2, 512>}]} {
    %c0_i32 = arith.constant 0 : i32
    %0 = arith.cmpi eq, %arg1, %c0_i32 : i32
    %1 = arith.extui %0 : i1 to i32
    %c0_i32_0 = arith.constant 0 : i32
    %2 = arith.cmpi ne, %1, %c0_i32_0 : i32
    scf.if %2 {
      %cst_9 = arith.constant 0.000000e+00 : f32
      %12 = vector.broadcast %cst_9 : f32 to vector<2x512xf32>
      %c0_10 = arith.constant 0 : index
      %c0_11 = arith.constant 0 : index
      %13 = vector.load %arg6[%c0_10, %c0_11] : memref<2x512xf32, #tpu.memory_space<vmem>>, vector<2x512xf32>
      tpu.vector_store %arg6[%c0_10, %c0_11], %12 {strides = array<i32>} : memref<2x512xf32, #tpu.memory_space<vmem>>, vector<2x512xf32>,
    } else {
    }
    %c0 = arith.constant 0 : index
    %c0_1 = arith.constant 0 : index
    %3 = vector.load %arg6[%c0, %c0_1] : memref<2x512xf32, #tpu.memory_space<vmem>>, vector<2x512xf32>
    %c0_2 = arith.constant 0 : index
    %c0_3 = arith.constant 0 : index
    %4 = vector.load %arg2[%c0_2, %c0_3] : memref<2x2048xbf16, #tpu.memory_space<vmem>>, vector<2x2048xbf16>
    %c0_4 = arith.constant 0 : index
    %c0_5 = arith.constant 0 : index
    %5 = vector.load %arg3[%c0_4, %c0_5] : memref<2048x512xbf16, #tpu.memory_space<vmem>>, vector<2048x512xbf16>
    %cst = arith.constant dense<0.000000e+00> : vector<2x512xf32>
    %6 = tpu.matmul %4, %5, %cst {dimension_numbers = #tpu.dot_dimension_numbers<[1], [0], [0], [1], [0, 0, 1, 1], [], []>} : vector<2x2048xbf16>, vector<2048x512xbf16>, vector<2x512xf32> -> vector<2x512xf32>
    %7 = arith.addf %3, %6 : vector<2x512xf32>
    %c0_6 = arith.constant 0 : index
    %c0_7 = arith.constant 0 : index
    %8 = vector.load %arg6[%c0_6, %c0_7] : memref<2x512xf32, #tpu.memory_space<vmem>>, vector<2x512xf32>
    tpu.vector_store %arg6[%c0_6, %c0_7], %7 {strides = array<i32>} : memref<2x512xf32, #tpu.memory_space<vmem>>, vector<2x512xf32>,
    %c9_i32 = arith.constant 9 : i32
    %9 = arith.cmpi eq, %arg1, %c9_i32 : i32
    %10 = arith.extui %9 : i1 to i32
    %c0_i32_8 = arith.constant 0 : i32
    %11 = arith.cmpi ne, %10, %c0_i32_8 : i32
    scf.if %11 {
      %c0_9 = arith.constant 0 : index
      %c0_10 = arith.constant 0 : index
      %12 = vector.load %arg4[%c0_9, %c0_10] : memref<8x512xf32, #tpu.memory_space<vmem>>, vector<8x512xf32>
      %c0_11 = arith.constant 0 : index
      %c0_12 = arith.constant 0 : index
      %13 = vector.load %arg6[%c0_11, %c0_12] : memref<2x512xf32, #tpu.memory_space<vmem>>, vector<2x512xf32>
      %14 = vector.extract_strided_slice %12 {offsets = [0, 0], sizes = [1, 512], strides = [1, 1]} : vector<8x512xf32> to vector<1x512xf32>
      %15 = vector.broadcast %14 : vector<1x512xf32> to vector<2x512xf32>
      %16 = arith.addf %13, %15 : vector<2x512xf32>
      %cst_13 = arith.constant 0.000000e+00 : f32
      %17 = vector.broadcast %cst_13 : f32 to vector<2x512xf32>
      %18 = arith.maximumf %16, %17 : vector<2x512xf32>
      %19 = vector.extract_strided_slice %12 {offsets = [1, 0], sizes = [1, 512], strides = [1, 1]} : vector<8x512xf32> to vector<1x512xf32>
      %20 = vector.broadcast %19 : vector<1x512xf32> to vector<2x512xf32>
      %21 = arith.mulf %18, %20 : vector<2x512xf32>
      %22 = vector.extract_strided_slice %12 {offsets = [2, 0], sizes = [1, 512], strides = [1, 1]} : vector<8x512xf32> to vector<1x512xf32>
      %23 = vector.broadcast %22 : vector<1x512xf32> to vector<2x512xf32>
      %24 = arith.addf %21, %23 : vector<2x512xf32>
      %25 = arith.truncf %24 : vector<2x512xf32> to vector<2x512xbf16>
      %c0_14 = arith.constant 0 : index
      %c0_15 = arith.constant 0 : index
      %26 = vector.load %arg5[%c0_14, %c0_15] : memref<2x512xbf16, #tpu.memory_space<vmem>>, vector<2x512xbf16>
      tpu.vector_store %arg5[%c0_14, %c0_15], %25 {strides = array<i32>} : memref<2x512xbf16, #tpu.memory_space<vmem>>, vector<2x512xbf16>,
    } else {
    }
    return
  }
  func.func @transform_0(%arg0: i32, %arg1: i32) -> (i32, i32) {
    %c0_i32 = arith.constant 0 : i32
    %c0_i32_0 = arith.constant 0 : i32
    return %c0_i32, %arg1 : i32, i32
  }
  func.func @transform_1(%arg0: i32, %arg1: i32) -> (i32, i32) {
    %c0_i32 = arith.constant 0 : i32
    return %arg1, %arg0 : i32, i32
  }
  func.func @transform_2(%arg0: i32, %arg1: i32) -> (i32, i32) {
    %c0_i32 = arith.constant 0 : i32
    %c0_i32_0 = arith.constant 0 : i32
    return %c0_i32, %arg0 : i32, i32
  }
  func.func @transform_3(%arg0: i32, %arg1: i32) -> (i32, i32) {
    %c0_i32 = arith.constant 0 : i32
    %c0_i32_0 = arith.constant 0 : i32
    return %c0_i32, %arg0 : i32, i32
  }
}

module attributes {stable_mosaic.version = 11 : i64} {
  func.func @_mlp_tail_kernel(%arg0: memref<2x512xbf16, #tpu.memory_space<vmem>>, %arg1: memref<512x512xbf16, #tpu.memory_space<vmem>>, %arg2: memref<8x512xf32, #tpu.memory_space<vmem>>, %arg3: memref<512x512xbf16, #tpu.memory_space<vmem>>, %arg4: memref<8x512xf32, #tpu.memory_space<vmem>>, %arg5: memref<512x128xbf16, #tpu.memory_space<vmem>>, %arg6: memref<8x128xf32, #tpu.memory_space<vmem>>, %arg7: memref<2x128xf32, #tpu.memory_space<vmem>>) attributes {dimension_semantics = [], scalar_prefetch = 0 : i64, scratch_operands = 0 : i64, tpu.core_type = #tpu.core_type<tc>} {
    %c0 = arith.constant 0 : index
    %c0_0 = arith.constant 0 : index
    %0 = vector.load %arg0[%c0, %c0_0] : memref<2x512xbf16, #tpu.memory_space<vmem>>, vector<2x512xbf16>
    %c0_1 = arith.constant 0 : index
    %c0_2 = arith.constant 0 : index
    %1 = vector.load %arg2[%c0_1, %c0_2] : memref<8x512xf32, #tpu.memory_space<vmem>>, vector<8x512xf32>
    %c0_3 = arith.constant 0 : index
    %c0_4 = arith.constant 0 : index
    %2 = vector.load %arg1[%c0_3, %c0_4] : memref<512x512xbf16, #tpu.memory_space<vmem>>, vector<512x512xbf16>
    %cst = arith.constant dense<0.000000e+00> : vector<2x512xf32>
    %3 = tpu.matmul %0, %2, %cst {dimension_numbers = #tpu.dot_dimension_numbers<[1], [0], [0], [1], [0, 0, 1, 1], [], []>} : vector<2x512xbf16>, vector<512x512xbf16>, vector<2x512xf32> -> vector<2x512xf32>
    %4 = vector.extract_strided_slice %1 {offsets = [0, 0], sizes = [1, 512], strides = [1, 1]} : vector<8x512xf32> to vector<1x512xf32>
    %5 = vector.broadcast %4 : vector<1x512xf32> to vector<2x512xf32>
    %6 = arith.addf %3, %5 : vector<2x512xf32>
    %cst_5 = arith.constant 0.000000e+00 : f32
    %7 = vector.broadcast %cst_5 : f32 to vector<2x512xf32>
    %8 = arith.maximumf %6, %7 : vector<2x512xf32>
    %9 = vector.extract_strided_slice %1 {offsets = [1, 0], sizes = [1, 512], strides = [1, 1]} : vector<8x512xf32> to vector<1x512xf32>
    %10 = vector.broadcast %9 : vector<1x512xf32> to vector<2x512xf32>
    %11 = arith.mulf %8, %10 : vector<2x512xf32>
    %12 = vector.extract_strided_slice %1 {offsets = [2, 0], sizes = [1, 512], strides = [1, 1]} : vector<8x512xf32> to vector<1x512xf32>
    %13 = vector.broadcast %12 : vector<1x512xf32> to vector<2x512xf32>
    %14 = arith.addf %11, %13 : vector<2x512xf32>
    %15 = arith.truncf %14 : vector<2x512xf32> to vector<2x512xbf16>
    %c0_6 = arith.constant 0 : index
    %c0_7 = arith.constant 0 : index
    %16 = vector.load %arg4[%c0_6, %c0_7] : memref<8x512xf32, #tpu.memory_space<vmem>>, vector<8x512xf32>
    %c0_8 = arith.constant 0 : index
    %c0_9 = arith.constant 0 : index
    %17 = vector.load %arg3[%c0_8, %c0_9] : memref<512x512xbf16, #tpu.memory_space<vmem>>, vector<512x512xbf16>
    %cst_10 = arith.constant dense<0.000000e+00> : vector<2x512xf32>
    %18 = tpu.matmul %15, %17, %cst_10 {dimension_numbers = #tpu.dot_dimension_numbers<[1], [0], [0], [1], [0, 0, 1, 1], [], []>} : vector<2x512xbf16>, vector<512x512xbf16>, vector<2x512xf32> -> vector<2x512xf32>
    %19 = vector.extract_strided_slice %16 {offsets = [0, 0], sizes = [1, 512], strides = [1, 1]} : vector<8x512xf32> to vector<1x512xf32>
    %20 = vector.broadcast %19 : vector<1x512xf32> to vector<2x512xf32>
    %21 = arith.addf %18, %20 : vector<2x512xf32>
    %cst_11 = arith.constant 0.000000e+00 : f32
    %22 = vector.broadcast %cst_11 : f32 to vector<2x512xf32>
    %23 = arith.maximumf %21, %22 : vector<2x512xf32>
    %24 = vector.extract_strided_slice %16 {offsets = [1, 0], sizes = [1, 512], strides = [1, 1]} : vector<8x512xf32> to vector<1x512xf32>
    %25 = vector.broadcast %24 : vector<1x512xf32> to vector<2x512xf32>
    %26 = arith.mulf %23, %25 : vector<2x512xf32>
    %27 = vector.extract_strided_slice %16 {offsets = [2, 0], sizes = [1, 512], strides = [1, 1]} : vector<8x512xf32> to vector<1x512xf32>
    %28 = vector.broadcast %27 : vector<1x512xf32> to vector<2x512xf32>
    %29 = arith.addf %26, %28 : vector<2x512xf32>
    %30 = arith.truncf %29 : vector<2x512xf32> to vector<2x512xbf16>
    %c0_12 = arith.constant 0 : index
    %c0_13 = arith.constant 0 : index
    %31 = vector.load %arg5[%c0_12, %c0_13] : memref<512x128xbf16, #tpu.memory_space<vmem>>, vector<512x128xbf16>
    %cst_14 = arith.constant dense<0.000000e+00> : vector<2x128xf32>
    %32 = tpu.matmul %30, %31, %cst_14 {dimension_numbers = #tpu.dot_dimension_numbers<[1], [0], [0], [1], [0, 0, 1, 1], [], []>} : vector<2x512xbf16>, vector<512x128xbf16>, vector<2x128xf32> -> vector<2x128xf32>
    %c0_15 = arith.constant 0 : index
    %c0_16 = arith.constant 0 : index
    %33 = vector.load %arg6[%c0_15, %c0_16] : memref<8x128xf32, #tpu.memory_space<vmem>>, vector<1x128xf32>
    %34 = vector.broadcast %33 : vector<1x128xf32> to vector<2x128xf32>
    %35 = arith.addf %32, %34 : vector<2x128xf32>
    %36 = arith.negf %35 : vector<2x128xf32>
    %37 = math.exp %36 : vector<2x128xf32>
    %cst_17 = arith.constant 1.000000e+00 : f32
    %38 = vector.broadcast %cst_17 : f32 to vector<2x128xf32>
    %39 = arith.addf %38, %37 : vector<2x128xf32>
    %40 = arith.divf %38, %39 : vector<2x128xf32>
    %c0_18 = arith.constant 0 : index
    %c0_19 = arith.constant 0 : index
    %41 = vector.load %arg7[%c0_18, %c0_19] : memref<2x128xf32, #tpu.memory_space<vmem>>, vector<2x128xf32>
    tpu.vector_store %arg7[%c0_18, %c0_19], %40 {strides = array<i32>} : memref<2x128xf32, #tpu.memory_space<vmem>>, vector<2x128xf32>,
    return
  }
}

</mosaic_0001>

<llo_original>
// kernel: cnn_forward.4
$region0: #{cnn_forward.4}
  #allocation0 [shape = 'u32[]', space=smem, size = 0x4, offset = 0x4, fixed_abs, tag = 'smem constant byte address 0x4 - core index']
  #allocation1 [shape = 'u32[72,128]{1,0:T(1,128)}', space=vmem, size = 0x9000, scoped, tag = 'internal scratch']
  %s0 = inlined_call_operand.vmem [shape: bf16[5120,75], index: 0, kind: input, shape index: {}]
  %s1 = inlined_call_operand.vmem [shape: bf16[5120,75], index: 1, kind: input, shape index: {}]
  %s2 = inlined_call_operand.vmem [shape: bf16[5120,75], index: 2, kind: input, shape index: {}]
  %s3 = inlined_call_operand.vmem [shape: bf16[5120,75], index: 3, kind: input, shape index: {}]
  %s4 = inlined_call_operand.vmem [shape: bf16[75,16], index: 4, kind: input, shape index: {}]
  %s5 = inlined_call_operand.vmem [shape: f32[8,16], index: 5, kind: input, shape index: {}]
  %s6 = inlined_call_operand.vmem [shape: bf16[5120,16], index: 6, kind: output, shape index: {}]
  %s7 = sld [smem:[#allocation0]]
  $region57: #{cnn_forward.4} parent=0
    _
  %s9 = ssub.s32 1, %s7
  %s10 = scalar_select 0, %s9, %s7
  loop: start=0, step=1, limit=12
  $region2: #{cnn_forward.4} parent=0 // loop_pre_header
    _
  $region3: #{cnn_forward.4} parent=0 // loop_header
    %s12 = sphi 0, %s16
    %p13 = scmp.ge.s32.totalorder %s12, 12
    %s22 = sphi 0, %s24
    %s25 = sphi 0, %s22
    %s26 = sphi 0, %s25
    %s42 = sphi 0, %s26
    %s48 = sphi 0, %s50
    %s51 = sphi 0, %s48
    %s52 = sphi 0, %s51
    %s68 = sphi 0, %s52
    %s74 = sphi 0, %s76
    %s77 = sphi 0, %s74
    %s78 = sphi 0, %s77
    %s94 = sphi 0, %s78
    %s100 = sphi 0, %s102
    %s103 = sphi 0, %s100
    %s104 = sphi 0, %s103
    %s120 = sphi 0, %s104
    %s124 = sphi 0, %s124
    %s126 = sphi 0, %s124
    %s127 = sphi 0, %s126
    %s141 = sphi 0, %s127
    %s145 = sphi 0, %s145
    %s147 = sphi 0, %s145
    %s148 = sphi 0, %s147
    %s162 = sphi 0, %s148
    %s168 = sphi 0, %s170
    %s171 = sphi 0, %s168
    %s172 = sphi 0, %s171
    %s188 = sphi 0, %s172
  $region4: #{cnn_forward.4} parent=0 // loop_header_branch
    %15 = sbr.rel (%p13) target = $region8
  $region5: #{cnn_forward.4} parent=0 // loop_body
    %s17 = ssub.s32 %s12, 1
    %s18 = ssub.s32 %s12, 2
    %s19 = sadd.s32 %s12, 1
    %s20 = ssub.s32 %s12, %s19
    %p21 = scmp.eq.s32.totalorder %s20, 0
    %s23 = sadd.s32 %s22, 1
    %s24 = scalar_select %p21, %s22, %s23
    %p27 = pneg %p21
    %p28 = scmp.eq.s32.totalorder %s12, 9
    %p29 = por %p27, %p28
    %p30 = scmp.ne.s32.totalorder %s22, %s25
    %p31 = scmp.eq.s32.totalorder %s12, 0
    %p32 = por %p30, %p31
    %p33 = scmp.ne.s32.totalorder %s22, %s25
    %p34 = scmp.eq.s32.totalorder %s17, 9
    %p35 = por %p33, %p34
    %p36 = scmp.ne.s32.totalorder %s25, %s26
    %p37 = scmp.eq.s32.totalorder %s17, 0
    %p38 = por %p36, %p37
    %p39 = scmp.ne.s32.totalorder %s25, %s26
    %p40 = scmp.eq.s32.totalorder %s18, 9
    %p41 = por %p39, %p40
    %p43 = scmp.ne.s32.totalorder %s26, %s42
    %p44 = scmp.eq.s32.totalorder %s18, 0
    %p45 = por %p43, %p44
    %s46 = ssub.s32 %s12, %s19
    %p47 = scmp.eq.s32.totalorder %s46, 0
    %s49 = sadd.s32 %s48, 1
    %s50 = scalar_select %p47, %s48, %s49
    %p53 = pneg %p47
    %p54 = scmp.eq.s32.totalorder %s12, 9
    %p55 = por %p53, %p54
    %p56 = scmp.ne.s32.totalorder %s48, %s51
    %p57 = scmp.eq.s32.totalorder %s12, 0
    %p58 = por %p56, %p57
    %p59 = scmp.ne.s32.totalorder %s48, %s51
    %p60 = scmp.eq.s32.totalorder %s17, 9
    %p61 = por %p59, %p60
    %p62 = scmp.ne.s32.totalorder %s51, %s52
    %p63 = scmp.eq.s32.totalorder %s17, 0
    %p64 = por %p62, %p63
    %p65 = scmp.ne.s32.totalorder %s51, %s52
    %p66 = scmp.eq.s32.totalorder %s18, 9
    %p67 = por %p65, %p66
    %p69 = scmp.ne.s32.totalorder %s52, %s68
    %p70 = scmp.eq.s32.totalorder %s18, 0
    %p71 = por %p69, %p70
    %s72 = ssub.s32 %s12, %s19
    %p73 = scmp.eq.s32.totalorder %s72, 0
    %s75 = sadd.s32 %s74, 1
    %s76 = scalar_select %p73, %s74, %s75
    %p79 = pneg %p73
    %p80 = scmp.eq.s32.totalorder %s12, 9
    %p81 = por %p79, %p80
    %p82 = scmp.ne.s32.totalorder %s74, %s77
    %p83 = scmp.eq.s32.totalorder %s12, 0
    %p84 = por %p82, %p83
    %p85 = scmp.ne.s32.totalorder %s74, %s77
    %p86 = scmp.eq.s32.totalorder %s17, 9
    %p87 = por %p85, %p86
    %p88 = scmp.ne.s32.totalorder %s77, %s78
    %p89 = scmp.eq.s32.totalorder %s17, 0
    %p90 = por %p88, %p89
    %p91 = scmp.ne.s32.totalorder %s77, %s78
    %p92 = scmp.eq.s32.totalorder %s18, 9
    %p93 = por %p91, %p92
    %p95 = scmp.ne.s32.totalorder %s78, %s94
    %p96 = scmp.eq.s32.totalorder %s18, 0
    %p97 = por %p95, %p96
    %s98 = ssub.s32 %s12, %s19
    %p99 = scmp.eq.s32.totalorder %s98, 0
    %s101 = sadd.s32 %s100, 1
    %s102 = scalar_select %p99, %s100, %s101
    %p105 = pneg %p99
    %p106 = scmp.eq.s32.totalorder %s12, 9
    %p107 = por %p105, %p106
    %p108 = scmp.ne.s32.totalorder %s100, %s103
    %p109 = scmp.eq.s32.totalorder %s12, 0
    %p110 = por %p108, %p109
    %p111 = scmp.ne.s32.totalorder %s100, %s103
    %p112 = scmp.eq.s32.totalorder %s17, 9
    %p113 = por %p111, %p112
    %p114 = scmp.ne.s32.totalorder %s103, %s104
    %p115 = scmp.eq.s32.totalorder %s17, 0
    %p116 = por %p114, %p115
    %p117 = scmp.ne.s32.totalorder %s103, %s104
    %p118 = scmp.eq.s32.totalorder %s18, 9
    %p119 = por %p117, %p118
    %p121 = scmp.ne.s32.totalorder %s104, %s120
    %p122 = scmp.eq.s32.totalorder %s18, 0
    %p123 = por %p121, %p122
    %s125 = sadd.s32 %s124, 1
    %p128 = scmp.eq.s32.totalorder %s12, 9
    %p129 = scmp.ne.s32.totalorder %s124, %s126
    %p130 = scmp.eq.s32.totalorder %s12, 0
    %p131 = por %p129, %p130
    %p132 = scmp.ne.s32.totalorder %s124, %s126
    %p133 = scmp.eq.s32.totalorder %s17, 9
    %p134 = por %p132, %p133
    %p135 = scmp.ne.s32.totalorder %s126, %s127
    %p136 = scmp.eq.s32.totalorder %s17, 0
    %p137 = por %p135, %p136
    %p138 = scmp.ne.s32.totalorder %s126, %s127
    %p139 = scmp.eq.s32.totalorder %s18, 9
    %p140 = por %p138, %p139
    %p142 = scmp.ne.s32.totalorder %s127, %s141
    %p143 = scmp.eq.s32.totalorder %s18, 0
    %p144 = por %p142, %p143
    %s146 = sadd.s32 %s145, 1
    %p149 = scmp.eq.s32.totalorder %s12, 9
    %p150 = scmp.ne.s32.totalorder %s145, %s147
    %p151 = scmp.eq.s32.totalorder %s12, 0
    %p152 = por %p150, %p151
    %p153 = scmp.ne.s32.totalorder %s145, %s147
    %p154 = scmp.eq.s32.totalorder %s17, 9
    %p155 = por %p153, %p154
    %p156 = scmp.ne.s32.totalorder %s147, %s148
    %p157 = scmp.eq.s32.totalorder %s17, 0
    %p158 = por %p156, %p157
    %p159 = scmp.ne.s32.totalorder %s147, %s148
    %p160 = scmp.eq.s32.totalorder %s18, 9
    %p161 = por %p159, %p160
    %p163 = scmp.ne.s32.totalorder %s148, %s162
    %p164 = scmp.eq.s32.totalorder %s18, 0
    %p165 = por %p163, %p164
    %s166 = ssub.s32 %s12, %s19
    %p167 = scmp.eq.s32.totalorder %s166, 0
    %s169 = sadd.s32 %s168, 1
    %s170 = scalar_select %p167, %s168, %s169
    %p173 = pneg %p167
    %p174 = scmp.eq.s32.totalorder %s12, 9
    %p175 = por %p173, %p174
    %p176 = scmp.ne.s32.totalorder %s168, %s171
    %p177 = scmp.eq.s32.totalorder %s12, 0
    %p178 = por %p176, %p177
    %p179 = scmp.ne.s32.totalorder %s168, %s171
    %p180 = scmp.eq.s32.totalorder %s17, 9
    %p181 = por %p179, %p180
    %p182 = scmp.ne.s32.totalorder %s171, %s172
    %p183 = scmp.eq.s32.totalorder %s17, 0
    %p184 = por %p182, %p183
    %p185 = scmp.ne.s32.totalorder %s171, %s172
    %p186 = scmp.eq.s32.totalorder %s18, 9
    %p187 = por %p185, %p186
    %p189 = scmp.ne.s32.totalorder %s172, %s188
    %p190 = scmp.eq.s32.totalorder %s18, 0
    %p191 = por %p189, %p190
    %p192 = scmp.le.s32.totalorder 1, %s12
    %p193 = scmp.lt.s32.totalorder %s12, 11
    %p194 = pnand %p192, %p193
    %p195 = pneg %p194
    // Predicated region
    $region9: #{cnn_forward.4} parent=5 // pred_check
      _
    $region10: #{cnn_forward.4} parent=5 // pred_check_branch
      %197 = sbr.rel (%p194) target = $region12
    $region11: #{cnn_forward.4} parent=5 // pred_region
      %s198 = ssub.s32 %s12, 1
      // Predicated region
      $region13: #{cnn_forward.4} parent=11 // pred_check
        %p199 = pneg %p137
      $region14: #{cnn_forward.4} parent=11 // pred_check_branch
        %201 = sbr.rel (%p199) target = $region16
      $region15: #{cnn_forward.4} parent=11 // pred_region
        _
      $region16: #{cnn_forward.4} parent=11 // pred_fallthru
        _
      // Predicated region
      $region17: #{cnn_forward.4} parent=11 // pred_check
        %p202 = pneg %p158
      $region18: #{cnn_forward.4} parent=11 // pred_check_branch
        %204 = sbr.rel (%p202) target = $region20
      $region19: #{cnn_forward.4} parent=11 // pred_region
        _
      $region20: #{cnn_forward.4} parent=11 // pred_fallthru
        _
    $region12: #{cnn_forward.4} parent=5 // pred_fallthru
      _
    %p205 = scmp.lt.s32.totalorder %s12, 10
    // Predicated region
    $region21: #{cnn_forward.4} parent=5 // pred_check
      %p206 = pneg %p205
    $region22: #{cnn_forward.4} parent=5 // pred_check_branch
      %208 = sbr.rel (%p206) target = $region24
    $region23: #{cnn_forward.4} parent=5 // pred_region
      // Predicated region
      $region25: #{cnn_forward.4} parent=23 // pred_check
        %p209 = pneg %p32
      $region26: #{cnn_forward.4} parent=23 // pred_check_branch
        %211 = sbr.rel (%p209) target = $region28
      $region27: #{cnn_forward.4} parent=23 // pred_region
        %s212 = smul.u32 64, %s12
        %p213 = scmp.lt.s32.totalorder %s212, 639
        %s214 = scalar_select %p213, %s212, 639
        %s215 = smul.addr %s214, 4
        %s216 = scalar_lea.vmem %s0, %s215
        %s217 = smul.u32 64, %s12
      $region28: #{cnn_forward.4} parent=23 // pred_fallthru
        _
      // Predicated region
      $region29: #{cnn_forward.4} parent=23 // pred_check
        %p218 = pneg %p58
      $region30: #{cnn_forward.4} parent=23 // pred_check_branch
        %220 = sbr.rel (%p218) target = $region32
      $region31: #{cnn_forward.4} parent=23 // pred_region
        %s221 = smul.u32 64, %s12
        %p222 = scmp.lt.s32.totalorder %s221, 639
        %s223 = scalar_select %p222, %s221, 639
        %s224 = smul.addr %s223, 4
        %s225 = scalar_lea.vmem %s1, %s224
        %s226 = smul.u32 64, %s12
      $region32: #{cnn_forward.4} parent=23 // pred_fallthru
        _
      // Predicated region
      $region33: #{cnn_forward.4} parent=23 // pred_check
        %p227 = pneg %p84
      $region34: #{cnn_forward.4} parent=23 // pred_check_branch
        %229 = sbr.rel (%p227) target = $region36
      $region35: #{cnn_forward.4} parent=23 // pred_region
        %s230 = smul.u32 64, %s12
        %p231 = scmp.lt.s32.totalorder %s230, 639
        %s232 = scalar_select %p231, %s230, 639
        %s233 = smul.addr %s232, 4
        %s234 = scalar_lea.vmem %s2, %s233
        %s235 = smul.u32 64, %s12
      $region36: #{cnn_forward.4} parent=23 // pred_fallthru
        _
      // Predicated region
      $region37: #{cnn_forward.4} parent=23 // pred_check
        %p236 = pneg %p110
      $region38: #{cnn_forward.4} parent=23 // pred_check_branch
        %238 = sbr.rel (%p236) target = $region40
      $region39: #{cnn_forward.4} parent=23 // pred_region
        %s239 = smul.u32 64, %s12
        %p240 = scmp.lt.s32.totalorder %s239, 639
        %s241 = scalar_select %p240, %s239, 639
        %s242 = smul.addr %s241, 4
        %s243 = scalar_lea.vmem %s3, %s242
        %s244 = smul.u32 64, %s12
      $region40: #{cnn_forward.4} parent=23 // pred_fallthru
        _
    $region24: #{cnn_forward.4} parent=5 // pred_fallthru
      _
    %p245 = scmp.le.s32.totalorder 1, %s12
    %p246 = scmp.lt.s32.totalorder %s12, 11
    %p247 = pnand %p245, %p246
    %p248 = pneg %p247
    // Predicated region
    $region41: #{cnn_forward.4} parent=5 // pred_check
      _
    $region42: #{cnn_forward.4} parent=5 // pred_check_branch
      %250 = sbr.rel (%p247) target = $region44
    $region43: #{cnn_forward.4} parent=5 // pred_region
      %s251 = ssub.s32 %s12, 1
      %s252 = smul.u32 64, %s17
      %p253 = scmp.lt.s32.totalorder %s252, 639
      %s254 = scalar_select %p253, %s252, 639
      %s255 = smul.addr %s254, 4
      %s256 = scalar_lea.vmem %s0, %s255
      %p257 = pneg %p38
      %p258 = pneg %p35
      %s259 = smul.u32 64, %s17
      %p260 = scmp.lt.s32.totalorder %s259, 639
      %s261 = scalar_select %p260, %s259, 639
      %s262 = smul.addr %s261, 4
      %s263 = scalar_lea.vmem %s1, %s262
      %p264 = pneg %p64
      %p265 = pneg %p61
      %s266 = smul.u32 64, %s17
      %p267 = scmp.lt.s32.totalorder %s266, 639
      %s268 = scalar_select %p267, %s266, 639
      %s269 = smul.addr %s268, 4
      %s270 = scalar_lea.vmem %s2, %s269
      %p271 = pneg %p90
      %p272 = pneg %p87
      %s273 = smul.u32 64, %s17
      %p274 = scmp.lt.s32.totalorder %s273, 639
      %s275 = scalar_select %p274, %s273, 639
      %s276 = smul.addr %s275, 4
      %s277 = scalar_lea.vmem %s3, %s276
      %p278 = pneg %p116
      %p279 = pneg %p113
      %p280 = pneg %p137
      %p281 = pneg %p134
      %p282 = pneg %p158
      %p283 = pneg %p155
      %p284 = pneg %p184
      %p285 = pneg %p181
      %s286 = smul.u32 64, %s17
      %p287 = scmp.lt.s32.totalorder %s286, 639
      %s288 = scalar_select %p287, %s286, 639
      %s289 = smul.addr %s288, 4
      %s290 = scalar_lea.vmem %s6, %s289
      %s291 = smul.u32 64, %s17
      %p292 = scmp.lt.s32.totalorder %s291, 639
      %s293 = scalar_select %p292, %s291, 639
      %s294 = smul.addr %s293, 4
      %s295 = scalar_lea.vmem %s0, %s294
      %s296 = smul.u32 64, %s17
      %s297 = smul.u32 64, %s17
      %p298 = scmp.lt.s32.totalorder %s297, 639
      %s299 = scalar_select %p298, %s297, 639
      %s300 = smul.addr %s299, 4
      %s301 = scalar_lea.vmem %s1, %s300
      %s302 = smul.u32 64, %s17
      %s303 = smul.u32 64, %s17
      %p304 = scmp.lt.s32.totalorder %s303, 639
      %s305 = scalar_select %p304, %s303, 639
      %s306 = smul.addr %s305, 4
      %s307 = scalar_lea.vmem %s2, %s306
      %s308 = smul.u32 64, %s17
      %s309 = smul.u32 64, %s17
      %p310 = scmp.lt.s32.totalorder %s309, 639
      %s311 = scalar_select %p310, %s309, 639
      %s312 = smul.addr %s311, 4
      %s313 = scalar_lea.vmem %s3, %s312
      %s314 = smul.u32 64, %s17
      %s315 = smul.u32 64, %s17
      %p316 = scmp.lt.s32.totalorder %s315, 639
      %s317 = scalar_select %p316, %s315, 639
      %s318 = smul.addr %s317, 4
      %s319 = scalar_lea.vmem %s6, %s318
      %s320 = smul.u32 64, %s17
      %v322 = vld [vmem:[%s4] sm:$0xf]
      %v323 = vld [vmem:[%s4 + $0x4] sm:$0xf]
      %v324 = vld [vmem:[%s4 + $0x8] sm:$0xf]
      %v325 = vld [vmem:[%s4 + $0xc] sm:$0xf]
      %v326 = vld [vmem:[%s4 + $0x10] sm:$0xf]
      %v327 = vld [vmem:[%s4 + $0x14] sm:$0xf]
      %v328 = vld [vmem:[%s4 + $0x18] sm:$0xf]
      %v329 = vld [vmem:[%s4 + $0x1c] sm:$0xf]
      %v330 = vld [vmem:[%s4 + $0x20] sm:$0xf]
      %v331 = vld [vmem:[%s4 + $0x24] sm:$0x3]
      %v332 = vld [vmem:[%s5] sm:$0xff]
      %v333 = vld [vmem:[%s295] sm:$0xf]
      %v334 = vld [vmem:[%s295 + $0x4] sm:$0xf]
      %v335 = vld [vmem:[%s295 + $0x8] sm:$0xf]
      %v336 = vld [vmem:[%s295 + $0xc] sm:$0xf]
      %v337 = vld [vmem:[%s295 + $0x10] sm:$0xf]
      %v338 = vld [vmem:[%s295 + $0x14] sm:$0xf]
      %v339 = vld [vmem:[%s295 + $0x18] sm:$0xf]
      %v340 = vld [vmem:[%s295 + $0x1c] sm:$0xf]
      %v341 = vld [vmem:[%s295 + $0x20] sm:$0xf]
      %v342 = vld [vmem:[%s295 + $0x24] sm:$0xf]
      %v343 = vld [vmem:[%s295 + $0x28] sm:$0xf]
      %v344 = vld [vmem:[%s295 + $0x2c] sm:$0xf]
      %v345 = vld [vmem:[%s295 + $0x30] sm:$0xf]
      %v346 = vld [vmem:[%s295 + $0x34] sm:$0xf]
      %v347 = vld [vmem:[%s295 + $0x38] sm:$0xf]
      %v348 = vld [vmem:[%s295 + $0x3c] sm:$0xf]
      %v349 = vld [vmem:[%s295 + $0x40] sm:$0xf]
      %v350 = vld [vmem:[%s295 + $0x44] sm:$0xf]
      %v351 = vld [vmem:[%s295 + $0x48] sm:$0xf]
      %v352 = vld [vmem:[%s295 + $0x4c] sm:$0xf]
      %v353 = vld [vmem:[%s295 + $0x50] sm:$0xf]
      %v354 = vld [vmem:[%s295 + $0x54] sm:$0xf]
      %v355 = vld [vmem:[%s295 + $0x58] sm:$0xf]
      %v356 = vld [vmem:[%s295 + $0x5c] sm:$0xf]
      %v357 = vld [vmem:[%s295 + $0x60] sm:$0xf]
      %v358 = vld [vmem:[%s295 + $0x64] sm:$0xf]
      %v359 = vld [vmem:[%s295 + $0x68] sm:$0xf]
      %v360 = vld [vmem:[%s295 + $0x6c] sm:$0xf]
      %v361 = vld [vmem:[%s295 + $0x70] sm:$0xf]
      %v362 = vld [vmem:[%s295 + $0x74] sm:$0xf]
      %v363 = vld [vmem:[%s295 + $0x78] sm:$0xf]
      %v364 = vld [vmem:[%s295 + $0x7c] sm:$0xf]
      %v365 = vld [vmem:[%s295 + $0x80] sm:$0xf]
      %v366 = vld [vmem:[%s295 + $0x84] sm:$0xf]
      %v367 = vld [vmem:[%s295 + $0x88] sm:$0xf]
      %v368 = vld [vmem:[%s295 + $0x8c] sm:$0xf]
      %v369 = vld [vmem:[%s295 + $0x90] sm:$0xf]
      %v370 = vld [vmem:[%s295 + $0x94] sm:$0xf]
      %v371 = vld [vmem:[%s295 + $0x98] sm:$0xf]
      %v372 = vld [vmem:[%s295 + $0x9c] sm:$0xf]
      %v373 = vld [vmem:[%s295 + $0xa0] sm:$0xf]
      %v374 = vld [vmem:[%s295 + $0xa4] sm:$0xf]
      %v375 = vld [vmem:[%s295 + $0xa8] sm:$0xf]
      %v376 = vld [vmem:[%s295 + $0xac] sm:$0xf]
      %v377 = vld [vmem:[%s295 + $0xb0] sm:$0xf]
      %v378 = vld [vmem:[%s295 + $0xb4] sm:$0xf]
      %v379 = vld [vmem:[%s295 + $0xb8] sm:$0xf]
      %v380 = vld [vmem:[%s295 + $0xbc] sm:$0xf]
      %v381 = vld [vmem:[%s295 + $0xc0] sm:$0xf]
      %v382 = vld [vmem:[%s295 + $0xc4] sm:$0xf]
      %v383 = vld [vmem:[%s295 + $0xc8] sm:$0xf]
      %v384 = vld [vmem:[%s295 + $0xcc] sm:$0xf]
      %v385 = vld [vmem:[%s295 + $0xd0] sm:$0xf]
      %v386 = vld [vmem:[%s295 + $0xd4] sm:$0xf]
      %v387 = vld [vmem:[%s295 + $0xd8] sm:$0xf]
      %v388 = vld [vmem:[%s295 + $0xdc] sm:$0xf]
      %v389 = vld [vmem:[%s295 + $0xe0] sm:$0xf]
      %v390 = vld [vmem:[%s295 + $0xe4] sm:$0xf]
      %v391 = vld [vmem:[%s295 + $0xe8] sm:$0xf]
      %v392 = vld [vmem:[%s295 + $0xec] sm:$0xf]
      %v393 = vld [vmem:[%s295 + $0xf0] sm:$0xf]
      %v394 = vld [vmem:[%s295 + $0xf4] sm:$0xf]
      %v395 = vld [vmem:[%s295 + $0xf8] sm:$0xf]
      %v396 = vld [vmem:[%s295 + $0xfc] sm:$0xf]
      %v397 = vperm.slane %v332, 0
      %v462 = vunpack.c.l.b16 %v333
      %v463 = vunpack.c.l.b16 %v334
      %v464 = vunpack.c.l.b16 %v335
      %v465 = vunpack.c.l.b16 %v336
      %v466 = vunpack.c.l.b16 %v337
      %v467 = vunpack.c.l.b16 %v338
      %v468 = vunpack.c.l.b16 %v339
      %v469 = vunpack.c.l.b16 %v340
      %v470 = vunpack.c.l.b16 %v341
      %v471 = vunpack.c.l.b16 %v342
      %v472 = vunpack.c.l.b16 %v343
      %v473 = vunpack.c.l.b16 %v344
      %v474 = vunpack.c.l.b16 %v345
      %v475 = vunpack.c.l.b16 %v346
      %v476 = vunpack.c.l.b16 %v347
      %v477 = vunpack.c.l.b16 %v348
      %v478 = vunpack.c.l.b16 %v349
      %v479 = vunpack.c.l.b16 %v350
      %v480 = vunpack.c.l.b16 %v351
      %v481 = vunpack.c.l.b16 %v352
      %v482 = vunpack.c.l.b16 %v353
      %v483 = vunpack.c.l.b16 %v354
      %v484 = vunpack.c.l.b16 %v355
      %v485 = vunpack.c.l.b16 %v356
      %v486 = vunpack.c.l.b16 %v357
      %v487 = vunpack.c.l.b16 %v358
      %v488 = vunpack.c.l.b16 %v359
      %v489 = vunpack.c.l.b16 %v360
      %v490 = vunpack.c.l.b16 %v361
      %v491 = vunpack.c.l.b16 %v362
      %v492 = vunpack.c.l.b16 %v363
      %v493 = vunpack.c.l.b16 %v364
      %v494 = vunpack.c.l.b16 %v365
      %v495 = vunpack.c.l.b16 %v366
      %v496 = vunpack.c.l.b16 %v367
      %v497 = vunpack.c.l.b16 %v368
      %v498 = vunpack.c.l.b16 %v369
      %v499 = vunpack.c.l.b16 %v370
      %v500 = vunpack.c.l.b16 %v371
      %v501 = vunpack.c.l.b16 %v372
      %v502 = vunpack.c.l.b16 %v373
      %v503 = vunpack.c.l.b16 %v374
      %v504 = vunpack.c.l.b16 %v375
      %v505 = vunpack.c.l.b16 %v376
      %v506 = vunpack.c.l.b16 %v377
      %v507 = vunpack.c.l.b16 %v378
      %v508 = vunpack.c.l.b16 %v379
      %v509 = vunpack.c.l.b16 %v380
      %v510 = vunpack.c.l.b16 %v381
      %v511 = vunpack.c.l.b16 %v382
      %v512 = vunpack.c.l.b16 %v383
      %v513 = vunpack.c.l.b16 %v384
      %v514 = vunpack.c.l.b16 %v385
      %v515 = vunpack.c.l.b16 %v386
      %v516 = vunpack.c.l.b16 %v387
      %v517 = vunpack.c.l.b16 %v388
      %v518 = vunpack.c.l.b16 %v389
      %v519 = vunpack.c.l.b16 %v390
      %v520 = vunpack.c.l.b16 %v391
      %v521 = vunpack.c.l.b16 %v392
      %v522 = vunpack.c.l.b16 %v393
      %v523 = vunpack.c.l.b16 %v394
      %v524 = vunpack.c.l.b16 %v395
      %v525 = vunpack.c.l.b16 %v396
      %v526 = vpack.c.b16 %v463, %v462
      %v527 = vpack.c.b16 %v465, %v464
      %v528 = vpack.c.b16 %v467, %v466
      %v529 = vpack.c.b16 %v469, %v468
      %v530 = vpack.c.b16 %v471, %v470
      %v531 = vpack.c.b16 %v473, %v472
      %v532 = vpack.c.b16 %v475, %v474
      %v533 = vpack.c.b16 %v477, %v476
      %v534 = vpack.c.b16 %v479, %v478
      %v535 = vpack.c.b16 %v481, %v480
      %v536 = vpack.c.b16 %v483, %v482
      %v537 = vpack.c.b16 %v485, %v484
      %v538 = vpack.c.b16 %v487, %v486
      %v539 = vpack.c.b16 %v489, %v488
      %v540 = vpack.c.b16 %v491, %v490
      %v541 = vpack.c.b16 %v493, %v492
      %v542 = vpack.c.b16 %v495, %v494
      %v543 = vpack.c.b16 %v497, %v496
      %v544 = vpack.c.b16 %v499, %v498
      %v545 = vpack.c.b16 %v501, %v500
      %v546 = vpack.c.b16 %v503, %v502
      %v547 = vpack.c.b16 %v505, %v504
      %v548 = vpack.c.b16 %v507, %v506
      %v549 = vpack.c.b16 %v509, %v508
      %v550 = vpack.c.b16 %v511, %v510
      %v551 = vpack.c.b16 %v513, %v512
      %v552 = vpack.c.b16 %v515, %v514
      %v553 = vpack.c.b16 %v517, %v516
      %v554 = vpack.c.b16 %v519, %v518
      %v555 = vpack.c.b16 %v521, %v520
      %v556 = vpack.c.b16 %v523, %v522
      %v557 = vpack.c.b16 %v525, %v524
      %v568 = vunpack.c.l.b16 %v322
      %v569 = vunpack.c.l.b16 %v323
      %v570 = vunpack.c.l.b16 %v324
      %v571 = vunpack.c.l.b16 %v325
      %v572 = vunpack.c.l.b16 %v326
      %v573 = vunpack.c.l.b16 %v327
      %v574 = vunpack.c.l.b16 %v328
      %v575 = vunpack.c.l.b16 %v329
      %v576 = vunpack.c.l.b16 %v330
      %v577 = vunpack.c.l.b16 %v331
      %v578 = vpack.c.b16 %v569, %v568
      %v579 = vpack.c.b16 %v571, %v570
      %v580 = vpack.c.b16 %v573, %v572
      %v581 = vpack.c.b16 %v575, %v574
      %v582 = vpack.c.b16 %v577, %v576
      %vm587 = vcmask 613376
      %v589 = vsel %vm587, %v526, 0
      %v592 = vsel %vm587, %v527, 0
      %v595 = vsel %vm587, %v528, 0
      %v598 = vsel %vm587, %v529, 0
      %v601 = vsel %vm587, %v530, 0
      %v604 = vsel %vm587, %v531, 0
      %v607 = vsel %vm587, %v532, 0
      %v610 = vsel %vm587, %v533, 0
      %v613 = vsel %vm587, %v534, 0
      %v616 = vsel %vm587, %v535, 0
      %v619 = vsel %vm587, %v536, 0
      %v622 = vsel %vm587, %v537, 0
      %v625 = vsel %vm587, %v538, 0
      %v628 = vsel %vm587, %v539, 0
      %v631 = vsel %vm587, %v540, 0
      %v634 = vsel %vm587, %v541, 0
      %v637 = vsel %vm587, %v542, 0
      %v640 = vsel %vm587, %v543, 0
      %v643 = vsel %vm587, %v544, 0
      %v646 = vsel %vm587, %v545, 0
      %v649 = vsel %vm587, %v546, 0
      %v652 = vsel %vm587, %v547, 0
      %v655 = vsel %vm587, %v548, 0
      %v658 = vsel %vm587, %v549, 0
      %v661 = vsel %vm587, %v550, 0
      %v664 = vsel %vm587, %v551, 0
      %v667 = vsel %vm587, %v552, 0
      %v670 = vsel %vm587, %v553, 0
      %v673 = vsel %vm587, %v554, 0
      %v676 = vsel %vm587, %v555, 0
      %v679 = vsel %vm587, %v556, 0
      %v682 = vsel %vm587, %v557, 0
      %vm684 = vcmask 1044480
      %vm685 = vcmask 1045504
      %v686 = vsel %vm684, 4294967295, 65535
      %v687 = vsel %vm685, %v686, 0
      %v689 = vand.u32 %v582, %v687
      %691 = vmatpush.bf16.msra.mxu0 0
      %692 = vmatpush.bf16.msra.mxu0 0
      %693 = vmatpush.bf16.msra.mxu0 0
      %694 = vmatpush.bf16.msra.mxu0 %v689
      %695 = vmatpush.bf16.msra.mxu0 %v581
      %696 = vmatpush.bf16.msra.mxu0 %v580
      %697 = vmatpush.bf16.msra.mxu0 %v579
      %698 = vmatpush.bf16.msra.mxu0 %v578
      %699 = vmatmul.bf16.gmra.mxu0 %v589
      %v700 = vpop.f32.mrf.mxu0
      %v701 = vadd.f32 %v397, %v700
      %v702 = vpop.f32.mrf.mxu0
      %v703 = vadd.f32 %v397, %v702
      %704 = vmatmul.bf16.gmra.mxu0 %v592
      %v705 = vpop.f32.mrf.mxu0
      %v706 = vadd.f32 %v397, %v705
      %v707 = vpop.f32.mrf.mxu0
      %v708 = vadd.f32 %v397, %v707
      %709 = vmatmul.bf16.gmra.mxu0 %v595
      %v710 = vpop.f32.mrf.mxu0
      %v711 = vadd.f32 %v397, %v710
      %v712 = vpop.f32.mrf.mxu0
      %v713 = vadd.f32 %v397, %v712
      %714 = vmatmul.bf16.gmra.mxu0 %v598
      %v715 = vpop.f32.mrf.mxu0
      %v716 = vadd.f32 %v397, %v715
      %v717 = vpop.f32.mrf.mxu0
      %v718 = vadd.f32 %v397, %v717
      %719 = vmatmul.bf16.gmra.mxu0 %v601
      %v720 = vpop.f32.mrf.mxu0
      %v721 = vadd.f32 %v397, %v720
      %v722 = vpop.f32.mrf.mxu0
      %v723 = vadd.f32 %v397, %v722
      %724 = vmatmul.bf16.gmra.mxu0 %v604
      %v725 = vpop.f32.mrf.mxu0
      %v726 = vadd.f32 %v397, %v725
      %v727 = vpop.f32.mrf.mxu0
      %v728 = vadd.f32 %v397, %v727
      %729 = vmatmul.bf16.gmra.mxu0 %v607
      %v730 = vpop.f32.mrf.mxu0
      %v731 = vadd.f32 %v397, %v730
      %v732 = vpop.f32.mrf.mxu0
      %v733 = vadd.f32 %v397, %v732
      %734 = vmatmul.bf16.gmra.mxu0 %v610
      %v735 = vpop.f32.mrf.mxu0
      %v736 = vadd.f32 %v397, %v735
      %v737 = vpop.f32.mrf.mxu0
      %v738 = vadd.f32 %v397, %v737
      %739 = vmatmul.bf16.gmra.mxu0 %v613
      %v740 = vpop.f32.mrf.mxu0
      %v741 = vadd.f32 %v397, %v740
      %v742 = vpop.f32.mrf.mxu0
      %v743 = vadd.f32 %v397, %v742
      %744 = vmatmul.bf16.gmra.mxu0 %v616
      %v745 = vpop.f32.mrf.mxu0
      %v746 = vadd.f32 %v397, %v745
      %v747 = vpop.f32.mrf.mxu0
      %v748 = vadd.f32 %v397, %v747
      %749 = vmatmul.bf16.gmra.mxu0 %v619
      %v750 = vpop.f32.mrf.mxu0
      %v751 = vadd.f32 %v397, %v750
      %v752 = vpop.f32.mrf.mxu0
      %v753 = vadd.f32 %v397, %v752
      %754 = vmatmul.bf16.gmra.mxu0 %v622
      %v755 = vpop.f32.mrf.mxu0
      %v756 = vadd.f32 %v397, %v755
      %v757 = vpop.f32.mrf.mxu0
      %v758 = vadd.f32 %v397, %v757
      %759 = vmatmul.bf16.gmra.mxu0 %v625
      %v760 = vpop.f32.mrf.mxu0
      %v761 = vadd.f32 %v397, %v760
      %v762 = vpop.f32.mrf.mxu0
      %v763 = vadd.f32 %v397, %v762
      %764 = vmatmul.bf16.gmra.mxu0 %v628
      %v765 = vpop.f32.mrf.mxu0
      %v766 = vadd.f32 %v397, %v765
      %v767 = vpop.f32.mrf.mxu0
      %v768 = vadd.f32 %v397, %v767
      %769 = vmatmul.bf16.gmra.mxu0 %v631
      %v770 = vpop.f32.mrf.mxu0
      %v771 = vadd.f32 %v397, %v770
      %v772 = vpop.f32.mrf.mxu0
      %v773 = vadd.f32 %v397, %v772
      %774 = vmatmul.bf16.gmra.mxu0 %v634
      %v775 = vpop.f32.mrf.mxu0
      %v776 = vadd.f32 %v397, %v775
      %v777 = vpop.f32.mrf.mxu0
      %v778 = vadd.f32 %v397, %v777
      %779 = vmatmul.bf16.gmra.mxu0 %v637
      %v780 = vpop.f32.mrf.mxu0
      %v781 = vadd.f32 %v397, %v780
      %v782 = vpop.f32.mrf.mxu0
      %v783 = vadd.f32 %v397, %v782
      %784 = vmatmul.bf16.gmra.mxu0 %v640
      %v785 = vpop.f32.mrf.mxu0
      %v786 = vadd.f32 %v397, %v785
      %v787 = vpop.f32.mrf.mxu0
      %v788 = vadd.f32 %v397, %v787
      %789 = vmatmul.bf16.gmra.mxu0 %v643
      %v790 = vpop.f32.mrf.mxu0
      %v791 = vadd.f32 %v397, %v790
      %v792 = vpop.f32.mrf.mxu0
      %v793 = vadd.f32 %v397, %v792
      %794 = vmatmul.bf16.gmra.mxu0 %v646
      %v795 = vpop.f32.mrf.mxu0
      %v796 = vadd.f32 %v397, %v795
      %v797 = vpop.f32.mrf.mxu0
      %v798 = vadd.f32 %v397, %v797
      %799 = vmatmul.bf16.gmra.mxu0 %v649
      %v800 = vpop.f32.mrf.mxu0
      %v801 = vadd.f32 %v397, %v800
      %v802 = vpop.f32.mrf.mxu0
      %v803 = vadd.f32 %v397, %v802
      %804 = vmatmul.bf16.gmra.mxu0 %v652
      %v805 = vpop.f32.mrf.mxu0
      %v806 = vadd.f32 %v397, %v805
      %v807 = vpop.f32.mrf.mxu0
      %v808 = vadd.f32 %v397, %v807
      %809 = vmatmul.bf16.gmra.mxu0 %v655
      %v810 = vpop.f32.mrf.mxu0
      %v811 = vadd.f32 %v397, %v810
      %v812 = vpop.f32.mrf.mxu0
      %v813 = vadd.f32 %v397, %v812
      %814 = vmatmul.bf16.gmra.mxu0 %v658
      %v815 = vpop.f32.mrf.mxu0
      %v816 = vadd.f32 %v397, %v815
      %v817 = vpop.f32.mrf.mxu0
      %v818 = vadd.f32 %v397, %v817
      %819 = vmatmul.bf16.gmra.mxu0 %v661
      %v820 = vpop.f32.mrf.mxu0
      %v821 = vadd.f32 %v397, %v820
      %v822 = vpop.f32.mrf.mxu0
      %v823 = vadd.f32 %v397, %v822
      %824 = vmatmul.bf16.gmra.mxu0 %v664
      %v825 = vpop.f32.mrf.mxu0
      %v826 = vadd.f32 %v397, %v825
      %v827 = vpop.f32.mrf.mxu0
      %v828 = vadd.f32 %v397, %v827
      %829 = vmatmul.bf16.gmra.mxu0 %v667
      %v830 = vpop.f32.mrf.mxu0
      %v831 = vadd.f32 %v397, %v830
      %v832 = vpop.f32.mrf.mxu0
      %v833 = vadd.f32 %v397, %v832
      %834 = vmatmul.bf16.gmra.mxu0 %v670
      %v835 = vpop.f32.mrf.mxu0
      %v836 = vadd.f32 %v397, %v835
      %v837 = vpop.f32.mrf.mxu0
      %v838 = vadd.f32 %v397, %v837
      %839 = vmatmul.bf16.gmra.mxu0 %v673
      %v840 = vpop.f32.mrf.mxu0
      %v841 = vadd.f32 %v397, %v840
      %v842 = vpop.f32.mrf.mxu0
      %v843 = vadd.f32 %v397, %v842
      %844 = vmatmul.bf16.gmra.mxu0 %v676
      %v845 = vpop.f32.mrf.mxu0
      %v846 = vadd.f32 %v397, %v845
      %v847 = vpop.f32.mrf.mxu0
      %v848 = vadd.f32 %v397, %v847
      %849 = vmatmul.bf16.gmra.mxu0 %v679
      %v850 = vpop.f32.mrf.mxu0
      %v851 = vadd.f32 %v397, %v850
      %v852 = vpop.f32.mrf.mxu0
      %v853 = vadd.f32 %v397, %v852
      %854 = vmatmul.bf16.gmra.mxu0 %v682
      %v855 = vpop.f32.mrf.mxu0
      %v856 = vadd.f32 %v397, %v855
      %v857 = vpop.f32.mrf.mxu0
      %v858 = vadd.f32 %v397, %v857
      %859 = vdwg.mxu0
      %v860 = vmax.f32 %v701, 0.0
      %v861 = vmax.f32 %v703, 0.0
      %v862 = vmax.f32 %v706, 0.0
      %v863 = vmax.f32 %v708, 0.0
      %v864 = vmax.f32 %v711, 0.0
      %v865 = vmax.f32 %v713, 0.0
      %v866 = vmax.f32 %v716, 0.0
      %v867 = vmax.f32 %v718, 0.0
      %v868 = vmax.f32 %v721, 0.0
      %v869 = vmax.f32 %v723, 0.0
      %v870 = vmax.f32 %v726, 0.0
      %v871 = vmax.f32 %v728, 0.0
      %v872 = vmax.f32 %v731, 0.0
      %v873 = vmax.f32 %v733, 0.0
      %v874 = vmax.f32 %v736, 0.0
      %v875 = vmax.f32 %v738, 0.0
      %v876 = vmax.f32 %v741, 0.0
      %v877 = vmax.f32 %v743, 0.0
      %v878 = vmax.f32 %v746, 0.0
      %v879 = vmax.f32 %v748, 0.0
      %v880 = vmax.f32 %v751, 0.0
      %v881 = vmax.f32 %v753, 0.0
      %v882 = vmax.f32 %v756, 0.0
      %v883 = vmax.f32 %v758, 0.0
      %v884 = vmax.f32 %v761, 0.0
      %v885 = vmax.f32 %v763, 0.0
      %v886 = vmax.f32 %v766, 0.0
      %v887 = vmax.f32 %v768, 0.0
      %v888 = vmax.f32 %v771, 0.0
      %v889 = vmax.f32 %v773, 0.0
      %v890 = vmax.f32 %v776, 0.0
      %v891 = vmax.f32 %v778, 0.0
      %v892 = vmax.f32 %v781, 0.0
      %v893 = vmax.f32 %v783, 0.0
      %v894 = vmax.f32 %v786, 0.0
      %v895 = vmax.f32 %v788, 0.0
      %v896 = vmax.f32 %v791, 0.0
      %v897 = vmax.f32 %v793, 0.0
      %v898 = vmax.f32 %v796, 0.0
      %v899 = vmax.f32 %v798, 0.0
      %v900 = vmax.f32 %v801, 0.0
      %v901 = vmax.f32 %v803, 0.0
      %v902 = vmax.f32 %v806, 0.0
      %v903 = vmax.f32 %v808, 0.0
      %v904 = vmax.f32 %v811, 0.0
      %v905 = vmax.f32 %v813, 0.0
      %v906 = vmax.f32 %v816, 0.0
      %v907 = vmax.f32 %v818, 0.0
      %v908 = vmax.f32 %v821, 0.0
      %v909 = vmax.f32 %v823, 0.0
      %v910 = vmax.f32 %v826, 0.0
      %v911 = vmax.f32 %v828, 0.0
      %v912 = vmax.f32 %v831, 0.0
      %v913 = vmax.f32 %v833, 0.0
      %v914 = vmax.f32 %v836, 0.0
      %v915 = vmax.f32 %v838, 0.0
      %v916 = vmax.f32 %v841, 0.0
      %v917 = vmax.f32 %v843, 0.0
      %v918 = vmax.f32 %v846, 0.0
      %v919 = vmax.f32 %v848, 0.0
      %v920 = vmax.f32 %v851, 0.0
      %v921 = vmax.f32 %v853, 0.0
      %v922 = vmax.f32 %v856, 0.0
      %v923 = vmax.f32 %v858, 0.0
      %v924 = vperm.slane %v332, 1
      %v925 = vmul.f32 %v860, %v924
      %v926 = vmul.f32 %v861, %v924
      %v927 = vmul.f32 %v862, %v924
      %v928 = vmul.f32 %v863, %v924
      %v929 = vmul.f32 %v864, %v924
      %v930 = vmul.f32 %v865, %v924
      %v931 = vmul.f32 %v866, %v924
      %v932 = vmul.f32 %v867, %v924
      %v933 = vmul.f32 %v868, %v924
      %v934 = vmul.f32 %v869, %v924
      %v935 = vmul.f32 %v870, %v924
      %v936 = vmul.f32 %v871, %v924
      %v937 = vmul.f32 %v872, %v924
      %v938 = vmul.f32 %v873, %v924
      %v939 = vmul.f32 %v874, %v924
      %v940 = vmul.f32 %v875, %v924
      %v941 = vmul.f32 %v876, %v924
      %v942 = vmul.f32 %v877, %v924
      %v943 = vmul.f32 %v878, %v924
      %v944 = vmul.f32 %v879, %v924
      %v945 = vmul.f32 %v880, %v924
      %v946 = vmul.f32 %v881, %v924
      %v947 = vmul.f32 %v882, %v924
      %v948 = vmul.f32 %v883, %v924
      %v949 = vmul.f32 %v884, %v924
      %v950 = vmul.f32 %v885, %v924
      %v951 = vmul.f32 %v886, %v924
      %v952 = vmul.f32 %v887, %v924
      %v953 = vmul.f32 %v888, %v924
      %v954 = vmul.f32 %v889, %v924
      %v955 = vmul.f32 %v890, %v924
      %v956 = vmul.f32 %v891, %v924
      %v957 = vmul.f32 %v892, %v924
      %v958 = vmul.f32 %v893, %v924
      %v959 = vmul.f32 %v894, %v924
      %v960 = vmul.f32 %v895, %v924
      %v961 = vmul.f32 %v896, %v924
      %v962 = vmul.f32 %v897, %v924
      %v963 = vmul.f32 %v898, %v924
      %v964 = vmul.f32 %v899, %v924
      %v965 = vmul.f32 %v900, %v924
      %v966 = vmul.f32 %v901, %v924
      %v967 = vmul.f32 %v902, %v924
      %v968 = vmul.f32 %v903, %v924
      %v969 = vmul.f32 %v904, %v924
      %v970 = vmul.f32 %v905, %v924
      %v971 = vmul.f32 %v906, %v924
      %v972 = vmul.f32 %v907, %v924
      %v973 = vmul.f32 %v908, %v924
      %v974 = vmul.f32 %v909, %v924
      %v975 = vmul.f32 %v910, %v924
      %v976 = vmul.f32 %v911, %v924
      %v977 = vmul.f32 %v912, %v924
      %v978 = vmul.f32 %v913, %v924
      %v979 = vmul.f32 %v914, %v924
      %v980 = vmul.f32 %v915, %v924
      %v981 = vmul.f32 %v916, %v924
      %v982 = vmul.f32 %v917, %v924
      %v983 = vmul.f32 %v918, %v924
      %v984 = vmul.f32 %v919, %v924
      %v985 = vmul.f32 %v920, %v924
      %v986 = vmul.f32 %v921, %v924
      %v987 = vmul.f32 %v922, %v924
      %v988 = vmul.f32 %v923, %v924
      %v989 = vperm.slane %v332, 2
      %v990 = vadd.f32 %v925, %v989
      %v991 = vadd.f32 %v926, %v989
      %v992 = vadd.f32 %v927, %v989
      %v993 = vadd.f32 %v928, %v989
      %v994 = vadd.f32 %v929, %v989
      %v995 = vadd.f32 %v930, %v989
      %v996 = vadd.f32 %v931, %v989
      %v997 = vadd.f32 %v932, %v989
      %v998 = vadd.f32 %v933, %v989
      %v999 = vadd.f32 %v934, %v989
      %v1000 = vadd.f32 %v935, %v989
      %v1001 = vadd.f32 %v936, %v989
      %v1002 = vadd.f32 %v937, %v989
      %v1003 = vadd.f32 %v938, %v989
      %v1004 = vadd.f32 %v939, %v989
      %v1005 = vadd.f32 %v940, %v989
      %v1006 = vadd.f32 %v941, %v989
      %v1007 = vadd.f32 %v942, %v989
      %v1008 = vadd.f32 %v943, %v989
      %v1009 = vadd.f32 %v944, %v989
      %v1010 = vadd.f32 %v945, %v989
      %v1011 = vadd.f32 %v946, %v989
      %v1012 = vadd.f32 %v947, %v989
      %v1013 = vadd.f32 %v948, %v989
      %v1014 = vadd.f32 %v949, %v989
      %v1015 = vadd.f32 %v950, %v989
      %v1016 = vadd.f32 %v951, %v989
      %v1017 = vadd.f32 %v952, %v989
      %v1018 = vadd.f32 %v953, %v989
      %v1019 = vadd.f32 %v954, %v989
      %v1020 = vadd.f32 %v955, %v989
      %v1021 = vadd.f32 %v956, %v989
      %v1022 = vadd.f32 %v957, %v989
      %v1023 = vadd.f32 %v958, %v989
      %v1024 = vadd.f32 %v959, %v989
      %v1025 = vadd.f32 %v960, %v989
      %v1026 = vadd.f32 %v961, %v989
      %v1027 = vadd.f32 %v962, %v989
      %v1028 = vadd.f32 %v963, %v989
      %v1029 = vadd.f32 %v964, %v989
      %v1030 = vadd.f32 %v965, %v989
      %v1031 = vadd.f32 %v966, %v989
      %v1032 = vadd.f32 %v967, %v989
      %v1033 = vadd.f32 %v968, %v989
      %v1034 = vadd.f32 %v969, %v989
      %v1035 = vadd.f32 %v970, %v989
      %v1036 = vadd.f32 %v971, %v989
      %v1037 = vadd.f32 %v972, %v989
      %v1038 = vadd.f32 %v973, %v989
      %v1039 = vadd.f32 %v974, %v989
      %v1040 = vadd.f32 %v975, %v989
      %v1041 = vadd.f32 %v976, %v989
      %v1042 = vadd.f32 %v977, %v989
      %v1043 = vadd.f32 %v978, %v989
      %v1044 = vadd.f32 %v979, %v989
      %v1045 = vadd.f32 %v980, %v989
      %v1046 = vadd.f32 %v981, %v989
      %v1047 = vadd.f32 %v982, %v989
      %v1048 = vadd.f32 %v983, %v989
      %v1049 = vadd.f32 %v984, %v989
      %v1050 = vadd.f32 %v985, %v989
      %v1051 = vadd.f32 %v986, %v989
      %v1052 = vadd.f32 %v987, %v989
      %v1053 = vadd.f32 %v988, %v989
      %v1054 = vld [vmem:[%s301] sm:$0xf]
      %v1055 = vld [vmem:[%s301 + $0x4] sm:$0xf]
      %v1056 = vld [vmem:[%s301 + $0x8] sm:$0xf]
      %v1057 = vld [vmem:[%s301 + $0xc] sm:$0xf]
      %v1058 = vld [vmem:[%s301 + $0x10] sm:$0xf]
      %v1059 = vld [vmem:[%s301 + $0x14] sm:$0xf]
      %v1060 = vld [vmem:[%s301 + $0x18] sm:$0xf]
      %v1061 = vld [vmem:[%s301 + $0x1c] sm:$0xf]
      %v1062 = vld [vmem:[%s301 + $0x20] sm:$0xf]
      %v1063 = vld [vmem:[%s301 + $0x24] sm:$0xf]
      %v1064 = vld [vmem:[%s301 + $0x28] sm:$0xf]
      %v1065 = vld [vmem:[%s301 + $0x2c] sm:$0xf]
      %v1066 = vld [vmem:[%s301 + $0x30] sm:$0xf]
      %v1067 = vld [vmem:[%s301 + $0x34] sm:$0xf]
      %v1068 = vld [vmem:[%s301 + $0x38] sm:$0xf]
      %v1069 = vld [vmem:[%s301 + $0x3c] sm:$0xf]
      %v1070 = vld [vmem:[%s301 + $0x40] sm:$0xf]
      %v1071 = vld [vmem:[%s301 + $0x44] sm:$0xf]
      %v1072 = vld [vmem:[%s301 + $0x48] sm:$0xf]
      %v1073 = vld [vmem:[%s301 + $0x4c] sm:$0xf]
      %v1074 = vld [vmem:[%s301 + $0x50] sm:$0xf]
      %v1075 = vld [vmem:[%s301 + $0x54] sm:$0xf]
      %v1076 = vld [vmem:[%s301 + $0x58] sm:$0xf]
      %v1077 = vld [vmem:[%s301 + $0x5c] sm:$0xf]
      %v1078 = vld [vmem:[%s301 + $0x60] sm:$0xf]
      %v1079 = vld [vmem:[%s301 + $0x64] sm:$0xf]
      %v1080 = vld [vmem:[%s301 + $0x68] sm:$0xf]
      %v1081 = vld [vmem:[%s301 + $0x6c] sm:$0xf]
      %v1082 = vld [vmem:[%s301 + $0x70] sm:$0xf]
      %v1083 = vld [vmem:[%s301 + $0x74] sm:$0xf]
      %v1084 = vld [vmem:[%s301 + $0x78] sm:$0xf]
      %v1085 = vld [vmem:[%s301 + $0x7c] sm:$0xf]
      %v1086 = vld [vmem:[%s301 + $0x80] sm:$0xf]
      %v1087 = vld [vmem:[%s301 + $0x84] sm:$0xf]
      %v1088 = vld [vmem:[%s301 + $0x88] sm:$0xf]
      %v1089 = vld [vmem:[%s301 + $0x8c] sm:$0xf]
      %v1090 = vld [vmem:[%s301 + $0x90] sm:$0xf]
      %v1091 = vld [vmem:[%s301 + $0x94] sm:$0xf]
      %v1092 = vld [vmem:[%s301 + $0x98] sm:$0xf]
      %v1093 = vld [vmem:[%s301 + $0x9c] sm:$0xf]
      %v1094 = vld [vmem:[%s301 + $0xa0] sm:$0xf]
      %v1095 = vld [vmem:[%s301 + $0xa4] sm:$0xf]
      %v1096 = vld [vmem:[%s301 + $0xa8] sm:$0xf]
      %v1097 = vld [vmem:[%s301 + $0xac] sm:$0xf]
      %v1098 = vld [vmem:[%s301 + $0xb0] sm:$0xf]
      %v1099 = vld [vmem:[%s301 + $0xb4] sm:$0xf]
      %v1100 = vld [vmem:[%s301 + $0xb8] sm:$0xf]
      %v1101 = vld [vmem:[%s301 + $0xbc] sm:$0xf]
      %v1102 = vld [vmem:[%s301 + $0xc0] sm:$0xf]
      %v1103 = vld [vmem:[%s301 + $0xc4] sm:$0xf]
      %v1104 = vld [vmem:[%s301 + $0xc8] sm:$0xf]
      %v1105 = vld [vmem:[%s301 + $0xcc] sm:$0xf]
      %v1106 = vld [vmem:[%s301 + $0xd0] sm:$0xf]
      %v1107 = vld [vmem:[%s301 + $0xd4] sm:$0xf]
      %v1108 = vld [vmem:[%s301 + $0xd8] sm:$0xf]
      %v1109 = vld [vmem:[%s301 + $0xdc] sm:$0xf]
      %v1110 = vld [vmem:[%s301 + $0xe0] sm:$0xf]
      %v1111 = vld [vmem:[%s301 + $0xe4] sm:$0xf]
      %v1112 = vld [vmem:[%s301 + $0xe8] sm:$0xf]
      %v1113 = vld [vmem:[%s301 + $0xec] sm:$0xf]
      %v1114 = vld [vmem:[%s301 + $0xf0] sm:$0xf]
      %v1115 = vld [vmem:[%s301 + $0xf4] sm:$0xf]
      %v1116 = vld [vmem:[%s301 + $0xf8] sm:$0xf]
      %v1117 = vld [vmem:[%s301 + $0xfc] sm:$0xf]
      %v1182 = vunpack.c.l.b16 %v1054
      %v1183 = vunpack.c.l.b16 %v1055
      %v1184 = vunpack.c.l.b16 %v1056
      %v1185 = vunpack.c.l.b16 %v1057
      %v1186 = vunpack.c.l.b16 %v1058
      %v1187 = vunpack.c.l.b16 %v1059
      %v1188 = vunpack.c.l.b16 %v1060
      %v1189 = vunpack.c.l.b16 %v1061
      %v1190 = vunpack.c.l.b16 %v1062
      %v1191 = vunpack.c.l.b16 %v1063
      %v1192 = vunpack.c.l.b16 %v1064
      %v1193 = vunpack.c.l.b16 %v1065
      %v1194 = vunpack.c.l.b16 %v1066
      %v1195 = vunpack.c.l.b16 %v1067
      %v1196 = vunpack.c.l.b16 %v1068
      %v1197 = vunpack.c.l.b16 %v1069
      %v1198 = vunpack.c.l.b16 %v1070
      %v1199 = vunpack.c.l.b16 %v1071
      %v1200 = vunpack.c.l.b16 %v1072
      %v1201 = vunpack.c.l.b16 %v1073
      %v1202 = vunpack.c.l.b16 %v1074
      %v1203 = vunpack.c.l.b16 %v1075
      %v1204 = vunpack.c.l.b16 %v1076
      %v1205 = vunpack.c.l.b16 %v1077
      %v1206 = vunpack.c.l.b16 %v1078
      %v1207 = vunpack.c.l.b16 %v1079
      %v1208 = vunpack.c.l.b16 %v1080
      %v1209 = vunpack.c.l.b16 %v1081
      %v1210 = vunpack.c.l.b16 %v1082
      %v1211 = vunpack.c.l.b16 %v1083
      %v1212 = vunpack.c.l.b16 %v1084
      %v1213 = vunpack.c.l.b16 %v1085
      %v1214 = vunpack.c.l.b16 %v1086
      %v1215 = vunpack.c.l.b16 %v1087
      %v1216 = vunpack.c.l.b16 %v1088
      %v1217 = vunpack.c.l.b16 %v1089
      %v1218 = vunpack.c.l.b16 %v1090
      %v1219 = vunpack.c.l.b16 %v1091
      %v1220 = vunpack.c.l.b16 %v1092
      %v1221 = vunpack.c.l.b16 %v1093
      %v1222 = vunpack.c.l.b16 %v1094
      %v1223 = vunpack.c.l.b16 %v1095
      %v1224 = vunpack.c.l.b16 %v1096
      %v1225 = vunpack.c.l.b16 %v1097
      %v1226 = vunpack.c.l.b16 %v1098
      %v1227 = vunpack.c.l.b16 %v1099
      %v1228 = vunpack.c.l.b16 %v1100
      %v1229 = vunpack.c.l.b16 %v1101
      %v1230 = vunpack.c.l.b16 %v1102
      %v1231 = vunpack.c.l.b16 %v1103
      %v1232 = vunpack.c.l.b16 %v1104
      %v1233 = vunpack.c.l.b16 %v1105
      %v1234 = vunpack.c.l.b16 %v1106
      %v1235 = vunpack.c.l.b16 %v1107
      %v1236 = vunpack.c.l.b16 %v1108
      %v1237 = vunpack.c.l.b16 %v1109
      %v1238 = vunpack.c.l.b16 %v1110
      %v1239 = vunpack.c.l.b16 %v1111
      %v1240 = vunpack.c.l.b16 %v1112
      %v1241 = vunpack.c.l.b16 %v1113
      %v1242 = vunpack.c.l.b16 %v1114
      %v1243 = vunpack.c.l.b16 %v1115
      %v1244 = vunpack.c.l.b16 %v1116
      %v1245 = vunpack.c.l.b16 %v1117
      %v1246 = vpack.c.b16 %v1183, %v1182
      %v1247 = vpack.c.b16 %v1185, %v1184
      %v1248 = vpack.c.b16 %v1187, %v1186
      %v1249 = vpack.c.b16 %v1189, %v1188
      %v1250 = vpack.c.b16 %v1191, %v1190
      %v1251 = vpack.c.b16 %v1193, %v1192
      %v1252 = vpack.c.b16 %v1195, %v1194
      %v1253 = vpack.c.b16 %v1197, %v1196
      %v1254 = vpack.c.b16 %v1199, %v1198
      %v1255 = vpack.c.b16 %v1201, %v1200
      %v1256 = vpack.c.b16 %v1203, %v1202
      %v1257 = vpack.c.b16 %v1205, %v1204
      %v1258 = vpack.c.b16 %v1207, %v1206
      %v1259 = vpack.c.b16 %v1209, %v1208
      %v1260 = vpack.c.b16 %v1211, %v1210
      %v1261 = vpack.c.b16 %v1213, %v1212
      %v1262 = vpack.c.b16 %v1215, %v1214
      %v1263 = vpack.c.b16 %v1217, %v1216
      %v1264 = vpack.c.b16 %v1219, %v1218
      %v1265 = vpack.c.b16 %v1221, %v1220
      %v1266 = vpack.c.b16 %v1223, %v1222
      %v1267 = vpack.c.b16 %v1225, %v1224
      %v1268 = vpack.c.b16 %v1227, %v1226
      %v1269 = vpack.c.b16 %v1229, %v1228
      %v1270 = vpack.c.b16 %v1231, %v1230
      %v1271 = vpack.c.b16 %v1233, %v1232
      %v1272 = vpack.c.b16 %v1235, %v1234
      %v1273 = vpack.c.b16 %v1237, %v1236
      %v1274 = vpack.c.b16 %v1239, %v1238
      %v1275 = vpack.c.b16 %v1241, %v1240
      %v1276 = vpack.c.b16 %v1243, %v1242
      %v1277 = vpack.c.b16 %v1245, %v1244
      %v1279 = vsel %vm587, %v1246, 0
      %v1282 = vsel %vm587, %v1247, 0
      %v1285 = vsel %vm587, %v1248, 0
      %v1288 = vsel %vm587, %v1249, 0
      %v1291 = vsel %vm587, %v1250, 0
      %v1294 = vsel %vm587, %v1251, 0
      %v1297 = vsel %vm587, %v1252, 0
      %v1300 = vsel %vm587, %v1253, 0
      %v1303 = vsel %vm587, %v1254, 0
      %v1306 = vsel %vm587, %v1255, 0
      %v1309 = vsel %vm587, %v1256, 0
      %v1312 = vsel %vm587, %v1257, 0
      %v1315 = vsel %vm587, %v1258, 0
      %v1318 = vsel %vm587, %v1259, 0
      %v1321 = vsel %vm587, %v1260, 0
      %v1324 = vsel %vm587, %v1261, 0
      %v1327 = vsel %vm587, %v1262, 0
      %v1330 = vsel %vm587, %v1263, 0
      %v1333 = vsel %vm587, %v1264, 0
      %v1336 = vsel %vm587, %v1265, 0
      %v1339 = vsel %vm587, %v1266, 0
      %v1342 = vsel %vm587, %v1267, 0
      %v1345 = vsel %vm587, %v1268, 0
      %v1348 = vsel %vm587, %v1269, 0
      %v1351 = vsel %vm587, %v1270, 0
      %v1354 = vsel %vm587, %v1271, 0
      %v1357 = vsel %vm587, %v1272, 0
      %v1360 = vsel %vm587, %v1273, 0
      %v1363 = vsel %vm587, %v1274, 0
      %v1366 = vsel %vm587, %v1275, 0
      %v1369 = vsel %vm587, %v1276, 0
      %v1372 = vsel %vm587, %v1277, 0
      %1374 = vmatpush.bf16.msra.mxu0 0
      %1375 = vmatpush.bf16.msra.mxu0 0
      %1376 = vmatpush.bf16.msra.mxu0 0
      %1377 = vmatpush.bf16.msra.mxu0 %v689
      %1378 = vmatpush.bf16.msra.mxu0 %v581
      %1379 = vmatpush.bf16.msra.mxu0 %v580
      %1380 = vmatpush.bf16.msra.mxu0 %v579
      %1381 = vmatpush.bf16.msra.mxu0 %v578
      %1382 = vmatmul.bf16.gmra.mxu0 %v1279
      %v1383 = vpop.f32.mrf.mxu0
      %v1384 = vadd.f32 %v397, %v1383
      %v1385 = vpop.f32.mrf.mxu0
      %v1386 = vadd.f32 %v397, %v1385
      %1387 = vmatmul.bf16.gmra.mxu0 %v1282
      %v1388 = vpop.f32.mrf.mxu0
      %v1389 = vadd.f32 %v397, %v1388
      %v1390 = vpop.f32.mrf.mxu0
      %v1391 = vadd.f32 %v397, %v1390
      %1392 = vmatmul.bf16.gmra.mxu0 %v1285
      %v1393 = vpop.f32.mrf.mxu0
      %v1394 = vadd.f32 %v397, %v1393
      %v1395 = vpop.f32.mrf.mxu0
      %v1396 = vadd.f32 %v397, %v1395
      %1397 = vmatmul.bf16.gmra.mxu0 %v1288
      %v1398 = vpop.f32.mrf.mxu0
      %v1399 = vadd.f32 %v397, %v1398
      %v1400 = vpop.f32.mrf.mxu0
      %v1401 = vadd.f32 %v397, %v1400
      %1402 = vmatmul.bf16.gmra.mxu0 %v1291
      %v1403 = vpop.f32.mrf.mxu0
      %v1404 = vadd.f32 %v397, %v1403
      %v1405 = vpop.f32.mrf.mxu0
      %v1406 = vadd.f32 %v397, %v1405
      %1407 = vmatmul.bf16.gmra.mxu0 %v1294
      %v1408 = vpop.f32.mrf.mxu0
      %v1409 = vadd.f32 %v397, %v1408
      %v1410 = vpop.f32.mrf.mxu0
      %v1411 = vadd.f32 %v397, %v1410
      %1412 = vmatmul.bf16.gmra.mxu0 %v1297
      %v1413 = vpop.f32.mrf.mxu0
      %v1414 = vadd.f32 %v397, %v1413
      %v1415 = vpop.f32.mrf.mxu0
      %v1416 = vadd.f32 %v397, %v1415
      %1417 = vmatmul.bf16.gmra.mxu0 %v1300
      %v1418 = vpop.f32.mrf.mxu0
      %v1419 = vadd.f32 %v397, %v1418
      %v1420 = vpop.f32.mrf.mxu0
      %v1421 = vadd.f32 %v397, %v1420
      %1422 = vmatmul.bf16.gmra.mxu0 %v1303
      %v1423 = vpop.f32.mrf.mxu0
      %v1424 = vadd.f32 %v397, %v1423
      %v1425 = vpop.f32.mrf.mxu0
      %v1426 = vadd.f32 %v397, %v1425
      %1427 = vmatmul.bf16.gmra.mxu0 %v1306
      %v1428 = vpop.f32.mrf.mxu0
      %v1429 = vadd.f32 %v397, %v1428
      %v1430 = vpop.f32.mrf.mxu0
      %v1431 = vadd.f32 %v397, %v1430
      %1432 = vmatmul.bf16.gmra.mxu0 %v1309
      %v1433 = vpop.f32.mrf.mxu0
      %v1434 = vadd.f32 %v397, %v1433
      %v1435 = vpop.f32.mrf.mxu0
      %v1436 = vadd.f32 %v397, %v1435
      %1437 = vmatmul.bf16.gmra.mxu0 %v1312
      %v1438 = vpop.f32.mrf.mxu0
      %v1439 = vadd.f32 %v397, %v1438
      %v1440 = vpop.f32.mrf.mxu0
      %v1441 = vadd.f32 %v397, %v1440
      %1442 = vmatmul.bf16.gmra.mxu0 %v1315
      %v1443 = vpop.f32.mrf.mxu0
      %v1444 = vadd.f32 %v397, %v1443
      %v1445 = vpop.f32.mrf.mxu0
      %v1446 = vadd.f32 %v397, %v1445
      %1447 = vmatmul.bf16.gmra.mxu0 %v1318
      %v1448 = vpop.f32.mrf.mxu0
      %v1449 = vadd.f32 %v397, %v1448
      %v1450 = vpop.f32.mrf.mxu0
      %v1451 = vadd.f32 %v397, %v1450
      %1452 = vmatmul.bf16.gmra.mxu0 %v1321
      %v1453 = vpop.f32.mrf.mxu0
      %v1454 = vadd.f32 %v397, %v1453
      %v1455 = vpop.f32.mrf.mxu0
      %v1456 = vadd.f32 %v397, %v1455
      %1457 = vmatmul.bf16.gmra.mxu0 %v1324
      %v1458 = vpop.f32.mrf.mxu0
      %v1459 = vadd.f32 %v397, %v1458
      %v1460 = vpop.f32.mrf.mxu0
      %v1461 = vadd.f32 %v397, %v1460
      %1462 = vmatmul.bf16.gmra.mxu0 %v1327
      %v1463 = vpop.f32.mrf.mxu0
      %v1464 = vadd.f32 %v397, %v1463
      %v1465 = vpop.f32.mrf.mxu0
      %v1466 = vadd.f32 %v397, %v1465
      %1467 = vmatmul.bf16.gmra.mxu0 %v1330
      %v1468 = vpop.f32.mrf.mxu0
      %v1469 = vadd.f32 %v397, %v1468
      %v1470 = vpop.f32.mrf.mxu0
      %v1471 = vadd.f32 %v397, %v1470
      %1472 = vmatmul.bf16.gmra.mxu0 %v1333
      %v1473 = vpop.f32.mrf.mxu0
      %v1474 = vadd.f32 %v397, %v1473
      %v1475 = vpop.f32.mrf.mxu0
      %v1476 = vadd.f32 %v397, %v1475
      %1477 = vmatmul.bf16.gmra.mxu0 %v1336
      %v1478 = vpop.f32.mrf.mxu0
      %v1479 = vadd.f32 %v397, %v1478
      %v1480 = vpop.f32.mrf.mxu0
      %v1481 = vadd.f32 %v397, %v1480
      %1482 = vmatmul.bf16.gmra.mxu0 %v1339
      %v1483 = vpop.f32.mrf.mxu0
      %v1484 = vadd.f32 %v397, %v1483
      %v1485 = vpop.f32.mrf.mxu0
      %v1486 = vadd.f32 %v397, %v1485
      %1487 = vmatmul.bf16.gmra.mxu0 %v1342
      %v1488 = vpop.f32.mrf.mxu0
      %v1489 = vadd.f32 %v397, %v1488
      %v1490 = vpop.f32.mrf.mxu0
      %v1491 = vadd.f32 %v397, %v1490
      %1492 = vmatmul.bf16.gmra.mxu0 %v1345
      %v1493 = vpop.f32.mrf.mxu0
      %v1494 = vadd.f32 %v397, %v1493
      %v1495 = vpop.f32.mrf.mxu0
      %v1496 = vadd.f32 %v397, %v1495
      %1497 = vmatmul.bf16.gmra.mxu0 %v1348
      %v1498 = vpop.f32.mrf.mxu0
      %v1499 = vadd.f32 %v397, %v1498
      %v1500 = vpop.f32.mrf.mxu0
      %v1501 = vadd.f32 %v397, %v1500
      %1502 = vmatmul.bf16.gmra.mxu0 %v1351
      %v1503 = vpop.f32.mrf.mxu0
      %v1504 = vadd.f32 %v397, %v1503
      %v1505 = vpop.f32.mrf.mxu0
      %v1506 = vadd.f32 %v397, %v1505
      %1507 = vmatmul.bf16.gmra.mxu0 %v1354
      %v1508 = vpop.f32.mrf.mxu0
      %v1509 = vadd.f32 %v397, %v1508
      %v1510 = vpop.f32.mrf.mxu0
      %v1511 = vadd.f32 %v397, %v1510
      %1512 = vmatmul.bf16.gmra.mxu0 %v1357
      %v1513 = vpop.f32.mrf.mxu0
      %v1514 = vadd.f32 %v397, %v1513
      %v1515 = vpop.f32.mrf.mxu0
      %v1516 = vadd.f32 %v397, %v1515
      %1517 = vmatmul.bf16.gmra.mxu0 %v1360
      %v1518 = vpop.f32.mrf.mxu0
      %v1519 = vadd.f32 %v397, %v1518
      %v1520 = vpop.f32.mrf.mxu0
      %v1521 = vadd.f32 %v397, %v1520
      %1522 = vmatmul.bf16.gmra.mxu0 %v1363
      %v1523 = vpop.f32.mrf.mxu0
      %v1524 = vadd.f32 %v397, %v1523
      %v1525 = vpop.f32.mrf.mxu0
      %v1526 = vadd.f32 %v397, %v1525
      %1527 = vmatmul.bf16.gmra.mxu0 %v1366
      %v1528 = vpop.f32.mrf.mxu0
      %v1529 = vadd.f32 %v397, %v1528
      %v1530 = vpop.f32.mrf.mxu0
      %v1531 = vadd.f32 %v397, %v1530
      %1532 = vmatmul.bf16.gmra.mxu0 %v1369
      %v1533 = vpop.f32.mrf.mxu0
      %v1534 = vadd.f32 %v397, %v1533
      %v1535 = vpop.f32.mrf.mxu0
      %v1536 = vadd.f32 %v397, %v1535
      %1537 = vmatmul.bf16.gmra.mxu0 %v1372
      %v1538 = vpop.f32.mrf.mxu0
      %v1539 = vadd.f32 %v397, %v1538
      %v1540 = vpop.f32.mrf.mxu0
      %v1541 = vadd.f32 %v397, %v1540
      %1542 = vdwg.mxu0
      %v1543 = vmax.f32 %v1384, 0.0
      %v1544 = vmax.f32 %v1386, 0.0
      %v1545 = vmax.f32 %v1389, 0.0
      %v1546 = vmax.f32 %v1391, 0.0
      %v1547 = vmax.f32 %v1394, 0.0
      %v1548 = vmax.f32 %v1396, 0.0
      %v1549 = vmax.f32 %v1399, 0.0
      %v1550 = vmax.f32 %v1401, 0.0
      %v1551 = vmax.f32 %v1404, 0.0
      %v1552 = vmax.f32 %v1406, 0.0
      %v1553 = vmax.f32 %v1409, 0.0
      %v1554 = vmax.f32 %v1411, 0.0
      %v1555 = vmax.f32 %v1414, 0.0
      %v1556 = vmax.f32 %v1416, 0.0
      %v1557 = vmax.f32 %v1419, 0.0
      %v1558 = vmax.f32 %v1421, 0.0
      %v1559 = vmax.f32 %v1424, 0.0
      %v1560 = vmax.f32 %v1426, 0.0
      %v1561 = vmax.f32 %v1429, 0.0
      %v1562 = vmax.f32 %v1431, 0.0
      %v1563 = vmax.f32 %v1434, 0.0
      %v1564 = vmax.f32 %v1436, 0.0
      %v1565 = vmax.f32 %v1439, 0.0
      %v1566 = vmax.f32 %v1441, 0.0
      %v1567 = vmax.f32 %v1444, 0.0
      %v1568 = vmax.f32 %v1446, 0.0
      %v1569 = vmax.f32 %v1449, 0.0
      %v1570 = vmax.f32 %v1451, 0.0
      %v1571 = vmax.f32 %v1454, 0.0
      %v1572 = vmax.f32 %v1456, 0.0
      %v1573 = vmax.f32 %v1459, 0.0
      %v1574 = vmax.f32 %v1461, 0.0
      %v1575 = vmax.f32 %v1464, 0.0
      %v1576 = vmax.f32 %v1466, 0.0
      %v1577 = vmax.f32 %v1469, 0.0
      %v1578 = vmax.f32 %v1471, 0.0
      %v1579 = vmax.f32 %v1474, 0.0
      %v1580 = vmax.f32 %v1476, 0.0
      %v1581 = vmax.f32 %v1479, 0.0
      %v1582 = vmax.f32 %v1481, 0.0
      %v1583 = vmax.f32 %v1484, 0.0
      %v1584 = vmax.f32 %v1486, 0.0
      %v1585 = vmax.f32 %v1489, 0.0
      %v1586 = vmax.f32 %v1491, 0.0
      %v1587 = vmax.f32 %v1494, 0.0
      %v1588 = vmax.f32 %v1496, 0.0
      %v1589 = vmax.f32 %v1499, 0.0
      %v1590 = vmax.f32 %v1501, 0.0
      %v1591 = vmax.f32 %v1504, 0.0
      %v1592 = vmax.f32 %v1506, 0.0
      %v1593 = vmax.f32 %v1509, 0.0
      %v1594 = vmax.f32 %v1511, 0.0
      %v1595 = vmax.f32 %v1514, 0.0
      %v1596 = vmax.f32 %v1516, 0.0
      %v1597 = vmax.f32 %v1519, 0.0
      %v1598 = vmax.f32 %v1521, 0.0
      %v1599 = vmax.f32 %v1524, 0.0
      %v1600 = vmax.f32 %v1526, 0.0
      %v1601 = vmax.f32 %v1529, 0.0
      %v1602 = vmax.f32 %v1531, 0.0
      %v1603 = vmax.f32 %v1534, 0.0
      %v1604 = vmax.f32 %v1536, 0.0
      %v1605 = vmax.f32 %v1539, 0.0
      %v1606 = vmax.f32 %v1541, 0.0
      %v1607 = vmul.f32 %v1543, %v924
      %v1608 = vmul.f32 %v1544, %v924
      %v1609 = vmul.f32 %v1545, %v924
      %v1610 = vmul.f32 %v1546, %v924
      %v1611 = vmul.f32 %v1547, %v924
      %v1612 = vmul.f32 %v1548, %v924
      %v1613 = vmul.f32 %v1549, %v924
      %v1614 = vmul.f32 %v1550, %v924
      %v1615 = vmul.f32 %v1551, %v924
      %v1616 = vmul.f32 %v1552, %v924
      %v1617 = vmul.f32 %v1553, %v924
      %v1618 = vmul.f32 %v1554, %v924
      %v1619 = vmul.f32 %v1555, %v924
      %v1620 = vmul.f32 %v1556, %v924
      %v1621 = vmul.f32 %v1557, %v924
      %v1622 = vmul.f32 %v1558, %v924
      %v1623 = vmul.f32 %v1559, %v924
      %v1624 = vmul.f32 %v1560, %v924
      %v1625 = vmul.f32 %v1561, %v924
      %v1626 = vmul.f32 %v1562, %v924
      %v1627 = vmul.f32 %v1563, %v924
      %v1628 = vmul.f32 %v1564, %v924
      %v1629 = vmul.f32 %v1565, %v924
      %v1630 = vmul.f32 %v1566, %v924
      %v1631 = vmul.f32 %v1567, %v924
      %v1632 = vmul.f32 %v1568, %v924
      %v1633 = vmul.f32 %v1569, %v924
      %v1634 = vmul.f32 %v1570, %v924
      %v1635 = vmul.f32 %v1571, %v924
      %v1636 = vmul.f32 %v1572, %v924
      %v1637 = vmul.f32 %v1573, %v924
      %v1638 = vmul.f32 %v1574, %v924
      %v1639 = vmul.f32 %v1575, %v924
      %v1640 = vmul.f32 %v1576, %v924
      %v1641 = vmul.f32 %v1577, %v924
      %v1642 = vmul.f32 %v1578, %v924
      %v1643 = vmul.f32 %v1579, %v924
      %v1644 = vmul.f32 %v1580, %v924
      %v1645 = vmul.f32 %v1581, %v924
      %v1646 = vmul.f32 %v1582, %v924
      %v1647 = vmul.f32 %v1583, %v924
      %v1648 = vmul.f32 %v1584, %v924
      %v1649 = vmul.f32 %v1585, %v924
      %v1650 = vmul.f32 %v1586, %v924
      %v1651 = vmul.f32 %v1587, %v924
      %v1652 = vmul.f32 %v1588, %v924
      %v1653 = vmul.f32 %v1589, %v924
      %v1654 = vmul.f32 %v1590, %v924
      %v1655 = vmul.f32 %v1591, %v924
      %v1656 = vmul.f32 %v1592, %v924
      %v1657 = vmul.f32 %v1593, %v924
      %v1658 = vmul.f32 %v1594, %v924
      %v1659 = vmul.f32 %v1595, %v924
      %v1660 = vmul.f32 %v1596, %v924
      %v1661 = vmul.f32 %v1597, %v924
      %v1662 = vmul.f32 %v1598, %v924
      %v1663 = vmul.f32 %v1599, %v924
      %v1664 = vmul.f32 %v1600, %v924
      %v1665 = vmul.f32 %v1601, %v924
      %v1666 = vmul.f32 %v1602, %v924
      %v1667 = vmul.f32 %v1603, %v924
      %v1668 = vmul.f32 %v1604, %v924
      %v1669 = vmul.f32 %v1605, %v924
      %v1670 = vmul.f32 %v1606, %v924
      %v1671 = vadd.f32 %v1607, %v989
      %v1672 = vadd.f32 %v1608, %v989
      %v1673 = vadd.f32 %v1609, %v989
      %v1674 = vadd.f32 %v1610, %v989
      %v1675 = vadd.f32 %v1611, %v989
      %v1676 = vadd.f32 %v1612, %v989
      %v1677 = vadd.f32 %v1613, %v989
      %v1678 = vadd.f32 %v1614, %v989
      %v1679 = vadd.f32 %v1615, %v989
      %v1680 = vadd.f32 %v1616, %v989
      %v1681 = vadd.f32 %v1617, %v989
      %v1682 = vadd.f32 %v1618, %v989
      %v1683 = vadd.f32 %v1619, %v989
      %v1684 = vadd.f32 %v1620, %v989
      %v1685 = vadd.f32 %v1621, %v989
      %v1686 = vadd.f32 %v1622, %v989
      %v1687 = vadd.f32 %v1623, %v989
      %v1688 = vadd.f32 %v1624, %v989
      %v1689 = vadd.f32 %v1625, %v989
      %v1690 = vadd.f32 %v1626, %v989
      %v1691 = vadd.f32 %v1627, %v989
      %v1692 = vadd.f32 %v1628, %v989
      %v1693 = vadd.f32 %v1629, %v989
      %v1694 = vadd.f32 %v1630, %v989
      %v1695 = vadd.f32 %v1631, %v989
      %v1696 = vadd.f32 %v1632, %v989
      %v1697 = vadd.f32 %v1633, %v989
      %v1698 = vadd.f32 %v1634, %v989
      %v1699 = vadd.f32 %v1635, %v989
      %v1700 = vadd.f32 %v1636, %v989
      %v1701 = vadd.f32 %v1637, %v989
      %v1702 = vadd.f32 %v1638, %v989
      %v1703 = vadd.f32 %v1639, %v989
      %v1704 = vadd.f32 %v1640, %v989
      %v1705 = vadd.f32 %v1641, %v989
      %v1706 = vadd.f32 %v1642, %v989
      %v1707 = vadd.f32 %v1643, %v989
      %v1708 = vadd.f32 %v1644, %v989
      %v1709 = vadd.f32 %v1645, %v989
      %v1710 = vadd.f32 %v1646, %v989
      %v1711 = vadd.f32 %v1647, %v989
      %v1712 = vadd.f32 %v1648, %v989
      %v1713 = vadd.f32 %v1649, %v989
      %v1714 = vadd.f32 %v1650, %v989
      %v1715 = vadd.f32 %v1651, %v989
      %v1716 = vadd.f32 %v1652, %v989
      %v1717 = vadd.f32 %v1653, %v989
      %v1718 = vadd.f32 %v1654, %v989
      %v1719 = vadd.f32 %v1655, %v989
      %v1720 = vadd.f32 %v1656, %v989
      %v1721 = vadd.f32 %v1657, %v989
      %v1722 = vadd.f32 %v1658, %v989
      %v1723 = vadd.f32 %v1659, %v989
      %v1724 = vadd.f32 %v1660, %v989
      %v1725 = vadd.f32 %v1661, %v989
      %v1726 = vadd.f32 %v1662, %v989
      %v1727 = vadd.f32 %v1663, %v989
      %v1728 = vadd.f32 %v1664, %v989
      %v1729 = vadd.f32 %v1665, %v989
      %v1730 = vadd.f32 %v1666, %v989
      %v1731 = vadd.f32 %v1667, %v989
      %v1732 = vadd.f32 %v1668, %v989
      %v1733 = vadd.f32 %v1669, %v989
      %v1734 = vadd.f32 %v1670, %v989
      %v1735 = vmax.f32 %v990, %v1671
      %v1736 = vmax.f32 %v991, %v1672
      %v1737 = vmax.f32 %v992, %v1673
      %v1738 = vmax.f32 %v993, %v1674
      %v1739 = vmax.f32 %v994, %v1675
      %v1740 = vmax.f32 %v995, %v1676
      %v1741 = vmax.f32 %v996, %v1677
      %v1742 = vmax.f32 %v997, %v1678
      %v1743 = vmax.f32 %v998, %v1679
      %v1744 = vmax.f32 %v999, %v1680
      %v1745 = vmax.f32 %v1000, %v1681
      %v1746 = vmax.f32 %v1001, %v1682
      %v1747 = vmax.f32 %v1002, %v1683
      %v1748 = vmax.f32 %v1003, %v1684
      %v1749 = vmax.f32 %v1004, %v1685
      %v1750 = vmax.f32 %v1005, %v1686
      %v1751 = vmax.f32 %v1006, %v1687
      %v1752 = vmax.f32 %v1007, %v1688
      %v1753 = vmax.f32 %v1008, %v1689
      %v1754 = vmax.f32 %v1009, %v1690
      %v1755 = vmax.f32 %v1010, %v1691
      %v1756 = vmax.f32 %v1011, %v1692
      %v1757 = vmax.f32 %v1012, %v1693
      %v1758 = vmax.f32 %v1013, %v1694
      %v1759 = vmax.f32 %v1014, %v1695
      %v1760 = vmax.f32 %v1015, %v1696
      %v1761 = vmax.f32 %v1016, %v1697
      %v1762 = vmax.f32 %v1017, %v1698
      %v1763 = vmax.f32 %v1018, %v1699
      %v1764 = vmax.f32 %v1019, %v1700
      %v1765 = vmax.f32 %v1020, %v1701
      %v1766 = vmax.f32 %v1021, %v1702
      %v1767 = vmax.f32 %v1022, %v1703
      %v1768 = vmax.f32 %v1023, %v1704
      %v1769 = vmax.f32 %v1024, %v1705
      %v1770 = vmax.f32 %v1025, %v1706
      %v1771 = vmax.f32 %v1026, %v1707
      %v1772 = vmax.f32 %v1027, %v1708
      %v1773 = vmax.f32 %v1028, %v1709
      %v1774 = vmax.f32 %v1029, %v1710
      %v1775 = vmax.f32 %v1030, %v1711
      %v1776 = vmax.f32 %v1031, %v1712
      %v1777 = vmax.f32 %v1032, %v1713
      %v1778 = vmax.f32 %v1033, %v1714
      %v1779 = vmax.f32 %v1034, %v1715
      %v1780 = vmax.f32 %v1035, %v1716
      %v1781 = vmax.f32 %v1036, %v1717
      %v1782 = vmax.f32 %v1037, %v1718
      %v1783 = vmax.f32 %v1038, %v1719
      %v1784 = vmax.f32 %v1039, %v1720
      %v1785 = vmax.f32 %v1040, %v1721
      %v1786 = vmax.f32 %v1041, %v1722
      %v1787 = vmax.f32 %v1042, %v1723
      %v1788 = vmax.f32 %v1043, %v1724
      %v1789 = vmax.f32 %v1044, %v1725
      %v1790 = vmax.f32 %v1045, %v1726
      %v1791 = vmax.f32 %v1046, %v1727
      %v1792 = vmax.f32 %v1047, %v1728
      %v1793 = vmax.f32 %v1048, %v1729
      %v1794 = vmax.f32 %v1049, %v1730
      %v1795 = vmax.f32 %v1050, %v1731
      %v1796 = vmax.f32 %v1051, %v1732
      %v1797 = vmax.f32 %v1052, %v1733
      %v1798 = vmax.f32 %v1053, %v1734
      %v1799 = vld [vmem:[%s307] sm:$0xf]
      %v1800 = vld [vmem:[%s307 + $0x4] sm:$0xf]
      %v1801 = vld [vmem:[%s307 + $0x8] sm:$0xf]
      %v1802 = vld [vmem:[%s307 + $0xc] sm:$0xf]
      %v1803 = vld [vmem:[%s307 + $0x10] sm:$0xf]
      %v1804 = vld [vmem:[%s307 + $0x14] sm:$0xf]
      %v1805 = vld [vmem:[%s307 + $0x18] sm:$0xf]
      %v1806 = vld [vmem:[%s307 + $0x1c] sm:$0xf]
      %v1807 = vld [vmem:[%s307 + $0x20] sm:$0xf]
      %v1808 = vld [vmem:[%s307 + $0x24] sm:$0xf]
      %v1809 = vld [vmem:[%s307 + $0x28] sm:$0xf]
      %v1810 = vld [vmem:[%s307 + $0x2c] sm:$0xf]
      %v1811 = vld [vmem:[%s307 + $0x30] sm:$0xf]
      %v1812 = vld [vmem:[%s307 + $0x34] sm:$0xf]
      %v1813 = vld [vmem:[%s307 + $0x38] sm:$0xf]
      %v1814 = vld [vmem:[%s307 + $0x3c] sm:$0xf]
      %v1815 = vld [vmem:[%s307 + $0x40] sm:$0xf]
      %v1816 = vld [vmem:[%s307 + $0x44] sm:$0xf]
      %v1817 = vld [vmem:[%s307 + $0x48] sm:$0xf]
      %v1818 = vld [vmem:[%s307 + $0x4c] sm:$0xf]
      %v1819 = vld [vmem:[%s307 + $0x50] sm:$0xf]
      %v1820 = vld [vmem:[%s307 + $0x54] sm:$0xf]
      %v1821 = vld [vmem:[%s307 + $0x58] sm:$0xf]
      %v1822 = vld [vmem:[%s307 + $0x5c] sm:$0xf]
      %v1823 = vld [vmem:[%s307 + $0x60] sm:$0xf]
      %v1824 = vld [vmem:[%s307 + $0x64] sm:$0xf]
      %v1825 = vld [vmem:[%s307 + $0x68] sm:$0xf]
      %v1826 = vld [vmem:[%s307 + $0x6c] sm:$0xf]
      %v1827 = vld [vmem:[%s307 + $0x70] sm:$0xf]
      %v1828 = vld [vmem:[%s307 + $0x74] sm:$0xf]
      %v1829 = vld [vmem:[%s307 + $0x78] sm:$0xf]
      %v1830 = vld [vmem:[%s307 + $0x7c] sm:$0xf]
      %v1831 = vld [vmem:[%s307 + $0x80] sm:$0xf]
      %v1832 = vld [vmem:[%s307 + $0x84] sm:$0xf]
      %v1833 = vld [vmem:[%s307 + $0x88] sm:$0xf]
      %v1834 = vld [vmem:[%s307 + $0x8c] sm:$0xf]
      %v1835 = vld [vmem:[%s307 + $0x90] sm:$0xf]
      %v1836 = vld [vmem:[%s307 + $0x94] sm:$0xf]
      %v1837 = vld [vmem:[%s307 + $0x98] sm:$0xf]
      %v1838 = vld [vmem:[%s307 + $0x9c] sm:$0xf]
      %v1839 = vld [vmem:[%s307 + $0xa0] sm:$0xf]
      %v1840 = vld [vmem:[%s307 + $0xa4] sm:$0xf]
      %v1841 = vld [vmem:[%s307 + $0xa8] sm:$0xf]
      %v1842 = vld [vmem:[%s307 + $0xac] sm:$0xf]
      %v1843 = vld [vmem:[%s307 + $0xb0] sm:$0xf]
      %v1844 = vld [vmem:[%s307 + $0xb4] sm:$0xf]
      %v1845 = vld [vmem:[%s307 + $0xb8] sm:$0xf]
      %v1846 = vld [vmem:[%s307 + $0xbc] sm:$0xf]
      %v1847 = vld [vmem:[%s307 + $0xc0] sm:$0xf]
      %v1848 = vld [vmem:[%s307 + $0xc4] sm:$0xf]
      %v1849 = vld [vmem:[%s307 + $0xc8] sm:$0xf]
      %v1850 = vld [vmem:[%s307 + $0xcc] sm:$0xf]
      %v1851 = vld [vmem:[%s307 + $0xd0] sm:$0xf]
      %v1852 = vld [vmem:[%s307 + $0xd4] sm:$0xf]
      %v1853 = vld [vmem:[%s307 + $0xd8] sm:$0xf]
      %v1854 = vld [vmem:[%s307 + $0xdc] sm:$0xf]
      %v1855 = vld [vmem:[%s307 + $0xe0] sm:$0xf]
      %v1856 = vld [vmem:[%s307 + $0xe4] sm:$0xf]
      %v1857 = vld [vmem:[%s307 + $0xe8] sm:$0xf]
      %v1858 = vld [vmem:[%s307 + $0xec] sm:$0xf]
      %v1859 = vld [vmem:[%s307 + $0xf0] sm:$0xf]
      %v1860 = vld [vmem:[%s307 + $0xf4] sm:$0xf]
      %v1861 = vld [vmem:[%s307 + $0xf8] sm:$0xf]
      %v1862 = vld [vmem:[%s307 + $0xfc] sm:$0xf]
      %v1927 = vunpack.c.l.b16 %v1799
      %v1928 = vunpack.c.l.b16 %v1800
      %v1929 = vunpack.c.l.b16 %v1801
      %v1930 = vunpack.c.l.b16 %v1802
      %v1931 = vunpack.c.l.b16 %v1803
      %v1932 = vunpack.c.l.b16 %v1804
      %v1933 = vunpack.c.l.b16 %v1805
      %v1934 = vunpack.c.l.b16 %v1806
      %v1935 = vunpack.c.l.b16 %v1807
      %v1936 = vunpack.c.l.b16 %v1808
      %v1937 = vunpack.c.l.b16 %v1809
      %v1938 = vunpack.c.l.b16 %v1810
      %v1939 = vunpack.c.l.b16 %v1811
      %v1940 = vunpack.c.l.b16 %v1812
      %v1941 = vunpack.c.l.b16 %v1813
      %v1942 = vunpack.c.l.b16 %v1814
      %v1943 = vunpack.c.l.b16 %v1815
      %v1944 = vunpack.c.l.b16 %v1816
      %v1945 = vunpack.c.l.b16 %v1817
      %v1946 = vunpack.c.l.b16 %v1818
      %v1947 = vunpack.c.l.b16 %v1819
      %v1948 = vunpack.c.l.b16 %v1820
      %v1949 = vunpack.c.l.b16 %v1821
      %v1950 = vunpack.c.l.b16 %v1822
      %v1951 = vunpack.c.l.b16 %v1823
      %v1952 = vunpack.c.l.b16 %v1824
      %v1953 = vunpack.c.l.b16 %v1825
      %v1954 = vunpack.c.l.b16 %v1826
      %v1955 = vunpack.c.l.b16 %v1827
      %v1956 = vunpack.c.l.b16 %v1828
      %v1957 = vunpack.c.l.b16 %v1829
      %v1958 = vunpack.c.l.b16 %v1830
      %v1959 = vunpack.c.l.b16 %v1831
      %v1960 = vunpack.c.l.b16 %v1832
      %v1961 = vunpack.c.l.b16 %v1833
      %v1962 = vunpack.c.l.b16 %v1834
      %v1963 = vunpack.c.l.b16 %v1835
      %v1964 = vunpack.c.l.b16 %v1836
      %v1965 = vunpack.c.l.b16 %v1837
      %v1966 = vunpack.c.l.b16 %v1838
      %v1967 = vunpack.c.l.b16 %v1839
      %v1968 = vunpack.c.l.b16 %v1840
      %v1969 = vunpack.c.l.b16 %v1841
      %v1970 = vunpack.c.l.b16 %v1842
      %v1971 = vunpack.c.l.b16 %v1843
      %v1972 = vunpack.c.l.b16 %v1844
      %v1973 = vunpack.c.l.b16 %v1845
      %v1974 = vunpack.c.l.b16 %v1846
      %v1975 = vunpack.c.l.b16 %v1847
      %v1976 = vunpack.c.l.b16 %v1848
      %v1977 = vunpack.c.l.b16 %v1849
      %v1978 = vunpack.c.l.b16 %v1850
      %v1979 = vunpack.c.l.b16 %v1851
      %v1980 = vunpack.c.l.b16 %v1852
      %v1981 = vunpack.c.l.b16 %v1853
      %v1982 = vunpack.c.l.b16 %v1854
      %v1983 = vunpack.c.l.b16 %v1855
      %v1984 = vunpack.c.l.b16 %v1856
      %v1985 = vunpack.c.l.b16 %v1857
      %v1986 = vunpack.c.l.b16 %v1858
      %v1987 = vunpack.c.l.b16 %v1859
      %v1988 = vunpack.c.l.b16 %v1860
      %v1989 = vunpack.c.l.b16 %v1861
      %v1990 = vunpack.c.l.b16 %v1862
      %v1991 = vpack.c.b16 %v1928, %v1927
      %v1992 = vpack.c.b16 %v1930, %v1929
      %v1993 = vpack.c.b16 %v1932, %v1931
      %v1994 = vpack.c.b16 %v1934, %v1933
      %v1995 = vpack.c.b16 %v1936, %v1935
      %v1996 = vpack.c.b16 %v1938, %v1937
      %v1997 = vpack.c.b16 %v1940, %v1939
      %v1998 = vpack.c.b16 %v1942, %v1941
      %v1999 = vpack.c.b16 %v1944, %v1943
      %v2000 = vpack.c.b16 %v1946, %v1945
      %v2001 = vpack.c.b16 %v1948, %v1947
      %v2002 = vpack.c.b16 %v1950, %v1949
      %v2003 = vpack.c.b16 %v1952, %v1951
      %v2004 = vpack.c.b16 %v1954, %v1953
      %v2005 = vpack.c.b16 %v1956, %v1955
      %v2006 = vpack.c.b16 %v1958, %v1957
      %v2007 = vpack.c.b16 %v1960, %v1959
      %v2008 = vpack.c.b16 %v1962, %v1961
      %v2009 = vpack.c.b16 %v1964, %v1963
      %v2010 = vpack.c.b16 %v1966, %v1965
      %v2011 = vpack.c.b16 %v1968, %v1967
      %v2012 = vpack.c.b16 %v1970, %v1969
      %v2013 = vpack.c.b16 %v1972, %v1971
      %v2014 = vpack.c.b16 %v1974, %v1973
      %v2015 = vpack.c.b16 %v1976, %v1975
      %v2016 = vpack.c.b16 %v1978, %v1977
      %v2017 = vpack.c.b16 %v1980, %v1979
      %v2018 = vpack.c.b16 %v1982, %v1981
      %v2019 = vpack.c.b16 %v1984, %v1983
      %v2020 = vpack.c.b16 %v1986, %v1985
      %v2021 = vpack.c.b16 %v1988, %v1987
      %v2022 = vpack.c.b16 %v1990, %v1989
      %v2024 = vsel %vm587, %v1991, 0
      %v2027 = vsel %vm587, %v1992, 0
      %v2030 = vsel %vm587, %v1993, 0
      %v2033 = vsel %vm587, %v1994, 0
      %v2036 = vsel %vm587, %v1995, 0
      %v2039 = vsel %vm587, %v1996, 0
      %v2042 = vsel %vm587, %v1997, 0
      %v2045 = vsel %vm587, %v1998, 0
      %v2048 = vsel %vm587, %v1999, 0
      %v2051 = vsel %vm587, %v2000, 0
      %v2054 = vsel %vm587, %v2001, 0
      %v2057 = vsel %vm587, %v2002, 0
      %v2060 = vsel %vm587, %v2003, 0
      %v2063 = vsel %vm587, %v2004, 0
      %v2066 = vsel %vm587, %v2005, 0
      %v2069 = vsel %vm587, %v2006, 0
      %v2072 = vsel %vm587, %v2007, 0
      %v2075 = vsel %vm587, %v2008, 0
      %v2078 = vsel %vm587, %v2009, 0
      %v2081 = vsel %vm587, %v2010, 0
      %v2084 = vsel %vm587, %v2011, 0
      %v2087 = vsel %vm587, %v2012, 0
      %v2090 = vsel %vm587, %v2013, 0
      %v2093 = vsel %vm587, %v2014, 0
      %v2096 = vsel %vm587, %v2015, 0
      %v2099 = vsel %vm587, %v2016, 0
      %v2102 = vsel %vm587, %v2017, 0
      %v2105 = vsel %vm587, %v2018, 0
      %v2108 = vsel %vm587, %v2019, 0
      %v2111 = vsel %vm587, %v2020, 0
      %v2114 = vsel %vm587, %v2021, 0
      %v2117 = vsel %vm587, %v2022, 0
      %2119 = vmatpush.bf16.msra.mxu0 0
      %2120 = vmatpush.bf16.msra.mxu0 0
      %2121 = vmatpush.bf16.msra.mxu0 0
      %2122 = vmatpush.bf16.msra.mxu0 %v689
      %2123 = vmatpush.bf16.msra.mxu0 %v581
      %2124 = vmatpush.bf16.msra.mxu0 %v580
      %2125 = vmatpush.bf16.msra.mxu0 %v579
      %2126 = vmatpush.bf16.msra.mxu0 %v578
      %2127 = vmatmul.bf16.gmra.mxu0 %v2024
      %v2128 = vpop.f32.mrf.mxu0
      %v2129 = vadd.f32 %v397, %v2128
      %v2130 = vpop.f32.mrf.mxu0
      %v2131 = vadd.f32 %v397, %v2130
      %2132 = vmatmul.bf16.gmra.mxu0 %v2027
      %v2133 = vpop.f32.mrf.mxu0
      %v2134 = vadd.f32 %v397, %v2133
      %v2135 = vpop.f32.mrf.mxu0
      %v2136 = vadd.f32 %v397, %v2135
      %2137 = vmatmul.bf16.gmra.mxu0 %v2030
      %v2138 = vpop.f32.mrf.mxu0
      %v2139 = vadd.f32 %v397, %v2138
      %v2140 = vpop.f32.mrf.mxu0
      %v2141 = vadd.f32 %v397, %v2140
      %2142 = vmatmul.bf16.gmra.mxu0 %v2033
      %v2143 = vpop.f32.mrf.mxu0
      %v2144 = vadd.f32 %v397, %v2143
      %v2145 = vpop.f32.mrf.mxu0
      %v2146 = vadd.f32 %v397, %v2145
      %2147 = vmatmul.bf16.gmra.mxu0 %v2036
      %v2148 = vpop.f32.mrf.mxu0
      %v2149 = vadd.f32 %v397, %v2148
      %v2150 = vpop.f32.mrf.mxu0
      %v2151 = vadd.f32 %v397, %v2150
      %2152 = vmatmul.bf16.gmra.mxu0 %v2039
      %v2153 = vpop.f32.mrf.mxu0
      %v2154 = vadd.f32 %v397, %v2153
      %v2155 = vpop.f32.mrf.mxu0
      %v2156 = vadd.f32 %v397, %v2155
      %2157 = vmatmul.bf16.gmra.mxu0 %v2042
      %v2158 = vpop.f32.mrf.mxu0
      %v2159 = vadd.f32 %v397, %v2158
      %v2160 = vpop.f32.mrf.mxu0
      %v2161 = vadd.f32 %v397, %v2160
      %2162 = vmatmul.bf16.gmra.mxu0 %v2045
      %v2163 = vpop.f32.mrf.mxu0
      %v2164 = vadd.f32 %v397, %v2163
      %v2165 = vpop.f32.mrf.mxu0
      %v2166 = vadd.f32 %v397, %v2165
      %2167 = vmatmul.bf16.gmra.mxu0 %v2048
      %v2168 = vpop.f32.mrf.mxu0
      %v2169 = vadd.f32 %v397, %v2168
      %v2170 = vpop.f32.mrf.mxu0
      %v2171 = vadd.f32 %v397, %v2170
      %2172 = vmatmul.bf16.gmra.mxu0 %v2051
      %v2173 = vpop.f32.mrf.mxu0
      %v2174 = vadd.f32 %v397, %v2173
      %v2175 = vpop.f32.mrf.mxu0
      %v2176 = vadd.f32 %v397, %v2175
      %2177 = vmatmul.bf16.gmra.mxu0 %v2054
      %v2178 = vpop.f32.mrf.mxu0
      %v2179 = vadd.f32 %v397, %v2178
      %v2180 = vpop.f32.mrf.mxu0
      %v2181 = vadd.f32 %v397, %v2180
      %2182 = vmatmul.bf16.gmra.mxu0 %v2057
      %v2183 = vpop.f32.mrf.mxu0
      %v2184 = vadd.f32 %v397, %v2183
      %v2185 = vpop.f32.mrf.mxu0
      %v2186 = vadd.f32 %v397, %v2185
      %2187 = vmatmul.bf16.gmra.mxu0 %v2060
      %v2188 = vpop.f32.mrf.mxu0
      %v2189 = vadd.f32 %v397, %v2188
      %v2190 = vpop.f32.mrf.mxu0
      %v2191 = vadd.f32 %v397, %v2190
      %2192 = vmatmul.bf16.gmra.mxu0 %v2063
      %v2193 = vpop.f32.mrf.mxu0
      %v2194 = vadd.f32 %v397, %v2193
      %v2195 = vpop.f32.mrf.mxu0
      %v2196 = vadd.f32 %v397, %v2195
      %2197 = vmatmul.bf16.gmra.mxu0 %v2066
      %v2198 = vpop.f32.mrf.mxu0
      %v2199 = vadd.f32 %v397, %v2198
      %v2200 = vpop.f32.mrf.mxu0
      %v2201 = vadd.f32 %v397, %v2200
      %2202 = vmatmul.bf16.gmra.mxu0 %v2069
      %v2203 = vpop.f32.mrf.mxu0
      %v2204 = vadd.f32 %v397, %v2203
      %v2205 = vpop.f32.mrf.mxu0
      %v2206 = vadd.f32 %v397, %v2205
      %2207 = vmatmul.bf16.gmra.mxu0 %v2072
      %v2208 = vpop.f32.mrf.mxu0
      %v2209 = vadd.f32 %v397, %v2208
      %v2210 = vpop.f32.mrf.mxu0
      %v2211 = vadd.f32 %v397, %v2210
      %2212 = vmatmul.bf16.gmra.mxu0 %v2075
      %v2213 = vpop.f32.mrf.mxu0
      %v2214 = vadd.f32 %v397, %v2213
      %v2215 = vpop.f32.mrf.mxu0
      %v2216 = vadd.f32 %v397, %v2215
      %2217 = vmatmul.bf16.gmra.mxu0 %v2078
      %v2218 = vpop.f32.mrf.mxu0
      %v2219 = vadd.f32 %v397, %v2218
      %v2220 = vpop.f32.mrf.mxu0
      %v2221 = vadd.f32 %v397, %v2220
      %2222 = vmatmul.bf16.gmra.mxu0 %v2081
      %v2223 = vpop.f32.mrf.mxu0
      %v2224 = vadd.f32 %v397, %v2223
      %v2225 = vpop.f32.mrf.mxu0
      %v2226 = vadd.f32 %v397, %v2225
      %2227 = vmatmul.bf16.gmra.mxu0 %v2084
      %v2228 = vpop.f32.mrf.mxu0
      %v2229 = vadd.f32 %v397, %v2228
      %v2230 = vpop.f32.mrf.mxu0
      %v2231 = vadd.f32 %v397, %v2230
      %2232 = vmatmul.bf16.gmra.mxu0 %v2087
      %v2233 = vpop.f32.mrf.mxu0
      %v2234 = vadd.f32 %v397, %v2233
      %v2235 = vpop.f32.mrf.mxu0
      %v2236 = vadd.f32 %v397, %v2235
      %2237 = vmatmul.bf16.gmra.mxu0 %v2090
      %v2238 = vpop.f32.mrf.mxu0
      %v2239 = vadd.f32 %v397, %v2238
      %v2240 = vpop.f32.mrf.mxu0
      %v2241 = vadd.f32 %v397, %v2240
      %2242 = vmatmul.bf16.gmra.mxu0 %v2093
      %v2243 = vpop.f32.mrf.mxu0
      %v2244 = vadd.f32 %v397, %v2243
      %v2245 = vpop.f32.mrf.mxu0
      %v2246 = vadd.f32 %v397, %v2245
      %2247 = vmatmul.bf16.gmra.mxu0 %v2096
      %v2248 = vpop.f32.mrf.mxu0
      %v2249 = vadd.f32 %v397, %v2248
      %v2250 = vpop.f32.mrf.mxu0
      %v2251 = vadd.f32 %v397, %v2250
      %2252 = vmatmul.bf16.gmra.mxu0 %v2099
      %v2253 = vpop.f32.mrf.mxu0
      %v2254 = vadd.f32 %v397, %v2253
      %v2255 = vpop.f32.mrf.mxu0
      %v2256 = vadd.f32 %v397, %v2255
      %2257 = vmatmul.bf16.gmra.mxu0 %v2102
      %v2258 = vpop.f32.mrf.mxu0
      %v2259 = vadd.f32 %v397, %v2258
      %v2260 = vpop.f32.mrf.mxu0
      %v2261 = vadd.f32 %v397, %v2260
      %2262 = vmatmul.bf16.gmra.mxu0 %v2105
      %v2263 = vpop.f32.mrf.mxu0
      %v2264 = vadd.f32 %v397, %v2263
      %v2265 = vpop.f32.mrf.mxu0
      %v2266 = vadd.f32 %v397, %v2265
      %2267 = vmatmul.bf16.gmra.mxu0 %v2108
      %v2268 = vpop.f32.mrf.mxu0
      %v2269 = vadd.f32 %v397, %v2268
      %v2270 = vpop.f32.mrf.mxu0
      %v2271 = vadd.f32 %v397, %v2270
      %2272 = vmatmul.bf16.gmra.mxu0 %v2111
      %v2273 = vpop.f32.mrf.mxu0
      %v2274 = vadd.f32 %v397, %v2273
      %v2275 = vpop.f32.mrf.mxu0
      %v2276 = vadd.f32 %v397, %v2275
      %2277 = vmatmul.bf16.gmra.mxu0 %v2114
      %v2278 = vpop.f32.mrf.mxu0
      %v2279 = vadd.f32 %v397, %v2278
      %v2280 = vpop.f32.mrf.mxu0
      %v2281 = vadd.f32 %v397, %v2280
      %2282 = vmatmul.bf16.gmra.mxu0 %v2117
      %v2283 = vpop.f32.mrf.mxu0
      %v2284 = vadd.f32 %v397, %v2283
      %v2285 = vpop.f32.mrf.mxu0
      %v2286 = vadd.f32 %v397, %v2285
      %2287 = vdwg.mxu0
      %v2288 = vmax.f32 %v2129, 0.0
      %v2289 = vmax.f32 %v2131, 0.0
      %v2290 = vmax.f32 %v2134, 0.0
      %v2291 = vmax.f32 %v2136, 0.0
      %v2292 = vmax.f32 %v2139, 0.0
      %v2293 = vmax.f32 %v2141, 0.0
      %v2294 = vmax.f32 %v2144, 0.0
      %v2295 = vmax.f32 %v2146, 0.0
      %v2296 = vmax.f32 %v2149, 0.0
      %v2297 = vmax.f32 %v2151, 0.0
      %v2298 = vmax.f32 %v2154, 0.0
      %v2299 = vmax.f32 %v2156, 0.0
      %v2300 = vmax.f32 %v2159, 0.0
      %v2301 = vmax.f32 %v2161, 0.0
      %v2302 = vmax.f32 %v2164, 0.0
      %v2303 = vmax.f32 %v2166, 0.0
      %v2304 = vmax.f32 %v2169, 0.0
      %v2305 = vmax.f32 %v2171, 0.0
      %v2306 = vmax.f32 %v2174, 0.0
      %v2307 = vmax.f32 %v2176, 0.0
      %v2308 = vmax.f32 %v2179, 0.0
      %v2309 = vmax.f32 %v2181, 0.0
      %v2310 = vmax.f32 %v2184, 0.0
      %v2311 = vmax.f32 %v2186, 0.0
      %v2312 = vmax.f32 %v2189, 0.0
      %v2313 = vmax.f32 %v2191, 0.0
      %v2314 = vmax.f32 %v2194, 0.0
      %v2315 = vmax.f32 %v2196, 0.0
      %v2316 = vmax.f32 %v2199, 0.0
      %v2317 = vmax.f32 %v2201, 0.0
      %v2318 = vmax.f32 %v2204, 0.0
      %v2319 = vmax.f32 %v2206, 0.0
      %v2320 = vmax.f32 %v2209, 0.0
      %v2321 = vmax.f32 %v2211, 0.0
      %v2322 = vmax.f32 %v2214, 0.0
      %v2323 = vmax.f32 %v2216, 0.0
      %v2324 = vmax.f32 %v2219, 0.0
      %v2325 = vmax.f32 %v2221, 0.0
      %v2326 = vmax.f32 %v2224, 0.0
      %v2327 = vmax.f32 %v2226, 0.0
      %v2328 = vmax.f32 %v2229, 0.0
      %v2329 = vmax.f32 %v2231, 0.0
      %v2330 = vmax.f32 %v2234, 0.0
      %v2331 = vmax.f32 %v2236, 0.0
      %v2332 = vmax.f32 %v2239, 0.0
      %v2333 = vmax.f32 %v2241, 0.0
      %v2334 = vmax.f32 %v2244, 0.0
      %v2335 = vmax.f32 %v2246, 0.0
      %v2336 = vmax.f32 %v2249, 0.0
      %v2337 = vmax.f32 %v2251, 0.0
      %v2338 = vmax.f32 %v2254, 0.0
      %v2339 = vmax.f32 %v2256, 0.0
      %v2340 = vmax.f32 %v2259, 0.0
      %v2341 = vmax.f32 %v2261, 0.0
      %v2342 = vmax.f32 %v2264, 0.0
      %v2343 = vmax.f32 %v2266, 0.0
      %v2344 = vmax.f32 %v2269, 0.0
      %v2345 = vmax.f32 %v2271, 0.0
      %v2346 = vmax.f32 %v2274, 0.0
      %v2347 = vmax.f32 %v2276, 0.0
      %v2348 = vmax.f32 %v2279, 0.0
      %v2349 = vmax.f32 %v2281, 0.0
      %v2350 = vmax.f32 %v2284, 0.0
      %v2351 = vmax.f32 %v2286, 0.0
      %v2352 = vmul.f32 %v2288, %v924
      %v2353 = vmul.f32 %v2289, %v924
      %v2354 = vmul.f32 %v2290, %v924
      %v2355 = vmul.f32 %v2291, %v924
      %v2356 = vmul.f32 %v2292, %v924
      %v2357 = vmul.f32 %v2293, %v924
      %v2358 = vmul.f32 %v2294, %v924
      %v2359 = vmul.f32 %v2295, %v924
      %v2360 = vmul.f32 %v2296, %v924
      %v2361 = vmul.f32 %v2297, %v924
      %v2362 = vmul.f32 %v2298, %v924
      %v2363 = vmul.f32 %v2299, %v924
      %v2364 = vmul.f32 %v2300, %v924
      %v2365 = vmul.f32 %v2301, %v924
      %v2366 = vmul.f32 %v2302, %v924
      %v2367 = vmul.f32 %v2303, %v924
      %v2368 = vmul.f32 %v2304, %v924
      %v2369 = vmul.f32 %v2305, %v924
      %v2370 = vmul.f32 %v2306, %v924
      %v2371 = vmul.f32 %v2307, %v924
      %v2372 = vmul.f32 %v2308, %v924
      %v2373 = vmul.f32 %v2309, %v924
      %v2374 = vmul.f32 %v2310, %v924
      %v2375 = vmul.f32 %v2311, %v924
      %v2376 = vmul.f32 %v2312, %v924
      %v2377 = vmul.f32 %v2313, %v924
      %v2378 = vmul.f32 %v2314, %v924
      %v2379 = vmul.f32 %v2315, %v924
      %v2380 = vmul.f32 %v2316, %v924
      %v2381 = vmul.f32 %v2317, %v924
      %v2382 = vmul.f32 %v2318, %v924
      %v2383 = vmul.f32 %v2319, %v924
      %v2384 = vmul.f32 %v2320, %v924
      %v2385 = vmul.f32 %v2321, %v924
      %v2386 = vmul.f32 %v2322, %v924
      %v2387 = vmul.f32 %v2323, %v924
      %v2388 = vmul.f32 %v2324, %v924
      %v2389 = vmul.f32 %v2325, %v924
      %v2390 = vmul.f32 %v2326, %v924
      %v2391 = vmul.f32 %v2327, %v924
      %v2392 = vmul.f32 %v2328, %v924
      %v2393 = vmul.f32 %v2329, %v924
      %v2394 = vmul.f32 %v2330, %v924
      %v2395 = vmul.f32 %v2331, %v924
      %v2396 = vmul.f32 %v2332, %v924
      %v2397 = vmul.f32 %v2333, %v924
      %v2398 = vmul.f32 %v2334, %v924
      %v2399 = vmul.f32 %v2335, %v924
      %v2400 = vmul.f32 %v2336, %v924
      %v2401 = vmul.f32 %v2337, %v924
      %v2402 = vmul.f32 %v2338, %v924
      %v2403 = vmul.f32 %v2339, %v924
      %v2404 = vmul.f32 %v2340, %v924
      %v2405 = vmul.f32 %v2341, %v924
      %v2406 = vmul.f32 %v2342, %v924
      %v2407 = vmul.f32 %v2343, %v924
      %v2408 = vmul.f32 %v2344, %v924
      %v2409 = vmul.f32 %v2345, %v924
      %v2410 = vmul.f32 %v2346, %v924
      %v2411 = vmul.f32 %v2347, %v924
      %v2412 = vmul.f32 %v2348, %v924
      %v2413 = vmul.f32 %v2349, %v924
      %v2414 = vmul.f32 %v2350, %v924
      %v2415 = vmul.f32 %v2351, %v924
      %v2416 = vadd.f32 %v2352, %v989
      %v2417 = vadd.f32 %v2353, %v989
      %v2418 = vadd.f32 %v2354, %v989
      %v2419 = vadd.f32 %v2355, %v989
      %v2420 = vadd.f32 %v2356, %v989
      %v2421 = vadd.f32 %v2357, %v989
      %v2422 = vadd.f32 %v2358, %v989
      %v2423 = vadd.f32 %v2359, %v989
      %v2424 = vadd.f32 %v2360, %v989
      %v2425 = vadd.f32 %v2361, %v989
      %v2426 = vadd.f32 %v2362, %v989
      %v2427 = vadd.f32 %v2363, %v989
      %v2428 = vadd.f32 %v2364, %v989
      %v2429 = vadd.f32 %v2365, %v989
      %v2430 = vadd.f32 %v2366, %v989
      %v2431 = vadd.f32 %v2367, %v989
      %v2432 = vadd.f32 %v2368, %v989
      %v2433 = vadd.f32 %v2369, %v989
      %v2434 = vadd.f32 %v2370, %v989
      %v2435 = vadd.f32 %v2371, %v989
      %v2436 = vadd.f32 %v2372, %v989
      %v2437 = vadd.f32 %v2373, %v989
      %v2438 = vadd.f32 %v2374, %v989
      %v2439 = vadd.f32 %v2375, %v989
      %v2440 = vadd.f32 %v2376, %v989
      %v2441 = vadd.f32 %v2377, %v989
      %v2442 = vadd.f32 %v2378, %v989
      %v2443 = vadd.f32 %v2379, %v989
      %v2444 = vadd.f32 %v2380, %v989
      %v2445 = vadd.f32 %v2381, %v989
      %v2446 = vadd.f32 %v2382, %v989
      %v2447 = vadd.f32 %v2383, %v989
      %v2448 = vadd.f32 %v2384, %v989
      %v2449 = vadd.f32 %v2385, %v989
      %v2450 = vadd.f32 %v2386, %v989
      %v2451 = vadd.f32 %v2387, %v989
      %v2452 = vadd.f32 %v2388, %v989
      %v2453 = vadd.f32 %v2389, %v989
      %v2454 = vadd.f32 %v2390, %v989
      %v2455 = vadd.f32 %v2391, %v989
      %v2456 = vadd.f32 %v2392, %v989
      %v2457 = vadd.f32 %v2393, %v989
      %v2458 = vadd.f32 %v2394, %v989
      %v2459 = vadd.f32 %v2395, %v989
      %v2460 = vadd.f32 %v2396, %v989
      %v2461 = vadd.f32 %v2397, %v989
      %v2462 = vadd.f32 %v2398, %v989
      %v2463 = vadd.f32 %v2399, %v989
      %v2464 = vadd.f32 %v2400, %v989
      %v2465 = vadd.f32 %v2401, %v989
      %v2466 = vadd.f32 %v2402, %v989
      %v2467 = vadd.f32 %v2403, %v989
      %v2468 = vadd.f32 %v2404, %v989
      %v2469 = vadd.f32 %v2405, %v989
      %v2470 = vadd.f32 %v2406, %v989
      %v2471 = vadd.f32 %v2407, %v989
      %v2472 = vadd.f32 %v2408, %v989
      %v2473 = vadd.f32 %v2409, %v989
      %v2474 = vadd.f32 %v2410, %v989
      %v2475 = vadd.f32 %v2411, %v989
      %v2476 = vadd.f32 %v2412, %v989
      %v2477 = vadd.f32 %v2413, %v989
      %v2478 = vadd.f32 %v2414, %v989
      %v2479 = vadd.f32 %v2415, %v989
      %v2480 = vmax.f32 %v1735, %v2416
      %v2481 = vmax.f32 %v1736, %v2417
      %v2482 = vmax.f32 %v1737, %v2418
      %v2483 = vmax.f32 %v1738, %v2419
      %v2484 = vmax.f32 %v1739, %v2420
      %v2485 = vmax.f32 %v1740, %v2421
      %v2486 = vmax.f32 %v1741, %v2422
      %v2487 = vmax.f32 %v1742, %v2423
      %v2488 = vmax.f32 %v1743, %v2424
      %v2489 = vmax.f32 %v1744, %v2425
      %v2490 = vmax.f32 %v1745, %v2426
      %v2491 = vmax.f32 %v1746, %v2427
      %v2492 = vmax.f32 %v1747, %v2428
      %v2493 = vmax.f32 %v1748, %v2429
      %v2494 = vmax.f32 %v1749, %v2430
      %v2495 = vmax.f32 %v1750, %v2431
      %v2496 = vmax.f32 %v1751, %v2432
      %v2497 = vmax.f32 %v1752, %v2433
      %v2498 = vmax.f32 %v1753, %v2434
      %v2499 = vmax.f32 %v1754, %v2435
      %v2500 = vmax.f32 %v1755, %v2436
      %v2501 = vmax.f32 %v1756, %v2437
      %v2502 = vmax.f32 %v1757, %v2438
      %v2503 = vmax.f32 %v1758, %v2439
      %v2504 = vmax.f32 %v1759, %v2440
      %v2505 = vmax.f32 %v1760, %v2441
      %v2506 = vmax.f32 %v1761, %v2442
      %v2507 = vmax.f32 %v1762, %v2443
      %v2508 = vmax.f32 %v1763, %v2444
      %v2509 = vmax.f32 %v1764, %v2445
      %v2510 = vmax.f32 %v1765, %v2446
      %v2511 = vmax.f32 %v1766, %v2447
      %v2512 = vmax.f32 %v1767, %v2448
      %v2513 = vmax.f32 %v1768, %v2449
      %v2514 = vmax.f32 %v1769, %v2450
      %v2515 = vmax.f32 %v1770, %v2451
      %v2516 = vmax.f32 %v1771, %v2452
      %v2517 = vmax.f32 %v1772, %v2453
      %v2518 = vmax.f32 %v1773, %v2454
      %v2519 = vmax.f32 %v1774, %v2455
      %v2520 = vmax.f32 %v1775, %v2456
      %v2521 = vmax.f32 %v1776, %v2457
      %v2522 = vmax.f32 %v1777, %v2458
      %v2523 = vmax.f32 %v1778, %v2459
      %v2524 = vmax.f32 %v1779, %v2460
      %v2525 = vmax.f32 %v1780, %v2461
      %v2526 = vmax.f32 %v1781, %v2462
      %v2527 = vmax.f32 %v1782, %v2463
      %v2528 = vmax.f32 %v1783, %v2464
      %v2529 = vmax.f32 %v1784, %v2465
      %v2530 = vmax.f32 %v1785, %v2466
      %v2531 = vmax.f32 %v1786, %v2467
      %v2532 = vmax.f32 %v1787, %v2468
      %v2533 = vmax.f32 %v1788, %v2469
      %v2534 = vmax.f32 %v1789, %v2470
      %v2535 = vmax.f32 %v1790, %v2471
      %v2536 = vmax.f32 %v1791, %v2472
      %v2537 = vmax.f32 %v1792, %v2473
      %v2538 = vmax.f32 %v1793, %v2474
      %v2539 = vmax.f32 %v1794, %v2475
      %v2540 = vmax.f32 %v1795, %v2476
      %v2541 = vmax.f32 %v1796, %v2477
      %v2542 = vmax.f32 %v1797, %v2478
      %v2543 = vmax.f32 %v1798, %v2479
      %v2544 = vld [vmem:[%s313] sm:$0xf]
      %v2545 = vld [vmem:[%s313 + $0x4] sm:$0xf]
      %v2546 = vld [vmem:[%s313 + $0x8] sm:$0xf]
      %v2547 = vld [vmem:[%s313 + $0xc] sm:$0xf]
      %v2548 = vld [vmem:[%s313 + $0x10] sm:$0xf]
      %v2549 = vld [vmem:[%s313 + $0x14] sm:$0xf]
      %v2550 = vld [vmem:[%s313 + $0x18] sm:$0xf]
      %v2551 = vld [vmem:[%s313 + $0x1c] sm:$0xf]
      %v2552 = vld [vmem:[%s313 + $0x20] sm:$0xf]
      %v2553 = vld [vmem:[%s313 + $0x24] sm:$0xf]
      %v2554 = vld [vmem:[%s313 + $0x28] sm:$0xf]
      %v2555 = vld [vmem:[%s313 + $0x2c] sm:$0xf]
      %v2556 = vld [vmem:[%s313 + $0x30] sm:$0xf]
      %v2557 = vld [vmem:[%s313 + $0x34] sm:$0xf]
      %v2558 = vld [vmem:[%s313 + $0x38] sm:$0xf]
      %v2559 = vld [vmem:[%s313 + $0x3c] sm:$0xf]
      %v2560 = vld [vmem:[%s313 + $0x40] sm:$0xf]
      %v2561 = vld [vmem:[%s313 + $0x44] sm:$0xf]
      %v2562 = vld [vmem:[%s313 + $0x48] sm:$0xf]
      %v2563 = vld [vmem:[%s313 + $0x4c] sm:$0xf]
      %v2564 = vld [vmem:[%s313 + $0x50] sm:$0xf]
      %v2565 = vld [vmem:[%s313 + $0x54] sm:$0xf]
      %v2566 = vld [vmem:[%s313 + $0x58] sm:$0xf]
      %v2567 = vld [vmem:[%s313 + $0x5c] sm:$0xf]
      %v2568 = vld [vmem:[%s313 + $0x60] sm:$0xf]
      %v2569 = vld [vmem:[%s313 + $0x64] sm:$0xf]
      %v2570 = vld [vmem:[%s313 + $0x68] sm:$0xf]
      %v2571 = vld [vmem:[%s313 + $0x6c] sm:$0xf]
      %v2572 = vld [vmem:[%s313 + $0x70] sm:$0xf]
      %v2573 = vld [vmem:[%s313 + $0x74] sm:$0xf]
      %v2574 = vld [vmem:[%s313 + $0x78] sm:$0xf]
      %v2575 = vld [vmem:[%s313 + $0x7c] sm:$0xf]
      %v2576 = vld [vmem:[%s313 + $0x80] sm:$0xf]
      %v2577 = vld [vmem:[%s313 + $0x84] sm:$0xf]
      %v2578 = vld [vmem:[%s313 + $0x88] sm:$0xf]
      %v2579 = vld [vmem:[%s313 + $0x8c] sm:$0xf]
      %v2580 = vld [vmem:[%s313 + $0x90] sm:$0xf]
      %v2581 = vld [vmem:[%s313 + $0x94] sm:$0xf]
      %v2582 = vld [vmem:[%s313 + $0x98] sm:$0xf]
      %v2583 = vld [vmem:[%s313 + $0x9c] sm:$0xf]
      %v2584 = vld [vmem:[%s313 + $0xa0] sm:$0xf]
      %v2585 = vld [vmem:[%s313 + $0xa4] sm:$0xf]
      %v2586 = vld [vmem:[%s313 + $0xa8] sm:$0xf]
      %v2587 = vld [vmem:[%s313 + $0xac] sm:$0xf]
      %v2588 = vld [vmem:[%s313 + $0xb0] sm:$0xf]
      %v2589 = vld [vmem:[%s313 + $0xb4] sm:$0xf]
      %v2590 = vld [vmem:[%s313 + $0xb8] sm:$0xf]
      %v2591 = vld [vmem:[%s313 + $0xbc] sm:$0xf]
      %v2592 = vld [vmem:[%s313 + $0xc0] sm:$0xf]
      %v2593 = vld [vmem:[%s313 + $0xc4] sm:$0xf]
      %v2594 = vld [vmem:[%s313 + $0xc8] sm:$0xf]
      %v2595 = vld [vmem:[%s313 + $0xcc] sm:$0xf]
      %v2596 = vld [vmem:[%s313 + $0xd0] sm:$0xf]
      %v2597 = vld [vmem:[%s313 + $0xd4] sm:$0xf]
      %v2598 = vld [vmem:[%s313 + $0xd8] sm:$0xf]
      %v2599 = vld [vmem:[%s313 + $0xdc] sm:$0xf]
      %v2600 = vld [vmem:[%s313 + $0xe0] sm:$0xf]
      %v2601 = vld [vmem:[%s313 + $0xe4] sm:$0xf]
      %v2602 = vld [vmem:[%s313 + $0xe8] sm:$0xf]
      %v2603 = vld [vmem:[%s313 + $0xec] sm:$0xf]
      %v2604 = vld [vmem:[%s313 + $0xf0] sm:$0xf]
      %v2605 = vld [vmem:[%s313 + $0xf4] sm:$0xf]
      %v2606 = vld [vmem:[%s313 + $0xf8] sm:$0xf]
      %v2607 = vld [vmem:[%s313 + $0xfc] sm:$0xf]
      %v2672 = vunpack.c.l.b16 %v2544
      %v2673 = vunpack.c.l.b16 %v2545
      %v2674 = vunpack.c.l.b16 %v2546
      %v2675 = vunpack.c.l.b16 %v2547
      %v2676 = vunpack.c.l.b16 %v2548
      %v2677 = vunpack.c.l.b16 %v2549
      %v2678 = vunpack.c.l.b16 %v2550
      %v2679 = vunpack.c.l.b16 %v2551
      %v2680 = vunpack.c.l.b16 %v2552
      %v2681 = vunpack.c.l.b16 %v2553
      %v2682 = vunpack.c.l.b16 %v2554
      %v2683 = vunpack.c.l.b16 %v2555
      %v2684 = vunpack.c.l.b16 %v2556
      %v2685 = vunpack.c.l.b16 %v2557
      %v2686 = vunpack.c.l.b16 %v2558
      %v2687 = vunpack.c.l.b16 %v2559
      %v2688 = vunpack.c.l.b16 %v2560
      %v2689 = vunpack.c.l.b16 %v2561
      %v2690 = vunpack.c.l.b16 %v2562
      %v2691 = vunpack.c.l.b16 %v2563
      %v2692 = vunpack.c.l.b16 %v2564
      %v2693 = vunpack.c.l.b16 %v2565
      %v2694 = vunpack.c.l.b16 %v2566
      %v2695 = vunpack.c.l.b16 %v2567
      %v2696 = vunpack.c.l.b16 %v2568
      %v2697 = vunpack.c.l.b16 %v2569
      %v2698 = vunpack.c.l.b16 %v2570
      %v2699 = vunpack.c.l.b16 %v2571
      %v2700 = vunpack.c.l.b16 %v2572
      %v2701 = vunpack.c.l.b16 %v2573
      %v2702 = vunpack.c.l.b16 %v2574
      %v2703 = vunpack.c.l.b16 %v2575
      %v2704 = vunpack.c.l.b16 %v2576
      %v2705 = vunpack.c.l.b16 %v2577
      %v2706 = vunpack.c.l.b16 %v2578
      %v2707 = vunpack.c.l.b16 %v2579
      %v2708 = vunpack.c.l.b16 %v2580
      %v2709 = vunpack.c.l.b16 %v2581
      %v2710 = vunpack.c.l.b16 %v2582
      %v2711 = vunpack.c.l.b16 %v2583
      %v2712 = vunpack.c.l.b16 %v2584
      %v2713 = vunpack.c.l.b16 %v2585
      %v2714 = vunpack.c.l.b16 %v2586
      %v2715 = vunpack.c.l.b16 %v2587
      %v2716 = vunpack.c.l.b16 %v2588
      %v2717 = vunpack.c.l.b16 %v2589
      %v2718 = vunpack.c.l.b16 %v2590
      %v2719 = vunpack.c.l.b16 %v2591
      %v2720 = vunpack.c.l.b16 %v2592
      %v2721 = vunpack.c.l.b16 %v2593
      %v2722 = vunpack.c.l.b16 %v2594
      %v2723 = vunpack.c.l.b16 %v2595
      %v2724 = vunpack.c.l.b16 %v2596
      %v2725 = vunpack.c.l.b16 %v2597
      %v2726 = vunpack.c.l.b16 %v2598
      %v2727 = vunpack.c.l.b16 %v2599
      %v2728 = vunpack.c.l.b16 %v2600
      %v2729 = vunpack.c.l.b16 %v2601
      %v2730 = vunpack.c.l.b16 %v2602
      %v2731 = vunpack.c.l.b16 %v2603
      %v2732 = vunpack.c.l.b16 %v2604
      %v2733 = vunpack.c.l.b16 %v2605
      %v2734 = vunpack.c.l.b16 %v2606
      %v2735 = vunpack.c.l.b16 %v2607
      %v2736 = vpack.c.b16 %v2673, %v2672
      %v2737 = vpack.c.b16 %v2675, %v2674
      %v2738 = vpack.c.b16 %v2677, %v2676
      %v2739 = vpack.c.b16 %v2679, %v2678
      %v2740 = vpack.c.b16 %v2681, %v2680
      %v2741 = vpack.c.b16 %v2683, %v2682
      %v2742 = vpack.c.b16 %v2685, %v2684
      %v2743 = vpack.c.b16 %v2687, %v2686
      %v2744 = vpack.c.b16 %v2689, %v2688
      %v2745 = vpack.c.b16 %v2691, %v2690
      %v2746 = vpack.c.b16 %v2693, %v2692
      %v2747 = vpack.c.b16 %v2695, %v2694
      %v2748 = vpack.c.b16 %v2697, %v2696
      %v2749 = vpack.c.b16 %v2699, %v2698
      %v2750 = vpack.c.b16 %v2701, %v2700
      %v2751 = vpack.c.b16 %v2703, %v2702
      %v2752 = vpack.c.b16 %v2705, %v2704
      %v2753 = vpack.c.b16 %v2707, %v2706
      %v2754 = vpack.c.b16 %v2709, %v2708
      %v2755 = vpack.c.b16 %v2711, %v2710
      %v2756 = vpack.c.b16 %v2713, %v2712
      %v2757 = vpack.c.b16 %v2715, %v2714
      %v2758 = vpack.c.b16 %v2717, %v2716
      %v2759 = vpack.c.b16 %v2719, %v2718
      %v2760 = vpack.c.b16 %v2721, %v2720
      %v2761 = vpack.c.b16 %v2723, %v2722
      %v2762 = vpack.c.b16 %v2725, %v2724
      %v2763 = vpack.c.b16 %v2727, %v2726
      %v2764 = vpack.c.b16 %v2729, %v2728
      %v2765 = vpack.c.b16 %v2731, %v2730
      %v2766 = vpack.c.b16 %v2733, %v2732
      %v2767 = vpack.c.b16 %v2735, %v2734
      %v2769 = vsel %vm587, %v2736, 0
      %v2772 = vsel %vm587, %v2737, 0
      %v2775 = vsel %vm587, %v2738, 0
      %v2778 = vsel %vm587, %v2739, 0
      %v2781 = vsel %vm587, %v2740, 0
      %v2784 = vsel %vm587, %v2741, 0
      %v2787 = vsel %vm587, %v2742, 0
      %v2790 = vsel %vm587, %v2743, 0
      %v2793 = vsel %vm587, %v2744, 0
      %v2796 = vsel %vm587, %v2745, 0
      %v2799 = vsel %vm587, %v2746, 0
      %v2802 = vsel %vm587, %v2747, 0
      %v2805 = vsel %vm587, %v2748, 0
      %v2808 = vsel %vm587, %v2749, 0
      %v2811 = vsel %vm587, %v2750, 0
      %v2814 = vsel %vm587, %v2751, 0
      %v2817 = vsel %vm587, %v2752, 0
      %v2820 = vsel %vm587, %v2753, 0
      %v2823 = vsel %vm587, %v2754, 0
      %v2826 = vsel %vm587, %v2755, 0
      %v2829 = vsel %vm587, %v2756, 0
      %v2832 = vsel %vm587, %v2757, 0
      %v2835 = vsel %vm587, %v2758, 0
      %v2838 = vsel %vm587, %v2759, 0
      %v2841 = vsel %vm587, %v2760, 0
      %v2844 = vsel %vm587, %v2761, 0
      %v2847 = vsel %vm587, %v2762, 0
      %v2850 = vsel %vm587, %v2763, 0
      %v2853 = vsel %vm587, %v2764, 0
      %v2856 = vsel %vm587, %v2765, 0
      %v2859 = vsel %vm587, %v2766, 0
      %v2862 = vsel %vm587, %v2767, 0
      %2864 = vmatpush.bf16.msra.mxu0 0
      %2865 = vmatpush.bf16.msra.mxu0 0
      %2866 = vmatpush.bf16.msra.mxu0 0
      %2867 = vmatpush.bf16.msra.mxu0 %v689
      %2868 = vmatpush.bf16.msra.mxu0 %v581
      %2869 = vmatpush.bf16.msra.mxu0 %v580
      %2870 = vmatpush.bf16.msra.mxu0 %v579
      %2871 = vmatpush.bf16.msra.mxu0 %v578
      %2872 = vmatmul.bf16.gmra.mxu0 %v2769
      %v2873 = vpop.f32.mrf.mxu0
      %v2874 = vadd.f32 %v397, %v2873
      %v2875 = vpop.f32.mrf.mxu0
      %v2876 = vadd.f32 %v397, %v2875
      %2877 = vmatmul.bf16.gmra.mxu0 %v2772
      %v2878 = vpop.f32.mrf.mxu0
      %v2879 = vadd.f32 %v397, %v2878
      %v2880 = vpop.f32.mrf.mxu0
      %v2881 = vadd.f32 %v397, %v2880
      %2882 = vmatmul.bf16.gmra.mxu0 %v2775
      %v2883 = vpop.f32.mrf.mxu0
      %v2884 = vadd.f32 %v397, %v2883
      %v2885 = vpop.f32.mrf.mxu0
      %v2886 = vadd.f32 %v397, %v2885
      %2887 = vmatmul.bf16.gmra.mxu0 %v2778
      %v2888 = vpop.f32.mrf.mxu0
      %v2889 = vadd.f32 %v397, %v2888
      %v2890 = vpop.f32.mrf.mxu0
      %v2891 = vadd.f32 %v397, %v2890
      %2892 = vmatmul.bf16.gmra.mxu0 %v2781
      %v2893 = vpop.f32.mrf.mxu0
      %v2894 = vadd.f32 %v397, %v2893
      %v2895 = vpop.f32.mrf.mxu0
      %v2896 = vadd.f32 %v397, %v2895
      %2897 = vmatmul.bf16.gmra.mxu0 %v2784
      %v2898 = vpop.f32.mrf.mxu0
      %v2899 = vadd.f32 %v397, %v2898
      %v2900 = vpop.f32.mrf.mxu0
      %v2901 = vadd.f32 %v397, %v2900
      %2902 = vmatmul.bf16.gmra.mxu0 %v2787
      %v2903 = vpop.f32.mrf.mxu0
      %v2904 = vadd.f32 %v397, %v2903
      %v2905 = vpop.f32.mrf.mxu0
      %v2906 = vadd.f32 %v397, %v2905
      %2907 = vmatmul.bf16.gmra.mxu0 %v2790
      %v2908 = vpop.f32.mrf.mxu0
      %v2909 = vadd.f32 %v397, %v2908
      %v2910 = vpop.f32.mrf.mxu0
      %v2911 = vadd.f32 %v397, %v2910
      %2912 = vmatmul.bf16.gmra.mxu0 %v2793
      %v2913 = vpop.f32.mrf.mxu0
      %v2914 = vadd.f32 %v397, %v2913
      %v2915 = vpop.f32.mrf.mxu0
      %v2916 = vadd.f32 %v397, %v2915
      %2917 = vmatmul.bf16.gmra.mxu0 %v2796
      %v2918 = vpop.f32.mrf.mxu0
      %v2919 = vadd.f32 %v397, %v2918
      %v2920 = vpop.f32.mrf.mxu0
      %v2921 = vadd.f32 %v397, %v2920
      %2922 = vmatmul.bf16.gmra.mxu0 %v2799
      %v2923 = vpop.f32.mrf.mxu0
      %v2924 = vadd.f32 %v397, %v2923
      %v2925 = vpop.f32.mrf.mxu0
      %v2926 = vadd.f32 %v397, %v2925
      %2927 = vmatmul.bf16.gmra.mxu0 %v2802
      %v2928 = vpop.f32.mrf.mxu0
      %v2929 = vadd.f32 %v397, %v2928
      %v2930 = vpop.f32.mrf.mxu0
      %v2931 = vadd.f32 %v397, %v2930
      %2932 = vmatmul.bf16.gmra.mxu0 %v2805
      %v2933 = vpop.f32.mrf.mxu0
      %v2934 = vadd.f32 %v397, %v2933
      %v2935 = vpop.f32.mrf.mxu0
      %v2936 = vadd.f32 %v397, %v2935
      %2937 = vmatmul.bf16.gmra.mxu0 %v2808
      %v2938 = vpop.f32.mrf.mxu0
      %v2939 = vadd.f32 %v397, %v2938
      %v2940 = vpop.f32.mrf.mxu0
      %v2941 = vadd.f32 %v397, %v2940
      %2942 = vmatmul.bf16.gmra.mxu0 %v2811
      %v2943 = vpop.f32.mrf.mxu0
      %v2944 = vadd.f32 %v397, %v2943
      %v2945 = vpop.f32.mrf.mxu0
      %v2946 = vadd.f32 %v397, %v2945
      %2947 = vmatmul.bf16.gmra.mxu0 %v2814
      %v2948 = vpop.f32.mrf.mxu0
      %v2949 = vadd.f32 %v397, %v2948
      %v2950 = vpop.f32.mrf.mxu0
      %v2951 = vadd.f32 %v397, %v2950
      %2952 = vmatmul.bf16.gmra.mxu0 %v2817
      %v2953 = vpop.f32.mrf.mxu0
      %v2954 = vadd.f32 %v397, %v2953
      %v2955 = vpop.f32.mrf.mxu0
      %v2956 = vadd.f32 %v397, %v2955
      %2957 = vmatmul.bf16.gmra.mxu0 %v2820
      %v2958 = vpop.f32.mrf.mxu0
      %v2959 = vadd.f32 %v397, %v2958
      %v2960 = vpop.f32.mrf.mxu0
      %v2961 = vadd.f32 %v397, %v2960
      %2962 = vmatmul.bf16.gmra.mxu0 %v2823
      %v2963 = vpop.f32.mrf.mxu0
      %v2964 = vadd.f32 %v397, %v2963
      %v2965 = vpop.f32.mrf.mxu0
      %v2966 = vadd.f32 %v397, %v2965
      %2967 = vmatmul.bf16.gmra.mxu0 %v2826
      %v2968 = vpop.f32.mrf.mxu0
      %v2969 = vadd.f32 %v397, %v2968
      %v2970 = vpop.f32.mrf.mxu0
      %v2971 = vadd.f32 %v397, %v2970
      %2972 = vmatmul.bf16.gmra.mxu0 %v2829
      %v2973 = vpop.f32.mrf.mxu0
      %v2974 = vadd.f32 %v397, %v2973
      %v2975 = vpop.f32.mrf.mxu0
      %v2976 = vadd.f32 %v397, %v2975
      %2977 = vmatmul.bf16.gmra.mxu0 %v2832
      %v2978 = vpop.f32.mrf.mxu0
      %v2979 = vadd.f32 %v397, %v2978
      %v2980 = vpop.f32.mrf.mxu0
      %v2981 = vadd.f32 %v397, %v2980
      %2982 = vmatmul.bf16.gmra.mxu0 %v2835
      %v2983 = vpop.f32.mrf.mxu0
      %v2984 = vadd.f32 %v397, %v2983
      %v2985 = vpop.f32.mrf.mxu0
      %v2986 = vadd.f32 %v397, %v2985
      %2987 = vmatmul.bf16.gmra.mxu0 %v2838
      %v2988 = vpop.f32.mrf.mxu0
      %v2989 = vadd.f32 %v397, %v2988
      %v2990 = vpop.f32.mrf.mxu0
      %v2991 = vadd.f32 %v397, %v2990
      %2992 = vmatmul.bf16.gmra.mxu0 %v2841
      %v2993 = vpop.f32.mrf.mxu0
      %v2994 = vadd.f32 %v397, %v2993
      %v2995 = vpop.f32.mrf.mxu0
      %v2996 = vadd.f32 %v397, %v2995
      %2997 = vmatmul.bf16.gmra.mxu0 %v2844
      %v2998 = vpop.f32.mrf.mxu0
      %v2999 = vadd.f32 %v397, %v2998
      %v3000 = vpop.f32.mrf.mxu0
      %v3001 = vadd.f32 %v397, %v3000
      %3002 = vmatmul.bf16.gmra.mxu0 %v2847
      %v3003 = vpop.f32.mrf.mxu0
      %v3004 = vadd.f32 %v397, %v3003
      %v3005 = vpop.f32.mrf.mxu0
      %v3006 = vadd.f32 %v397, %v3005
      %3007 = vmatmul.bf16.gmra.mxu0 %v2850
      %v3008 = vpop.f32.mrf.mxu0
      %v3009 = vadd.f32 %v397, %v3008
      %v3010 = vpop.f32.mrf.mxu0
      %v3011 = vadd.f32 %v397, %v3010
      %3012 = vmatmul.bf16.gmra.mxu0 %v2853
      %v3013 = vpop.f32.mrf.mxu0
      %v3014 = vadd.f32 %v397, %v3013
      %v3015 = vpop.f32.mrf.mxu0
      %v3016 = vadd.f32 %v397, %v3015
      %3017 = vmatmul.bf16.gmra.mxu0 %v2856
      %v3018 = vpop.f32.mrf.mxu0
      %v3019 = vadd.f32 %v397, %v3018
      %v3020 = vpop.f32.mrf.mxu0
      %v3021 = vadd.f32 %v397, %v3020
      %3022 = vmatmul.bf16.gmra.mxu0 %v2859
      %v3023 = vpop.f32.mrf.mxu0
      %v3024 = vadd.f32 %v397, %v3023
      %v3025 = vpop.f32.mrf.mxu0
      %v3026 = vadd.f32 %v397, %v3025
      %3027 = vmatmul.bf16.gmra.mxu0 %v2862
      %v3028 = vpop.f32.mrf.mxu0
      %v3029 = vadd.f32 %v397, %v3028
      %v3030 = vpop.f32.mrf.mxu0
      %v3031 = vadd.f32 %v397, %v3030
      %3032 = vdwg.mxu0
      %v3033 = vmax.f32 %v2874, 0.0
      %v3034 = vmax.f32 %v2876, 0.0
      %v3035 = vmax.f32 %v2879, 0.0
      %v3036 = vmax.f32 %v2881, 0.0
      %v3037 = vmax.f32 %v2884, 0.0
      %v3038 = vmax.f32 %v2886, 0.0
      %v3039 = vmax.f32 %v2889, 0.0
      %v3040 = vmax.f32 %v2891, 0.0
      %v3041 = vmax.f32 %v2894, 0.0
      %v3042 = vmax.f32 %v2896, 0.0
      %v3043 = vmax.f32 %v2899, 0.0
      %v3044 = vmax.f32 %v2901, 0.0
      %v3045 = vmax.f32 %v2904, 0.0
      %v3046 = vmax.f32 %v2906, 0.0
      %v3047 = vmax.f32 %v2909, 0.0
      %v3048 = vmax.f32 %v2911, 0.0
      %v3049 = vmax.f32 %v2914, 0.0
      %v3050 = vmax.f32 %v2916, 0.0
      %v3051 = vmax.f32 %v2919, 0.0
      %v3052 = vmax.f32 %v2921, 0.0
      %v3053 = vmax.f32 %v2924, 0.0
      %v3054 = vmax.f32 %v2926, 0.0
      %v3055 = vmax.f32 %v2929, 0.0
      %v3056 = vmax.f32 %v2931, 0.0
      %v3057 = vmax.f32 %v2934, 0.0
      %v3058 = vmax.f32 %v2936, 0.0
      %v3059 = vmax.f32 %v2939, 0.0
      %v3060 = vmax.f32 %v2941, 0.0
      %v3061 = vmax.f32 %v2944, 0.0
      %v3062 = vmax.f32 %v2946, 0.0
      %v3063 = vmax.f32 %v2949, 0.0
      %v3064 = vmax.f32 %v2951, 0.0
      %v3065 = vmax.f32 %v2954, 0.0
      %v3066 = vmax.f32 %v2956, 0.0
      %v3067 = vmax.f32 %v2959, 0.0
      %v3068 = vmax.f32 %v2961, 0.0
      %v3069 = vmax.f32 %v2964, 0.0
      %v3070 = vmax.f32 %v2966, 0.0
      %v3071 = vmax.f32 %v2969, 0.0
      %v3072 = vmax.f32 %v2971, 0.0
      %v3073 = vmax.f32 %v2974, 0.0
      %v3074 = vmax.f32 %v2976, 0.0
      %v3075 = vmax.f32 %v2979, 0.0
      %v3076 = vmax.f32 %v2981, 0.0
      %v3077 = vmax.f32 %v2984, 0.0
      %v3078 = vmax.f32 %v2986, 0.0
      %v3079 = vmax.f32 %v2989, 0.0
      %v3080 = vmax.f32 %v2991, 0.0
      %v3081 = vmax.f32 %v2994, 0.0
      %v3082 = vmax.f32 %v2996, 0.0
      %v3083 = vmax.f32 %v2999, 0.0
      %v3084 = vmax.f32 %v3001, 0.0
      %v3085 = vmax.f32 %v3004, 0.0
      %v3086 = vmax.f32 %v3006, 0.0
      %v3087 = vmax.f32 %v3009, 0.0
      %v3088 = vmax.f32 %v3011, 0.0
      %v3089 = vmax.f32 %v3014, 0.0
      %v3090 = vmax.f32 %v3016, 0.0
      %v3091 = vmax.f32 %v3019, 0.0
      %v3092 = vmax.f32 %v3021, 0.0
      %v3093 = vmax.f32 %v3024, 0.0
      %v3094 = vmax.f32 %v3026, 0.0
      %v3095 = vmax.f32 %v3029, 0.0
      %v3096 = vmax.f32 %v3031, 0.0
      %v3097 = vmul.f32 %v3033, %v924
      %v3098 = vmul.f32 %v3034, %v924
      %v3099 = vmul.f32 %v3035, %v924
      %v3100 = vmul.f32 %v3036, %v924
      %v3101 = vmul.f32 %v3037, %v924
      %v3102 = vmul.f32 %v3038, %v924
      %v3103 = vmul.f32 %v3039, %v924
      %v3104 = vmul.f32 %v3040, %v924
      %v3105 = vmul.f32 %v3041, %v924
      %v3106 = vmul.f32 %v3042, %v924
      %v3107 = vmul.f32 %v3043, %v924
      %v3108 = vmul.f32 %v3044, %v924
      %v3109 = vmul.f32 %v3045, %v924
      %v3110 = vmul.f32 %v3046, %v924
      %v3111 = vmul.f32 %v3047, %v924
      %v3112 = vmul.f32 %v3048, %v924
      %v3113 = vmul.f32 %v3049, %v924
      %v3114 = vmul.f32 %v3050, %v924
      %v3115 = vmul.f32 %v3051, %v924
      %v3116 = vmul.f32 %v3052, %v924
      %v3117 = vmul.f32 %v3053, %v924
      %v3118 = vmul.f32 %v3054, %v924
      %v3119 = vmul.f32 %v3055, %v924
      %v3120 = vmul.f32 %v3056, %v924
      %v3121 = vmul.f32 %v3057, %v924
      %v3122 = vmul.f32 %v3058, %v924
      %v3123 = vmul.f32 %v3059, %v924
      %v3124 = vmul.f32 %v3060, %v924
      %v3125 = vmul.f32 %v3061, %v924
      %v3126 = vmul.f32 %v3062, %v924
      %v3127 = vmul.f32 %v3063, %v924
      %v3128 = vmul.f32 %v3064, %v924
      %v3129 = vmul.f32 %v3065, %v924
      %v3130 = vmul.f32 %v3066, %v924
      %v3131 = vmul.f32 %v3067, %v924
      %v3132 = vmul.f32 %v3068, %v924
      %v3133 = vmul.f32 %v3069, %v924
      %v3134 = vmul.f32 %v3070, %v924
      %v3135 = vmul.f32 %v3071, %v924
      %v3136 = vmul.f32 %v3072, %v924
      %v3137 = vmul.f32 %v3073, %v924
      %v3138 = vmul.f32 %v3074, %v924
      %v3139 = vmul.f32 %v3075, %v924
      %v3140 = vmul.f32 %v3076, %v924
      %v3141 = vmul.f32 %v3077, %v924
      %v3142 = vmul.f32 %v3078, %v924
      %v3143 = vmul.f32 %v3079, %v924
      %v3144 = vmul.f32 %v3080, %v924
      %v3145 = vmul.f32 %v3081, %v924
      %v3146 = vmul.f32 %v3082, %v924
      %v3147 = vmul.f32 %v3083, %v924
      %v3148 = vmul.f32 %v3084, %v924
      %v3149 = vmul.f32 %v3085, %v924
      %v3150 = vmul.f32 %v3086, %v924
      %v3151 = vmul.f32 %v3087, %v924
      %v3152 = vmul.f32 %v3088, %v924
      %v3153 = vmul.f32 %v3089, %v924
      %v3154 = vmul.f32 %v3090, %v924
      %v3155 = vmul.f32 %v3091, %v924
      %v3156 = vmul.f32 %v3092, %v924
      %v3157 = vmul.f32 %v3093, %v924
      %v3158 = vmul.f32 %v3094, %v924
      %v3159 = vmul.f32 %v3095, %v924
      %v3160 = vmul.f32 %v3096, %v924
      %v3161 = vadd.f32 %v3097, %v989
      %v3162 = vadd.f32 %v3098, %v989
      %v3163 = vadd.f32 %v3099, %v989
      %v3164 = vadd.f32 %v3100, %v989
      %v3165 = vadd.f32 %v3101, %v989
      %v3166 = vadd.f32 %v3102, %v989
      %v3167 = vadd.f32 %v3103, %v989
      %v3168 = vadd.f32 %v3104, %v989
      %v3169 = vadd.f32 %v3105, %v989
      %v3170 = vadd.f32 %v3106, %v989
      %v3171 = vadd.f32 %v3107, %v989
      %v3172 = vadd.f32 %v3108, %v989
      %v3173 = vadd.f32 %v3109, %v989
      %v3174 = vadd.f32 %v3110, %v989
      %v3175 = vadd.f32 %v3111, %v989
      %v3176 = vadd.f32 %v3112, %v989
      %v3177 = vadd.f32 %v3113, %v989
      %v3178 = vadd.f32 %v3114, %v989
      %v3179 = vadd.f32 %v3115, %v989
      %v3180 = vadd.f32 %v3116, %v989
      %v3181 = vadd.f32 %v3117, %v989
      %v3182 = vadd.f32 %v3118, %v989
      %v3183 = vadd.f32 %v3119, %v989
      %v3184 = vadd.f32 %v3120, %v989
      %v3185 = vadd.f32 %v3121, %v989
      %v3186 = vadd.f32 %v3122, %v989
      %v3187 = vadd.f32 %v3123, %v989
      %v3188 = vadd.f32 %v3124, %v989
      %v3189 = vadd.f32 %v3125, %v989
      %v3190 = vadd.f32 %v3126, %v989
      %v3191 = vadd.f32 %v3127, %v989
      %v3192 = vadd.f32 %v3128, %v989
      %v3193 = vadd.f32 %v3129, %v989
      %v3194 = vadd.f32 %v3130, %v989
      %v3195 = vadd.f32 %v3131, %v989
      %v3196 = vadd.f32 %v3132, %v989
      %v3197 = vadd.f32 %v3133, %v989
      %v3198 = vadd.f32 %v3134, %v989
      %v3199 = vadd.f32 %v3135, %v989
      %v3200 = vadd.f32 %v3136, %v989
      %v3201 = vadd.f32 %v3137, %v989
      %v3202 = vadd.f32 %v3138, %v989
      %v3203 = vadd.f32 %v3139, %v989
      %v3204 = vadd.f32 %v3140, %v989
      %v3205 = vadd.f32 %v3141, %v989
      %v3206 = vadd.f32 %v3142, %v989
      %v3207 = vadd.f32 %v3143, %v989
      %v3208 = vadd.f32 %v3144, %v989
      %v3209 = vadd.f32 %v3145, %v989
      %v3210 = vadd.f32 %v3146, %v989
      %v3211 = vadd.f32 %v3147, %v989
      %v3212 = vadd.f32 %v3148, %v989
      %v3213 = vadd.f32 %v3149, %v989
      %v3214 = vadd.f32 %v3150, %v989
      %v3215 = vadd.f32 %v3151, %v989
      %v3216 = vadd.f32 %v3152, %v989
      %v3217 = vadd.f32 %v3153, %v989
      %v3218 = vadd.f32 %v3154, %v989
      %v3219 = vadd.f32 %v3155, %v989
      %v3220 = vadd.f32 %v3156, %v989
      %v3221 = vadd.f32 %v3157, %v989
      %v3222 = vadd.f32 %v3158, %v989
      %v3223 = vadd.f32 %v3159, %v989
      %v3224 = vadd.f32 %v3160, %v989
      %v3225 = vmax.f32 %v2480, %v3161
      %v3226 = vmax.f32 %v2481, %v3162
      %v3227 = vmax.f32 %v2482, %v3163
      %v3228 = vmax.f32 %v2483, %v3164
      %v3229 = vmax.f32 %v2484, %v3165
      %v3230 = vmax.f32 %v2485, %v3166
      %v3231 = vmax.f32 %v2486, %v3167
      %v3232 = vmax.f32 %v2487, %v3168
      %v3233 = vmax.f32 %v2488, %v3169
      %v3234 = vmax.f32 %v2489, %v3170
      %v3235 = vmax.f32 %v2490, %v3171
      %v3236 = vmax.f32 %v2491, %v3172
      %v3237 = vmax.f32 %v2492, %v3173
      %v3238 = vmax.f32 %v2493, %v3174
      %v3239 = vmax.f32 %v2494, %v3175
      %v3240 = vmax.f32 %v2495, %v3176
      %v3241 = vmax.f32 %v2496, %v3177
      %v3242 = vmax.f32 %v2497, %v3178
      %v3243 = vmax.f32 %v2498, %v3179
      %v3244 = vmax.f32 %v2499, %v3180
      %v3245 = vmax.f32 %v2500, %v3181
      %v3246 = vmax.f32 %v2501, %v3182
      %v3247 = vmax.f32 %v2502, %v3183
      %v3248 = vmax.f32 %v2503, %v3184
      %v3249 = vmax.f32 %v2504, %v3185
      %v3250 = vmax.f32 %v2505, %v3186
      %v3251 = vmax.f32 %v2506, %v3187
      %v3252 = vmax.f32 %v2507, %v3188
      %v3253 = vmax.f32 %v2508, %v3189
      %v3254 = vmax.f32 %v2509, %v3190
      %v3255 = vmax.f32 %v2510, %v3191
      %v3256 = vmax.f32 %v2511, %v3192
      %v3257 = vmax.f32 %v2512, %v3193
      %v3258 = vmax.f32 %v2513, %v3194
      %v3259 = vmax.f32 %v2514, %v3195
      %v3260 = vmax.f32 %v2515, %v3196
      %v3261 = vmax.f32 %v2516, %v3197
      %v3262 = vmax.f32 %v2517, %v3198
      %v3263 = vmax.f32 %v2518, %v3199
      %v3264 = vmax.f32 %v2519, %v3200
      %v3265 = vmax.f32 %v2520, %v3201
      %v3266 = vmax.f32 %v2521, %v3202
      %v3267 = vmax.f32 %v2522, %v3203
      %v3268 = vmax.f32 %v2523, %v3204
      %v3269 = vmax.f32 %v2524, %v3205
      %v3270 = vmax.f32 %v2525, %v3206
      %v3271 = vmax.f32 %v2526, %v3207
      %v3272 = vmax.f32 %v2527, %v3208
      %v3273 = vmax.f32 %v2528, %v3209
      %v3274 = vmax.f32 %v2529, %v3210
      %v3275 = vmax.f32 %v2530, %v3211
      %v3276 = vmax.f32 %v2531, %v3212
      %v3277 = vmax.f32 %v2532, %v3213
      %v3278 = vmax.f32 %v2533, %v3214
      %v3279 = vmax.f32 %v2534, %v3215
      %v3280 = vmax.f32 %v2535, %v3216
      %v3281 = vmax.f32 %v2536, %v3217
      %v3282 = vmax.f32 %v2537, %v3218
      %v3283 = vmax.f32 %v2538, %v3219
      %v3284 = vmax.f32 %v2539, %v3220
      %v3285 = vmax.f32 %v2540, %v3221
      %v3286 = vmax.f32 %v2541, %v3222
      %v3287 = vmax.f32 %v2542, %v3223
      %v3288 = vmax.f32 %v2543, %v3224
      %v3289 = vpack.c.bf16 %v3225, %v3225
      %v3290 = vpack.c.bf16 %v3226, %v3226
      %v3291 = vpack.c.bf16 %v3227, %v3227
      %v3292 = vpack.c.bf16 %v3228, %v3228
      %v3293 = vpack.c.bf16 %v3229, %v3229
      %v3294 = vpack.c.bf16 %v3230, %v3230
      %v3295 = vpack.c.bf16 %v3231, %v3231
      %v3296 = vpack.c.bf16 %v3232, %v3232
      %v3297 = vpack.c.bf16 %v3233, %v3233
      %v3298 = vpack.c.bf16 %v3234, %v3234
      %v3299 = vpack.c.bf16 %v3235, %v3235
      %v3300 = vpack.c.bf16 %v3236, %v3236
      %v3301 = vpack.c.bf16 %v3237, %v3237
      %v3302 = vpack.c.bf16 %v3238, %v3238
      %v3303 = vpack.c.bf16 %v3239, %v3239
      %v3304 = vpack.c.bf16 %v3240, %v3240
      %v3305 = vpack.c.bf16 %v3241, %v3241
      %v3306 = vpack.c.bf16 %v3242, %v3242
      %v3307 = vpack.c.bf16 %v3243, %v3243
      %v3308 = vpack.c.bf16 %v3244, %v3244
      %v3309 = vpack.c.bf16 %v3245, %v3245
      %v3310 = vpack.c.bf16 %v3246, %v3246
      %v3311 = vpack.c.bf16 %v3247, %v3247
      %v3312 = vpack.c.bf16 %v3248, %v3248
      %v3313 = vpack.c.bf16 %v3249, %v3249
      %v3314 = vpack.c.bf16 %v3250, %v3250
      %v3315 = vpack.c.bf16 %v3251, %v3251
      %v3316 = vpack.c.bf16 %v3252, %v3252
      %v3317 = vpack.c.bf16 %v3253, %v3253
      %v3318 = vpack.c.bf16 %v3254, %v3254
      %v3319 = vpack.c.bf16 %v3255, %v3255
      %v3320 = vpack.c.bf16 %v3256, %v3256
      %v3321 = vpack.c.bf16 %v3257, %v3257
      %v3322 = vpack.c.bf16 %v3258, %v3258
      %v3323 = vpack.c.bf16 %v3259, %v3259
      %v3324 = vpack.c.bf16 %v3260, %v3260
      %v3325 = vpack.c.bf16 %v3261, %v3261
      %v3326 = vpack.c.bf16 %v3262, %v3262
      %v3327 = vpack.c.bf16 %v3263, %v3263
      %v3328 = vpack.c.bf16 %v3264, %v3264
      %v3329 = vpack.c.bf16 %v3265, %v3265
      %v3330 = vpack.c.bf16 %v3266, %v3266
      %v3331 = vpack.c.bf16 %v3267, %v3267
      %v3332 = vpack.c.bf16 %v3268, %v3268
      %v3333 = vpack.c.bf16 %v3269, %v3269
      %v3334 = vpack.c.bf16 %v3270, %v3270
      %v3335 = vpack.c.bf16 %v3271, %v3271
      %v3336 = vpack.c.bf16 %v3272, %v3272
      %v3337 = vpack.c.bf16 %v3273, %v3273
      %v3338 = vpack.c.bf16 %v3274, %v3274
      %v3339 = vpack.c.bf16 %v3275, %v3275
      %v3340 = vpack.c.bf16 %v3276, %v3276
      %v3341 = vpack.c.bf16 %v3277, %v3277
      %v3342 = vpack.c.bf16 %v3278, %v3278
      %v3343 = vpack.c.bf16 %v3279, %v3279
      %v3344 = vpack.c.bf16 %v3280, %v3280
      %v3345 = vpack.c.bf16 %v3281, %v3281
      %v3346 = vpack.c.bf16 %v3282, %v3282
      %v3347 = vpack.c.bf16 %v3283, %v3283
      %v3348 = vpack.c.bf16 %v3284, %v3284
      %v3349 = vpack.c.bf16 %v3285, %v3285
      %v3350 = vpack.c.bf16 %v3286, %v3286
      %v3351 = vpack.c.bf16 %v3287, %v3287
      %v3352 = vpack.c.bf16 %v3288, %v3288
      %vm3353 = vcmask 125952
      %3354 = vst.msk [vmem:[%s319] sm:$0xf] %vm3353, %v3289
      %3355 = vst.msk [vmem:[%s319 + $0x4] sm:$0xf] %vm3353, %v3290
      %3356 = vst.msk [vmem:[%s319 + $0x8] sm:$0xf] %vm3353, %v3291
      %3357 = vst.msk [vmem:[%s319 + $0xc] sm:$0xf] %vm3353, %v3292
      %3358 = vst.msk [vmem:[%s319 + $0x10] sm:$0xf] %vm3353, %v3293
      %3359 = vst.msk [vmem:[%s319 + $0x14] sm:$0xf] %vm3353, %v3294
      %3360 = vst.msk [vmem:[%s319 + $0x18] sm:$0xf] %vm3353, %v3295
      %3361 = vst.msk [vmem:[%s319 + $0x1c] sm:$0xf] %vm3353, %v3296
      %3362 = vst.msk [vmem:[%s319 + $0x20] sm:$0xf] %vm3353, %v3297
      %3363 = vst.msk [vmem:[%s319 + $0x24] sm:$0xf] %vm3353, %v3298
      %3364 = vst.msk [vmem:[%s319 + $0x28] sm:$0xf] %vm3353, %v3299
      %3365 = vst.msk [vmem:[%s319 + $0x2c] sm:$0xf] %vm3353, %v3300
      %3366 = vst.msk [vmem:[%s319 + $0x30] sm:$0xf] %vm3353, %v3301
      %3367 = vst.msk [vmem:[%s319 + $0x34] sm:$0xf] %vm3353, %v3302
      %3368 = vst.msk [vmem:[%s319 + $0x38] sm:$0xf] %vm3353, %v3303
      %3369 = vst.msk [vmem:[%s319 + $0x3c] sm:$0xf] %vm3353, %v3304
      %3370 = vst.msk [vmem:[%s319 + $0x40] sm:$0xf] %vm3353, %v3305
      %3371 = vst.msk [vmem:[%s319 + $0x44] sm:$0xf] %vm3353, %v3306
      %3372 = vst.msk [vmem:[%s319 + $0x48] sm:$0xf] %vm3353, %v3307
      %3373 = vst.msk [vmem:[%s319 + $0x4c] sm:$0xf] %vm3353, %v3308
      %3374 = vst.msk [vmem:[%s319 + $0x50] sm:$0xf] %vm3353, %v3309
      %3375 = vst.msk [vmem:[%s319 + $0x54] sm:$0xf] %vm3353, %v3310
      %3376 = vst.msk [vmem:[%s319 + $0x58] sm:$0xf] %vm3353, %v3311
      %3377 = vst.msk [vmem:[%s319 + $0x5c] sm:$0xf] %vm3353, %v3312
      %3378 = vst.msk [vmem:[%s319 + $0x60] sm:$0xf] %vm3353, %v3313
      %3379 = vst.msk [vmem:[%s319 + $0x64] sm:$0xf] %vm3353, %v3314
      %3380 = vst.msk [vmem:[%s319 + $0x68] sm:$0xf] %vm3353, %v3315
      %3381 = vst.msk [vmem:[%s319 + $0x6c] sm:$0xf] %vm3353, %v3316
      %3382 = vst.msk [vmem:[%s319 + $0x70] sm:$0xf] %vm3353, %v3317
      %3383 = vst.msk [vmem:[%s319 + $0x74] sm:$0xf] %vm3353, %v3318
      %3384 = vst.msk [vmem:[%s319 + $0x78] sm:$0xf] %vm3353, %v3319
      %3385 = vst.msk [vmem:[%s319 + $0x7c] sm:$0xf] %vm3353, %v3320
      %3386 = vst.msk [vmem:[%s319 + $0x80] sm:$0xf] %vm3353, %v3321
      %3387 = vst.msk [vmem:[%s319 + $0x84] sm:$0xf] %vm3353, %v3322
      %3388 = vst.msk [vmem:[%s319 + $0x88] sm:$0xf] %vm3353, %v3323
      %3389 = vst.msk [vmem:[%s319 + $0x8c] sm:$0xf] %vm3353, %v3324
      %3390 = vst.msk [vmem:[%s319 + $0x90] sm:$0xf] %vm3353, %v3325
      %3391 = vst.msk [vmem:[%s319 + $0x94] sm:$0xf] %vm3353, %v3326
      %3392 = vst.msk [vmem:[%s319 + $0x98] sm:$0xf] %vm3353, %v3327
      %3393 = vst.msk [vmem:[%s319 + $0x9c] sm:$0xf] %vm3353, %v3328
      %3394 = vst.msk [vmem:[%s319 + $0xa0] sm:$0xf] %vm3353, %v3329
      %3395 = vst.msk [vmem:[%s319 + $0xa4] sm:$0xf] %vm3353, %v3330
      %3396 = vst.msk [vmem:[%s319 + $0xa8] sm:$0xf] %vm3353, %v3331
      %3397 = vst.msk [vmem:[%s319 + $0xac] sm:$0xf] %vm3353, %v3332
      %3398 = vst.msk [vmem:[%s319 + $0xb0] sm:$0xf] %vm3353, %v3333
      %3399 = vst.msk [vmem:[%s319 + $0xb4] sm:$0xf] %vm3353, %v3334
      %3400 = vst.msk [vmem:[%s319 + $0xb8] sm:$0xf] %vm3353, %v3335
      %3401 = vst.msk [vmem:[%s319 + $0xbc] sm:$0xf] %vm3353, %v3336
      %3402 = vst.msk [vmem:[%s319 + $0xc0] sm:$0xf] %vm3353, %v3337
      %3403 = vst.msk [vmem:[%s319 + $0xc4] sm:$0xf] %vm3353, %v3338
      %3404 = vst.msk [vmem:[%s319 + $0xc8] sm:$0xf] %vm3353, %v3339
      %3405 = vst.msk [vmem:[%s319 + $0xcc] sm:$0xf] %vm3353, %v3340
      %3406 = vst.msk [vmem:[%s319 + $0xd0] sm:$0xf] %vm3353, %v3341
      %3407 = vst.msk [vmem:[%s319 + $0xd4] sm:$0xf] %vm3353, %v3342
      %3408 = vst.msk [vmem:[%s319 + $0xd8] sm:$0xf] %vm3353, %v3343
      %3409 = vst.msk [vmem:[%s319 + $0xdc] sm:$0xf] %vm3353, %v3344
      %3410 = vst.msk [vmem:[%s319 + $0xe0] sm:$0xf] %vm3353, %v3345
      %3411 = vst.msk [vmem:[%s319 + $0xe4] sm:$0xf] %vm3353, %v3346
      %3412 = vst.msk [vmem:[%s319 + $0xe8] sm:$0xf] %vm3353, %v3347
      %3413 = vst.msk [vmem:[%s319 + $0xec] sm:$0xf] %vm3353, %v3348
      %3414 = vst.msk [vmem:[%s319 + $0xf0] sm:$0xf] %vm3353, %v3349
      %3415 = vst.msk [vmem:[%s319 + $0xf4] sm:$0xf] %vm3353, %v3350
      %3416 = vst.msk [vmem:[%s319 + $0xf8] sm:$0xf] %vm3353, %v3351
      %3417 = vst.msk [vmem:[%s319 + $0xfc] sm:$0xf] %vm3353, %v3352
      %s3418 = smul.u32 64, %s17
      %p3419 = scmp.lt.s32.totalorder %s3418, 639
      %s3420 = scalar_select %p3419, %s3418, 639
      %s3421 = smul.addr %s3420, 4
      %s3422 = scalar_lea.vmem %s6, %s3421
      // Predicated region
      $region45: #{cnn_forward.4} parent=43 // pred_check
        %p3423 = pneg %p181
      $region46: #{cnn_forward.4} parent=43 // pred_check_branch
        %3425 = sbr.rel (%p3423) target = $region48
      $region47: #{cnn_forward.4} parent=43 // pred_region
        %s3426 = smul.u32 64, %s17
      $region48: #{cnn_forward.4} parent=43 // pred_fallthru
        _
    $region44: #{cnn_forward.4} parent=5 // pred_fallthru
      _
    %p3427 = scmp.le.s32.totalorder 2, %s12
    // Predicated region
    $region49: #{cnn_forward.4} parent=5 // pred_check
      %p3428 = pneg %p3427
    $region50: #{cnn_forward.4} parent=5 // pred_check_branch
      %3430 = sbr.rel (%p3428) target = $region52
    $region51: #{cnn_forward.4} parent=5 // pred_region
      %s3431 = ssub.s32 %s12, 2
      // Predicated region
      $region53: #{cnn_forward.4} parent=51 // pred_check
        %p3432 = pneg %p187
      $region54: #{cnn_forward.4} parent=51 // pred_check_branch
        %3434 = sbr.rel (%p3432) target = $region56
      $region55: #{cnn_forward.4} parent=51 // pred_region
        %s3435 = smul.u32 64, %s18
        %p3436 = scmp.lt.s32.totalorder %s3435, 639
        %s3437 = scalar_select %p3436, %s3435, 639
        %s3438 = smul.addr %s3437, 4
        %s3439 = scalar_lea.vmem %s6, %s3438
      $region56: #{cnn_forward.4} parent=51 // pred_fallthru
        _
    $region52: #{cnn_forward.4} parent=5 // pred_fallthru
      _
  $region6: #{cnn_forward.4} parent=0 // loop_footer
    %s16 = sadd.s32 1, %s12
  $region7: #{cnn_forward.4} parent=0 // loop_footer_branch
    %11 = sbr.rel target = $region3
  $region8: #{cnn_forward.4} parent=0 // loop_exit
    _

// kernel: cnn_forward.5
$region0: #{cnn_forward.5}
  #allocation0 [shape = 'u32[]', space=smem, size = 0x4, offset = 0x4, fixed_abs, tag = 'smem constant byte address 0x4 - core index']
  #allocation1 [shape = 'u32[72,128]{1,0:T(1,128)}', space=vmem, size = 0x9000, scoped, tag = 'internal scratch']
  %s0 = inlined_call_operand.vmem [shape: bf16[1280,144], index: 0, kind: input, shape index: {}]
  %s1 = inlined_call_operand.vmem [shape: bf16[1280,144], index: 1, kind: input, shape index: {}]
  %s2 = inlined_call_operand.vmem [shape: bf16[1280,144], index: 2, kind: input, shape index: {}]
  %s3 = inlined_call_operand.vmem [shape: bf16[1280,144], index: 3, kind: input, shape index: {}]
  %s4 = inlined_call_operand.vmem [shape: bf16[144,32], index: 4, kind: input, shape index: {}]
  %s5 = inlined_call_operand.vmem [shape: f32[8,32], index: 5, kind: input, shape index: {}]
  %s6 = inlined_call_operand.vmem [shape: bf16[1280,32], index: 6, kind: output, shape index: {}]
  %s7 = sld [smem:[#allocation0]]
  $region57: #{cnn_forward.5} parent=0
    _
  %s9 = ssub.s32 1, %s7
  %s10 = scalar_select 0, %s9, %s7
  loop: start=0, step=1, limit=6
  $region2: #{cnn_forward.5} parent=0 // loop_pre_header
    _
  $region3: #{cnn_forward.5} parent=0 // loop_header
    %s12 = sphi 0, %s16
    %p13 = scmp.ge.s32.totalorder %s12, 6
    %s22 = sphi 0, %s24
    %s25 = sphi 0, %s22
    %s26 = sphi 0, %s25
    %s42 = sphi 0, %s26
    %s48 = sphi 0, %s50
    %s51 = sphi 0, %s48
    %s52 = sphi 0, %s51
    %s68 = sphi 0, %s52
    %s74 = sphi 0, %s76
    %s77 = sphi 0, %s74
    %s78 = sphi 0, %s77
    %s94 = sphi 0, %s78
    %s100 = sphi 0, %s102
    %s103 = sphi 0, %s100
    %s104 = sphi 0, %s103
    %s120 = sphi 0, %s104
    %s124 = sphi 0, %s124
    %s126 = sphi 0, %s124
    %s127 = sphi 0, %s126
    %s141 = sphi 0, %s127
    %s145 = sphi 0, %s145
    %s147 = sphi 0, %s145
    %s148 = sphi 0, %s147
    %s162 = sphi 0, %s148
    %s168 = sphi 0, %s170
    %s171 = sphi 0, %s168
    %s172 = sphi 0, %s171
    %s188 = sphi 0, %s172
  $region4: #{cnn_forward.5} parent=0 // loop_header_branch
    %15 = sbr.rel (%p13) target = $region8
  $region5: #{cnn_forward.5} parent=0 // loop_body
    %s17 = ssub.s32 %s12, 1
    %s18 = ssub.s32 %s12, 2
    %s19 = sadd.s32 %s12, 1
    %s20 = ssub.s32 %s12, %s19
    %p21 = scmp.eq.s32.totalorder %s20, 0
    %s23 = sadd.s32 %s22, 1
    %s24 = scalar_select %p21, %s22, %s23
    %p27 = pneg %p21
    %p28 = scmp.eq.s32.totalorder %s12, 3
    %p29 = por %p27, %p28
    %p30 = scmp.ne.s32.totalorder %s22, %s25
    %p31 = scmp.eq.s32.totalorder %s12, 0
    %p32 = por %p30, %p31
    %p33 = scmp.ne.s32.totalorder %s22, %s25
    %p34 = scmp.eq.s32.totalorder %s17, 3
    %p35 = por %p33, %p34
    %p36 = scmp.ne.s32.totalorder %s25, %s26
    %p37 = scmp.eq.s32.totalorder %s17, 0
    %p38 = por %p36, %p37
    %p39 = scmp.ne.s32.totalorder %s25, %s26
    %p40 = scmp.eq.s32.totalorder %s18, 3
    %p41 = por %p39, %p40
    %p43 = scmp.ne.s32.totalorder %s26, %s42
    %p44 = scmp.eq.s32.totalorder %s18, 0
    %p45 = por %p43, %p44
    %s46 = ssub.s32 %s12, %s19
    %p47 = scmp.eq.s32.totalorder %s46, 0
    %s49 = sadd.s32 %s48, 1
    %s50 = scalar_select %p47, %s48, %s49
    %p53 = pneg %p47
    %p54 = scmp.eq.s32.totalorder %s12, 3
    %p55 = por %p53, %p54
    %p56 = scmp.ne.s32.totalorder %s48, %s51
    %p57 = scmp.eq.s32.totalorder %s12, 0
    %p58 = por %p56, %p57
    %p59 = scmp.ne.s32.totalorder %s48, %s51
    %p60 = scmp.eq.s32.totalorder %s17, 3
    %p61 = por %p59, %p60
    %p62 = scmp.ne.s32.totalorder %s51, %s52
    %p63 = scmp.eq.s32.totalorder %s17, 0
    %p64 = por %p62, %p63
    %p65 = scmp.ne.s32.totalorder %s51, %s52
    %p66 = scmp.eq.s32.totalorder %s18, 3
    %p67 = por %p65, %p66
    %p69 = scmp.ne.s32.totalorder %s52, %s68
    %p70 = scmp.eq.s32.totalorder %s18, 0
    %p71 = por %p69, %p70
    %s72 = ssub.s32 %s12, %s19
    %p73 = scmp.eq.s32.totalorder %s72, 0
    %s75 = sadd.s32 %s74, 1
    %s76 = scalar_select %p73, %s74, %s75
    %p79 = pneg %p73
    %p80 = scmp.eq.s32.totalorder %s12, 3
    %p81 = por %p79, %p80
    %p82 = scmp.ne.s32.totalorder %s74, %s77
    %p83 = scmp.eq.s32.totalorder %s12, 0
    %p84 = por %p82, %p83
    %p85 = scmp.ne.s32.totalorder %s74, %s77
    %p86 = scmp.eq.s32.totalorder %s17, 3
    %p87 = por %p85, %p86
    %p88 = scmp.ne.s32.totalorder %s77, %s78
    %p89 = scmp.eq.s32.totalorder %s17, 0
    %p90 = por %p88, %p89
    %p91 = scmp.ne.s32.totalorder %s77, %s78
    %p92 = scmp.eq.s32.totalorder %s18, 3
    %p93 = por %p91, %p92
    %p95 = scmp.ne.s32.totalorder %s78, %s94
    %p96 = scmp.eq.s32.totalorder %s18, 0
    %p97 = por %p95, %p96
    %s98 = ssub.s32 %s12, %s19
    %p99 = scmp.eq.s32.totalorder %s98, 0
    %s101 = sadd.s32 %s100, 1
    %s102 = scalar_select %p99, %s100, %s101
    %p105 = pneg %p99
    %p106 = scmp.eq.s32.totalorder %s12, 3
    %p107 = por %p105, %p106
    %p108 = scmp.ne.s32.totalorder %s100, %s103
    %p109 = scmp.eq.s32.totalorder %s12, 0
    %p110 = por %p108, %p109
    %p111 = scmp.ne.s32.totalorder %s100, %s103
    %p112 = scmp.eq.s32.totalorder %s17, 3
    %p113 = por %p111, %p112
    %p114 = scmp.ne.s32.totalorder %s103, %s104
    %p115 = scmp.eq.s32.totalorder %s17, 0
    %p116 = por %p114, %p115
    %p117 = scmp.ne.s32.totalorder %s103, %s104
    %p118 = scmp.eq.s32.totalorder %s18, 3
    %p119 = por %p117, %p118
    %p121 = scmp.ne.s32.totalorder %s104, %s120
    %p122 = scmp.eq.s32.totalorder %s18, 0
    %p123 = por %p121, %p122
    %s125 = sadd.s32 %s124, 1
    %p128 = scmp.eq.s32.totalorder %s12, 3
    %p129 = scmp.ne.s32.totalorder %s124, %s126
    %p130 = scmp.eq.s32.totalorder %s12, 0
    %p131 = por %p129, %p130
    %p132 = scmp.ne.s32.totalorder %s124, %s126
    %p133 = scmp.eq.s32.totalorder %s17, 3
    %p134 = por %p132, %p133
    %p135 = scmp.ne.s32.totalorder %s126, %s127
    %p136 = scmp.eq.s32.totalorder %s17, 0
    %p137 = por %p135, %p136
    %p138 = scmp.ne.s32.totalorder %s126, %s127
    %p139 = scmp.eq.s32.totalorder %s18, 3
    %p140 = por %p138, %p139
    %p142 = scmp.ne.s32.totalorder %s127, %s141
    %p143 = scmp.eq.s32.totalorder %s18, 0
    %p144 = por %p142, %p143
    %s146 = sadd.s32 %s145, 1
    %p149 = scmp.eq.s32.totalorder %s12, 3
    %p150 = scmp.ne.s32.totalorder %s145, %s147
    %p151 = scmp.eq.s32.totalorder %s12, 0
    %p152 = por %p150, %p151
    %p153 = scmp.ne.s32.totalorder %s145, %s147
    %p154 = scmp.eq.s32.totalorder %s17, 3
    %p155 = por %p153, %p154
    %p156 = scmp.ne.s32.totalorder %s147, %s148
    %p157 = scmp.eq.s32.totalorder %s17, 0
    %p158 = por %p156, %p157
    %p159 = scmp.ne.s32.totalorder %s147, %s148
    %p160 = scmp.eq.s32.totalorder %s18, 3
    %p161 = por %p159, %p160
    %p163 = scmp.ne.s32.totalorder %s148, %s162
    %p164 = scmp.eq.s32.totalorder %s18, 0
    %p165 = por %p163, %p164
    %s166 = ssub.s32 %s12, %s19
    %p167 = scmp.eq.s32.totalorder %s166, 0
    %s169 = sadd.s32 %s168, 1
    %s170 = scalar_select %p167, %s168, %s169
    %p173 = pneg %p167
    %p174 = scmp.eq.s32.totalorder %s12, 3
    %p175 = por %p173, %p174
    %p176 = scmp.ne.s32.totalorder %s168, %s171
    %p177 = scmp.eq.s32.totalorder %s12, 0
    %p178 = por %p176, %p177
    %p179 = scmp.ne.s32.totalorder %s168, %s171
    %p180 = scmp.eq.s32.totalorder %s17, 3
    %p181 = por %p179, %p180
    %p182 = scmp.ne.s32.totalorder %s171, %s172
    %p183 = scmp.eq.s32.totalorder %s17, 0
    %p184 = por %p182, %p183
    %p185 = scmp.ne.s32.totalorder %s171, %s172
    %p186 = scmp.eq.s32.totalorder %s18, 3
    %p187 = por %p185, %p186
    %p189 = scmp.ne.s32.totalorder %s172, %s188
    %p190 = scmp.eq.s32.totalorder %s18, 0
    %p191 = por %p189, %p190
    %p192 = scmp.le.s32.totalorder 1, %s12
    %p193 = scmp.lt.s32.totalorder %s12, 5
    %p194 = pnand %p192, %p193
    %p195 = pneg %p194
    // Predicated region
    $region9: #{cnn_forward.5} parent=5 // pred_check
      _
    $region10: #{cnn_forward.5} parent=5 // pred_check_branch
      %197 = sbr.rel (%p194) target = $region12
    $region11: #{cnn_forward.5} parent=5 // pred_region
      %s198 = ssub.s32 %s12, 1
      // Predicated region
      $region13: #{cnn_forward.5} parent=11 // pred_check
        %p199 = pneg %p137
      $region14: #{cnn_forward.5} parent=11 // pred_check_branch
        %201 = sbr.rel (%p199) target = $region16
      $region15: #{cnn_forward.5} parent=11 // pred_region
        _
      $region16: #{cnn_forward.5} parent=11 // pred_fallthru
        _
      // Predicated region
      $region17: #{cnn_forward.5} parent=11 // pred_check
        %p202 = pneg %p158
      $region18: #{cnn_forward.5} parent=11 // pred_check_branch
        %204 = sbr.rel (%p202) target = $region20
      $region19: #{cnn_forward.5} parent=11 // pred_region
        _
      $region20: #{cnn_forward.5} parent=11 // pred_fallthru
        _
    $region12: #{cnn_forward.5} parent=5 // pred_fallthru
      _
    %p205 = scmp.lt.s32.totalorder %s12, 4
    // Predicated region
    $region21: #{cnn_forward.5} parent=5 // pred_check
      %p206 = pneg %p205
    $region22: #{cnn_forward.5} parent=5 // pred_check_branch
      %208 = sbr.rel (%p206) target = $region24
    $region23: #{cnn_forward.5} parent=5 // pred_region
      // Predicated region
      $region25: #{cnn_forward.5} parent=23 // pred_check
        %p209 = pneg %p32
      $region26: #{cnn_forward.5} parent=23 // pred_check_branch
        %211 = sbr.rel (%p209) target = $region28
      $region27: #{cnn_forward.5} parent=23 // pred_region
        %s212 = smul.u32 40, %s12
        %p213 = scmp.lt.s32.totalorder %s212, 159
        %s214 = scalar_select %p213, %s212, 159
        %s215 = smul.addr %s214, 2
        %s216 = smul.addr %s215, 4
        %s217 = scalar_lea.vmem %s0, %s216
        %s218 = smul.u32 40, %s12
      $region28: #{cnn_forward.5} parent=23 // pred_fallthru
        _
      // Predicated region
      $region29: #{cnn_forward.5} parent=23 // pred_check
        %p219 = pneg %p58
      $region30: #{cnn_forward.5} parent=23 // pred_check_branch
        %221 = sbr.rel (%p219) target = $region32
      $region31: #{cnn_forward.5} parent=23 // pred_region
        %s222 = smul.u32 40, %s12
        %p223 = scmp.lt.s32.totalorder %s222, 159
        %s224 = scalar_select %p223, %s222, 159
        %s225 = smul.addr %s224, 2
        %s226 = smul.addr %s225, 4
        %s227 = scalar_lea.vmem %s1, %s226
        %s228 = smul.u32 40, %s12
      $region32: #{cnn_forward.5} parent=23 // pred_fallthru
        _
      // Predicated region
      $region33: #{cnn_forward.5} parent=23 // pred_check
        %p229 = pneg %p84
      $region34: #{cnn_forward.5} parent=23 // pred_check_branch
        %231 = sbr.rel (%p229) target = $region36
      $region35: #{cnn_forward.5} parent=23 // pred_region
        %s232 = smul.u32 40, %s12
        %p233 = scmp.lt.s32.totalorder %s232, 159
        %s234 = scalar_select %p233, %s232, 159
        %s235 = smul.addr %s234, 2
        %s236 = smul.addr %s235, 4
        %s237 = scalar_lea.vmem %s2, %s236
        %s238 = smul.u32 40, %s12
      $region36: #{cnn_forward.5} parent=23 // pred_fallthru
        _
      // Predicated region
      $region37: #{cnn_forward.5} parent=23 // pred_check
        %p239 = pneg %p110
      $region38: #{cnn_forward.5} parent=23 // pred_check_branch
        %241 = sbr.rel (%p239) target = $region40
      $region39: #{cnn_forward.5} parent=23 // pred_region
        %s242 = smul.u32 40, %s12
        %p243 = scmp.lt.s32.totalorder %s242, 159
        %s244 = scalar_select %p243, %s242, 159
        %s245 = smul.addr %s244, 2
        %s246 = smul.addr %s245, 4
        %s247 = scalar_lea.vmem %s3, %s246
        %s248 = smul.u32 40, %s12
      $region40: #{cnn_forward.5} parent=23 // pred_fallthru
        _
    $region24: #{cnn_forward.5} parent=5 // pred_fallthru
      _
    %p249 = scmp.le.s32.totalorder 1, %s12
    %p250 = scmp.lt.s32.totalorder %s12, 5
    %p251 = pnand %p249, %p250
    %p252 = pneg %p251
    // Predicated region
    $region41: #{cnn_forward.5} parent=5 // pred_check
      _
    $region42: #{cnn_forward.5} parent=5 // pred_check_branch
      %254 = sbr.rel (%p251) target = $region44
    $region43: #{cnn_forward.5} parent=5 // pred_region
      %s255 = ssub.s32 %s12, 1
      %s256 = smul.u32 40, %s17
      %p257 = scmp.lt.s32.totalorder %s256, 159
      %s258 = scalar_select %p257, %s256, 159
      %s259 = smul.addr %s258, 2
      %s260 = smul.addr %s259, 4
      %s261 = scalar_lea.vmem %s0, %s260
      %p262 = pneg %p38
      %p263 = pneg %p35
      %s264 = smul.u32 40, %s17
      %p265 = scmp.lt.s32.totalorder %s264, 159
      %s266 = scalar_select %p265, %s264, 159
      %s267 = smul.addr %s266, 2
      %s268 = smul.addr %s267, 4
      %s269 = scalar_lea.vmem %s1, %s268
      %p270 = pneg %p64
      %p271 = pneg %p61
      %s272 = smul.u32 40, %s17
      %p273 = scmp.lt.s32.totalorder %s272, 159
      %s274 = scalar_select %p273, %s272, 159
      %s275 = smul.addr %s274, 2
      %s276 = smul.addr %s275, 4
      %s277 = scalar_lea.vmem %s2, %s276
      %p278 = pneg %p90
      %p279 = pneg %p87
      %s280 = smul.u32 40, %s17
      %p281 = scmp.lt.s32.totalorder %s280, 159
      %s282 = scalar_select %p281, %s280, 159
      %s283 = smul.addr %s282, 2
      %s284 = smul.addr %s283, 4
      %s285 = scalar_lea.vmem %s3, %s284
      %p286 = pneg %p116
      %p287 = pneg %p113
      %p288 = pneg %p137
      %p289 = pneg %p134
      %p290 = pneg %p158
      %p291 = pneg %p155
      %p292 = pneg %p184
      %p293 = pneg %p181
      %s294 = smul.u32 40, %s17
      %p295 = scmp.lt.s32.totalorder %s294, 159
      %s296 = scalar_select %p295, %s294, 159
      %s297 = smul.addr %s296, 4
      %s298 = scalar_lea.vmem %s6, %s297
      %s299 = smul.u32 40, %s17
      %p300 = scmp.lt.s32.totalorder %s299, 159
      %s301 = scalar_select %p300, %s299, 159
      %s302 = smul.addr %s301, 2
      %s303 = smul.addr %s302, 4
      %s304 = scalar_lea.vmem %s0, %s303
      %s305 = smul.u32 40, %s17
      %s306 = smul.u32 40, %s17
      %p307 = scmp.lt.s32.totalorder %s306, 159
      %s308 = scalar_select %p307, %s306, 159
      %s309 = smul.addr %s308, 2
      %s310 = smul.addr %s309, 4
      %s311 = scalar_lea.vmem %s1, %s310
      %s312 = smul.u32 40, %s17
      %s313 = smul.u32 40, %s17
      %p314 = scmp.lt.s32.totalorder %s313, 159
      %s315 = scalar_select %p314, %s313, 159
      %s316 = smul.addr %s315, 2
      %s317 = smul.addr %s316, 4
      %s318 = scalar_lea.vmem %s2, %s317
      %s319 = smul.u32 40, %s17
      %s320 = smul.u32 40, %s17
      %p321 = scmp.lt.s32.totalorder %s320, 159
      %s322 = scalar_select %p321, %s320, 159
      %s323 = smul.addr %s322, 2
      %s324 = smul.addr %s323, 4
      %s325 = scalar_lea.vmem %s3, %s324
      %s326 = smul.u32 40, %s17
      %s327 = smul.u32 40, %s17
      %p328 = scmp.lt.s32.totalorder %s327, 159
      %s329 = scalar_select %p328, %s327, 159
      %s330 = smul.addr %s329, 4
      %s331 = scalar_lea.vmem %s6, %s330
      %s332 = smul.u32 40, %s17
      %v334 = vld [vmem:[%s4] sm:$0xf]
      %v335 = vld [vmem:[%s4 + $0x4] sm:$0xf]
      %v336 = vld [vmem:[%s4 + $0x8] sm:$0xf]
      %v337 = vld [vmem:[%s4 + $0xc] sm:$0xf]
      %v338 = vld [vmem:[%s4 + $0x10] sm:$0xf]
      %v339 = vld [vmem:[%s4 + $0x14] sm:$0xf]
      %v340 = vld [vmem:[%s4 + $0x18] sm:$0xf]
      %v341 = vld [vmem:[%s4 + $0x1c] sm:$0xf]
      %v342 = vld [vmem:[%s4 + $0x20] sm:$0xf]
      %v343 = vld [vmem:[%s4 + $0x24] sm:$0xf]
      %v344 = vld [vmem:[%s4 + $0x28] sm:$0xf]
      %v345 = vld [vmem:[%s4 + $0x2c] sm:$0xf]
      %v346 = vld [vmem:[%s4 + $0x30] sm:$0xf]
      %v347 = vld [vmem:[%s4 + $0x34] sm:$0xf]
      %v348 = vld [vmem:[%s4 + $0x38] sm:$0xf]
      %v349 = vld [vmem:[%s4 + $0x3c] sm:$0xf]
      %v350 = vld [vmem:[%s4 + $0x40] sm:$0xf]
      %v351 = vld [vmem:[%s4 + $0x44] sm:$0xf]
      %v352 = vld [vmem:[%s5] sm:$0xff]
      %v353 = vld [vmem:[%s304] sm:$0xff]
      %v354 = vld [vmem:[%s304 + $0x8] sm:$0xff]
      %v355 = vld [vmem:[%s304 + $0x10] sm:$0xff]
      %v356 = vld [vmem:[%s304 + $0x18] sm:$0xff]
      %v357 = vld [vmem:[%s304 + $0x20] sm:$0xff]
      %v358 = vld [vmem:[%s304 + $0x28] sm:$0xff]
      %v359 = vld [vmem:[%s304 + $0x30] sm:$0xff]
      %v360 = vld [vmem:[%s304 + $0x38] sm:$0xff]
      %v361 = vld [vmem:[%s304 + $0x40] sm:$0xff]
      %v362 = vld [vmem:[%s304 + $0x48] sm:$0xff]
      %v363 = vld [vmem:[%s304 + $0x50] sm:$0xff]
      %v364 = vld [vmem:[%s304 + $0x58] sm:$0xff]
      %v365 = vld [vmem:[%s304 + $0x60] sm:$0xff]
      %v366 = vld [vmem:[%s304 + $0x68] sm:$0xff]
      %v367 = vld [vmem:[%s304 + $0x70] sm:$0xff]
      %v368 = vld [vmem:[%s304 + $0x78] sm:$0xff]
      %v369 = vld [vmem:[%s304 + $0x80] sm:$0xff]
      %v370 = vld [vmem:[%s304 + $0x88] sm:$0xff]
      %v371 = vld [vmem:[%s304 + $0x90] sm:$0xff]
      %v372 = vld [vmem:[%s304 + $0x98] sm:$0xff]
      %v373 = vld [vmem:[%s304 + $0xa0] sm:$0xff]
      %v374 = vld [vmem:[%s304 + $0xa8] sm:$0xff]
      %v375 = vld [vmem:[%s304 + $0xb0] sm:$0xff]
      %v376 = vld [vmem:[%s304 + $0xb8] sm:$0xff]
      %v377 = vld [vmem:[%s304 + $0xc0] sm:$0xff]
      %v378 = vld [vmem:[%s304 + $0xc8] sm:$0xff]
      %v379 = vld [vmem:[%s304 + $0xd0] sm:$0xff]
      %v380 = vld [vmem:[%s304 + $0xd8] sm:$0xff]
      %v381 = vld [vmem:[%s304 + $0xe0] sm:$0xff]
      %v382 = vld [vmem:[%s304 + $0xe8] sm:$0xff]
      %v383 = vld [vmem:[%s304 + $0xf0] sm:$0xff]
      %v384 = vld [vmem:[%s304 + $0xf8] sm:$0xff]
      %v385 = vld [vmem:[%s304 + $0x100] sm:$0xff]
      %v386 = vld [vmem:[%s304 + $0x108] sm:$0xff]
      %v387 = vld [vmem:[%s304 + $0x110] sm:$0xff]
      %v388 = vld [vmem:[%s304 + $0x118] sm:$0xff]
      %v389 = vld [vmem:[%s304 + $0x120] sm:$0xff]
      %v390 = vld [vmem:[%s304 + $0x128] sm:$0xff]
      %v391 = vld [vmem:[%s304 + $0x130] sm:$0xff]
      %v392 = vld [vmem:[%s304 + $0x138] sm:$0xff]
      %v393 = vperm.slane %v352, 0
      %v434 = vunpack.c.l.b16 %v353
      %v435 = vunpack.c.h.b16 %v353
      %v436 = vunpack.c.l.b16 %v354
      %v437 = vunpack.c.h.b16 %v354
      %v438 = vunpack.c.l.b16 %v355
      %v439 = vunpack.c.h.b16 %v355
      %v440 = vunpack.c.l.b16 %v356
      %v441 = vunpack.c.h.b16 %v356
      %v442 = vunpack.c.l.b16 %v357
      %v443 = vunpack.c.h.b16 %v357
      %v444 = vunpack.c.l.b16 %v358
      %v445 = vunpack.c.h.b16 %v358
      %v446 = vunpack.c.l.b16 %v359
      %v447 = vunpack.c.h.b16 %v359
      %v448 = vunpack.c.l.b16 %v360
      %v449 = vunpack.c.h.b16 %v360
      %v450 = vunpack.c.l.b16 %v361
      %v451 = vunpack.c.h.b16 %v361
      %v452 = vunpack.c.l.b16 %v362
      %v453 = vunpack.c.h.b16 %v362
      %v454 = vunpack.c.l.b16 %v363
      %v455 = vunpack.c.h.b16 %v363
      %v456 = vunpack.c.l.b16 %v364
      %v457 = vunpack.c.h.b16 %v364
      %v458 = vunpack.c.l.b16 %v365
      %v459 = vunpack.c.h.b16 %v365
      %v460 = vunpack.c.l.b16 %v366
      %v461 = vunpack.c.h.b16 %v366
      %v462 = vunpack.c.l.b16 %v367
      %v463 = vunpack.c.h.b16 %v367
      %v464 = vunpack.c.l.b16 %v368
      %v465 = vunpack.c.h.b16 %v368
      %v466 = vunpack.c.l.b16 %v369
      %v467 = vunpack.c.h.b16 %v369
      %v468 = vunpack.c.l.b16 %v370
      %v469 = vunpack.c.h.b16 %v370
      %v470 = vunpack.c.l.b16 %v371
      %v471 = vunpack.c.h.b16 %v371
      %v472 = vunpack.c.l.b16 %v372
      %v473 = vunpack.c.h.b16 %v372
      %v474 = vunpack.c.l.b16 %v373
      %v475 = vunpack.c.h.b16 %v373
      %v476 = vunpack.c.l.b16 %v374
      %v477 = vunpack.c.h.b16 %v374
      %v478 = vunpack.c.l.b16 %v375
      %v479 = vunpack.c.h.b16 %v375
      %v480 = vunpack.c.l.b16 %v376
      %v481 = vunpack.c.h.b16 %v376
      %v482 = vunpack.c.l.b16 %v377
      %v483 = vunpack.c.h.b16 %v377
      %v484 = vunpack.c.l.b16 %v378
      %v485 = vunpack.c.h.b16 %v378
      %v486 = vunpack.c.l.b16 %v379
      %v487 = vunpack.c.h.b16 %v379
      %v488 = vunpack.c.l.b16 %v380
      %v489 = vunpack.c.h.b16 %v380
      %v490 = vunpack.c.l.b16 %v381
      %v491 = vunpack.c.h.b16 %v381
      %v492 = vunpack.c.l.b16 %v382
      %v493 = vunpack.c.h.b16 %v382
      %v494 = vunpack.c.l.b16 %v383
      %v495 = vunpack.c.h.b16 %v383
      %v496 = vunpack.c.l.b16 %v384
      %v497 = vunpack.c.h.b16 %v384
      %v498 = vunpack.c.l.b16 %v385
      %v499 = vunpack.c.h.b16 %v385
      %v500 = vunpack.c.l.b16 %v386
      %v501 = vunpack.c.h.b16 %v386
      %v502 = vunpack.c.l.b16 %v387
      %v503 = vunpack.c.h.b16 %v387
      %v504 = vunpack.c.l.b16 %v388
      %v505 = vunpack.c.h.b16 %v388
      %v506 = vunpack.c.l.b16 %v389
      %v507 = vunpack.c.h.b16 %v389
      %v508 = vunpack.c.l.b16 %v390
      %v509 = vunpack.c.h.b16 %v390
      %v510 = vunpack.c.l.b16 %v391
      %v511 = vunpack.c.h.b16 %v391
      %v512 = vunpack.c.l.b16 %v392
      %v513 = vunpack.c.h.b16 %v392
      %v514 = vpack.c.b16 %v436, %v434
      %v515 = vpack.c.b16 %v437, %v435
      %v516 = vpack.c.b16 %v440, %v438
      %v517 = vpack.c.b16 %v441, %v439
      %v518 = vpack.c.b16 %v444, %v442
      %v519 = vpack.c.b16 %v445, %v443
      %v520 = vpack.c.b16 %v448, %v446
      %v521 = vpack.c.b16 %v449, %v447
      %v522 = vpack.c.b16 %v452, %v450
      %v523 = vpack.c.b16 %v453, %v451
      %v524 = vpack.c.b16 %v456, %v454
      %v525 = vpack.c.b16 %v457, %v455
      %v526 = vpack.c.b16 %v460, %v458
      %v527 = vpack.c.b16 %v461, %v459
      %v528 = vpack.c.b16 %v464, %v462
      %v529 = vpack.c.b16 %v465, %v463
      %v530 = vpack.c.b16 %v468, %v466
      %v531 = vpack.c.b16 %v469, %v467
      %v532 = vpack.c.b16 %v472, %v470
      %v533 = vpack.c.b16 %v473, %v471
      %v534 = vpack.c.b16 %v476, %v474
      %v535 = vpack.c.b16 %v477, %v475
      %v536 = vpack.c.b16 %v480, %v478
      %v537 = vpack.c.b16 %v481, %v479
      %v538 = vpack.c.b16 %v484, %v482
      %v539 = vpack.c.b16 %v485, %v483
      %v540 = vpack.c.b16 %v488, %v486
      %v541 = vpack.c.b16 %v489, %v487
      %v542 = vpack.c.b16 %v492, %v490
      %v543 = vpack.c.b16 %v493, %v491
      %v544 = vpack.c.b16 %v496, %v494
      %v545 = vpack.c.b16 %v497, %v495
      %v546 = vpack.c.b16 %v500, %v498
      %v547 = vpack.c.b16 %v501, %v499
      %v548 = vpack.c.b16 %v504, %v502
      %v549 = vpack.c.b16 %v505, %v503
      %v550 = vpack.c.b16 %v508, %v506
      %v551 = vpack.c.b16 %v509, %v507
      %v552 = vpack.c.b16 %v512, %v510
      %v553 = vpack.c.b16 %v513, %v511
      %v592 = vunpack.c.l.b16 %v334
      %v593 = vunpack.c.l.b16 %v335
      %v594 = vunpack.c.l.b16 %v336
      %v595 = vunpack.c.l.b16 %v337
      %v596 = vunpack.c.l.b16 %v338
      %v597 = vunpack.c.l.b16 %v339
      %v598 = vunpack.c.l.b16 %v340
      %v599 = vunpack.c.l.b16 %v341
      %v600 = vunpack.c.l.b16 %v342
      %v601 = vunpack.c.l.b16 %v343
      %v602 = vunpack.c.l.b16 %v344
      %v603 = vunpack.c.l.b16 %v345
      %v604 = vunpack.c.l.b16 %v346
      %v605 = vunpack.c.l.b16 %v347
      %v606 = vunpack.c.l.b16 %v348
      %v607 = vunpack.c.l.b16 %v349
      %v608 = vunpack.c.l.b16 %v350
      %v609 = vunpack.c.l.b16 %v351
      %v610 = vpack.c.b16 %v593, %v592
      %v611 = vpack.c.b16 %v595, %v594
      %v612 = vpack.c.b16 %v597, %v596
      %v613 = vpack.c.b16 %v599, %v598
      %v614 = vpack.c.b16 %v601, %v600
      %v615 = vpack.c.b16 %v603, %v602
      %v616 = vpack.c.b16 %v605, %v604
      %v617 = vpack.c.b16 %v607, %v606
      %v618 = vpack.c.b16 %v609, %v608
      %vm628 = vcmask 130048
      %v630 = vsel %vm628, %v515, 0
      %v633 = vsel %vm628, %v517, 0
      %v636 = vsel %vm628, %v519, 0
      %v639 = vsel %vm628, %v521, 0
      %v642 = vsel %vm628, %v523, 0
      %v645 = vsel %vm628, %v525, 0
      %v648 = vsel %vm628, %v527, 0
      %v651 = vsel %vm628, %v529, 0
      %v654 = vsel %vm628, %v531, 0
      %v657 = vsel %vm628, %v533, 0
      %v660 = vsel %vm628, %v535, 0
      %v663 = vsel %vm628, %v537, 0
      %v666 = vsel %vm628, %v539, 0
      %v669 = vsel %vm628, %v541, 0
      %v672 = vsel %vm628, %v543, 0
      %v675 = vsel %vm628, %v545, 0
      %v678 = vsel %vm628, %v547, 0
      %v681 = vsel %vm628, %v549, 0
      %v684 = vsel %vm628, %v551, 0
      %v687 = vsel %vm628, %v553, 0
      %689 = vmatpush.bf16.msra.mxu0 %v617
      %690 = vmatpush.bf16.msra.mxu0 %v616
      %691 = vmatpush.bf16.msra.mxu0 %v615
      %692 = vmatpush.bf16.msra.mxu0 %v614
      %693 = vmatpush.bf16.msra.mxu0 %v613
      %694 = vmatpush.bf16.msra.mxu0 %v612
      %695 = vmatpush.bf16.msra.mxu0 %v611
      %696 = vmatpush.bf16.msra.mxu0 %v610
      %697 = vmatmul.bf16.gmra.mxu0 %v514
      %v698 = vpop.f32.mrf.mxu0
      %v699 = vadd.f32 %v393, %v698
      %v700 = vpop.f32.mrf.mxu0
      %v701 = vadd.f32 %v393, %v700
      %702 = vmatmul.bf16.gmra.mxu0 %v516
      %v703 = vpop.f32.mrf.mxu0
      %v704 = vadd.f32 %v393, %v703
      %v705 = vpop.f32.mrf.mxu0
      %v706 = vadd.f32 %v393, %v705
      %707 = vmatmul.bf16.gmra.mxu0 %v518
      %v708 = vpop.f32.mrf.mxu0
      %v709 = vadd.f32 %v393, %v708
      %v710 = vpop.f32.mrf.mxu0
      %v711 = vadd.f32 %v393, %v710
      %712 = vmatmul.bf16.gmra.mxu0 %v520
      %v713 = vpop.f32.mrf.mxu0
      %v714 = vadd.f32 %v393, %v713
      %v715 = vpop.f32.mrf.mxu0
      %v716 = vadd.f32 %v393, %v715
      %717 = vmatmul.bf16.gmra.mxu0 %v522
      %v718 = vpop.f32.mrf.mxu0
      %v719 = vadd.f32 %v393, %v718
      %v720 = vpop.f32.mrf.mxu0
      %v721 = vadd.f32 %v393, %v720
      %722 = vmatmul.bf16.gmra.mxu0 %v524
      %v723 = vpop.f32.mrf.mxu0
      %v724 = vadd.f32 %v393, %v723
      %v725 = vpop.f32.mrf.mxu0
      %v726 = vadd.f32 %v393, %v725
      %727 = vmatmul.bf16.gmra.mxu0 %v526
      %v728 = vpop.f32.mrf.mxu0
      %v729 = vadd.f32 %v393, %v728
      %v730 = vpop.f32.mrf.mxu0
      %v731 = vadd.f32 %v393, %v730
      %732 = vmatmul.bf16.gmra.mxu0 %v528
      %v733 = vpop.f32.mrf.mxu0
      %v734 = vadd.f32 %v393, %v733
      %v735 = vpop.f32.mrf.mxu0
      %v736 = vadd.f32 %v393, %v735
      %737 = vmatmul.bf16.gmra.mxu0 %v530
      %v738 = vpop.f32.mrf.mxu0
      %v739 = vadd.f32 %v393, %v738
      %v740 = vpop.f32.mrf.mxu0
      %v741 = vadd.f32 %v393, %v740
      %742 = vmatmul.bf16.gmra.mxu0 %v532
      %v743 = vpop.f32.mrf.mxu0
      %v744 = vadd.f32 %v393, %v743
      %v745 = vpop.f32.mrf.mxu0
      %v746 = vadd.f32 %v393, %v745
      %747 = vmatmul.bf16.gmra.mxu0 %v534
      %v748 = vpop.f32.mrf.mxu0
      %v749 = vadd.f32 %v393, %v748
      %v750 = vpop.f32.mrf.mxu0
      %v751 = vadd.f32 %v393, %v750
      %752 = vmatmul.bf16.gmra.mxu0 %v536
      %v753 = vpop.f32.mrf.mxu0
      %v754 = vadd.f32 %v393, %v753
      %v755 = vpop.f32.mrf.mxu0
      %v756 = vadd.f32 %v393, %v755
      %757 = vmatmul.bf16.gmra.mxu0 %v538
      %v758 = vpop.f32.mrf.mxu0
      %v759 = vadd.f32 %v393, %v758
      %v760 = vpop.f32.mrf.mxu0
      %v761 = vadd.f32 %v393, %v760
      %762 = vmatmul.bf16.gmra.mxu0 %v540
      %v763 = vpop.f32.mrf.mxu0
      %v764 = vadd.f32 %v393, %v763
      %v765 = vpop.f32.mrf.mxu0
      %v766 = vadd.f32 %v393, %v765
      %767 = vmatmul.bf16.gmra.mxu0 %v542
      %v768 = vpop.f32.mrf.mxu0
      %v769 = vadd.f32 %v393, %v768
      %v770 = vpop.f32.mrf.mxu0
      %v771 = vadd.f32 %v393, %v770
      %772 = vmatmul.bf16.gmra.mxu0 %v544
      %v773 = vpop.f32.mrf.mxu0
      %v774 = vadd.f32 %v393, %v773
      %v775 = vpop.f32.mrf.mxu0
      %v776 = vadd.f32 %v393, %v775
      %777 = vmatmul.bf16.gmra.mxu0 %v546
      %v778 = vpop.f32.mrf.mxu0
      %v779 = vadd.f32 %v393, %v778
      %v780 = vpop.f32.mrf.mxu0
      %v781 = vadd.f32 %v393, %v780
      %782 = vmatmul.bf16.gmra.mxu0 %v548
      %v783 = vpop.f32.mrf.mxu0
      %v784 = vadd.f32 %v393, %v783
      %v785 = vpop.f32.mrf.mxu0
      %v786 = vadd.f32 %v393, %v785
      %787 = vmatmul.bf16.gmra.mxu0 %v550
      %v788 = vpop.f32.mrf.mxu0
      %v789 = vadd.f32 %v393, %v788
      %v790 = vpop.f32.mrf.mxu0
      %v791 = vadd.f32 %v393, %v790
      %792 = vmatmul.bf16.gmra.mxu0 %v552
      %v793 = vpop.f32.mrf.mxu0
      %v794 = vadd.f32 %v393, %v793
      %v795 = vpop.f32.mrf.mxu0
      %v796 = vadd.f32 %v393, %v795
      %797 = vdwg.mxu0
      %798 = vmatpush.bf16.msra.mxu0 0
      %799 = vmatpush.bf16.msra.mxu0 0
      %800 = vmatpush.bf16.msra.mxu0 0
      %801 = vmatpush.bf16.msra.mxu0 0
      %802 = vmatpush.bf16.msra.mxu0 0
      %803 = vmatpush.bf16.msra.mxu0 0
      %804 = vmatpush.bf16.msra.mxu0 0
      %805 = vmatpush.bf16.msra.mxu0 %v618
      %806 = vmatmul.bf16.gmra.mxu0 %v630
      %v807 = vpop.f32.mrf.mxu0
      %v808 = vadd.f32 %v699, %v807
      %v809 = vpop.f32.mrf.mxu0
      %v810 = vadd.f32 %v701, %v809
      %811 = vmatmul.bf16.gmra.mxu0 %v633
      %v812 = vpop.f32.mrf.mxu0
      %v813 = vadd.f32 %v704, %v812
      %v814 = vpop.f32.mrf.mxu0
      %v815 = vadd.f32 %v706, %v814
      %816 = vmatmul.bf16.gmra.mxu0 %v636
      %v817 = vpop.f32.mrf.mxu0
      %v818 = vadd.f32 %v709, %v817
      %v819 = vpop.f32.mrf.mxu0
      %v820 = vadd.f32 %v711, %v819
      %821 = vmatmul.bf16.gmra.mxu0 %v639
      %v822 = vpop.f32.mrf.mxu0
      %v823 = vadd.f32 %v714, %v822
      %v824 = vpop.f32.mrf.mxu0
      %v825 = vadd.f32 %v716, %v824
      %826 = vmatmul.bf16.gmra.mxu0 %v642
      %v827 = vpop.f32.mrf.mxu0
      %v828 = vadd.f32 %v719, %v827
      %v829 = vpop.f32.mrf.mxu0
      %v830 = vadd.f32 %v721, %v829
      %831 = vmatmul.bf16.gmra.mxu0 %v645
      %v832 = vpop.f32.mrf.mxu0
      %v833 = vadd.f32 %v724, %v832
      %v834 = vpop.f32.mrf.mxu0
      %v835 = vadd.f32 %v726, %v834
      %836 = vmatmul.bf16.gmra.mxu0 %v648
      %v837 = vpop.f32.mrf.mxu0
      %v838 = vadd.f32 %v729, %v837
      %v839 = vpop.f32.mrf.mxu0
      %v840 = vadd.f32 %v731, %v839
      %841 = vmatmul.bf16.gmra.mxu0 %v651
      %v842 = vpop.f32.mrf.mxu0
      %v843 = vadd.f32 %v734, %v842
      %v844 = vpop.f32.mrf.mxu0
      %v845 = vadd.f32 %v736, %v844
      %846 = vmatmul.bf16.gmra.mxu0 %v654
      %v847 = vpop.f32.mrf.mxu0
      %v848 = vadd.f32 %v739, %v847
      %v849 = vpop.f32.mrf.mxu0
      %v850 = vadd.f32 %v741, %v849
      %851 = vmatmul.bf16.gmra.mxu0 %v657
      %v852 = vpop.f32.mrf.mxu0
      %v853 = vadd.f32 %v744, %v852
      %v854 = vpop.f32.mrf.mxu0
      %v855 = vadd.f32 %v746, %v854
      %856 = vmatmul.bf16.gmra.mxu0 %v660
      %v857 = vpop.f32.mrf.mxu0
      %v858 = vadd.f32 %v749, %v857
      %v859 = vpop.f32.mrf.mxu0
      %v860 = vadd.f32 %v751, %v859
      %861 = vmatmul.bf16.gmra.mxu0 %v663
      %v862 = vpop.f32.mrf.mxu0
      %v863 = vadd.f32 %v754, %v862
      %v864 = vpop.f32.mrf.mxu0
      %v865 = vadd.f32 %v756, %v864
      %866 = vmatmul.bf16.gmra.mxu0 %v666
      %v867 = vpop.f32.mrf.mxu0
      %v868 = vadd.f32 %v759, %v867
      %v869 = vpop.f32.mrf.mxu0
      %v870 = vadd.f32 %v761, %v869
      %871 = vmatmul.bf16.gmra.mxu0 %v669
      %v872 = vpop.f32.mrf.mxu0
      %v873 = vadd.f32 %v764, %v872
      %v874 = vpop.f32.mrf.mxu0
      %v875 = vadd.f32 %v766, %v874
      %876 = vmatmul.bf16.gmra.mxu0 %v672
      %v877 = vpop.f32.mrf.mxu0
      %v878 = vadd.f32 %v769, %v877
      %v879 = vpop.f32.mrf.mxu0
      %v880 = vadd.f32 %v771, %v879
      %881 = vmatmul.bf16.gmra.mxu0 %v675
      %v882 = vpop.f32.mrf.mxu0
      %v883 = vadd.f32 %v774, %v882
      %v884 = vpop.f32.mrf.mxu0
      %v885 = vadd.f32 %v776, %v884
      %886 = vmatmul.bf16.gmra.mxu0 %v678
      %v887 = vpop.f32.mrf.mxu0
      %v888 = vadd.f32 %v779, %v887
      %v889 = vpop.f32.mrf.mxu0
      %v890 = vadd.f32 %v781, %v889
      %891 = vmatmul.bf16.gmra.mxu0 %v681
      %v892 = vpop.f32.mrf.mxu0
      %v893 = vadd.f32 %v784, %v892
      %v894 = vpop.f32.mrf.mxu0
      %v895 = vadd.f32 %v786, %v894
      %896 = vmatmul.bf16.gmra.mxu0 %v684
      %v897 = vpop.f32.mrf.mxu0
      %v898 = vadd.f32 %v789, %v897
      %v899 = vpop.f32.mrf.mxu0
      %v900 = vadd.f32 %v791, %v899
      %901 = vmatmul.bf16.gmra.mxu0 %v687
      %v902 = vpop.f32.mrf.mxu0
      %v903 = vadd.f32 %v794, %v902
      %v904 = vpop.f32.mrf.mxu0
      %v905 = vadd.f32 %v796, %v904
      %906 = vdwg.mxu0
      %v907 = vmax.f32 %v808, 0.0
      %v908 = vmax.f32 %v810, 0.0
      %v909 = vmax.f32 %v813, 0.0
      %v910 = vmax.f32 %v815, 0.0
      %v911 = vmax.f32 %v818, 0.0
      %v912 = vmax.f32 %v820, 0.0
      %v913 = vmax.f32 %v823, 0.0
      %v914 = vmax.f32 %v825, 0.0
      %v915 = vmax.f32 %v828, 0.0
      %v916 = vmax.f32 %v830, 0.0
      %v917 = vmax.f32 %v833, 0.0
      %v918 = vmax.f32 %v835, 0.0
      %v919 = vmax.f32 %v838, 0.0
      %v920 = vmax.f32 %v840, 0.0
      %v921 = vmax.f32 %v843, 0.0
      %v922 = vmax.f32 %v845, 0.0
      %v923 = vmax.f32 %v848, 0.0
      %v924 = vmax.f32 %v850, 0.0
      %v925 = vmax.f32 %v853, 0.0
      %v926 = vmax.f32 %v855, 0.0
      %v927 = vmax.f32 %v858, 0.0
      %v928 = vmax.f32 %v860, 0.0
      %v929 = vmax.f32 %v863, 0.0
      %v930 = vmax.f32 %v865, 0.0
      %v931 = vmax.f32 %v868, 0.0
      %v932 = vmax.f32 %v870, 0.0
      %v933 = vmax.f32 %v873, 0.0
      %v934 = vmax.f32 %v875, 0.0
      %v935 = vmax.f32 %v878, 0.0
      %v936 = vmax.f32 %v880, 0.0
      %v937 = vmax.f32 %v883, 0.0
      %v938 = vmax.f32 %v885, 0.0
      %v939 = vmax.f32 %v888, 0.0
      %v940 = vmax.f32 %v890, 0.0
      %v941 = vmax.f32 %v893, 0.0
      %v942 = vmax.f32 %v895, 0.0
      %v943 = vmax.f32 %v898, 0.0
      %v944 = vmax.f32 %v900, 0.0
      %v945 = vmax.f32 %v903, 0.0
      %v946 = vmax.f32 %v905, 0.0
      %v947 = vperm.slane %v352, 1
      %v948 = vmul.f32 %v907, %v947
      %v949 = vmul.f32 %v908, %v947
      %v950 = vmul.f32 %v909, %v947
      %v951 = vmul.f32 %v910, %v947
      %v952 = vmul.f32 %v911, %v947
      %v953 = vmul.f32 %v912, %v947
      %v954 = vmul.f32 %v913, %v947
      %v955 = vmul.f32 %v914, %v947
      %v956 = vmul.f32 %v915, %v947
      %v957 = vmul.f32 %v916, %v947
      %v958 = vmul.f32 %v917, %v947
      %v959 = vmul.f32 %v918, %v947
      %v960 = vmul.f32 %v919, %v947
      %v961 = vmul.f32 %v920, %v947
      %v962 = vmul.f32 %v921, %v947
      %v963 = vmul.f32 %v922, %v947
      %v964 = vmul.f32 %v923, %v947
      %v965 = vmul.f32 %v924, %v947
      %v966 = vmul.f32 %v925, %v947
      %v967 = vmul.f32 %v926, %v947
      %v968 = vmul.f32 %v927, %v947
      %v969 = vmul.f32 %v928, %v947
      %v970 = vmul.f32 %v929, %v947
      %v971 = vmul.f32 %v930, %v947
      %v972 = vmul.f32 %v931, %v947
      %v973 = vmul.f32 %v932, %v947
      %v974 = vmul.f32 %v933, %v947
      %v975 = vmul.f32 %v934, %v947
      %v976 = vmul.f32 %v935, %v947
      %v977 = vmul.f32 %v936, %v947
      %v978 = vmul.f32 %v937, %v947
      %v979 = vmul.f32 %v938, %v947
      %v980 = vmul.f32 %v939, %v947
      %v981 = vmul.f32 %v940, %v947
      %v982 = vmul.f32 %v941, %v947
      %v983 = vmul.f32 %v942, %v947
      %v984 = vmul.f32 %v943, %v947
      %v985 = vmul.f32 %v944, %v947
      %v986 = vmul.f32 %v945, %v947
      %v987 = vmul.f32 %v946, %v947
      %v988 = vperm.slane %v352, 2
      %v989 = vadd.f32 %v948, %v988
      %v990 = vadd.f32 %v949, %v988
      %v991 = vadd.f32 %v950, %v988
      %v992 = vadd.f32 %v951, %v988
      %v993 = vadd.f32 %v952, %v988
      %v994 = vadd.f32 %v953, %v988
      %v995 = vadd.f32 %v954, %v988
      %v996 = vadd.f32 %v955, %v988
      %v997 = vadd.f32 %v956, %v988
      %v998 = vadd.f32 %v957, %v988
      %v999 = vadd.f32 %v958, %v988
      %v1000 = vadd.f32 %v959, %v988
      %v1001 = vadd.f32 %v960, %v988
      %v1002 = vadd.f32 %v961, %v988
      %v1003 = vadd.f32 %v962, %v988
      %v1004 = vadd.f32 %v963, %v988
      %v1005 = vadd.f32 %v964, %v988
      %v1006 = vadd.f32 %v965, %v988
      %v1007 = vadd.f32 %v966, %v988
      %v1008 = vadd.f32 %v967, %v988
      %v1009 = vadd.f32 %v968, %v988
      %v1010 = vadd.f32 %v969, %v988
      %v1011 = vadd.f32 %v970, %v988
      %v1012 = vadd.f32 %v971, %v988
      %v1013 = vadd.f32 %v972, %v988
      %v1014 = vadd.f32 %v973, %v988
      %v1015 = vadd.f32 %v974, %v988
      %v1016 = vadd.f32 %v975, %v988
      %v1017 = vadd.f32 %v976, %v988
      %v1018 = vadd.f32 %v977, %v988
      %v1019 = vadd.f32 %v978, %v988
      %v1020 = vadd.f32 %v979, %v988
      %v1021 = vadd.f32 %v980, %v988
      %v1022 = vadd.f32 %v981, %v988
      %v1023 = vadd.f32 %v982, %v988
      %v1024 = vadd.f32 %v983, %v988
      %v1025 = vadd.f32 %v984, %v988
      %v1026 = vadd.f32 %v985, %v988
      %v1027 = vadd.f32 %v986, %v988
      %v1028 = vadd.f32 %v987, %v988
      %v1029 = vld [vmem:[%s311] sm:$0xff]
      %v1030 = vld [vmem:[%s311 + $0x8] sm:$0xff]
      %v1031 = vld [vmem:[%s311 + $0x10] sm:$0xff]
      %v1032 = vld [vmem:[%s311 + $0x18] sm:$0xff]
      %v1033 = vld [vmem:[%s311 + $0x20] sm:$0xff]
      %v1034 = vld [vmem:[%s311 + $0x28] sm:$0xff]
      %v1035 = vld [vmem:[%s311 + $0x30] sm:$0xff]
      %v1036 = vld [vmem:[%s311 + $0x38] sm:$0xff]
      %v1037 = vld [vmem:[%s311 + $0x40] sm:$0xff]
      %v1038 = vld [vmem:[%s311 + $0x48] sm:$0xff]
      %v1039 = vld [vmem:[%s311 + $0x50] sm:$0xff]
      %v1040 = vld [vmem:[%s311 + $0x58] sm:$0xff]
      %v1041 = vld [vmem:[%s311 + $0x60] sm:$0xff]
      %v1042 = vld [vmem:[%s311 + $0x68] sm:$0xff]
      %v1043 = vld [vmem:[%s311 + $0x70] sm:$0xff]
      %v1044 = vld [vmem:[%s311 + $0x78] sm:$0xff]
      %v1045 = vld [vmem:[%s311 + $0x80] sm:$0xff]
      %v1046 = vld [vmem:[%s311 + $0x88] sm:$0xff]
      %v1047 = vld [vmem:[%s311 + $0x90] sm:$0xff]
      %v1048 = vld [vmem:[%s311 + $0x98] sm:$0xff]
      %v1049 = vld [vmem:[%s311 + $0xa0] sm:$0xff]
      %v1050 = vld [vmem:[%s311 + $0xa8] sm:$0xff]
      %v1051 = vld [vmem:[%s311 + $0xb0] sm:$0xff]
      %v1052 = vld [vmem:[%s311 + $0xb8] sm:$0xff]
      %v1053 = vld [vmem:[%s311 + $0xc0] sm:$0xff]
      %v1054 = vld [vmem:[%s311 + $0xc8] sm:$0xff]
      %v1055 = vld [vmem:[%s311 + $0xd0] sm:$0xff]
      %v1056 = vld [vmem:[%s311 + $0xd8] sm:$0xff]
      %v1057 = vld [vmem:[%s311 + $0xe0] sm:$0xff]
      %v1058 = vld [vmem:[%s311 + $0xe8] sm:$0xff]
      %v1059 = vld [vmem:[%s311 + $0xf0] sm:$0xff]
      %v1060 = vld [vmem:[%s311 + $0xf8] sm:$0xff]
      %v1061 = vld [vmem:[%s311 + $0x100] sm:$0xff]
      %v1062 = vld [vmem:[%s311 + $0x108] sm:$0xff]
      %v1063 = vld [vmem:[%s311 + $0x110] sm:$0xff]
      %v1064 = vld [vmem:[%s311 + $0x118] sm:$0xff]
      %v1065 = vld [vmem:[%s311 + $0x120] sm:$0xff]
      %v1066 = vld [vmem:[%s311 + $0x128] sm:$0xff]
      %v1067 = vld [vmem:[%s311 + $0x130] sm:$0xff]
      %v1068 = vld [vmem:[%s311 + $0x138] sm:$0xff]
      %v1109 = vunpack.c.l.b16 %v1029
      %v1110 = vunpack.c.h.b16 %v1029
      %v1111 = vunpack.c.l.b16 %v1030
      %v1112 = vunpack.c.h.b16 %v1030
      %v1113 = vunpack.c.l.b16 %v1031
      %v1114 = vunpack.c.h.b16 %v1031
      %v1115 = vunpack.c.l.b16 %v1032
      %v1116 = vunpack.c.h.b16 %v1032
      %v1117 = vunpack.c.l.b16 %v1033
      %v1118 = vunpack.c.h.b16 %v1033
      %v1119 = vunpack.c.l.b16 %v1034
      %v1120 = vunpack.c.h.b16 %v1034
      %v1121 = vunpack.c.l.b16 %v1035
      %v1122 = vunpack.c.h.b16 %v1035
      %v1123 = vunpack.c.l.b16 %v1036
      %v1124 = vunpack.c.h.b16 %v1036
      %v1125 = vunpack.c.l.b16 %v1037
      %v1126 = vunpack.c.h.b16 %v1037
      %v1127 = vunpack.c.l.b16 %v1038
      %v1128 = vunpack.c.h.b16 %v1038
      %v1129 = vunpack.c.l.b16 %v1039
      %v1130 = vunpack.c.h.b16 %v1039
      %v1131 = vunpack.c.l.b16 %v1040
      %v1132 = vunpack.c.h.b16 %v1040
      %v1133 = vunpack.c.l.b16 %v1041
      %v1134 = vunpack.c.h.b16 %v1041
      %v1135 = vunpack.c.l.b16 %v1042
      %v1136 = vunpack.c.h.b16 %v1042
      %v1137 = vunpack.c.l.b16 %v1043
      %v1138 = vunpack.c.h.b16 %v1043
      %v1139 = vunpack.c.l.b16 %v1044
      %v1140 = vunpack.c.h.b16 %v1044
      %v1141 = vunpack.c.l.b16 %v1045
      %v1142 = vunpack.c.h.b16 %v1045
      %v1143 = vunpack.c.l.b16 %v1046
      %v1144 = vunpack.c.h.b16 %v1046
      %v1145 = vunpack.c.l.b16 %v1047
      %v1146 = vunpack.c.h.b16 %v1047
      %v1147 = vunpack.c.l.b16 %v1048
      %v1148 = vunpack.c.h.b16 %v1048
      %v1149 = vunpack.c.l.b16 %v1049
      %v1150 = vunpack.c.h.b16 %v1049
      %v1151 = vunpack.c.l.b16 %v1050
      %v1152 = vunpack.c.h.b16 %v1050
      %v1153 = vunpack.c.l.b16 %v1051
      %v1154 = vunpack.c.h.b16 %v1051
      %v1155 = vunpack.c.l.b16 %v1052
      %v1156 = vunpack.c.h.b16 %v1052
      %v1157 = vunpack.c.l.b16 %v1053
      %v1158 = vunpack.c.h.b16 %v1053
      %v1159 = vunpack.c.l.b16 %v1054
      %v1160 = vunpack.c.h.b16 %v1054
      %v1161 = vunpack.c.l.b16 %v1055
      %v1162 = vunpack.c.h.b16 %v1055
      %v1163 = vunpack.c.l.b16 %v1056
      %v1164 = vunpack.c.h.b16 %v1056
      %v1165 = vunpack.c.l.b16 %v1057
      %v1166 = vunpack.c.h.b16 %v1057
      %v1167 = vunpack.c.l.b16 %v1058
      %v1168 = vunpack.c.h.b16 %v1058
      %v1169 = vunpack.c.l.b16 %v1059
      %v1170 = vunpack.c.h.b16 %v1059
      %v1171 = vunpack.c.l.b16 %v1060
      %v1172 = vunpack.c.h.b16 %v1060
      %v1173 = vunpack.c.l.b16 %v1061
      %v1174 = vunpack.c.h.b16 %v1061
      %v1175 = vunpack.c.l.b16 %v1062
      %v1176 = vunpack.c.h.b16 %v1062
      %v1177 = vunpack.c.l.b16 %v1063
      %v1178 = vunpack.c.h.b16 %v1063
      %v1179 = vunpack.c.l.b16 %v1064
      %v1180 = vunpack.c.h.b16 %v1064
      %v1181 = vunpack.c.l.b16 %v1065
      %v1182 = vunpack.c.h.b16 %v1065
      %v1183 = vunpack.c.l.b16 %v1066
      %v1184 = vunpack.c.h.b16 %v1066
      %v1185 = vunpack.c.l.b16 %v1067
      %v1186 = vunpack.c.h.b16 %v1067
      %v1187 = vunpack.c.l.b16 %v1068
      %v1188 = vunpack.c.h.b16 %v1068
      %v1189 = vpack.c.b16 %v1111, %v1109
      %v1190 = vpack.c.b16 %v1112, %v1110
      %v1191 = vpack.c.b16 %v1115, %v1113
      %v1192 = vpack.c.b16 %v1116, %v1114
      %v1193 = vpack.c.b16 %v1119, %v1117
      %v1194 = vpack.c.b16 %v1120, %v1118
      %v1195 = vpack.c.b16 %v1123, %v1121
      %v1196 = vpack.c.b16 %v1124, %v1122
      %v1197 = vpack.c.b16 %v1127, %v1125
      %v1198 = vpack.c.b16 %v1128, %v1126
      %v1199 = vpack.c.b16 %v1131, %v1129
      %v1200 = vpack.c.b16 %v1132, %v1130
      %v1201 = vpack.c.b16 %v1135, %v1133
      %v1202 = vpack.c.b16 %v1136, %v1134
      %v1203 = vpack.c.b16 %v1139, %v1137
      %v1204 = vpack.c.b16 %v1140, %v1138
      %v1205 = vpack.c.b16 %v1143, %v1141
      %v1206 = vpack.c.b16 %v1144, %v1142
      %v1207 = vpack.c.b16 %v1147, %v1145
      %v1208 = vpack.c.b16 %v1148, %v1146
      %v1209 = vpack.c.b16 %v1151, %v1149
      %v1210 = vpack.c.b16 %v1152, %v1150
      %v1211 = vpack.c.b16 %v1155, %v1153
      %v1212 = vpack.c.b16 %v1156, %v1154
      %v1213 = vpack.c.b16 %v1159, %v1157
      %v1214 = vpack.c.b16 %v1160, %v1158
      %v1215 = vpack.c.b16 %v1163, %v1161
      %v1216 = vpack.c.b16 %v1164, %v1162
      %v1217 = vpack.c.b16 %v1167, %v1165
      %v1218 = vpack.c.b16 %v1168, %v1166
      %v1219 = vpack.c.b16 %v1171, %v1169
      %v1220 = vpack.c.b16 %v1172, %v1170
      %v1221 = vpack.c.b16 %v1175, %v1173
      %v1222 = vpack.c.b16 %v1176, %v1174
      %v1223 = vpack.c.b16 %v1179, %v1177
      %v1224 = vpack.c.b16 %v1180, %v1178
      %v1225 = vpack.c.b16 %v1183, %v1181
      %v1226 = vpack.c.b16 %v1184, %v1182
      %v1227 = vpack.c.b16 %v1187, %v1185
      %v1228 = vpack.c.b16 %v1188, %v1186
      %v1250 = vsel %vm628, %v1190, 0
      %v1253 = vsel %vm628, %v1192, 0
      %v1256 = vsel %vm628, %v1194, 0
      %v1259 = vsel %vm628, %v1196, 0
      %v1262 = vsel %vm628, %v1198, 0
      %v1265 = vsel %vm628, %v1200, 0
      %v1268 = vsel %vm628, %v1202, 0
      %v1271 = vsel %vm628, %v1204, 0
      %v1274 = vsel %vm628, %v1206, 0
      %v1277 = vsel %vm628, %v1208, 0
      %v1280 = vsel %vm628, %v1210, 0
      %v1283 = vsel %vm628, %v1212, 0
      %v1286 = vsel %vm628, %v1214, 0
      %v1289 = vsel %vm628, %v1216, 0
      %v1292 = vsel %vm628, %v1218, 0
      %v1295 = vsel %vm628, %v1220, 0
      %v1298 = vsel %vm628, %v1222, 0
      %v1301 = vsel %vm628, %v1224, 0
      %v1304 = vsel %vm628, %v1226, 0
      %v1307 = vsel %vm628, %v1228, 0
      %1309 = vmatpush.bf16.msra.mxu0 %v617
      %1310 = vmatpush.bf16.msra.mxu0 %v616
      %1311 = vmatpush.bf16.msra.mxu0 %v615
      %1312 = vmatpush.bf16.msra.mxu0 %v614
      %1313 = vmatpush.bf16.msra.mxu0 %v613
      %1314 = vmatpush.bf16.msra.mxu0 %v612
      %1315 = vmatpush.bf16.msra.mxu0 %v611
      %1316 = vmatpush.bf16.msra.mxu0 %v610
      %1317 = vmatmul.bf16.gmra.mxu0 %v1189
      %v1318 = vpop.f32.mrf.mxu0
      %v1319 = vadd.f32 %v393, %v1318
      %v1320 = vpop.f32.mrf.mxu0
      %v1321 = vadd.f32 %v393, %v1320
      %1322 = vmatmul.bf16.gmra.mxu0 %v1191
      %v1323 = vpop.f32.mrf.mxu0
      %v1324 = vadd.f32 %v393, %v1323
      %v1325 = vpop.f32.mrf.mxu0
      %v1326 = vadd.f32 %v393, %v1325
      %1327 = vmatmul.bf16.gmra.mxu0 %v1193
      %v1328 = vpop.f32.mrf.mxu0
      %v1329 = vadd.f32 %v393, %v1328
      %v1330 = vpop.f32.mrf.mxu0
      %v1331 = vadd.f32 %v393, %v1330
      %1332 = vmatmul.bf16.gmra.mxu0 %v1195
      %v1333 = vpop.f32.mrf.mxu0
      %v1334 = vadd.f32 %v393, %v1333
      %v1335 = vpop.f32.mrf.mxu0
      %v1336 = vadd.f32 %v393, %v1335
      %1337 = vmatmul.bf16.gmra.mxu0 %v1197
      %v1338 = vpop.f32.mrf.mxu0
      %v1339 = vadd.f32 %v393, %v1338
      %v1340 = vpop.f32.mrf.mxu0
      %v1341 = vadd.f32 %v393, %v1340
      %1342 = vmatmul.bf16.gmra.mxu0 %v1199
      %v1343 = vpop.f32.mrf.mxu0
      %v1344 = vadd.f32 %v393, %v1343
      %v1345 = vpop.f32.mrf.mxu0
      %v1346 = vadd.f32 %v393, %v1345
      %1347 = vmatmul.bf16.gmra.mxu0 %v1201
      %v1348 = vpop.f32.mrf.mxu0
      %v1349 = vadd.f32 %v393, %v1348
      %v1350 = vpop.f32.mrf.mxu0
      %v1351 = vadd.f32 %v393, %v1350
      %1352 = vmatmul.bf16.gmra.mxu0 %v1203
      %v1353 = vpop.f32.mrf.mxu0
      %v1354 = vadd.f32 %v393, %v1353
      %v1355 = vpop.f32.mrf.mxu0
      %v1356 = vadd.f32 %v393, %v1355
      %1357 = vmatmul.bf16.gmra.mxu0 %v1205
      %v1358 = vpop.f32.mrf.mxu0
      %v1359 = vadd.f32 %v393, %v1358
      %v1360 = vpop.f32.mrf.mxu0
      %v1361 = vadd.f32 %v393, %v1360
      %1362 = vmatmul.bf16.gmra.mxu0 %v1207
      %v1363 = vpop.f32.mrf.mxu0
      %v1364 = vadd.f32 %v393, %v1363
      %v1365 = vpop.f32.mrf.mxu0
      %v1366 = vadd.f32 %v393, %v1365
      %1367 = vmatmul.bf16.gmra.mxu0 %v1209
      %v1368 = vpop.f32.mrf.mxu0
      %v1369 = vadd.f32 %v393, %v1368
      %v1370 = vpop.f32.mrf.mxu0
      %v1371 = vadd.f32 %v393, %v1370
      %1372 = vmatmul.bf16.gmra.mxu0 %v1211
      %v1373 = vpop.f32.mrf.mxu0
      %v1374 = vadd.f32 %v393, %v1373
      %v1375 = vpop.f32.mrf.mxu0
      %v1376 = vadd.f32 %v393, %v1375
      %1377 = vmatmul.bf16.gmra.mxu0 %v1213
      %v1378 = vpop.f32.mrf.mxu0
      %v1379 = vadd.f32 %v393, %v1378
      %v1380 = vpop.f32.mrf.mxu0
      %v1381 = vadd.f32 %v393, %v1380
      %1382 = vmatmul.bf16.gmra.mxu0 %v1215
      %v1383 = vpop.f32.mrf.mxu0
      %v1384 = vadd.f32 %v393, %v1383
      %v1385 = vpop.f32.mrf.mxu0
      %v1386 = vadd.f32 %v393, %v1385
      %1387 = vmatmul.bf16.gmra.mxu0 %v1217
      %v1388 = vpop.f32.mrf.mxu0
      %v1389 = vadd.f32 %v393, %v1388
      %v1390 = vpop.f32.mrf.mxu0
      %v1391 = vadd.f32 %v393, %v1390
      %1392 = vmatmul.bf16.gmra.mxu0 %v1219
      %v1393 = vpop.f32.mrf.mxu0
      %v1394 = vadd.f32 %v393, %v1393
      %v1395 = vpop.f32.mrf.mxu0
      %v1396 = vadd.f32 %v393, %v1395
      %1397 = vmatmul.bf16.gmra.mxu0 %v1221
      %v1398 = vpop.f32.mrf.mxu0
      %v1399 = vadd.f32 %v393, %v1398
      %v1400 = vpop.f32.mrf.mxu0
      %v1401 = vadd.f32 %v393, %v1400
      %1402 = vmatmul.bf16.gmra.mxu0 %v1223
      %v1403 = vpop.f32.mrf.mxu0
      %v1404 = vadd.f32 %v393, %v1403
      %v1405 = vpop.f32.mrf.mxu0
      %v1406 = vadd.f32 %v393, %v1405
      %1407 = vmatmul.bf16.gmra.mxu0 %v1225
      %v1408 = vpop.f32.mrf.mxu0
      %v1409 = vadd.f32 %v393, %v1408
      %v1410 = vpop.f32.mrf.mxu0
      %v1411 = vadd.f32 %v393, %v1410
      %1412 = vmatmul.bf16.gmra.mxu0 %v1227
      %v1413 = vpop.f32.mrf.mxu0
      %v1414 = vadd.f32 %v393, %v1413
      %v1415 = vpop.f32.mrf.mxu0
      %v1416 = vadd.f32 %v393, %v1415
      %1417 = vdwg.mxu0
      %1418 = vmatpush.bf16.msra.mxu0 0
      %1419 = vmatpush.bf16.msra.mxu0 0
      %1420 = vmatpush.bf16.msra.mxu0 0
      %1421 = vmatpush.bf16.msra.mxu0 0
      %1422 = vmatpush.bf16.msra.mxu0 0
      %1423 = vmatpush.bf16.msra.mxu0 0
      %1424 = vmatpush.bf16.msra.mxu0 0
      %1425 = vmatpush.bf16.msra.mxu0 %v618
      %1426 = vmatmul.bf16.gmra.mxu0 %v1250
      %v1427 = vpop.f32.mrf.mxu0
      %v1428 = vadd.f32 %v1319, %v1427
      %v1429 = vpop.f32.mrf.mxu0
      %v1430 = vadd.f32 %v1321, %v1429
      %1431 = vmatmul.bf16.gmra.mxu0 %v1253
      %v1432 = vpop.f32.mrf.mxu0
      %v1433 = vadd.f32 %v1324, %v1432
      %v1434 = vpop.f32.mrf.mxu0
      %v1435 = vadd.f32 %v1326, %v1434
      %1436 = vmatmul.bf16.gmra.mxu0 %v1256
      %v1437 = vpop.f32.mrf.mxu0
      %v1438 = vadd.f32 %v1329, %v1437
      %v1439 = vpop.f32.mrf.mxu0
      %v1440 = vadd.f32 %v1331, %v1439
      %1441 = vmatmul.bf16.gmra.mxu0 %v1259
      %v1442 = vpop.f32.mrf.mxu0
      %v1443 = vadd.f32 %v1334, %v1442
      %v1444 = vpop.f32.mrf.mxu0
      %v1445 = vadd.f32 %v1336, %v1444
      %1446 = vmatmul.bf16.gmra.mxu0 %v1262
      %v1447 = vpop.f32.mrf.mxu0
      %v1448 = vadd.f32 %v1339, %v1447
      %v1449 = vpop.f32.mrf.mxu0
      %v1450 = vadd.f32 %v1341, %v1449
      %1451 = vmatmul.bf16.gmra.mxu0 %v1265
      %v1452 = vpop.f32.mrf.mxu0
      %v1453 = vadd.f32 %v1344, %v1452
      %v1454 = vpop.f32.mrf.mxu0
      %v1455 = vadd.f32 %v1346, %v1454
      %1456 = vmatmul.bf16.gmra.mxu0 %v1268
      %v1457 = vpop.f32.mrf.mxu0
      %v1458 = vadd.f32 %v1349, %v1457
      %v1459 = vpop.f32.mrf.mxu0
      %v1460 = vadd.f32 %v1351, %v1459
      %1461 = vmatmul.bf16.gmra.mxu0 %v1271
      %v1462 = vpop.f32.mrf.mxu0
      %v1463 = vadd.f32 %v1354, %v1462
      %v1464 = vpop.f32.mrf.mxu0
      %v1465 = vadd.f32 %v1356, %v1464
      %1466 = vmatmul.bf16.gmra.mxu0 %v1274
      %v1467 = vpop.f32.mrf.mxu0
      %v1468 = vadd.f32 %v1359, %v1467
      %v1469 = vpop.f32.mrf.mxu0
      %v1470 = vadd.f32 %v1361, %v1469
      %1471 = vmatmul.bf16.gmra.mxu0 %v1277
      %v1472 = vpop.f32.mrf.mxu0
      %v1473 = vadd.f32 %v1364, %v1472
      %v1474 = vpop.f32.mrf.mxu0
      %v1475 = vadd.f32 %v1366, %v1474
      %1476 = vmatmul.bf16.gmra.mxu0 %v1280
      %v1477 = vpop.f32.mrf.mxu0
      %v1478 = vadd.f32 %v1369, %v1477
      %v1479 = vpop.f32.mrf.mxu0
      %v1480 = vadd.f32 %v1371, %v1479
      %1481 = vmatmul.bf16.gmra.mxu0 %v1283
      %v1482 = vpop.f32.mrf.mxu0
      %v1483 = vadd.f32 %v1374, %v1482
      %v1484 = vpop.f32.mrf.mxu0
      %v1485 = vadd.f32 %v1376, %v1484
      %1486 = vmatmul.bf16.gmra.mxu0 %v1286
      %v1487 = vpop.f32.mrf.mxu0
      %v1488 = vadd.f32 %v1379, %v1487
      %v1489 = vpop.f32.mrf.mxu0
      %v1490 = vadd.f32 %v1381, %v1489
      %1491 = vmatmul.bf16.gmra.mxu0 %v1289
      %v1492 = vpop.f32.mrf.mxu0
      %v1493 = vadd.f32 %v1384, %v1492
      %v1494 = vpop.f32.mrf.mxu0
      %v1495 = vadd.f32 %v1386, %v1494
      %1496 = vmatmul.bf16.gmra.mxu0 %v1292
      %v1497 = vpop.f32.mrf.mxu0
      %v1498 = vadd.f32 %v1389, %v1497
      %v1499 = vpop.f32.mrf.mxu0
      %v1500 = vadd.f32 %v1391, %v1499
      %1501 = vmatmul.bf16.gmra.mxu0 %v1295
      %v1502 = vpop.f32.mrf.mxu0
      %v1503 = vadd.f32 %v1394, %v1502
      %v1504 = vpop.f32.mrf.mxu0
      %v1505 = vadd.f32 %v1396, %v1504
      %1506 = vmatmul.bf16.gmra.mxu0 %v1298
      %v1507 = vpop.f32.mrf.mxu0
      %v1508 = vadd.f32 %v1399, %v1507
      %v1509 = vpop.f32.mrf.mxu0
      %v1510 = vadd.f32 %v1401, %v1509
      %1511 = vmatmul.bf16.gmra.mxu0 %v1301
      %v1512 = vpop.f32.mrf.mxu0
      %v1513 = vadd.f32 %v1404, %v1512
      %v1514 = vpop.f32.mrf.mxu0
      %v1515 = vadd.f32 %v1406, %v1514
      %1516 = vmatmul.bf16.gmra.mxu0 %v1304
      %v1517 = vpop.f32.mrf.mxu0
      %v1518 = vadd.f32 %v1409, %v1517
      %v1519 = vpop.f32.mrf.mxu0
      %v1520 = vadd.f32 %v1411, %v1519
      %1521 = vmatmul.bf16.gmra.mxu0 %v1307
      %v1522 = vpop.f32.mrf.mxu0
      %v1523 = vadd.f32 %v1414, %v1522
      %v1524 = vpop.f32.mrf.mxu0
      %v1525 = vadd.f32 %v1416, %v1524
      %1526 = vdwg.mxu0
      %v1527 = vmax.f32 %v1428, 0.0
      %v1528 = vmax.f32 %v1430, 0.0
      %v1529 = vmax.f32 %v1433, 0.0
      %v1530 = vmax.f32 %v1435, 0.0
      %v1531 = vmax.f32 %v1438, 0.0
      %v1532 = vmax.f32 %v1440, 0.0
      %v1533 = vmax.f32 %v1443, 0.0
      %v1534 = vmax.f32 %v1445, 0.0
      %v1535 = vmax.f32 %v1448, 0.0
      %v1536 = vmax.f32 %v1450, 0.0
      %v1537 = vmax.f32 %v1453, 0.0
      %v1538 = vmax.f32 %v1455, 0.0
      %v1539 = vmax.f32 %v1458, 0.0
      %v1540 = vmax.f32 %v1460, 0.0
      %v1541 = vmax.f32 %v1463, 0.0
      %v1542 = vmax.f32 %v1465, 0.0
      %v1543 = vmax.f32 %v1468, 0.0
      %v1544 = vmax.f32 %v1470, 0.0
      %v1545 = vmax.f32 %v1473, 0.0
      %v1546 = vmax.f32 %v1475, 0.0
      %v1547 = vmax.f32 %v1478, 0.0
      %v1548 = vmax.f32 %v1480, 0.0
      %v1549 = vmax.f32 %v1483, 0.0
      %v1550 = vmax.f32 %v1485, 0.0
      %v1551 = vmax.f32 %v1488, 0.0
      %v1552 = vmax.f32 %v1490, 0.0
      %v1553 = vmax.f32 %v1493, 0.0
      %v1554 = vmax.f32 %v1495, 0.0
      %v1555 = vmax.f32 %v1498, 0.0
      %v1556 = vmax.f32 %v1500, 0.0
      %v1557 = vmax.f32 %v1503, 0.0
      %v1558 = vmax.f32 %v1505, 0.0
      %v1559 = vmax.f32 %v1508, 0.0
      %v1560 = vmax.f32 %v1510, 0.0
      %v1561 = vmax.f32 %v1513, 0.0
      %v1562 = vmax.f32 %v1515, 0.0
      %v1563 = vmax.f32 %v1518, 0.0
      %v1564 = vmax.f32 %v1520, 0.0
      %v1565 = vmax.f32 %v1523, 0.0
      %v1566 = vmax.f32 %v1525, 0.0
      %v1567 = vmul.f32 %v1527, %v947
      %v1568 = vmul.f32 %v1528, %v947
      %v1569 = vmul.f32 %v1529, %v947
      %v1570 = vmul.f32 %v1530, %v947
      %v1571 = vmul.f32 %v1531, %v947
      %v1572 = vmul.f32 %v1532, %v947
      %v1573 = vmul.f32 %v1533, %v947
      %v1574 = vmul.f32 %v1534, %v947
      %v1575 = vmul.f32 %v1535, %v947
      %v1576 = vmul.f32 %v1536, %v947
      %v1577 = vmul.f32 %v1537, %v947
      %v1578 = vmul.f32 %v1538, %v947
      %v1579 = vmul.f32 %v1539, %v947
      %v1580 = vmul.f32 %v1540, %v947
      %v1581 = vmul.f32 %v1541, %v947
      %v1582 = vmul.f32 %v1542, %v947
      %v1583 = vmul.f32 %v1543, %v947
      %v1584 = vmul.f32 %v1544, %v947
      %v1585 = vmul.f32 %v1545, %v947
      %v1586 = vmul.f32 %v1546, %v947
      %v1587 = vmul.f32 %v1547, %v947
      %v1588 = vmul.f32 %v1548, %v947
      %v1589 = vmul.f32 %v1549, %v947
      %v1590 = vmul.f32 %v1550, %v947
      %v1591 = vmul.f32 %v1551, %v947
      %v1592 = vmul.f32 %v1552, %v947
      %v1593 = vmul.f32 %v1553, %v947
      %v1594 = vmul.f32 %v1554, %v947
      %v1595 = vmul.f32 %v1555, %v947
      %v1596 = vmul.f32 %v1556, %v947
      %v1597 = vmul.f32 %v1557, %v947
      %v1598 = vmul.f32 %v1558, %v947
      %v1599 = vmul.f32 %v1559, %v947
      %v1600 = vmul.f32 %v1560, %v947
      %v1601 = vmul.f32 %v1561, %v947
      %v1602 = vmul.f32 %v1562, %v947
      %v1603 = vmul.f32 %v1563, %v947
      %v1604 = vmul.f32 %v1564, %v947
      %v1605 = vmul.f32 %v1565, %v947
      %v1606 = vmul.f32 %v1566, %v947
      %v1607 = vadd.f32 %v1567, %v988
      %v1608 = vadd.f32 %v1568, %v988
      %v1609 = vadd.f32 %v1569, %v988
      %v1610 = vadd.f32 %v1570, %v988
      %v1611 = vadd.f32 %v1571, %v988
      %v1612 = vadd.f32 %v1572, %v988
      %v1613 = vadd.f32 %v1573, %v988
      %v1614 = vadd.f32 %v1574, %v988
      %v1615 = vadd.f32 %v1575, %v988
      %v1616 = vadd.f32 %v1576, %v988
      %v1617 = vadd.f32 %v1577, %v988
      %v1618 = vadd.f32 %v1578, %v988
      %v1619 = vadd.f32 %v1579, %v988
      %v1620 = vadd.f32 %v1580, %v988
      %v1621 = vadd.f32 %v1581, %v988
      %v1622 = vadd.f32 %v1582, %v988
      %v1623 = vadd.f32 %v1583, %v988
      %v1624 = vadd.f32 %v1584, %v988
      %v1625 = vadd.f32 %v1585, %v988
      %v1626 = vadd.f32 %v1586, %v988
      %v1627 = vadd.f32 %v1587, %v988
      %v1628 = vadd.f32 %v1588, %v988
      %v1629 = vadd.f32 %v1589, %v988
      %v1630 = vadd.f32 %v1590, %v988
      %v1631 = vadd.f32 %v1591, %v988
      %v1632 = vadd.f32 %v1592, %v988
      %v1633 = vadd.f32 %v1593, %v988
      %v1634 = vadd.f32 %v1594, %v988
      %v1635 = vadd.f32 %v1595, %v988
      %v1636 = vadd.f32 %v1596, %v988
      %v1637 = vadd.f32 %v1597, %v988
      %v1638 = vadd.f32 %v1598, %v988
      %v1639 = vadd.f32 %v1599, %v988
      %v1640 = vadd.f32 %v1600, %v988
      %v1641 = vadd.f32 %v1601, %v988
      %v1642 = vadd.f32 %v1602, %v988
      %v1643 = vadd.f32 %v1603, %v988
      %v1644 = vadd.f32 %v1604, %v988
      %v1645 = vadd.f32 %v1605, %v988
      %v1646 = vadd.f32 %v1606, %v988
      %v1647 = vadd.f32 %v989, %v1607
      %v1648 = vadd.f32 %v990, %v1608
      %v1649 = vadd.f32 %v991, %v1609
      %v1650 = vadd.f32 %v992, %v1610
      %v1651 = vadd.f32 %v993, %v1611
      %v1652 = vadd.f32 %v994, %v1612
      %v1653 = vadd.f32 %v995, %v1613
      %v1654 = vadd.f32 %v996, %v1614
      %v1655 = vadd.f32 %v997, %v1615
      %v1656 = vadd.f32 %v998, %v1616
      %v1657 = vadd.f32 %v999, %v1617
      %v1658 = vadd.f32 %v1000, %v1618
      %v1659 = vadd.f32 %v1001, %v1619
      %v1660 = vadd.f32 %v1002, %v1620
      %v1661 = vadd.f32 %v1003, %v1621
      %v1662 = vadd.f32 %v1004, %v1622
      %v1663 = vadd.f32 %v1005, %v1623
      %v1664 = vadd.f32 %v1006, %v1624
      %v1665 = vadd.f32 %v1007, %v1625
      %v1666 = vadd.f32 %v1008, %v1626
      %v1667 = vadd.f32 %v1009, %v1627
      %v1668 = vadd.f32 %v1010, %v1628
      %v1669 = vadd.f32 %v1011, %v1629
      %v1670 = vadd.f32 %v1012, %v1630
      %v1671 = vadd.f32 %v1013, %v1631
      %v1672 = vadd.f32 %v1014, %v1632
      %v1673 = vadd.f32 %v1015, %v1633
      %v1674 = vadd.f32 %v1016, %v1634
      %v1675 = vadd.f32 %v1017, %v1635
      %v1676 = vadd.f32 %v1018, %v1636
      %v1677 = vadd.f32 %v1019, %v1637
      %v1678 = vadd.f32 %v1020, %v1638
      %v1679 = vadd.f32 %v1021, %v1639
      %v1680 = vadd.f32 %v1022, %v1640
      %v1681 = vadd.f32 %v1023, %v1641
      %v1682 = vadd.f32 %v1024, %v1642
      %v1683 = vadd.f32 %v1025, %v1643
      %v1684 = vadd.f32 %v1026, %v1644
      %v1685 = vadd.f32 %v1027, %v1645
      %v1686 = vadd.f32 %v1028, %v1646
      %v1687 = vld [vmem:[%s318] sm:$0xff]
      %v1688 = vld [vmem:[%s318 + $0x8] sm:$0xff]
      %v1689 = vld [vmem:[%s318 + $0x10] sm:$0xff]
      %v1690 = vld [vmem:[%s318 + $0x18] sm:$0xff]
      %v1691 = vld [vmem:[%s318 + $0x20] sm:$0xff]
      %v1692 = vld [vmem:[%s318 + $0x28] sm:$0xff]
      %v1693 = vld [vmem:[%s318 + $0x30] sm:$0xff]
      %v1694 = vld [vmem:[%s318 + $0x38] sm:$0xff]
      %v1695 = vld [vmem:[%s318 + $0x40] sm:$0xff]
      %v1696 = vld [vmem:[%s318 + $0x48] sm:$0xff]
      %v1697 = vld [vmem:[%s318 + $0x50] sm:$0xff]
      %v1698 = vld [vmem:[%s318 + $0x58] sm:$0xff]
      %v1699 = vld [vmem:[%s318 + $0x60] sm:$0xff]
      %v1700 = vld [vmem:[%s318 + $0x68] sm:$0xff]
      %v1701 = vld [vmem:[%s318 + $0x70] sm:$0xff]
      %v1702 = vld [vmem:[%s318 + $0x78] sm:$0xff]
      %v1703 = vld [vmem:[%s318 + $0x80] sm:$0xff]
      %v1704 = vld [vmem:[%s318 + $0x88] sm:$0xff]
      %v1705 = vld [vmem:[%s318 + $0x90] sm:$0xff]
      %v1706 = vld [vmem:[%s318 + $0x98] sm:$0xff]
      %v1707 = vld [vmem:[%s318 + $0xa0] sm:$0xff]
      %v1708 = vld [vmem:[%s318 + $0xa8] sm:$0xff]
      %v1709 = vld [vmem:[%s318 + $0xb0] sm:$0xff]
      %v1710 = vld [vmem:[%s318 + $0xb8] sm:$0xff]
      %v1711 = vld [vmem:[%s318 + $0xc0] sm:$0xff]
      %v1712 = vld [vmem:[%s318 + $0xc8] sm:$0xff]
      %v1713 = vld [vmem:[%s318 + $0xd0] sm:$0xff]
      %v1714 = vld [vmem:[%s318 + $0xd8] sm:$0xff]
      %v1715 = vld [vmem:[%s318 + $0xe0] sm:$0xff]
      %v1716 = vld [vmem:[%s318 + $0xe8] sm:$0xff]
      %v1717 = vld [vmem:[%s318 + $0xf0] sm:$0xff]
      %v1718 = vld [vmem:[%s318 + $0xf8] sm:$0xff]
      %v1719 = vld [vmem:[%s318 + $0x100] sm:$0xff]
      %v1720 = vld [vmem:[%s318 + $0x108] sm:$0xff]
      %v1721 = vld [vmem:[%s318 + $0x110] sm:$0xff]
      %v1722 = vld [vmem:[%s318 + $0x118] sm:$0xff]
      %v1723 = vld [vmem:[%s318 + $0x120] sm:$0xff]
      %v1724 = vld [vmem:[%s318 + $0x128] sm:$0xff]
      %v1725 = vld [vmem:[%s318 + $0x130] sm:$0xff]
      %v1726 = vld [vmem:[%s318 + $0x138] sm:$0xff]
      %v1767 = vunpack.c.l.b16 %v1687
      %v1768 = vunpack.c.h.b16 %v1687
      %v1769 = vunpack.c.l.b16 %v1688
      %v1770 = vunpack.c.h.b16 %v1688
      %v1771 = vunpack.c.l.b16 %v1689
      %v1772 = vunpack.c.h.b16 %v1689
      %v1773 = vunpack.c.l.b16 %v1690
      %v1774 = vunpack.c.h.b16 %v1690
      %v1775 = vunpack.c.l.b16 %v1691
      %v1776 = vunpack.c.h.b16 %v1691
      %v1777 = vunpack.c.l.b16 %v1692
      %v1778 = vunpack.c.h.b16 %v1692
      %v1779 = vunpack.c.l.b16 %v1693
      %v1780 = vunpack.c.h.b16 %v1693
      %v1781 = vunpack.c.l.b16 %v1694
      %v1782 = vunpack.c.h.b16 %v1694
      %v1783 = vunpack.c.l.b16 %v1695
      %v1784 = vunpack.c.h.b16 %v1695
      %v1785 = vunpack.c.l.b16 %v1696
      %v1786 = vunpack.c.h.b16 %v1696
      %v1787 = vunpack.c.l.b16 %v1697
      %v1788 = vunpack.c.h.b16 %v1697
      %v1789 = vunpack.c.l.b16 %v1698
      %v1790 = vunpack.c.h.b16 %v1698
      %v1791 = vunpack.c.l.b16 %v1699
      %v1792 = vunpack.c.h.b16 %v1699
      %v1793 = vunpack.c.l.b16 %v1700
      %v1794 = vunpack.c.h.b16 %v1700
      %v1795 = vunpack.c.l.b16 %v1701
      %v1796 = vunpack.c.h.b16 %v1701
      %v1797 = vunpack.c.l.b16 %v1702
      %v1798 = vunpack.c.h.b16 %v1702
      %v1799 = vunpack.c.l.b16 %v1703
      %v1800 = vunpack.c.h.b16 %v1703
      %v1801 = vunpack.c.l.b16 %v1704
      %v1802 = vunpack.c.h.b16 %v1704
      %v1803 = vunpack.c.l.b16 %v1705
      %v1804 = vunpack.c.h.b16 %v1705
      %v1805 = vunpack.c.l.b16 %v1706
      %v1806 = vunpack.c.h.b16 %v1706
      %v1807 = vunpack.c.l.b16 %v1707
      %v1808 = vunpack.c.h.b16 %v1707
      %v1809 = vunpack.c.l.b16 %v1708
      %v1810 = vunpack.c.h.b16 %v1708
      %v1811 = vunpack.c.l.b16 %v1709
      %v1812 = vunpack.c.h.b16 %v1709
      %v1813 = vunpack.c.l.b16 %v1710
      %v1814 = vunpack.c.h.b16 %v1710
      %v1815 = vunpack.c.l.b16 %v1711
      %v1816 = vunpack.c.h.b16 %v1711
      %v1817 = vunpack.c.l.b16 %v1712
      %v1818 = vunpack.c.h.b16 %v1712
      %v1819 = vunpack.c.l.b16 %v1713
      %v1820 = vunpack.c.h.b16 %v1713
      %v1821 = vunpack.c.l.b16 %v1714
      %v1822 = vunpack.c.h.b16 %v1714
      %v1823 = vunpack.c.l.b16 %v1715
      %v1824 = vunpack.c.h.b16 %v1715
      %v1825 = vunpack.c.l.b16 %v1716
      %v1826 = vunpack.c.h.b16 %v1716
      %v1827 = vunpack.c.l.b16 %v1717
      %v1828 = vunpack.c.h.b16 %v1717
      %v1829 = vunpack.c.l.b16 %v1718
      %v1830 = vunpack.c.h.b16 %v1718
      %v1831 = vunpack.c.l.b16 %v1719
      %v1832 = vunpack.c.h.b16 %v1719
      %v1833 = vunpack.c.l.b16 %v1720
      %v1834 = vunpack.c.h.b16 %v1720
      %v1835 = vunpack.c.l.b16 %v1721
      %v1836 = vunpack.c.h.b16 %v1721
      %v1837 = vunpack.c.l.b16 %v1722
      %v1838 = vunpack.c.h.b16 %v1722
      %v1839 = vunpack.c.l.b16 %v1723
      %v1840 = vunpack.c.h.b16 %v1723
      %v1841 = vunpack.c.l.b16 %v1724
      %v1842 = vunpack.c.h.b16 %v1724
      %v1843 = vunpack.c.l.b16 %v1725
      %v1844 = vunpack.c.h.b16 %v1725
      %v1845 = vunpack.c.l.b16 %v1726
      %v1846 = vunpack.c.h.b16 %v1726
      %v1847 = vpack.c.b16 %v1769, %v1767
      %v1848 = vpack.c.b16 %v1770, %v1768
      %v1849 = vpack.c.b16 %v1773, %v1771
      %v1850 = vpack.c.b16 %v1774, %v1772
      %v1851 = vpack.c.b16 %v1777, %v1775
      %v1852 = vpack.c.b16 %v1778, %v1776
      %v1853 = vpack.c.b16 %v1781, %v1779
      %v1854 = vpack.c.b16 %v1782, %v1780
      %v1855 = vpack.c.b16 %v1785, %v1783
      %v1856 = vpack.c.b16 %v1786, %v1784
      %v1857 = vpack.c.b16 %v1789, %v1787
      %v1858 = vpack.c.b16 %v1790, %v1788
      %v1859 = vpack.c.b16 %v1793, %v1791
      %v1860 = vpack.c.b16 %v1794, %v1792
      %v1861 = vpack.c.b16 %v1797, %v1795
      %v1862 = vpack.c.b16 %v1798, %v1796
      %v1863 = vpack.c.b16 %v1801, %v1799
      %v1864 = vpack.c.b16 %v1802, %v1800
      %v1865 = vpack.c.b16 %v1805, %v1803
      %v1866 = vpack.c.b16 %v1806, %v1804
      %v1867 = vpack.c.b16 %v1809, %v1807
      %v1868 = vpack.c.b16 %v1810, %v1808
      %v1869 = vpack.c.b16 %v1813, %v1811
      %v1870 = vpack.c.b16 %v1814, %v1812
      %v1871 = vpack.c.b16 %v1817, %v1815
      %v1872 = vpack.c.b16 %v1818, %v1816
      %v1873 = vpack.c.b16 %v1821, %v1819
      %v1874 = vpack.c.b16 %v1822, %v1820
      %v1875 = vpack.c.b16 %v1825, %v1823
      %v1876 = vpack.c.b16 %v1826, %v1824
      %v1877 = vpack.c.b16 %v1829, %v1827
      %v1878 = vpack.c.b16 %v1830, %v1828
      %v1879 = vpack.c.b16 %v1833, %v1831
      %v1880 = vpack.c.b16 %v1834, %v1832
      %v1881 = vpack.c.b16 %v1837, %v1835
      %v1882 = vpack.c.b16 %v1838, %v1836
      %v1883 = vpack.c.b16 %v1841, %v1839
      %v1884 = vpack.c.b16 %v1842, %v1840
      %v1885 = vpack.c.b16 %v1845, %v1843
      %v1886 = vpack.c.b16 %v1846, %v1844
      %v1908 = vsel %vm628, %v1848, 0
      %v1911 = vsel %vm628, %v1850, 0
      %v1914 = vsel %vm628, %v1852, 0
      %v1917 = vsel %vm628, %v1854, 0
      %v1920 = vsel %vm628, %v1856, 0
      %v1923 = vsel %vm628, %v1858, 0
      %v1926 = vsel %vm628, %v1860, 0
      %v1929 = vsel %vm628, %v1862, 0
      %v1932 = vsel %vm628, %v1864, 0
      %v1935 = vsel %vm628, %v1866, 0
      %v1938 = vsel %vm628, %v1868, 0
      %v1941 = vsel %vm628, %v1870, 0
      %v1944 = vsel %vm628, %v1872, 0
      %v1947 = vsel %vm628, %v1874, 0
      %v1950 = vsel %vm628, %v1876, 0
      %v1953 = vsel %vm628, %v1878, 0
      %v1956 = vsel %vm628, %v1880, 0
      %v1959 = vsel %vm628, %v1882, 0
      %v1962 = vsel %vm628, %v1884, 0
      %v1965 = vsel %vm628, %v1886, 0
      %1967 = vmatpush.bf16.msra.mxu0 %v617
      %1968 = vmatpush.bf16.msra.mxu0 %v616
      %1969 = vmatpush.bf16.msra.mxu0 %v615
      %1970 = vmatpush.bf16.msra.mxu0 %v614
      %1971 = vmatpush.bf16.msra.mxu0 %v613
      %1972 = vmatpush.bf16.msra.mxu0 %v612
      %1973 = vmatpush.bf16.msra.mxu0 %v611
      %1974 = vmatpush.bf16.msra.mxu0 %v610
      %1975 = vmatmul.bf16.gmra.mxu0 %v1847
      %v1976 = vpop.f32.mrf.mxu0
      %v1977 = vadd.f32 %v393, %v1976
      %v1978 = vpop.f32.mrf.mxu0
      %v1979 = vadd.f32 %v393, %v1978
      %1980 = vmatmul.bf16.gmra.mxu0 %v1849
      %v1981 = vpop.f32.mrf.mxu0
      %v1982 = vadd.f32 %v393, %v1981
      %v1983 = vpop.f32.mrf.mxu0
      %v1984 = vadd.f32 %v393, %v1983
      %1985 = vmatmul.bf16.gmra.mxu0 %v1851
      %v1986 = vpop.f32.mrf.mxu0
      %v1987 = vadd.f32 %v393, %v1986
      %v1988 = vpop.f32.mrf.mxu0
      %v1989 = vadd.f32 %v393, %v1988
      %1990 = vmatmul.bf16.gmra.mxu0 %v1853
      %v1991 = vpop.f32.mrf.mxu0
      %v1992 = vadd.f32 %v393, %v1991
      %v1993 = vpop.f32.mrf.mxu0
      %v1994 = vadd.f32 %v393, %v1993
      %1995 = vmatmul.bf16.gmra.mxu0 %v1855
      %v1996 = vpop.f32.mrf.mxu0
      %v1997 = vadd.f32 %v393, %v1996
      %v1998 = vpop.f32.mrf.mxu0
      %v1999 = vadd.f32 %v393, %v1998
      %2000 = vmatmul.bf16.gmra.mxu0 %v1857
      %v2001 = vpop.f32.mrf.mxu0
      %v2002 = vadd.f32 %v393, %v2001
      %v2003 = vpop.f32.mrf.mxu0
      %v2004 = vadd.f32 %v393, %v2003
      %2005 = vmatmul.bf16.gmra.mxu0 %v1859
      %v2006 = vpop.f32.mrf.mxu0
      %v2007 = vadd.f32 %v393, %v2006
      %v2008 = vpop.f32.mrf.mxu0
      %v2009 = vadd.f32 %v393, %v2008
      %2010 = vmatmul.bf16.gmra.mxu0 %v1861
      %v2011 = vpop.f32.mrf.mxu0
      %v2012 = vadd.f32 %v393, %v2011
      %v2013 = vpop.f32.mrf.mxu0
      %v2014 = vadd.f32 %v393, %v2013
      %2015 = vmatmul.bf16.gmra.mxu0 %v1863
      %v2016 = vpop.f32.mrf.mxu0
      %v2017 = vadd.f32 %v393, %v2016
      %v2018 = vpop.f32.mrf.mxu0
      %v2019 = vadd.f32 %v393, %v2018
      %2020 = vmatmul.bf16.gmra.mxu0 %v1865
      %v2021 = vpop.f32.mrf.mxu0
      %v2022 = vadd.f32 %v393, %v2021
      %v2023 = vpop.f32.mrf.mxu0
      %v2024 = vadd.f32 %v393, %v2023
      %2025 = vmatmul.bf16.gmra.mxu0 %v1867
      %v2026 = vpop.f32.mrf.mxu0
      %v2027 = vadd.f32 %v393, %v2026
      %v2028 = vpop.f32.mrf.mxu0
      %v2029 = vadd.f32 %v393, %v2028
      %2030 = vmatmul.bf16.gmra.mxu0 %v1869
      %v2031 = vpop.f32.mrf.mxu0
      %v2032 = vadd.f32 %v393, %v2031
      %v2033 = vpop.f32.mrf.mxu0
      %v2034 = vadd.f32 %v393, %v2033
      %2035 = vmatmul.bf16.gmra.mxu0 %v1871
      %v2036 = vpop.f32.mrf.mxu0
      %v2037 = vadd.f32 %v393, %v2036
      %v2038 = vpop.f32.mrf.mxu0
      %v2039 = vadd.f32 %v393, %v2038
      %2040 = vmatmul.bf16.gmra.mxu0 %v1873
      %v2041 = vpop.f32.mrf.mxu0
      %v2042 = vadd.f32 %v393, %v2041
      %v2043 = vpop.f32.mrf.mxu0
      %v2044 = vadd.f32 %v393, %v2043
      %2045 = vmatmul.bf16.gmra.mxu0 %v1875
      %v2046 = vpop.f32.mrf.mxu0
      %v2047 = vadd.f32 %v393, %v2046
      %v2048 = vpop.f32.mrf.mxu0
      %v2049 = vadd.f32 %v393, %v2048
      %2050 = vmatmul.bf16.gmra.mxu0 %v1877
      %v2051 = vpop.f32.mrf.mxu0
      %v2052 = vadd.f32 %v393, %v2051
      %v2053 = vpop.f32.mrf.mxu0
      %v2054 = vadd.f32 %v393, %v2053
      %2055 = vmatmul.bf16.gmra.mxu0 %v1879
      %v2056 = vpop.f32.mrf.mxu0
      %v2057 = vadd.f32 %v393, %v2056
      %v2058 = vpop.f32.mrf.mxu0
      %v2059 = vadd.f32 %v393, %v2058
      %2060 = vmatmul.bf16.gmra.mxu0 %v1881
      %v2061 = vpop.f32.mrf.mxu0
      %v2062 = vadd.f32 %v393, %v2061
      %v2063 = vpop.f32.mrf.mxu0
      %v2064 = vadd.f32 %v393, %v2063
      %2065 = vmatmul.bf16.gmra.mxu0 %v1883
      %v2066 = vpop.f32.mrf.mxu0
      %v2067 = vadd.f32 %v393, %v2066
      %v2068 = vpop.f32.mrf.mxu0
      %v2069 = vadd.f32 %v393, %v2068
      %2070 = vmatmul.bf16.gmra.mxu0 %v1885
      %v2071 = vpop.f32.mrf.mxu0
      %v2072 = vadd.f32 %v393, %v2071
      %v2073 = vpop.f32.mrf.mxu0
      %v2074 = vadd.f32 %v393, %v2073
      %2075 = vdwg.mxu0
      %2076 = vmatpush.bf16.msra.mxu0 0
      %2077 = vmatpush.bf16.msra.mxu0 0
      %2078 = vmatpush.bf16.msra.mxu0 0
      %2079 = vmatpush.bf16.msra.mxu0 0
      %2080 = vmatpush.bf16.msra.mxu0 0
      %2081 = vmatpush.bf16.msra.mxu0 0
      %2082 = vmatpush.bf16.msra.mxu0 0
      %2083 = vmatpush.bf16.msra.mxu0 %v618
      %2084 = vmatmul.bf16.gmra.mxu0 %v1908
      %v2085 = vpop.f32.mrf.mxu0
      %v2086 = vadd.f32 %v1977, %v2085
      %v2087 = vpop.f32.mrf.mxu0
      %v2088 = vadd.f32 %v1979, %v2087
      %2089 = vmatmul.bf16.gmra.mxu0 %v1911
      %v2090 = vpop.f32.mrf.mxu0
      %v2091 = vadd.f32 %v1982, %v2090
      %v2092 = vpop.f32.mrf.mxu0
      %v2093 = vadd.f32 %v1984, %v2092
      %2094 = vmatmul.bf16.gmra.mxu0 %v1914
      %v2095 = vpop.f32.mrf.mxu0
      %v2096 = vadd.f32 %v1987, %v2095
      %v2097 = vpop.f32.mrf.mxu0
      %v2098 = vadd.f32 %v1989, %v2097
      %2099 = vmatmul.bf16.gmra.mxu0 %v1917
      %v2100 = vpop.f32.mrf.mxu0
      %v2101 = vadd.f32 %v1992, %v2100
      %v2102 = vpop.f32.mrf.mxu0
      %v2103 = vadd.f32 %v1994, %v2102
      %2104 = vmatmul.bf16.gmra.mxu0 %v1920
      %v2105 = vpop.f32.mrf.mxu0
      %v2106 = vadd.f32 %v1997, %v2105
      %v2107 = vpop.f32.mrf.mxu0
      %v2108 = vadd.f32 %v1999, %v2107
      %2109 = vmatmul.bf16.gmra.mxu0 %v1923
      %v2110 = vpop.f32.mrf.mxu0
      %v2111 = vadd.f32 %v2002, %v2110
      %v2112 = vpop.f32.mrf.mxu0
      %v2113 = vadd.f32 %v2004, %v2112
      %2114 = vmatmul.bf16.gmra.mxu0 %v1926
      %v2115 = vpop.f32.mrf.mxu0
      %v2116 = vadd.f32 %v2007, %v2115
      %v2117 = vpop.f32.mrf.mxu0
      %v2118 = vadd.f32 %v2009, %v2117
      %2119 = vmatmul.bf16.gmra.mxu0 %v1929
      %v2120 = vpop.f32.mrf.mxu0
      %v2121 = vadd.f32 %v2012, %v2120
      %v2122 = vpop.f32.mrf.mxu0
      %v2123 = vadd.f32 %v2014, %v2122
      %2124 = vmatmul.bf16.gmra.mxu0 %v1932
      %v2125 = vpop.f32.mrf.mxu0
      %v2126 = vadd.f32 %v2017, %v2125
      %v2127 = vpop.f32.mrf.mxu0
      %v2128 = vadd.f32 %v2019, %v2127
      %2129 = vmatmul.bf16.gmra.mxu0 %v1935
      %v2130 = vpop.f32.mrf.mxu0
      %v2131 = vadd.f32 %v2022, %v2130
      %v2132 = vpop.f32.mrf.mxu0
      %v2133 = vadd.f32 %v2024, %v2132
      %2134 = vmatmul.bf16.gmra.mxu0 %v1938
      %v2135 = vpop.f32.mrf.mxu0
      %v2136 = vadd.f32 %v2027, %v2135
      %v2137 = vpop.f32.mrf.mxu0
      %v2138 = vadd.f32 %v2029, %v2137
      %2139 = vmatmul.bf16.gmra.mxu0 %v1941
      %v2140 = vpop.f32.mrf.mxu0
      %v2141 = vadd.f32 %v2032, %v2140
      %v2142 = vpop.f32.mrf.mxu0
      %v2143 = vadd.f32 %v2034, %v2142
      %2144 = vmatmul.bf16.gmra.mxu0 %v1944
      %v2145 = vpop.f32.mrf.mxu0
      %v2146 = vadd.f32 %v2037, %v2145
      %v2147 = vpop.f32.mrf.mxu0
      %v2148 = vadd.f32 %v2039, %v2147
      %2149 = vmatmul.bf16.gmra.mxu0 %v1947
      %v2150 = vpop.f32.mrf.mxu0
      %v2151 = vadd.f32 %v2042, %v2150
      %v2152 = vpop.f32.mrf.mxu0
      %v2153 = vadd.f32 %v2044, %v2152
      %2154 = vmatmul.bf16.gmra.mxu0 %v1950
      %v2155 = vpop.f32.mrf.mxu0
      %v2156 = vadd.f32 %v2047, %v2155
      %v2157 = vpop.f32.mrf.mxu0
      %v2158 = vadd.f32 %v2049, %v2157
      %2159 = vmatmul.bf16.gmra.mxu0 %v1953
      %v2160 = vpop.f32.mrf.mxu0
      %v2161 = vadd.f32 %v2052, %v2160
      %v2162 = vpop.f32.mrf.mxu0
      %v2163 = vadd.f32 %v2054, %v2162
      %2164 = vmatmul.bf16.gmra.mxu0 %v1956
      %v2165 = vpop.f32.mrf.mxu0
      %v2166 = vadd.f32 %v2057, %v2165
      %v2167 = vpop.f32.mrf.mxu0
      %v2168 = vadd.f32 %v2059, %v2167
      %2169 = vmatmul.bf16.gmra.mxu0 %v1959
      %v2170 = vpop.f32.mrf.mxu0
      %v2171 = vadd.f32 %v2062, %v2170
      %v2172 = vpop.f32.mrf.mxu0
      %v2173 = vadd.f32 %v2064, %v2172
      %2174 = vmatmul.bf16.gmra.mxu0 %v1962
      %v2175 = vpop.f32.mrf.mxu0
      %v2176 = vadd.f32 %v2067, %v2175
      %v2177 = vpop.f32.mrf.mxu0
      %v2178 = vadd.f32 %v2069, %v2177
      %2179 = vmatmul.bf16.gmra.mxu0 %v1965
      %v2180 = vpop.f32.mrf.mxu0
      %v2181 = vadd.f32 %v2072, %v2180
      %v2182 = vpop.f32.mrf.mxu0
      %v2183 = vadd.f32 %v2074, %v2182
      %2184 = vdwg.mxu0
      %v2185 = vmax.f32 %v2086, 0.0
      %v2186 = vmax.f32 %v2088, 0.0
      %v2187 = vmax.f32 %v2091, 0.0
      %v2188 = vmax.f32 %v2093, 0.0
      %v2189 = vmax.f32 %v2096, 0.0
      %v2190 = vmax.f32 %v2098, 0.0
      %v2191 = vmax.f32 %v2101, 0.0
      %v2192 = vmax.f32 %v2103, 0.0
      %v2193 = vmax.f32 %v2106, 0.0
      %v2194 = vmax.f32 %v2108, 0.0
      %v2195 = vmax.f32 %v2111, 0.0
      %v2196 = vmax.f32 %v2113, 0.0
      %v2197 = vmax.f32 %v2116, 0.0
      %v2198 = vmax.f32 %v2118, 0.0
      %v2199 = vmax.f32 %v2121, 0.0
      %v2200 = vmax.f32 %v2123, 0.0
      %v2201 = vmax.f32 %v2126, 0.0
      %v2202 = vmax.f32 %v2128, 0.0
      %v2203 = vmax.f32 %v2131, 0.0
      %v2204 = vmax.f32 %v2133, 0.0
      %v2205 = vmax.f32 %v2136, 0.0
      %v2206 = vmax.f32 %v2138, 0.0
      %v2207 = vmax.f32 %v2141, 0.0
      %v2208 = vmax.f32 %v2143, 0.0
      %v2209 = vmax.f32 %v2146, 0.0
      %v2210 = vmax.f32 %v2148, 0.0
      %v2211 = vmax.f32 %v2151, 0.0
      %v2212 = vmax.f32 %v2153, 0.0
      %v2213 = vmax.f32 %v2156, 0.0
      %v2214 = vmax.f32 %v2158, 0.0
      %v2215 = vmax.f32 %v2161, 0.0
      %v2216 = vmax.f32 %v2163, 0.0
      %v2217 = vmax.f32 %v2166, 0.0
      %v2218 = vmax.f32 %v2168, 0.0
      %v2219 = vmax.f32 %v2171, 0.0
      %v2220 = vmax.f32 %v2173, 0.0
      %v2221 = vmax.f32 %v2176, 0.0
      %v2222 = vmax.f32 %v2178, 0.0
      %v2223 = vmax.f32 %v2181, 0.0
      %v2224 = vmax.f32 %v2183, 0.0
      %v2225 = vmul.f32 %v2185, %v947
      %v2226 = vmul.f32 %v2186, %v947
      %v2227 = vmul.f32 %v2187, %v947
      %v2228 = vmul.f32 %v2188, %v947
      %v2229 = vmul.f32 %v2189, %v947
      %v2230 = vmul.f32 %v2190, %v947
      %v2231 = vmul.f32 %v2191, %v947
      %v2232 = vmul.f32 %v2192, %v947
      %v2233 = vmul.f32 %v2193, %v947
      %v2234 = vmul.f32 %v2194, %v947
      %v2235 = vmul.f32 %v2195, %v947
      %v2236 = vmul.f32 %v2196, %v947
      %v2237 = vmul.f32 %v2197, %v947
      %v2238 = vmul.f32 %v2198, %v947
      %v2239 = vmul.f32 %v2199, %v947
      %v2240 = vmul.f32 %v2200, %v947
      %v2241 = vmul.f32 %v2201, %v947
      %v2242 = vmul.f32 %v2202, %v947
      %v2243 = vmul.f32 %v2203, %v947
      %v2244 = vmul.f32 %v2204, %v947
      %v2245 = vmul.f32 %v2205, %v947
      %v2246 = vmul.f32 %v2206, %v947
      %v2247 = vmul.f32 %v2207, %v947
      %v2248 = vmul.f32 %v2208, %v947
      %v2249 = vmul.f32 %v2209, %v947
      %v2250 = vmul.f32 %v2210, %v947
      %v2251 = vmul.f32 %v2211, %v947
      %v2252 = vmul.f32 %v2212, %v947
      %v2253 = vmul.f32 %v2213, %v947
      %v2254 = vmul.f32 %v2214, %v947
      %v2255 = vmul.f32 %v2215, %v947
      %v2256 = vmul.f32 %v2216, %v947
      %v2257 = vmul.f32 %v2217, %v947
      %v2258 = vmul.f32 %v2218, %v947
      %v2259 = vmul.f32 %v2219, %v947
      %v2260 = vmul.f32 %v2220, %v947
      %v2261 = vmul.f32 %v2221, %v947
      %v2262 = vmul.f32 %v2222, %v947
      %v2263 = vmul.f32 %v2223, %v947
      %v2264 = vmul.f32 %v2224, %v947
      %v2265 = vadd.f32 %v2225, %v988
      %v2266 = vadd.f32 %v2226, %v988
      %v2267 = vadd.f32 %v2227, %v988
      %v2268 = vadd.f32 %v2228, %v988
      %v2269 = vadd.f32 %v2229, %v988
      %v2270 = vadd.f32 %v2230, %v988
      %v2271 = vadd.f32 %v2231, %v988
      %v2272 = vadd.f32 %v2232, %v988
      %v2273 = vadd.f32 %v2233, %v988
      %v2274 = vadd.f32 %v2234, %v988
      %v2275 = vadd.f32 %v2235, %v988
      %v2276 = vadd.f32 %v2236, %v988
      %v2277 = vadd.f32 %v2237, %v988
      %v2278 = vadd.f32 %v2238, %v988
      %v2279 = vadd.f32 %v2239, %v988
      %v2280 = vadd.f32 %v2240, %v988
      %v2281 = vadd.f32 %v2241, %v988
      %v2282 = vadd.f32 %v2242, %v988
      %v2283 = vadd.f32 %v2243, %v988
      %v2284 = vadd.f32 %v2244, %v988
      %v2285 = vadd.f32 %v2245, %v988
      %v2286 = vadd.f32 %v2246, %v988
      %v2287 = vadd.f32 %v2247, %v988
      %v2288 = vadd.f32 %v2248, %v988
      %v2289 = vadd.f32 %v2249, %v988
      %v2290 = vadd.f32 %v2250, %v988
      %v2291 = vadd.f32 %v2251, %v988
      %v2292 = vadd.f32 %v2252, %v988
      %v2293 = vadd.f32 %v2253, %v988
      %v2294 = vadd.f32 %v2254, %v988
      %v2295 = vadd.f32 %v2255, %v988
      %v2296 = vadd.f32 %v2256, %v988
      %v2297 = vadd.f32 %v2257, %v988
      %v2298 = vadd.f32 %v2258, %v988
      %v2299 = vadd.f32 %v2259, %v988
      %v2300 = vadd.f32 %v2260, %v988
      %v2301 = vadd.f32 %v2261, %v988
      %v2302 = vadd.f32 %v2262, %v988
      %v2303 = vadd.f32 %v2263, %v988
      %v2304 = vadd.f32 %v2264, %v988
      %v2305 = vadd.f32 %v1647, %v2265
      %v2306 = vadd.f32 %v1648, %v2266
      %v2307 = vadd.f32 %v1649, %v2267
      %v2308 = vadd.f32 %v1650, %v2268
      %v2309 = vadd.f32 %v1651, %v2269
      %v2310 = vadd.f32 %v1652, %v2270
      %v2311 = vadd.f32 %v1653, %v2271
      %v2312 = vadd.f32 %v1654, %v2272
      %v2313 = vadd.f32 %v1655, %v2273
      %v2314 = vadd.f32 %v1656, %v2274
      %v2315 = vadd.f32 %v1657, %v2275
      %v2316 = vadd.f32 %v1658, %v2276
      %v2317 = vadd.f32 %v1659, %v2277
      %v2318 = vadd.f32 %v1660, %v2278
      %v2319 = vadd.f32 %v1661, %v2279
      %v2320 = vadd.f32 %v1662, %v2280
      %v2321 = vadd.f32 %v1663, %v2281
      %v2322 = vadd.f32 %v1664, %v2282
      %v2323 = vadd.f32 %v1665, %v2283
      %v2324 = vadd.f32 %v1666, %v2284
      %v2325 = vadd.f32 %v1667, %v2285
      %v2326 = vadd.f32 %v1668, %v2286
      %v2327 = vadd.f32 %v1669, %v2287
      %v2328 = vadd.f32 %v1670, %v2288
      %v2329 = vadd.f32 %v1671, %v2289
      %v2330 = vadd.f32 %v1672, %v2290
      %v2331 = vadd.f32 %v1673, %v2291
      %v2332 = vadd.f32 %v1674, %v2292
      %v2333 = vadd.f32 %v1675, %v2293
      %v2334 = vadd.f32 %v1676, %v2294
      %v2335 = vadd.f32 %v1677, %v2295
      %v2336 = vadd.f32 %v1678, %v2296
      %v2337 = vadd.f32 %v1679, %v2297
      %v2338 = vadd.f32 %v1680, %v2298
      %v2339 = vadd.f32 %v1681, %v2299
      %v2340 = vadd.f32 %v1682, %v2300
      %v2341 = vadd.f32 %v1683, %v2301
      %v2342 = vadd.f32 %v1684, %v2302
      %v2343 = vadd.f32 %v1685, %v2303
      %v2344 = vadd.f32 %v1686, %v2304
      %v2345 = vld [vmem:[%s325] sm:$0xff]
      %v2346 = vld [vmem:[%s325 + $0x8] sm:$0xff]
      %v2347 = vld [vmem:[%s325 + $0x10] sm:$0xff]
      %v2348 = vld [vmem:[%s325 + $0x18] sm:$0xff]
      %v2349 = vld [vmem:[%s325 + $0x20] sm:$0xff]
      %v2350 = vld [vmem:[%s325 + $0x28] sm:$0xff]
      %v2351 = vld [vmem:[%s325 + $0x30] sm:$0xff]
      %v2352 = vld [vmem:[%s325 + $0x38] sm:$0xff]
      %v2353 = vld [vmem:[%s325 + $0x40] sm:$0xff]
      %v2354 = vld [vmem:[%s325 + $0x48] sm:$0xff]
      %v2355 = vld [vmem:[%s325 + $0x50] sm:$0xff]
      %v2356 = vld [vmem:[%s325 + $0x58] sm:$0xff]
      %v2357 = vld [vmem:[%s325 + $0x60] sm:$0xff]
      %v2358 = vld [vmem:[%s325 + $0x68] sm:$0xff]
      %v2359 = vld [vmem:[%s325 + $0x70] sm:$0xff]
      %v2360 = vld [vmem:[%s325 + $0x78] sm:$0xff]
      %v2361 = vld [vmem:[%s325 + $0x80] sm:$0xff]
      %v2362 = vld [vmem:[%s325 + $0x88] sm:$0xff]
      %v2363 = vld [vmem:[%s325 + $0x90] sm:$0xff]
      %v2364 = vld [vmem:[%s325 + $0x98] sm:$0xff]
      %v2365 = vld [vmem:[%s325 + $0xa0] sm:$0xff]
      %v2366 = vld [vmem:[%s325 + $0xa8] sm:$0xff]
      %v2367 = vld [vmem:[%s325 + $0xb0] sm:$0xff]
      %v2368 = vld [vmem:[%s325 + $0xb8] sm:$0xff]
      %v2369 = vld [vmem:[%s325 + $0xc0] sm:$0xff]
      %v2370 = vld [vmem:[%s325 + $0xc8] sm:$0xff]
      %v2371 = vld [vmem:[%s325 + $0xd0] sm:$0xff]
      %v2372 = vld [vmem:[%s325 + $0xd8] sm:$0xff]
      %v2373 = vld [vmem:[%s325 + $0xe0] sm:$0xff]
      %v2374 = vld [vmem:[%s325 + $0xe8] sm:$0xff]
      %v2375 = vld [vmem:[%s325 + $0xf0] sm:$0xff]
      %v2376 = vld [vmem:[%s325 + $0xf8] sm:$0xff]
      %v2377 = vld [vmem:[%s325 + $0x100] sm:$0xff]
      %v2378 = vld [vmem:[%s325 + $0x108] sm:$0xff]
      %v2379 = vld [vmem:[%s325 + $0x110] sm:$0xff]
      %v2380 = vld [vmem:[%s325 + $0x118] sm:$0xff]
      %v2381 = vld [vmem:[%s325 + $0x120] sm:$0xff]
      %v2382 = vld [vmem:[%s325 + $0x128] sm:$0xff]
      %v2383 = vld [vmem:[%s325 + $0x130] sm:$0xff]
      %v2384 = vld [vmem:[%s325 + $0x138] sm:$0xff]
      %v2425 = vunpack.c.l.b16 %v2345
      %v2426 = vunpack.c.h.b16 %v2345
      %v2427 = vunpack.c.l.b16 %v2346
      %v2428 = vunpack.c.h.b16 %v2346
      %v2429 = vunpack.c.l.b16 %v2347
      %v2430 = vunpack.c.h.b16 %v2347
      %v2431 = vunpack.c.l.b16 %v2348
      %v2432 = vunpack.c.h.b16 %v2348
      %v2433 = vunpack.c.l.b16 %v2349
      %v2434 = vunpack.c.h.b16 %v2349
      %v2435 = vunpack.c.l.b16 %v2350
      %v2436 = vunpack.c.h.b16 %v2350
      %v2437 = vunpack.c.l.b16 %v2351
      %v2438 = vunpack.c.h.b16 %v2351
      %v2439 = vunpack.c.l.b16 %v2352
      %v2440 = vunpack.c.h.b16 %v2352
      %v2441 = vunpack.c.l.b16 %v2353
      %v2442 = vunpack.c.h.b16 %v2353
      %v2443 = vunpack.c.l.b16 %v2354
      %v2444 = vunpack.c.h.b16 %v2354
      %v2445 = vunpack.c.l.b16 %v2355
      %v2446 = vunpack.c.h.b16 %v2355
      %v2447 = vunpack.c.l.b16 %v2356
      %v2448 = vunpack.c.h.b16 %v2356
      %v2449 = vunpack.c.l.b16 %v2357
      %v2450 = vunpack.c.h.b16 %v2357
      %v2451 = vunpack.c.l.b16 %v2358
      %v2452 = vunpack.c.h.b16 %v2358
      %v2453 = vunpack.c.l.b16 %v2359
      %v2454 = vunpack.c.h.b16 %v2359
      %v2455 = vunpack.c.l.b16 %v2360
      %v2456 = vunpack.c.h.b16 %v2360
      %v2457 = vunpack.c.l.b16 %v2361
      %v2458 = vunpack.c.h.b16 %v2361
      %v2459 = vunpack.c.l.b16 %v2362
      %v2460 = vunpack.c.h.b16 %v2362
      %v2461 = vunpack.c.l.b16 %v2363
      %v2462 = vunpack.c.h.b16 %v2363
      %v2463 = vunpack.c.l.b16 %v2364
      %v2464 = vunpack.c.h.b16 %v2364
      %v2465 = vunpack.c.l.b16 %v2365
      %v2466 = vunpack.c.h.b16 %v2365
      %v2467 = vunpack.c.l.b16 %v2366
      %v2468 = vunpack.c.h.b16 %v2366
      %v2469 = vunpack.c.l.b16 %v2367
      %v2470 = vunpack.c.h.b16 %v2367
      %v2471 = vunpack.c.l.b16 %v2368
      %v2472 = vunpack.c.h.b16 %v2368
      %v2473 = vunpack.c.l.b16 %v2369
      %v2474 = vunpack.c.h.b16 %v2369
      %v2475 = vunpack.c.l.b16 %v2370
      %v2476 = vunpack.c.h.b16 %v2370
      %v2477 = vunpack.c.l.b16 %v2371
      %v2478 = vunpack.c.h.b16 %v2371
      %v2479 = vunpack.c.l.b16 %v2372
      %v2480 = vunpack.c.h.b16 %v2372
      %v2481 = vunpack.c.l.b16 %v2373
      %v2482 = vunpack.c.h.b16 %v2373
      %v2483 = vunpack.c.l.b16 %v2374
      %v2484 = vunpack.c.h.b16 %v2374
      %v2485 = vunpack.c.l.b16 %v2375
      %v2486 = vunpack.c.h.b16 %v2375
      %v2487 = vunpack.c.l.b16 %v2376
      %v2488 = vunpack.c.h.b16 %v2376
      %v2489 = vunpack.c.l.b16 %v2377
      %v2490 = vunpack.c.h.b16 %v2377
      %v2491 = vunpack.c.l.b16 %v2378
      %v2492 = vunpack.c.h.b16 %v2378
      %v2493 = vunpack.c.l.b16 %v2379
      %v2494 = vunpack.c.h.b16 %v2379
      %v2495 = vunpack.c.l.b16 %v2380
      %v2496 = vunpack.c.h.b16 %v2380
      %v2497 = vunpack.c.l.b16 %v2381
      %v2498 = vunpack.c.h.b16 %v2381
      %v2499 = vunpack.c.l.b16 %v2382
      %v2500 = vunpack.c.h.b16 %v2382
      %v2501 = vunpack.c.l.b16 %v2383
      %v2502 = vunpack.c.h.b16 %v2383
      %v2503 = vunpack.c.l.b16 %v2384
      %v2504 = vunpack.c.h.b16 %v2384
      %v2505 = vpack.c.b16 %v2427, %v2425
      %v2506 = vpack.c.b16 %v2428, %v2426
      %v2507 = vpack.c.b16 %v2431, %v2429
      %v2508 = vpack.c.b16 %v2432, %v2430
      %v2509 = vpack.c.b16 %v2435, %v2433
      %v2510 = vpack.c.b16 %v2436, %v2434
      %v2511 = vpack.c.b16 %v2439, %v2437
      %v2512 = vpack.c.b16 %v2440, %v2438
      %v2513 = vpack.c.b16 %v2443, %v2441
      %v2514 = vpack.c.b16 %v2444, %v2442
      %v2515 = vpack.c.b16 %v2447, %v2445
      %v2516 = vpack.c.b16 %v2448, %v2446
      %v2517 = vpack.c.b16 %v2451, %v2449
      %v2518 = vpack.c.b16 %v2452, %v2450
      %v2519 = vpack.c.b16 %v2455, %v2453
      %v2520 = vpack.c.b16 %v2456, %v2454
      %v2521 = vpack.c.b16 %v2459, %v2457
      %v2522 = vpack.c.b16 %v2460, %v2458
      %v2523 = vpack.c.b16 %v2463, %v2461
      %v2524 = vpack.c.b16 %v2464, %v2462
      %v2525 = vpack.c.b16 %v2467, %v2465
      %v2526 = vpack.c.b16 %v2468, %v2466
      %v2527 = vpack.c.b16 %v2471, %v2469
      %v2528 = vpack.c.b16 %v2472, %v2470
      %v2529 = vpack.c.b16 %v2475, %v2473
      %v2530 = vpack.c.b16 %v2476, %v2474
      %v2531 = vpack.c.b16 %v2479, %v2477
      %v2532 = vpack.c.b16 %v2480, %v2478
      %v2533 = vpack.c.b16 %v2483, %v2481
      %v2534 = vpack.c.b16 %v2484, %v2482
      %v2535 = vpack.c.b16 %v2487, %v2485
      %v2536 = vpack.c.b16 %v2488, %v2486
      %v2537 = vpack.c.b16 %v2491, %v2489
      %v2538 = vpack.c.b16 %v2492, %v2490
      %v2539 = vpack.c.b16 %v2495, %v2493
      %v2540 = vpack.c.b16 %v2496, %v2494
      %v2541 = vpack.c.b16 %v2499, %v2497
      %v2542 = vpack.c.b16 %v2500, %v2498
      %v2543 = vpack.c.b16 %v2503, %v2501
      %v2544 = vpack.c.b16 %v2504, %v2502
      %v2566 = vsel %vm628, %v2506, 0
      %v2569 = vsel %vm628, %v2508, 0
      %v2572 = vsel %vm628, %v2510, 0
      %v2575 = vsel %vm628, %v2512, 0
      %v2578 = vsel %vm628, %v2514, 0
      %v2581 = vsel %vm628, %v2516, 0
      %v2584 = vsel %vm628, %v2518, 0
      %v2587 = vsel %vm628, %v2520, 0
      %v2590 = vsel %vm628, %v2522, 0
      %v2593 = vsel %vm628, %v2524, 0
      %v2596 = vsel %vm628, %v2526, 0
      %v2599 = vsel %vm628, %v2528, 0
      %v2602 = vsel %vm628, %v2530, 0
      %v2605 = vsel %vm628, %v2532, 0
      %v2608 = vsel %vm628, %v2534, 0
      %v2611 = vsel %vm628, %v2536, 0
      %v2614 = vsel %vm628, %v2538, 0
      %v2617 = vsel %vm628, %v2540, 0
      %v2620 = vsel %vm628, %v2542, 0
      %v2623 = vsel %vm628, %v2544, 0
      %2625 = vmatpush.bf16.msra.mxu0 %v617
      %2626 = vmatpush.bf16.msra.mxu0 %v616
      %2627 = vmatpush.bf16.msra.mxu0 %v615
      %2628 = vmatpush.bf16.msra.mxu0 %v614
      %2629 = vmatpush.bf16.msra.mxu0 %v613
      %2630 = vmatpush.bf16.msra.mxu0 %v612
      %2631 = vmatpush.bf16.msra.mxu0 %v611
      %2632 = vmatpush.bf16.msra.mxu0 %v610
      %2633 = vmatmul.bf16.gmra.mxu0 %v2505
      %v2634 = vpop.f32.mrf.mxu0
      %v2635 = vadd.f32 %v393, %v2634
      %v2636 = vpop.f32.mrf.mxu0
      %v2637 = vadd.f32 %v393, %v2636
      %2638 = vmatmul.bf16.gmra.mxu0 %v2507
      %v2639 = vpop.f32.mrf.mxu0
      %v2640 = vadd.f32 %v393, %v2639
      %v2641 = vpop.f32.mrf.mxu0
      %v2642 = vadd.f32 %v393, %v2641
      %2643 = vmatmul.bf16.gmra.mxu0 %v2509
      %v2644 = vpop.f32.mrf.mxu0
      %v2645 = vadd.f32 %v393, %v2644
      %v2646 = vpop.f32.mrf.mxu0
      %v2647 = vadd.f32 %v393, %v2646
      %2648 = vmatmul.bf16.gmra.mxu0 %v2511
      %v2649 = vpop.f32.mrf.mxu0
      %v2650 = vadd.f32 %v393, %v2649
      %v2651 = vpop.f32.mrf.mxu0
      %v2652 = vadd.f32 %v393, %v2651
      %2653 = vmatmul.bf16.gmra.mxu0 %v2513
      %v2654 = vpop.f32.mrf.mxu0
      %v2655 = vadd.f32 %v393, %v2654
      %v2656 = vpop.f32.mrf.mxu0
      %v2657 = vadd.f32 %v393, %v2656
      %2658 = vmatmul.bf16.gmra.mxu0 %v2515
      %v2659 = vpop.f32.mrf.mxu0
      %v2660 = vadd.f32 %v393, %v2659
      %v2661 = vpop.f32.mrf.mxu0
      %v2662 = vadd.f32 %v393, %v2661
      %2663 = vmatmul.bf16.gmra.mxu0 %v2517
      %v2664 = vpop.f32.mrf.mxu0
      %v2665 = vadd.f32 %v393, %v2664
      %v2666 = vpop.f32.mrf.mxu0
      %v2667 = vadd.f32 %v393, %v2666
      %2668 = vmatmul.bf16.gmra.mxu0 %v2519
      %v2669 = vpop.f32.mrf.mxu0
      %v2670 = vadd.f32 %v393, %v2669
      %v2671 = vpop.f32.mrf.mxu0
      %v2672 = vadd.f32 %v393, %v2671
      %2673 = vmatmul.bf16.gmra.mxu0 %v2521
      %v2674 = vpop.f32.mrf.mxu0
      %v2675 = vadd.f32 %v393, %v2674
      %v2676 = vpop.f32.mrf.mxu0
      %v2677 = vadd.f32 %v393, %v2676
      %2678 = vmatmul.bf16.gmra.mxu0 %v2523
      %v2679 = vpop.f32.mrf.mxu0
      %v2680 = vadd.f32 %v393, %v2679
      %v2681 = vpop.f32.mrf.mxu0
      %v2682 = vadd.f32 %v393, %v2681
      %2683 = vmatmul.bf16.gmra.mxu0 %v2525
      %v2684 = vpop.f32.mrf.mxu0
      %v2685 = vadd.f32 %v393, %v2684
      %v2686 = vpop.f32.mrf.mxu0
      %v2687 = vadd.f32 %v393, %v2686
      %2688 = vmatmul.bf16.gmra.mxu0 %v2527
      %v2689 = vpop.f32.mrf.mxu0
      %v2690 = vadd.f32 %v393, %v2689
      %v2691 = vpop.f32.mrf.mxu0
      %v2692 = vadd.f32 %v393, %v2691
      %2693 = vmatmul.bf16.gmra.mxu0 %v2529
      %v2694 = vpop.f32.mrf.mxu0
      %v2695 = vadd.f32 %v393, %v2694
      %v2696 = vpop.f32.mrf.mxu0
      %v2697 = vadd.f32 %v393, %v2696
      %2698 = vmatmul.bf16.gmra.mxu0 %v2531
      %v2699 = vpop.f32.mrf.mxu0
      %v2700 = vadd.f32 %v393, %v2699
      %v2701 = vpop.f32.mrf.mxu0
      %v2702 = vadd.f32 %v393, %v2701
      %2703 = vmatmul.bf16.gmra.mxu0 %v2533
      %v2704 = vpop.f32.mrf.mxu0
      %v2705 = vadd.f32 %v393, %v2704
      %v2706 = vpop.f32.mrf.mxu0
      %v2707 = vadd.f32 %v393, %v2706
      %2708 = vmatmul.bf16.gmra.mxu0 %v2535
      %v2709 = vpop.f32.mrf.mxu0
      %v2710 = vadd.f32 %v393, %v2709
      %v2711 = vpop.f32.mrf.mxu0
      %v2712 = vadd.f32 %v393, %v2711
      %2713 = vmatmul.bf16.gmra.mxu0 %v2537
      %v2714 = vpop.f32.mrf.mxu0
      %v2715 = vadd.f32 %v393, %v2714
      %v2716 = vpop.f32.mrf.mxu0
      %v2717 = vadd.f32 %v393, %v2716
      %2718 = vmatmul.bf16.gmra.mxu0 %v2539
      %v2719 = vpop.f32.mrf.mxu0
      %v2720 = vadd.f32 %v393, %v2719
      %v2721 = vpop.f32.mrf.mxu0
      %v2722 = vadd.f32 %v393, %v2721
      %2723 = vmatmul.bf16.gmra.mxu0 %v2541
      %v2724 = vpop.f32.mrf.mxu0
      %v2725 = vadd.f32 %v393, %v2724
      %v2726 = vpop.f32.mrf.mxu0
      %v2727 = vadd.f32 %v393, %v2726
      %2728 = vmatmul.bf16.gmra.mxu0 %v2543
      %v2729 = vpop.f32.mrf.mxu0
      %v2730 = vadd.f32 %v393, %v2729
      %v2731 = vpop.f32.mrf.mxu0
      %v2732 = vadd.f32 %v393, %v2731
      %2733 = vdwg.mxu0
      %2734 = vmatpush.bf16.msra.mxu0 0
      %2735 = vmatpush.bf16.msra.mxu0 0
      %2736 = vmatpush.bf16.msra.mxu0 0
      %2737 = vmatpush.bf16.msra.mxu0 0
      %2738 = vmatpush.bf16.msra.mxu0 0
      %2739 = vmatpush.bf16.msra.mxu0 0
      %2740 = vmatpush.bf16.msra.mxu0 0
      %2741 = vmatpush.bf16.msra.mxu0 %v618
      %2742 = vmatmul.bf16.gmra.mxu0 %v2566
      %v2743 = vpop.f32.mrf.mxu0
      %v2744 = vadd.f32 %v2635, %v2743
      %v2745 = vpop.f32.mrf.mxu0
      %v2746 = vadd.f32 %v2637, %v2745
      %2747 = vmatmul.bf16.gmra.mxu0 %v2569
      %v2748 = vpop.f32.mrf.mxu0
      %v2749 = vadd.f32 %v2640, %v2748
      %v2750 = vpop.f32.mrf.mxu0
      %v2751 = vadd.f32 %v2642, %v2750
      %2752 = vmatmul.bf16.gmra.mxu0 %v2572
      %v2753 = vpop.f32.mrf.mxu0
      %v2754 = vadd.f32 %v2645, %v2753
      %v2755 = vpop.f32.mrf.mxu0
      %v2756 = vadd.f32 %v2647, %v2755
      %2757 = vmatmul.bf16.gmra.mxu0 %v2575
      %v2758 = vpop.f32.mrf.mxu0
      %v2759 = vadd.f32 %v2650, %v2758
      %v2760 = vpop.f32.mrf.mxu0
      %v2761 = vadd.f32 %v2652, %v2760
      %2762 = vmatmul.bf16.gmra.mxu0 %v2578
      %v2763 = vpop.f32.mrf.mxu0
      %v2764 = vadd.f32 %v2655, %v2763
      %v2765 = vpop.f32.mrf.mxu0
      %v2766 = vadd.f32 %v2657, %v2765
      %2767 = vmatmul.bf16.gmra.mxu0 %v2581
      %v2768 = vpop.f32.mrf.mxu0
      %v2769 = vadd.f32 %v2660, %v2768
      %v2770 = vpop.f32.mrf.mxu0
      %v2771 = vadd.f32 %v2662, %v2770
      %2772 = vmatmul.bf16.gmra.mxu0 %v2584
      %v2773 = vpop.f32.mrf.mxu0
      %v2774 = vadd.f32 %v2665, %v2773
      %v2775 = vpop.f32.mrf.mxu0
      %v2776 = vadd.f32 %v2667, %v2775
      %2777 = vmatmul.bf16.gmra.mxu0 %v2587
      %v2778 = vpop.f32.mrf.mxu0
      %v2779 = vadd.f32 %v2670, %v2778
      %v2780 = vpop.f32.mrf.mxu0
      %v2781 = vadd.f32 %v2672, %v2780
      %2782 = vmatmul.bf16.gmra.mxu0 %v2590
      %v2783 = vpop.f32.mrf.mxu0
      %v2784 = vadd.f32 %v2675, %v2783
      %v2785 = vpop.f32.mrf.mxu0
      %v2786 = vadd.f32 %v2677, %v2785
      %2787 = vmatmul.bf16.gmra.mxu0 %v2593
      %v2788 = vpop.f32.mrf.mxu0
      %v2789 = vadd.f32 %v2680, %v2788
      %v2790 = vpop.f32.mrf.mxu0
      %v2791 = vadd.f32 %v2682, %v2790
      %2792 = vmatmul.bf16.gmra.mxu0 %v2596
      %v2793 = vpop.f32.mrf.mxu0
      %v2794 = vadd.f32 %v2685, %v2793
      %v2795 = vpop.f32.mrf.mxu0
      %v2796 = vadd.f32 %v2687, %v2795
      %2797 = vmatmul.bf16.gmra.mxu0 %v2599
      %v2798 = vpop.f32.mrf.mxu0
      %v2799 = vadd.f32 %v2690, %v2798
      %v2800 = vpop.f32.mrf.mxu0
      %v2801 = vadd.f32 %v2692, %v2800
      %2802 = vmatmul.bf16.gmra.mxu0 %v2602
      %v2803 = vpop.f32.mrf.mxu0
      %v2804 = vadd.f32 %v2695, %v2803
      %v2805 = vpop.f32.mrf.mxu0
      %v2806 = vadd.f32 %v2697, %v2805
      %2807 = vmatmul.bf16.gmra.mxu0 %v2605
      %v2808 = vpop.f32.mrf.mxu0
      %v2809 = vadd.f32 %v2700, %v2808
      %v2810 = vpop.f32.mrf.mxu0
      %v2811 = vadd.f32 %v2702, %v2810
      %2812 = vmatmul.bf16.gmra.mxu0 %v2608
      %v2813 = vpop.f32.mrf.mxu0
      %v2814 = vadd.f32 %v2705, %v2813
      %v2815 = vpop.f32.mrf.mxu0
      %v2816 = vadd.f32 %v2707, %v2815
      %2817 = vmatmul.bf16.gmra.mxu0 %v2611
      %v2818 = vpop.f32.mrf.mxu0
      %v2819 = vadd.f32 %v2710, %v2818
      %v2820 = vpop.f32.mrf.mxu0
      %v2821 = vadd.f32 %v2712, %v2820
      %2822 = vmatmul.bf16.gmra.mxu0 %v2614
      %v2823 = vpop.f32.mrf.mxu0
      %v2824 = vadd.f32 %v2715, %v2823
      %v2825 = vpop.f32.mrf.mxu0
      %v2826 = vadd.f32 %v2717, %v2825
      %2827 = vmatmul.bf16.gmra.mxu0 %v2617
      %v2828 = vpop.f32.mrf.mxu0
      %v2829 = vadd.f32 %v2720, %v2828
      %v2830 = vpop.f32.mrf.mxu0
      %v2831 = vadd.f32 %v2722, %v2830
      %2832 = vmatmul.bf16.gmra.mxu0 %v2620
      %v2833 = vpop.f32.mrf.mxu0
      %v2834 = vadd.f32 %v2725, %v2833
      %v2835 = vpop.f32.mrf.mxu0
      %v2836 = vadd.f32 %v2727, %v2835
      %2837 = vmatmul.bf16.gmra.mxu0 %v2623
      %v2838 = vpop.f32.mrf.mxu0
      %v2839 = vadd.f32 %v2730, %v2838
      %v2840 = vpop.f32.mrf.mxu0
      %v2841 = vadd.f32 %v2732, %v2840
      %2842 = vdwg.mxu0
      %v2843 = vmax.f32 %v2744, 0.0
      %v2844 = vmax.f32 %v2746, 0.0
      %v2845 = vmax.f32 %v2749, 0.0
      %v2846 = vmax.f32 %v2751, 0.0
      %v2847 = vmax.f32 %v2754, 0.0
      %v2848 = vmax.f32 %v2756, 0.0
      %v2849 = vmax.f32 %v2759, 0.0
      %v2850 = vmax.f32 %v2761, 0.0
      %v2851 = vmax.f32 %v2764, 0.0
      %v2852 = vmax.f32 %v2766, 0.0
      %v2853 = vmax.f32 %v2769, 0.0
      %v2854 = vmax.f32 %v2771, 0.0
      %v2855 = vmax.f32 %v2774, 0.0
      %v2856 = vmax.f32 %v2776, 0.0
      %v2857 = vmax.f32 %v2779, 0.0
      %v2858 = vmax.f32 %v2781, 0.0
      %v2859 = vmax.f32 %v2784, 0.0
      %v2860 = vmax.f32 %v2786, 0.0
      %v2861 = vmax.f32 %v2789, 0.0
      %v2862 = vmax.f32 %v2791, 0.0
      %v2863 = vmax.f32 %v2794, 0.0
      %v2864 = vmax.f32 %v2796, 0.0
      %v2865 = vmax.f32 %v2799, 0.0
      %v2866 = vmax.f32 %v2801, 0.0
      %v2867 = vmax.f32 %v2804, 0.0
      %v2868 = vmax.f32 %v2806, 0.0
      %v2869 = vmax.f32 %v2809, 0.0
      %v2870 = vmax.f32 %v2811, 0.0
      %v2871 = vmax.f32 %v2814, 0.0
      %v2872 = vmax.f32 %v2816, 0.0
      %v2873 = vmax.f32 %v2819, 0.0
      %v2874 = vmax.f32 %v2821, 0.0
      %v2875 = vmax.f32 %v2824, 0.0
      %v2876 = vmax.f32 %v2826, 0.0
      %v2877 = vmax.f32 %v2829, 0.0
      %v2878 = vmax.f32 %v2831, 0.0
      %v2879 = vmax.f32 %v2834, 0.0
      %v2880 = vmax.f32 %v2836, 0.0
      %v2881 = vmax.f32 %v2839, 0.0
      %v2882 = vmax.f32 %v2841, 0.0
      %v2883 = vmul.f32 %v2843, %v947
      %v2884 = vmul.f32 %v2844, %v947
      %v2885 = vmul.f32 %v2845, %v947
      %v2886 = vmul.f32 %v2846, %v947
      %v2887 = vmul.f32 %v2847, %v947
      %v2888 = vmul.f32 %v2848, %v947
      %v2889 = vmul.f32 %v2849, %v947
      %v2890 = vmul.f32 %v2850, %v947
      %v2891 = vmul.f32 %v2851, %v947
      %v2892 = vmul.f32 %v2852, %v947
      %v2893 = vmul.f32 %v2853, %v947
      %v2894 = vmul.f32 %v2854, %v947
      %v2895 = vmul.f32 %v2855, %v947
      %v2896 = vmul.f32 %v2856, %v947
      %v2897 = vmul.f32 %v2857, %v947
      %v2898 = vmul.f32 %v2858, %v947
      %v2899 = vmul.f32 %v2859, %v947
      %v2900 = vmul.f32 %v2860, %v947
      %v2901 = vmul.f32 %v2861, %v947
      %v2902 = vmul.f32 %v2862, %v947
      %v2903 = vmul.f32 %v2863, %v947
      %v2904 = vmul.f32 %v2864, %v947
      %v2905 = vmul.f32 %v2865, %v947
      %v2906 = vmul.f32 %v2866, %v947
      %v2907 = vmul.f32 %v2867, %v947
      %v2908 = vmul.f32 %v2868, %v947
      %v2909 = vmul.f32 %v2869, %v947
      %v2910 = vmul.f32 %v2870, %v947
      %v2911 = vmul.f32 %v2871, %v947
      %v2912 = vmul.f32 %v2872, %v947
      %v2913 = vmul.f32 %v2873, %v947
      %v2914 = vmul.f32 %v2874, %v947
      %v2915 = vmul.f32 %v2875, %v947
      %v2916 = vmul.f32 %v2876, %v947
      %v2917 = vmul.f32 %v2877, %v947
      %v2918 = vmul.f32 %v2878, %v947
      %v2919 = vmul.f32 %v2879, %v947
      %v2920 = vmul.f32 %v2880, %v947
      %v2921 = vmul.f32 %v2881, %v947
      %v2922 = vmul.f32 %v2882, %v947
      %v2923 = vadd.f32 %v2883, %v988
      %v2924 = vadd.f32 %v2884, %v988
      %v2925 = vadd.f32 %v2885, %v988
      %v2926 = vadd.f32 %v2886, %v988
      %v2927 = vadd.f32 %v2887, %v988
      %v2928 = vadd.f32 %v2888, %v988
      %v2929 = vadd.f32 %v2889, %v988
      %v2930 = vadd.f32 %v2890, %v988
      %v2931 = vadd.f32 %v2891, %v988
      %v2932 = vadd.f32 %v2892, %v988
      %v2933 = vadd.f32 %v2893, %v988
      %v2934 = vadd.f32 %v2894, %v988
      %v2935 = vadd.f32 %v2895, %v988
      %v2936 = vadd.f32 %v2896, %v988
      %v2937 = vadd.f32 %v2897, %v988
      %v2938 = vadd.f32 %v2898, %v988
      %v2939 = vadd.f32 %v2899, %v988
      %v2940 = vadd.f32 %v2900, %v988
      %v2941 = vadd.f32 %v2901, %v988
      %v2942 = vadd.f32 %v2902, %v988
      %v2943 = vadd.f32 %v2903, %v988
      %v2944 = vadd.f32 %v2904, %v988
      %v2945 = vadd.f32 %v2905, %v988
      %v2946 = vadd.f32 %v2906, %v988
      %v2947 = vadd.f32 %v2907, %v988
      %v2948 = vadd.f32 %v2908, %v988
      %v2949 = vadd.f32 %v2909, %v988
      %v2950 = vadd.f32 %v2910, %v988
      %v2951 = vadd.f32 %v2911, %v988
      %v2952 = vadd.f32 %v2912, %v988
      %v2953 = vadd.f32 %v2913, %v988
      %v2954 = vadd.f32 %v2914, %v988
      %v2955 = vadd.f32 %v2915, %v988
      %v2956 = vadd.f32 %v2916, %v988
      %v2957 = vadd.f32 %v2917, %v988
      %v2958 = vadd.f32 %v2918, %v988
      %v2959 = vadd.f32 %v2919, %v988
      %v2960 = vadd.f32 %v2920, %v988
      %v2961 = vadd.f32 %v2921, %v988
      %v2962 = vadd.f32 %v2922, %v988
      %v2963 = vadd.f32 %v2305, %v2923
      %v2964 = vadd.f32 %v2306, %v2924
      %v2965 = vadd.f32 %v2307, %v2925
      %v2966 = vadd.f32 %v2308, %v2926
      %v2967 = vadd.f32 %v2309, %v2927
      %v2968 = vadd.f32 %v2310, %v2928
      %v2969 = vadd.f32 %v2311, %v2929
      %v2970 = vadd.f32 %v2312, %v2930
      %v2971 = vadd.f32 %v2313, %v2931
      %v2972 = vadd.f32 %v2314, %v2932
      %v2973 = vadd.f32 %v2315, %v2933
      %v2974 = vadd.f32 %v2316, %v2934
      %v2975 = vadd.f32 %v2317, %v2935
      %v2976 = vadd.f32 %v2318, %v2936
      %v2977 = vadd.f32 %v2319, %v2937
      %v2978 = vadd.f32 %v2320, %v2938
      %v2979 = vadd.f32 %v2321, %v2939
      %v2980 = vadd.f32 %v2322, %v2940
      %v2981 = vadd.f32 %v2323, %v2941
      %v2982 = vadd.f32 %v2324, %v2942
      %v2983 = vadd.f32 %v2325, %v2943
      %v2984 = vadd.f32 %v2326, %v2944
      %v2985 = vadd.f32 %v2327, %v2945
      %v2986 = vadd.f32 %v2328, %v2946
      %v2987 = vadd.f32 %v2329, %v2947
      %v2988 = vadd.f32 %v2330, %v2948
      %v2989 = vadd.f32 %v2331, %v2949
      %v2990 = vadd.f32 %v2332, %v2950
      %v2991 = vadd.f32 %v2333, %v2951
      %v2992 = vadd.f32 %v2334, %v2952
      %v2993 = vadd.f32 %v2335, %v2953
      %v2994 = vadd.f32 %v2336, %v2954
      %v2995 = vadd.f32 %v2337, %v2955
      %v2996 = vadd.f32 %v2338, %v2956
      %v2997 = vadd.f32 %v2339, %v2957
      %v2998 = vadd.f32 %v2340, %v2958
      %v2999 = vadd.f32 %v2341, %v2959
      %v3000 = vadd.f32 %v2342, %v2960
      %v3001 = vadd.f32 %v2343, %v2961
      %v3002 = vadd.f32 %v2344, %v2962
      %v3003 = vmul.f32 %v2963, 0.25
      %v3004 = vmul.f32 %v2964, 0.25
      %v3005 = vmul.f32 %v2965, 0.25
      %v3006 = vmul.f32 %v2966, 0.25
      %v3007 = vmul.f32 %v2967, 0.25
      %v3008 = vmul.f32 %v2968, 0.25
      %v3009 = vmul.f32 %v2969, 0.25
      %v3010 = vmul.f32 %v2970, 0.25
      %v3011 = vmul.f32 %v2971, 0.25
      %v3012 = vmul.f32 %v2972, 0.25
      %v3013 = vmul.f32 %v2973, 0.25
      %v3014 = vmul.f32 %v2974, 0.25
      %v3015 = vmul.f32 %v2975, 0.25
      %v3016 = vmul.f32 %v2976, 0.25
      %v3017 = vmul.f32 %v2977, 0.25
      %v3018 = vmul.f32 %v2978, 0.25
      %v3019 = vmul.f32 %v2979, 0.25
      %v3020 = vmul.f32 %v2980, 0.25
      %v3021 = vmul.f32 %v2981, 0.25
      %v3022 = vmul.f32 %v2982, 0.25
      %v3023 = vmul.f32 %v2983, 0.25
      %v3024 = vmul.f32 %v2984, 0.25
      %v3025 = vmul.f32 %v2985, 0.25
      %v3026 = vmul.f32 %v2986, 0.25
      %v3027 = vmul.f32 %v2987, 0.25
      %v3028 = vmul.f32 %v2988, 0.25
      %v3029 = vmul.f32 %v2989, 0.25
      %v3030 = vmul.f32 %v2990, 0.25
      %v3031 = vmul.f32 %v2991, 0.25
      %v3032 = vmul.f32 %v2992, 0.25
      %v3033 = vmul.f32 %v2993, 0.25
      %v3034 = vmul.f32 %v2994, 0.25
      %v3035 = vmul.f32 %v2995, 0.25
      %v3036 = vmul.f32 %v2996, 0.25
      %v3037 = vmul.f32 %v2997, 0.25
      %v3038 = vmul.f32 %v2998, 0.25
      %v3039 = vmul.f32 %v2999, 0.25
      %v3040 = vmul.f32 %v3000, 0.25
      %v3041 = vmul.f32 %v3001, 0.25
      %v3042 = vmul.f32 %v3002, 0.25
      %v3043 = vpack.c.bf16 %v3003, %v3003
      %v3044 = vpack.c.bf16 %v3004, %v3004
      %v3045 = vpack.c.bf16 %v3005, %v3005
      %v3046 = vpack.c.bf16 %v3006, %v3006
      %v3047 = vpack.c.bf16 %v3007, %v3007
      %v3048 = vpack.c.bf16 %v3008, %v3008
      %v3049 = vpack.c.bf16 %v3009, %v3009
      %v3050 = vpack.c.bf16 %v3010, %v3010
      %v3051 = vpack.c.bf16 %v3011, %v3011
      %v3052 = vpack.c.bf16 %v3012, %v3012
      %v3053 = vpack.c.bf16 %v3013, %v3013
      %v3054 = vpack.c.bf16 %v3014, %v3014
      %v3055 = vpack.c.bf16 %v3015, %v3015
      %v3056 = vpack.c.bf16 %v3016, %v3016
      %v3057 = vpack.c.bf16 %v3017, %v3017
      %v3058 = vpack.c.bf16 %v3018, %v3018
      %v3059 = vpack.c.bf16 %v3019, %v3019
      %v3060 = vpack.c.bf16 %v3020, %v3020
      %v3061 = vpack.c.bf16 %v3021, %v3021
      %v3062 = vpack.c.bf16 %v3022, %v3022
      %v3063 = vpack.c.bf16 %v3023, %v3023
      %v3064 = vpack.c.bf16 %v3024, %v3024
      %v3065 = vpack.c.bf16 %v3025, %v3025
      %v3066 = vpack.c.bf16 %v3026, %v3026
      %v3067 = vpack.c.bf16 %v3027, %v3027
      %v3068 = vpack.c.bf16 %v3028, %v3028
      %v3069 = vpack.c.bf16 %v3029, %v3029
      %v3070 = vpack.c.bf16 %v3030, %v3030
      %v3071 = vpack.c.bf16 %v3031, %v3031
      %v3072 = vpack.c.bf16 %v3032, %v3032
      %v3073 = vpack.c.bf16 %v3033, %v3033
      %v3074 = vpack.c.bf16 %v3034, %v3034
      %v3075 = vpack.c.bf16 %v3035, %v3035
      %v3076 = vpack.c.bf16 %v3036, %v3036
      %v3077 = vpack.c.bf16 %v3037, %v3037
      %v3078 = vpack.c.bf16 %v3038, %v3038
      %v3079 = vpack.c.bf16 %v3039, %v3039
      %v3080 = vpack.c.bf16 %v3040, %v3040
      %v3081 = vpack.c.bf16 %v3041, %v3041
      %v3082 = vpack.c.bf16 %v3042, %v3042
      %vm3083 = vcmask 257024
      %3084 = vst.msk [vmem:[%s331] sm:$0xf] %vm3083, %v3043
      %3085 = vst.msk [vmem:[%s331 + $0x4] sm:$0xf] %vm3083, %v3044
      %3086 = vst.msk [vmem:[%s331 + $0x8] sm:$0xf] %vm3083, %v3045
      %3087 = vst.msk [vmem:[%s331 + $0xc] sm:$0xf] %vm3083, %v3046
      %3088 = vst.msk [vmem:[%s331 + $0x10] sm:$0xf] %vm3083, %v3047
      %3089 = vst.msk [vmem:[%s331 + $0x14] sm:$0xf] %vm3083, %v3048
      %3090 = vst.msk [vmem:[%s331 + $0x18] sm:$0xf] %vm3083, %v3049
      %3091 = vst.msk [vmem:[%s331 + $0x1c] sm:$0xf] %vm3083, %v3050
      %3092 = vst.msk [vmem:[%s331 + $0x20] sm:$0xf] %vm3083, %v3051
      %3093 = vst.msk [vmem:[%s331 + $0x24] sm:$0xf] %vm3083, %v3052
      %3094 = vst.msk [vmem:[%s331 + $0x28] sm:$0xf] %vm3083, %v3053
      %3095 = vst.msk [vmem:[%s331 + $0x2c] sm:$0xf] %vm3083, %v3054
      %3096 = vst.msk [vmem:[%s331 + $0x30] sm:$0xf] %vm3083, %v3055
      %3097 = vst.msk [vmem:[%s331 + $0x34] sm:$0xf] %vm3083, %v3056
      %3098 = vst.msk [vmem:[%s331 + $0x38] sm:$0xf] %vm3083, %v3057
      %3099 = vst.msk [vmem:[%s331 + $0x3c] sm:$0xf] %vm3083, %v3058
      %3100 = vst.msk [vmem:[%s331 + $0x40] sm:$0xf] %vm3083, %v3059
      %3101 = vst.msk [vmem:[%s331 + $0x44] sm:$0xf] %vm3083, %v3060
      %3102 = vst.msk [vmem:[%s331 + $0x48] sm:$0xf] %vm3083, %v3061
      %3103 = vst.msk [vmem:[%s331 + $0x4c] sm:$0xf] %vm3083, %v3062
      %3104 = vst.msk [vmem:[%s331 + $0x50] sm:$0xf] %vm3083, %v3063
      %3105 = vst.msk [vmem:[%s331 + $0x54] sm:$0xf] %vm3083, %v3064
      %3106 = vst.msk [vmem:[%s331 + $0x58] sm:$0xf] %vm3083, %v3065
      %3107 = vst.msk [vmem:[%s331 + $0x5c] sm:$0xf] %vm3083, %v3066
      %3108 = vst.msk [vmem:[%s331 + $0x60] sm:$0xf] %vm3083, %v3067
      %3109 = vst.msk [vmem:[%s331 + $0x64] sm:$0xf] %vm3083, %v3068
      %3110 = vst.msk [vmem:[%s331 + $0x68] sm:$0xf] %vm3083, %v3069
      %3111 = vst.msk [vmem:[%s331 + $0x6c] sm:$0xf] %vm3083, %v3070
      %3112 = vst.msk [vmem:[%s331 + $0x70] sm:$0xf] %vm3083, %v3071
      %3113 = vst.msk [vmem:[%s331 + $0x74] sm:$0xf] %vm3083, %v3072
      %3114 = vst.msk [vmem:[%s331 + $0x78] sm:$0xf] %vm3083, %v3073
      %3115 = vst.msk [vmem:[%s331 + $0x7c] sm:$0xf] %vm3083, %v3074
      %3116 = vst.msk [vmem:[%s331 + $0x80] sm:$0xf] %vm3083, %v3075
      %3117 = vst.msk [vmem:[%s331 + $0x84] sm:$0xf] %vm3083, %v3076
      %3118 = vst.msk [vmem:[%s331 + $0x88] sm:$0xf] %vm3083, %v3077
      %3119 = vst.msk [vmem:[%s331 + $0x8c] sm:$0xf] %vm3083, %v3078
      %3120 = vst.msk [vmem:[%s331 + $0x90] sm:$0xf] %vm3083, %v3079
      %3121 = vst.msk [vmem:[%s331 + $0x94] sm:$0xf] %vm3083, %v3080
      %3122 = vst.msk [vmem:[%s331 + $0x98] sm:$0xf] %vm3083, %v3081
      %3123 = vst.msk [vmem:[%s331 + $0x9c] sm:$0xf] %vm3083, %v3082
      %s3124 = smul.u32 40, %s17
      %p3125 = scmp.lt.s32.totalorder %s3124, 159
      %s3126 = scalar_select %p3125, %s3124, 159
      %s3127 = smul.addr %s3126, 4
      %s3128 = scalar_lea.vmem %s6, %s3127
      // Predicated region
      $region45: #{cnn_forward.5} parent=43 // pred_check
        %p3129 = pneg %p181
      $region46: #{cnn_forward.5} parent=43 // pred_check_branch
        %3131 = sbr.rel (%p3129) target = $region48
      $region47: #{cnn_forward.5} parent=43 // pred_region
        %s3132 = smul.u32 40, %s17
      $region48: #{cnn_forward.5} parent=43 // pred_fallthru
        _
    $region44: #{cnn_forward.5} parent=5 // pred_fallthru
      _
    %p3133 = scmp.le.s32.totalorder 2, %s12
    // Predicated region
    $region49: #{cnn_forward.5} parent=5 // pred_check
      %p3134 = pneg %p3133
    $region50: #{cnn_forward.5} parent=5 // pred_check_branch
      %3136 = sbr.rel (%p3134) target = $region52
    $region51: #{cnn_forward.5} parent=5 // pred_region
      %s3137 = ssub.s32 %s12, 2
      // Predicated region
      $region53: #{cnn_forward.5} parent=51 // pred_check
        %p3138 = pneg %p187
      $region54: #{cnn_forward.5} parent=51 // pred_check_branch
        %3140 = sbr.rel (%p3138) target = $region56
      $region55: #{cnn_forward.5} parent=51 // pred_region
        %s3141 = smul.u32 40, %s18
        %p3142 = scmp.lt.s32.totalorder %s3141, 159
        %s3143 = scalar_select %p3142, %s3141, 159
        %s3144 = smul.addr %s3143, 4
        %s3145 = scalar_lea.vmem %s6, %s3144
      $region56: #{cnn_forward.5} parent=51 // pred_fallthru
        _
    $region52: #{cnn_forward.5} parent=5 // pred_fallthru
      _
  $region6: #{cnn_forward.5} parent=0 // loop_footer
    %s16 = sadd.s32 1, %s12
  $region7: #{cnn_forward.5} parent=0 // loop_footer_branch
    %11 = sbr.rel target = $region3
  $region8: #{cnn_forward.5} parent=0 // loop_exit
    _

// kernel: cnn_forward.7
$region0: #{cnn_forward.7}
  #allocation0 [shape = 'u32[]', space=smem, size = 0x4, offset = 0x4, fixed_abs, tag = 'smem constant byte address 0x4 - core index']
  #allocation1 [shape = 'u32[72,128]{1,0:T(1,128)}', space=vmem, size = 0x9000, scoped, tag = 'internal scratch']
  %s0 = inlined_call_operand.vmem [shape: bf16[2,512], index: 0, kind: input, shape index: {}]
  %s1 = inlined_call_operand.vmem [shape: bf16[512,512], index: 1, kind: input, shape index: {}]
  %s2 = inlined_call_operand.vmem [shape: f32[8,512], index: 2, kind: input, shape index: {}]
  %s3 = inlined_call_operand.vmem [shape: bf16[512,512], index: 3, kind: input, shape index: {}]
  %s4 = inlined_call_operand.vmem [shape: f32[8,512], index: 4, kind: input, shape index: {}]
  %s5 = inlined_call_operand.vmem [shape: bf16[512,128], index: 5, kind: input, shape index: {}]
  %s6 = inlined_call_operand.vmem [shape: f32[8,128], index: 6, kind: input, shape index: {}]
  %s7 = inlined_call_operand.hbm [shape: f32[2,128], index: 7, kind: output, shape index: {}]
  %s8 = sld [smem:[#allocation0]]
  $region38: #{cnn_forward.7} parent=0
    _
  %s10 = ssub.s32 1, %s8
  %s11 = scalar_select 0, %s10, %s8
  $region1: #{cnn_forward.7} parent=0
    #allocation2 [shape = 'u8[1024]{0}', space=vmem, size = 0x400, scoped, tag = 'output window, operand 0, single buffered']
    #allocation3 [shape = 's32[1]{0}', space=sflag, size = 0x4, scoped, tag = 'scoped memory for cnn_forward.7']
    %12 = vsyncpa [#allocation3], 0
    // Predicated region
    $region2: #{cnn_forward.7} parent=1 // pred_check
      _
    $region3: #{cnn_forward.7} parent=1 // pred_check_branch
      %14 = sbr.rel (0) target = $region5
    $region4: #{cnn_forward.7} parent=1 // pred_region
      _
    $region5: #{cnn_forward.7} parent=1 // pred_fallthru
      _
    // Predicated region
    $region6: #{cnn_forward.7} parent=1 // pred_check
      _
    $region7: #{cnn_forward.7} parent=1 // pred_check_branch
      %16 = sbr.rel (0) target = $region9
    $region8: #{cnn_forward.7} parent=1 // pred_region
      _
    $region9: #{cnn_forward.7} parent=1 // pred_fallthru
      _
    // Predicated region
    $region10: #{cnn_forward.7} parent=1 // pred_check
      _
    $region11: #{cnn_forward.7} parent=1 // pred_check_branch
      %18 = sbr.rel (0) target = $region13
    $region12: #{cnn_forward.7} parent=1 // pred_region
      _
    $region13: #{cnn_forward.7} parent=1 // pred_fallthru
      _
    // Predicated region
    $region14: #{cnn_forward.7} parent=1 // pred_check
      _
    $region15: #{cnn_forward.7} parent=1 // pred_check_branch
      %20 = sbr.rel (0) target = $region17
    $region16: #{cnn_forward.7} parent=1 // pred_region
      _
    $region17: #{cnn_forward.7} parent=1 // pred_fallthru
      _
    // Predicated region
    $region18: #{cnn_forward.7} parent=1 // pred_check
      _
    $region19: #{cnn_forward.7} parent=1 // pred_check_branch
      %22 = sbr.rel (0) target = $region21
    $region20: #{cnn_forward.7} parent=1 // pred_region
      _
    $region21: #{cnn_forward.7} parent=1 // pred_fallthru
      _
    // Predicated region
    $region22: #{cnn_forward.7} parent=1 // pred_check
      _
    $region23: #{cnn_forward.7} parent=1 // pred_check_branch
      %24 = sbr.rel (0) target = $region25
    $region24: #{cnn_forward.7} parent=1 // pred_region
      _
    $region25: #{cnn_forward.7} parent=1 // pred_fallthru
      _
    // Predicated region
    $region26: #{cnn_forward.7} parent=1 // pred_check
      _
    $region27: #{cnn_forward.7} parent=1 // pred_check_branch
      %26 = sbr.rel (0) target = $region29
    $region28: #{cnn_forward.7} parent=1 // pred_region
      _
    $region29: #{cnn_forward.7} parent=1 // pred_fallthru
      _
    %v27 = vld [vmem:[%s0] sm:$0xf]
    %v28 = vld [vmem:[%s2] sm:$0xff]
    %v29 = vld [vmem:[%s2 + $0x8] sm:$0xff]
    %v30 = vld [vmem:[%s2 + $0x10] sm:$0xff]
    %v31 = vld [vmem:[%s2 + $0x18] sm:$0xff]
    %v32 = vld [vmem:[%s1] sm:$0xff]
    %v33 = vld [vmem:[%s1 + $0x8] sm:$0xff]
    %v34 = vld [vmem:[%s1 + $0x10] sm:$0xff]
    %v35 = vld [vmem:[%s1 + $0x18] sm:$0xff]
    %v36 = vld [vmem:[%s1 + $0x20] sm:$0xff]
    %v37 = vld [vmem:[%s1 + $0x28] sm:$0xff]
    %v38 = vld [vmem:[%s1 + $0x30] sm:$0xff]
    %v39 = vld [vmem:[%s1 + $0x38] sm:$0xff]
    %v40 = vld [vmem:[%s1 + $0x40] sm:$0xff]
    %v41 = vld [vmem:[%s1 + $0x48] sm:$0xff]
    %v42 = vld [vmem:[%s1 + $0x50] sm:$0xff]
    %v43 = vld [vmem:[%s1 + $0x58] sm:$0xff]
    %v44 = vld [vmem:[%s1 + $0x60] sm:$0xff]
    %v45 = vld [vmem:[%s1 + $0x68] sm:$0xff]
    %v46 = vld [vmem:[%s1 + $0x70] sm:$0xff]
    %v47 = vld [vmem:[%s1 + $0x78] sm:$0xff]
    %v48 = vld [vmem:[%s1 + $0x80] sm:$0xff]
    %v49 = vld [vmem:[%s1 + $0x88] sm:$0xff]
    %v50 = vld [vmem:[%s1 + $0x90] sm:$0xff]
    %v51 = vld [vmem:[%s1 + $0x98] sm:$0xff]
    %v52 = vld [vmem:[%s1 + $0xa0] sm:$0xff]
    %v53 = vld [vmem:[%s1 + $0xa8] sm:$0xff]
    %v54 = vld [vmem:[%s1 + $0xb0] sm:$0xff]
    %v55 = vld [vmem:[%s1 + $0xb8] sm:$0xff]
    %v56 = vld [vmem:[%s1 + $0xc0] sm:$0xff]
    %v57 = vld [vmem:[%s1 + $0xc8] sm:$0xff]
    %v58 = vld [vmem:[%s1 + $0xd0] sm:$0xff]
    %v59 = vld [vmem:[%s1 + $0xd8] sm:$0xff]
    %v60 = vld [vmem:[%s1 + $0xe0] sm:$0xff]
    %v61 = vld [vmem:[%s1 + $0xe8] sm:$0xff]
    %v62 = vld [vmem:[%s1 + $0xf0] sm:$0xff]
    %v63 = vld [vmem:[%s1 + $0xf8] sm:$0xff]
    %v64 = vld [vmem:[%s1 + $0x100] sm:$0xff]
    %v65 = vld [vmem:[%s1 + $0x108] sm:$0xff]
    %v66 = vld [vmem:[%s1 + $0x110] sm:$0xff]
    %v67 = vld [vmem:[%s1 + $0x118] sm:$0xff]
    %v68 = vld [vmem:[%s1 + $0x120] sm:$0xff]
    %v69 = vld [vmem:[%s1 + $0x128] sm:$0xff]
    %v70 = vld [vmem:[%s1 + $0x130] sm:$0xff]
    %v71 = vld [vmem:[%s1 + $0x138] sm:$0xff]
    %v72 = vld [vmem:[%s1 + $0x140] sm:$0xff]
    %v73 = vld [vmem:[%s1 + $0x148] sm:$0xff]
    %v74 = vld [vmem:[%s1 + $0x150] sm:$0xff]
    %v75 = vld [vmem:[%s1 + $0x158] sm:$0xff]
    %v76 = vld [vmem:[%s1 + $0x160] sm:$0xff]
    %v77 = vld [vmem:[%s1 + $0x168] sm:$0xff]
    %v78 = vld [vmem:[%s1 + $0x170] sm:$0xff]
    %v79 = vld [vmem:[%s1 + $0x178] sm:$0xff]
    %v80 = vld [vmem:[%s1 + $0x180] sm:$0xff]
    %v81 = vld [vmem:[%s1 + $0x188] sm:$0xff]
    %v82 = vld [vmem:[%s1 + $0x190] sm:$0xff]
    %v83 = vld [vmem:[%s1 + $0x198] sm:$0xff]
    %v84 = vld [vmem:[%s1 + $0x1a0] sm:$0xff]
    %v85 = vld [vmem:[%s1 + $0x1a8] sm:$0xff]
    %v86 = vld [vmem:[%s1 + $0x1b0] sm:$0xff]
    %v87 = vld [vmem:[%s1 + $0x1b8] sm:$0xff]
    %v88 = vld [vmem:[%s1 + $0x1c0] sm:$0xff]
    %v89 = vld [vmem:[%s1 + $0x1c8] sm:$0xff]
    %v90 = vld [vmem:[%s1 + $0x1d0] sm:$0xff]
    %v91 = vld [vmem:[%s1 + $0x1d8] sm:$0xff]
    %v92 = vld [vmem:[%s1 + $0x1e0] sm:$0xff]
    %v93 = vld [vmem:[%s1 + $0x1e8] sm:$0xff]
    %v94 = vld [vmem:[%s1 + $0x1f0] sm:$0xff]
    %v95 = vld [vmem:[%s1 + $0x1f8] sm:$0xff]
    %v96 = vld [vmem:[%s1 + $0x200] sm:$0xff]
    %v97 = vld [vmem:[%s1 + $0x208] sm:$0xff]
    %v98 = vld [vmem:[%s1 + $0x210] sm:$0xff]
    %v99 = vld [vmem:[%s1 + $0x218] sm:$0xff]
    %v100 = vld [vmem:[%s1 + $0x220] sm:$0xff]
    %v101 = vld [vmem:[%s1 + $0x228] sm:$0xff]
    %v102 = vld [vmem:[%s1 + $0x230] sm:$0xff]
    %v103 = vld [vmem:[%s1 + $0x238] sm:$0xff]
    %v104 = vld [vmem:[%s1 + $0x240] sm:$0xff]
    %v105 = vld [vmem:[%s1 + $0x248] sm:$0xff]
    %v106 = vld [vmem:[%s1 + $0x250] sm:$0xff]
    %v107 = vld [vmem:[%s1 + $0x258] sm:$0xff]
    %v108 = vld [vmem:[%s1 + $0x260] sm:$0xff]
    %v109 = vld [vmem:[%s1 + $0x268] sm:$0xff]
    %v110 = vld [vmem:[%s1 + $0x270] sm:$0xff]
    %v111 = vld [vmem:[%s1 + $0x278] sm:$0xff]
    %v112 = vld [vmem:[%s1 + $0x280] sm:$0xff]
    %v113 = vld [vmem:[%s1 + $0x288] sm:$0xff]
    %v114 = vld [vmem:[%s1 + $0x290] sm:$0xff]
    %v115 = vld [vmem:[%s1 + $0x298] sm:$0xff]
    %v116 = vld [vmem:[%s1 + $0x2a0] sm:$0xff]
    %v117 = vld [vmem:[%s1 + $0x2a8] sm:$0xff]
    %v118 = vld [vmem:[%s1 + $0x2b0] sm:$0xff]
    %v119 = vld [vmem:[%s1 + $0x2b8] sm:$0xff]
    %v120 = vld [vmem:[%s1 + $0x2c0] sm:$0xff]
    %v121 = vld [vmem:[%s1 + $0x2c8] sm:$0xff]
    %v122 = vld [vmem:[%s1 + $0x2d0] sm:$0xff]
    %v123 = vld [vmem:[%s1 + $0x2d8] sm:$0xff]
    %v124 = vld [vmem:[%s1 + $0x2e0] sm:$0xff]
    %v125 = vld [vmem:[%s1 + $0x2e8] sm:$0xff]
    %v126 = vld [vmem:[%s1 + $0x2f0] sm:$0xff]
    %v127 = vld [vmem:[%s1 + $0x2f8] sm:$0xff]
    %v128 = vld [vmem:[%s1 + $0x300] sm:$0xff]
    %v129 = vld [vmem:[%s1 + $0x308] sm:$0xff]
    %v130 = vld [vmem:[%s1 + $0x310] sm:$0xff]
    %v131 = vld [vmem:[%s1 + $0x318] sm:$0xff]
    %v132 = vld [vmem:[%s1 + $0x320] sm:$0xff]
    %v133 = vld [vmem:[%s1 + $0x328] sm:$0xff]
    %v134 = vld [vmem:[%s1 + $0x330] sm:$0xff]
    %v135 = vld [vmem:[%s1 + $0x338] sm:$0xff]
    %v136 = vld [vmem:[%s1 + $0x340] sm:$0xff]
    %v137 = vld [vmem:[%s1 + $0x348] sm:$0xff]
    %v138 = vld [vmem:[%s1 + $0x350] sm:$0xff]
    %v139 = vld [vmem:[%s1 + $0x358] sm:$0xff]
    %v140 = vld [vmem:[%s1 + $0x360] sm:$0xff]
    %v141 = vld [vmem:[%s1 + $0x368] sm:$0xff]
    %v142 = vld [vmem:[%s1 + $0x370] sm:$0xff]
    %v143 = vld [vmem:[%s1 + $0x378] sm:$0xff]
    %v144 = vld [vmem:[%s1 + $0x380] sm:$0xff]
    %v145 = vld [vmem:[%s1 + $0x388] sm:$0xff]
    %v146 = vld [vmem:[%s1 + $0x390] sm:$0xff]
    %v147 = vld [vmem:[%s1 + $0x398] sm:$0xff]
    %v148 = vld [vmem:[%s1 + $0x3a0] sm:$0xff]
    %v149 = vld [vmem:[%s1 + $0x3a8] sm:$0xff]
    %v150 = vld [vmem:[%s1 + $0x3b0] sm:$0xff]
    %v151 = vld [vmem:[%s1 + $0x3b8] sm:$0xff]
    %v152 = vld [vmem:[%s1 + $0x3c0] sm:$0xff]
    %v153 = vld [vmem:[%s1 + $0x3c8] sm:$0xff]
    %v154 = vld [vmem:[%s1 + $0x3d0] sm:$0xff]
    %v155 = vld [vmem:[%s1 + $0x3d8] sm:$0xff]
    %v156 = vld [vmem:[%s1 + $0x3e0] sm:$0xff]
    %v157 = vld [vmem:[%s1 + $0x3e8] sm:$0xff]
    %v158 = vld [vmem:[%s1 + $0x3f0] sm:$0xff]
    %v159 = vld [vmem:[%s1 + $0x3f8] sm:$0xff]
    %v160 = vperm.slane %v28, 0
    %v161 = vperm.slane %v29, 0
    %v162 = vperm.slane %v30, 0
    %v163 = vperm.slane %v31, 0
    %165 = vst [vmem:[#allocation1] ss:$9 sm:$0xff] %v27
    %v166 = vld [vmem:[#allocation1] sm:$0xff]
    %v167 = vld [vmem:[#allocation1 + $0x9] sm:$0xff]
    %v168 = vld [vmem:[#allocation1 + $0x12] sm:$0xff]
    %v169 = vld [vmem:[#allocation1 + $0x1b] sm:$0xff]
    %v302 = vunpack.c.l.b16 %v32
    %v303 = vunpack.c.h.b16 %v32
    %v304 = vunpack.c.l.b16 %v33
    %v305 = vunpack.c.h.b16 %v33
    %v306 = vunpack.c.l.b16 %v34
    %v307 = vunpack.c.h.b16 %v34
    %v308 = vunpack.c.l.b16 %v35
    %v309 = vunpack.c.h.b16 %v35
    %v310 = vunpack.c.l.b16 %v36
    %v311 = vunpack.c.h.b16 %v36
    %v312 = vunpack.c.l.b16 %v37
    %v313 = vunpack.c.h.b16 %v37
    %v314 = vunpack.c.l.b16 %v38
    %v315 = vunpack.c.h.b16 %v38
    %v316 = vunpack.c.l.b16 %v39
    %v317 = vunpack.c.h.b16 %v39
    %v318 = vunpack.c.l.b16 %v40
    %v319 = vunpack.c.h.b16 %v40
    %v320 = vunpack.c.l.b16 %v41
    %v321 = vunpack.c.h.b16 %v41
    %v322 = vunpack.c.l.b16 %v42
    %v323 = vunpack.c.h.b16 %v42
    %v324 = vunpack.c.l.b16 %v43
    %v325 = vunpack.c.h.b16 %v43
    %v326 = vunpack.c.l.b16 %v44
    %v327 = vunpack.c.h.b16 %v44
    %v328 = vunpack.c.l.b16 %v45
    %v329 = vunpack.c.h.b16 %v45
    %v330 = vunpack.c.l.b16 %v46
    %v331 = vunpack.c.h.b16 %v46
    %v332 = vunpack.c.l.b16 %v47
    %v333 = vunpack.c.h.b16 %v47
    %v334 = vunpack.c.l.b16 %v48
    %v335 = vunpack.c.h.b16 %v48
    %v336 = vunpack.c.l.b16 %v49
    %v337 = vunpack.c.h.b16 %v49
    %v338 = vunpack.c.l.b16 %v50
    %v339 = vunpack.c.h.b16 %v50
    %v340 = vunpack.c.l.b16 %v51
    %v341 = vunpack.c.h.b16 %v51
    %v342 = vunpack.c.l.b16 %v52
    %v343 = vunpack.c.h.b16 %v52
    %v344 = vunpack.c.l.b16 %v53
    %v345 = vunpack.c.h.b16 %v53
    %v346 = vunpack.c.l.b16 %v54
    %v347 = vunpack.c.h.b16 %v54
    %v348 = vunpack.c.l.b16 %v55
    %v349 = vunpack.c.h.b16 %v55
    %v350 = vunpack.c.l.b16 %v56
    %v351 = vunpack.c.h.b16 %v56
    %v352 = vunpack.c.l.b16 %v57
    %v353 = vunpack.c.h.b16 %v57
    %v354 = vunpack.c.l.b16 %v58
    %v355 = vunpack.c.h.b16 %v58
    %v356 = vunpack.c.l.b16 %v59
    %v357 = vunpack.c.h.b16 %v59
    %v358 = vunpack.c.l.b16 %v60
    %v359 = vunpack.c.h.b16 %v60
    %v360 = vunpack.c.l.b16 %v61
    %v361 = vunpack.c.h.b16 %v61
    %v362 = vunpack.c.l.b16 %v62
    %v363 = vunpack.c.h.b16 %v62
    %v364 = vunpack.c.l.b16 %v63
    %v365 = vunpack.c.h.b16 %v63
    %v366 = vunpack.c.l.b16 %v64
    %v367 = vunpack.c.h.b16 %v64
    %v368 = vunpack.c.l.b16 %v65
    %v369 = vunpack.c.h.b16 %v65
    %v370 = vunpack.c.l.b16 %v66
    %v371 = vunpack.c.h.b16 %v66
    %v372 = vunpack.c.l.b16 %v67
    %v373 = vunpack.c.h.b16 %v67
    %v374 = vunpack.c.l.b16 %v68
    %v375 = vunpack.c.h.b16 %v68
    %v376 = vunpack.c.l.b16 %v69
    %v377 = vunpack.c.h.b16 %v69
    %v378 = vunpack.c.l.b16 %v70
    %v379 = vunpack.c.h.b16 %v70
    %v380 = vunpack.c.l.b16 %v71
    %v381 = vunpack.c.h.b16 %v71
    %v382 = vunpack.c.l.b16 %v72
    %v383 = vunpack.c.h.b16 %v72
    %v384 = vunpack.c.l.b16 %v73
    %v385 = vunpack.c.h.b16 %v73
    %v386 = vunpack.c.l.b16 %v74
    %v387 = vunpack.c.h.b16 %v74
    %v388 = vunpack.c.l.b16 %v75
    %v389 = vunpack.c.h.b16 %v75
    %v390 = vunpack.c.l.b16 %v76
    %v391 = vunpack.c.h.b16 %v76
    %v392 = vunpack.c.l.b16 %v77
    %v393 = vunpack.c.h.b16 %v77
    %v394 = vunpack.c.l.b16 %v78
    %v395 = vunpack.c.h.b16 %v78
    %v396 = vunpack.c.l.b16 %v79
    %v397 = vunpack.c.h.b16 %v79
    %v398 = vunpack.c.l.b16 %v80
    %v399 = vunpack.c.h.b16 %v80
    %v400 = vunpack.c.l.b16 %v81
    %v401 = vunpack.c.h.b16 %v81
    %v402 = vunpack.c.l.b16 %v82
    %v403 = vunpack.c.h.b16 %v82
    %v404 = vunpack.c.l.b16 %v83
    %v405 = vunpack.c.h.b16 %v83
    %v406 = vunpack.c.l.b16 %v84
    %v407 = vunpack.c.h.b16 %v84
    %v408 = vunpack.c.l.b16 %v85
    %v409 = vunpack.c.h.b16 %v85
    %v410 = vunpack.c.l.b16 %v86
    %v411 = vunpack.c.h.b16 %v86
    %v412 = vunpack.c.l.b16 %v87
    %v413 = vunpack.c.h.b16 %v87
    %v414 = vunpack.c.l.b16 %v88
    %v415 = vunpack.c.h.b16 %v88
    %v416 = vunpack.c.l.b16 %v89
    %v417 = vunpack.c.h.b16 %v89
    %v418 = vunpack.c.l.b16 %v90
    %v419 = vunpack.c.h.b16 %v90
    %v420 = vunpack.c.l.b16 %v91
    %v421 = vunpack.c.h.b16 %v91
    %v422 = vunpack.c.l.b16 %v92
    %v423 = vunpack.c.h.b16 %v92
    %v424 = vunpack.c.l.b16 %v93
    %v425 = vunpack.c.h.b16 %v93
    %v426 = vunpack.c.l.b16 %v94
    %v427 = vunpack.c.h.b16 %v94
    %v428 = vunpack.c.l.b16 %v95
    %v429 = vunpack.c.h.b16 %v95
    %v430 = vunpack.c.l.b16 %v96
    %v431 = vunpack.c.h.b16 %v96
    %v432 = vunpack.c.l.b16 %v97
    %v433 = vunpack.c.h.b16 %v97
    %v434 = vunpack.c.l.b16 %v98
    %v435 = vunpack.c.h.b16 %v98
    %v436 = vunpack.c.l.b16 %v99
    %v437 = vunpack.c.h.b16 %v99
    %v438 = vunpack.c.l.b16 %v100
    %v439 = vunpack.c.h.b16 %v100
    %v440 = vunpack.c.l.b16 %v101
    %v441 = vunpack.c.h.b16 %v101
    %v442 = vunpack.c.l.b16 %v102
    %v443 = vunpack.c.h.b16 %v102
    %v444 = vunpack.c.l.b16 %v103
    %v445 = vunpack.c.h.b16 %v103
    %v446 = vunpack.c.l.b16 %v104
    %v447 = vunpack.c.h.b16 %v104
    %v448 = vunpack.c.l.b16 %v105
    %v449 = vunpack.c.h.b16 %v105
    %v450 = vunpack.c.l.b16 %v106
    %v451 = vunpack.c.h.b16 %v106
    %v452 = vunpack.c.l.b16 %v107
    %v453 = vunpack.c.h.b16 %v107
    %v454 = vunpack.c.l.b16 %v108
    %v455 = vunpack.c.h.b16 %v108
    %v456 = vunpack.c.l.b16 %v109
    %v457 = vunpack.c.h.b16 %v109
    %v458 = vunpack.c.l.b16 %v110
    %v459 = vunpack.c.h.b16 %v110
    %v460 = vunpack.c.l.b16 %v111
    %v461 = vunpack.c.h.b16 %v111
    %v462 = vunpack.c.l.b16 %v112
    %v463 = vunpack.c.h.b16 %v112
    %v464 = vunpack.c.l.b16 %v113
    %v465 = vunpack.c.h.b16 %v113
    %v466 = vunpack.c.l.b16 %v114
    %v467 = vunpack.c.h.b16 %v114
    %v468 = vunpack.c.l.b16 %v115
    %v469 = vunpack.c.h.b16 %v115
    %v470 = vunpack.c.l.b16 %v116
    %v471 = vunpack.c.h.b16 %v116
    %v472 = vunpack.c.l.b16 %v117
    %v473 = vunpack.c.h.b16 %v117
    %v474 = vunpack.c.l.b16 %v118
    %v475 = vunpack.c.h.b16 %v118
    %v476 = vunpack.c.l.b16 %v119
    %v477 = vunpack.c.h.b16 %v119
    %v478 = vunpack.c.l.b16 %v120
    %v479 = vunpack.c.h.b16 %v120
    %v480 = vunpack.c.l.b16 %v121
    %v481 = vunpack.c.h.b16 %v121
    %v482 = vunpack.c.l.b16 %v122
    %v483 = vunpack.c.h.b16 %v122
    %v484 = vunpack.c.l.b16 %v123
    %v485 = vunpack.c.h.b16 %v123
    %v486 = vunpack.c.l.b16 %v124
    %v487 = vunpack.c.h.b16 %v124
    %v488 = vunpack.c.l.b16 %v125
    %v489 = vunpack.c.h.b16 %v125
    %v490 = vunpack.c.l.b16 %v126
    %v491 = vunpack.c.h.b16 %v126
    %v492 = vunpack.c.l.b16 %v127
    %v493 = vunpack.c.h.b16 %v127
    %v494 = vunpack.c.l.b16 %v128
    %v495 = vunpack.c.h.b16 %v128
    %v496 = vunpack.c.l.b16 %v129
    %v497 = vunpack.c.h.b16 %v129
    %v498 = vunpack.c.l.b16 %v130
    %v499 = vunpack.c.h.b16 %v130
    %v500 = vunpack.c.l.b16 %v131
    %v501 = vunpack.c.h.b16 %v131
    %v502 = vunpack.c.l.b16 %v132
    %v503 = vunpack.c.h.b16 %v132
    %v504 = vunpack.c.l.b16 %v133
    %v505 = vunpack.c.h.b16 %v133
    %v506 = vunpack.c.l.b16 %v134
    %v507 = vunpack.c.h.b16 %v134
    %v508 = vunpack.c.l.b16 %v135
    %v509 = vunpack.c.h.b16 %v135
    %v510 = vunpack.c.l.b16 %v136
    %v511 = vunpack.c.h.b16 %v136
    %v512 = vunpack.c.l.b16 %v137
    %v513 = vunpack.c.h.b16 %v137
    %v514 = vunpack.c.l.b16 %v138
    %v515 = vunpack.c.h.b16 %v138
    %v516 = vunpack.c.l.b16 %v139
    %v517 = vunpack.c.h.b16 %v139
    %v518 = vunpack.c.l.b16 %v140
    %v519 = vunpack.c.h.b16 %v140
    %v520 = vunpack.c.l.b16 %v141
    %v521 = vunpack.c.h.b16 %v141
    %v522 = vunpack.c.l.b16 %v142
    %v523 = vunpack.c.h.b16 %v142
    %v524 = vunpack.c.l.b16 %v143
    %v525 = vunpack.c.h.b16 %v143
    %v526 = vunpack.c.l.b16 %v144
    %v527 = vunpack.c.h.b16 %v144
    %v528 = vunpack.c.l.b16 %v145
    %v529 = vunpack.c.h.b16 %v145
    %v530 = vunpack.c.l.b16 %v146
    %v531 = vunpack.c.h.b16 %v146
    %v532 = vunpack.c.l.b16 %v147
    %v533 = vunpack.c.h.b16 %v147
    %v534 = vunpack.c.l.b16 %v148
    %v535 = vunpack.c.h.b16 %v148
    %v536 = vunpack.c.l.b16 %v149
    %v537 = vunpack.c.h.b16 %v149
    %v538 = vunpack.c.l.b16 %v150
    %v539 = vunpack.c.h.b16 %v150
    %v540 = vunpack.c.l.b16 %v151
    %v541 = vunpack.c.h.b16 %v151
    %v542 = vunpack.c.l.b16 %v152
    %v543 = vunpack.c.h.b16 %v152
    %v544 = vunpack.c.l.b16 %v153
    %v545 = vunpack.c.h.b16 %v153
    %v546 = vunpack.c.l.b16 %v154
    %v547 = vunpack.c.h.b16 %v154
    %v548 = vunpack.c.l.b16 %v155
    %v549 = vunpack.c.h.b16 %v155
    %v550 = vunpack.c.l.b16 %v156
    %v551 = vunpack.c.h.b16 %v156
    %v552 = vunpack.c.l.b16 %v157
    %v553 = vunpack.c.h.b16 %v157
    %v554 = vunpack.c.l.b16 %v158
    %v555 = vunpack.c.h.b16 %v158
    %v556 = vunpack.c.l.b16 %v159
    %v557 = vunpack.c.h.b16 %v159
    %v558 = vpack.c.b16 %v306, %v302
    %v559 = vpack.c.b16 %v307, %v303
    %v560 = vpack.c.b16 %v308, %v304
    %v561 = vpack.c.b16 %v309, %v305
    %v562 = vpack.c.b16 %v314, %v310
    %v563 = vpack.c.b16 %v315, %v311
    %v564 = vpack.c.b16 %v316, %v312
    %v565 = vpack.c.b16 %v317, %v313
    %v566 = vpack.c.b16 %v322, %v318
    %v567 = vpack.c.b16 %v323, %v319
    %v568 = vpack.c.b16 %v324, %v320
    %v569 = vpack.c.b16 %v325, %v321
    %v570 = vpack.c.b16 %v330, %v326
    %v571 = vpack.c.b16 %v331, %v327
    %v572 = vpack.c.b16 %v332, %v328
    %v573 = vpack.c.b16 %v333, %v329
    %v574 = vpack.c.b16 %v338, %v334
    %v575 = vpack.c.b16 %v339, %v335
    %v576 = vpack.c.b16 %v340, %v336
    %v577 = vpack.c.b16 %v341, %v337
    %v578 = vpack.c.b16 %v346, %v342
    %v579 = vpack.c.b16 %v347, %v343
    %v580 = vpack.c.b16 %v348, %v344
    %v581 = vpack.c.b16 %v349, %v345
    %v582 = vpack.c.b16 %v354, %v350
    %v583 = vpack.c.b16 %v355, %v351
    %v584 = vpack.c.b16 %v356, %v352
    %v585 = vpack.c.b16 %v357, %v353
    %v586 = vpack.c.b16 %v362, %v358
    %v587 = vpack.c.b16 %v363, %v359
    %v588 = vpack.c.b16 %v364, %v360
    %v589 = vpack.c.b16 %v365, %v361
    %v590 = vpack.c.b16 %v370, %v366
    %v591 = vpack.c.b16 %v371, %v367
    %v592 = vpack.c.b16 %v372, %v368
    %v593 = vpack.c.b16 %v373, %v369
    %v594 = vpack.c.b16 %v378, %v374
    %v595 = vpack.c.b16 %v379, %v375
    %v596 = vpack.c.b16 %v380, %v376
    %v597 = vpack.c.b16 %v381, %v377
    %v598 = vpack.c.b16 %v386, %v382
    %v599 = vpack.c.b16 %v387, %v383
    %v600 = vpack.c.b16 %v388, %v384
    %v601 = vpack.c.b16 %v389, %v385
    %v602 = vpack.c.b16 %v394, %v390
    %v603 = vpack.c.b16 %v395, %v391
    %v604 = vpack.c.b16 %v396, %v392
    %v605 = vpack.c.b16 %v397, %v393
    %v606 = vpack.c.b16 %v402, %v398
    %v607 = vpack.c.b16 %v403, %v399
    %v608 = vpack.c.b16 %v404, %v400
    %v609 = vpack.c.b16 %v405, %v401
    %v610 = vpack.c.b16 %v410, %v406
    %v611 = vpack.c.b16 %v411, %v407
    %v612 = vpack.c.b16 %v412, %v408
    %v613 = vpack.c.b16 %v413, %v409
    %v614 = vpack.c.b16 %v418, %v414
    %v615 = vpack.c.b16 %v419, %v415
    %v616 = vpack.c.b16 %v420, %v416
    %v617 = vpack.c.b16 %v421, %v417
    %v618 = vpack.c.b16 %v426, %v422
    %v619 = vpack.c.b16 %v427, %v423
    %v620 = vpack.c.b16 %v428, %v424
    %v621 = vpack.c.b16 %v429, %v425
    %v622 = vpack.c.b16 %v434, %v430
    %v623 = vpack.c.b16 %v435, %v431
    %v624 = vpack.c.b16 %v436, %v432
    %v625 = vpack.c.b16 %v437, %v433
    %v626 = vpack.c.b16 %v442, %v438
    %v627 = vpack.c.b16 %v443, %v439
    %v628 = vpack.c.b16 %v444, %v440
    %v629 = vpack.c.b16 %v445, %v441
    %v630 = vpack.c.b16 %v450, %v446
    %v631 = vpack.c.b16 %v451, %v447
    %v632 = vpack.c.b16 %v452, %v448
    %v633 = vpack.c.b16 %v453, %v449
    %v634 = vpack.c.b16 %v458, %v454
    %v635 = vpack.c.b16 %v459, %v455
    %v636 = vpack.c.b16 %v460, %v456
    %v637 = vpack.c.b16 %v461, %v457
    %v638 = vpack.c.b16 %v466, %v462
    %v639 = vpack.c.b16 %v467, %v463
    %v640 = vpack.c.b16 %v468, %v464
    %v641 = vpack.c.b16 %v469, %v465
    %v642 = vpack.c.b16 %v474, %v470
    %v643 = vpack.c.b16 %v475, %v471
    %v644 = vpack.c.b16 %v476, %v472
    %v645 = vpack.c.b16 %v477, %v473
    %v646 = vpack.c.b16 %v482, %v478
    %v647 = vpack.c.b16 %v483, %v479
    %v648 = vpack.c.b16 %v484, %v480
    %v649 = vpack.c.b16 %v485, %v481
    %v650 = vpack.c.b16 %v490, %v486
    %v651 = vpack.c.b16 %v491, %v487
    %v652 = vpack.c.b16 %v492, %v488
    %v653 = vpack.c.b16 %v493, %v489
    %v654 = vpack.c.b16 %v498, %v494
    %v655 = vpack.c.b16 %v499, %v495
    %v656 = vpack.c.b16 %v500, %v496
    %v657 = vpack.c.b16 %v501, %v497
    %v658 = vpack.c.b16 %v506, %v502
    %v659 = vpack.c.b16 %v507, %v503
    %v660 = vpack.c.b16 %v508, %v504
    %v661 = vpack.c.b16 %v509, %v505
    %v662 = vpack.c.b16 %v514, %v510
    %v663 = vpack.c.b16 %v515, %v511
    %v664 = vpack.c.b16 %v516, %v512
    %v665 = vpack.c.b16 %v517, %v513
    %v666 = vpack.c.b16 %v522, %v518
    %v667 = vpack.c.b16 %v523, %v519
    %v668 = vpack.c.b16 %v524, %v520
    %v669 = vpack.c.b16 %v525, %v521
    %v670 = vpack.c.b16 %v530, %v526
    %v671 = vpack.c.b16 %v531, %v527
    %v672 = vpack.c.b16 %v532, %v528
    %v673 = vpack.c.b16 %v533, %v529
    %v674 = vpack.c.b16 %v538, %v534
    %v675 = vpack.c.b16 %v539, %v535
    %v676 = vpack.c.b16 %v540, %v536
    %v677 = vpack.c.b16 %v541, %v537
    %v678 = vpack.c.b16 %v546, %v542
    %v679 = vpack.c.b16 %v547, %v543
    %v680 = vpack.c.b16 %v548, %v544
    %v681 = vpack.c.b16 %v549, %v545
    %v682 = vpack.c.b16 %v554, %v550
    %v683 = vpack.c.b16 %v555, %v551
    %v684 = vpack.c.b16 %v556, %v552
    %v685 = vpack.c.b16 %v557, %v553
    %814 = vmatpush.bf16.msra.mxu0 %v586
    %815 = vmatpush.bf16.msra.mxu0 %v582
    %816 = vmatpush.bf16.msra.mxu0 %v578
    %817 = vmatpush.bf16.msra.mxu0 %v574
    %818 = vmatpush.bf16.msra.mxu0 %v570
    %819 = vmatpush.bf16.msra.mxu0 %v566
    %820 = vmatpush.bf16.msra.mxu0 %v562
    %821 = vmatpush.bf16.msra.mxu0 %v558
    %822 = vmatmul.bf16.gmra.mxu0 %v166
    %v823 = vpop.f32.mrf.mxu0
    %v824 = vadd.f32 %v160, %v823
    %v825 = vpop.f32.mrf.mxu0
    %826 = vdwg.mxu0
    %827 = vmatpush.bf16.msra.mxu0 %v618
    %828 = vmatpush.bf16.msra.mxu0 %v614
    %829 = vmatpush.bf16.msra.mxu0 %v610
    %830 = vmatpush.bf16.msra.mxu0 %v606
    %831 = vmatpush.bf16.msra.mxu0 %v602
    %832 = vmatpush.bf16.msra.mxu0 %v598
    %833 = vmatpush.bf16.msra.mxu0 %v594
    %834 = vmatpush.bf16.msra.mxu0 %v590
    %835 = vmatmul.bf16.gmra.mxu0 %v167
    %v836 = vpop.f32.mrf.mxu0
    %v837 = vadd.f32 %v824, %v836
    %v838 = vpop.f32.mrf.mxu0
    %839 = vdwg.mxu0
    %840 = vmatpush.bf16.msra.mxu0 %v650
    %841 = vmatpush.bf16.msra.mxu0 %v646
    %842 = vmatpush.bf16.msra.mxu0 %v642
    %843 = vmatpush.bf16.msra.mxu0 %v638
    %844 = vmatpush.bf16.msra.mxu0 %v634
    %845 = vmatpush.bf16.msra.mxu0 %v630
    %846 = vmatpush.bf16.msra.mxu0 %v626
    %847 = vmatpush.bf16.msra.mxu0 %v622
    %848 = vmatmul.bf16.gmra.mxu0 %v168
    %v849 = vpop.f32.mrf.mxu0
    %v850 = vadd.f32 %v837, %v849
    %v851 = vpop.f32.mrf.mxu0
    %852 = vdwg.mxu0
    %853 = vmatpush.bf16.msra.mxu0 %v682
    %854 = vmatpush.bf16.msra.mxu0 %v678
    %855 = vmatpush.bf16.msra.mxu0 %v674
    %856 = vmatpush.bf16.msra.mxu0 %v670
    %857 = vmatpush.bf16.msra.mxu0 %v666
    %858 = vmatpush.bf16.msra.mxu0 %v662
    %859 = vmatpush.bf16.msra.mxu0 %v658
    %860 = vmatpush.bf16.msra.mxu0 %v654
    %861 = vmatmul.bf16.gmra.mxu0 %v169
    %v862 = vpop.f32.mrf.mxu0
    %v863 = vadd.f32 %v850, %v862
    %v864 = vpop.f32.mrf.mxu0
    %865 = vdwg.mxu0
    %866 = vmatpush.bf16.msra.mxu0 %v587
    %867 = vmatpush.bf16.msra.mxu0 %v583
    %868 = vmatpush.bf16.msra.mxu0 %v579
    %869 = vmatpush.bf16.msra.mxu0 %v575
    %870 = vmatpush.bf16.msra.mxu0 %v571
    %871 = vmatpush.bf16.msra.mxu0 %v567
    %872 = vmatpush.bf16.msra.mxu0 %v563
    %873 = vmatpush.bf16.msra.mxu0 %v559
    %874 = vmatmul.bf16.gmra.mxu0 %v166
    %v875 = vpop.f32.mrf.mxu0
    %v876 = vadd.f32 %v161, %v875
    %v877 = vpop.f32.mrf.mxu0
    %878 = vdwg.mxu0
    %879 = vmatpush.bf16.msra.mxu0 %v619
    %880 = vmatpush.bf16.msra.mxu0 %v615
    %881 = vmatpush.bf16.msra.mxu0 %v611
    %882 = vmatpush.bf16.msra.mxu0 %v607
    %883 = vmatpush.bf16.msra.mxu0 %v603
    %884 = vmatpush.bf16.msra.mxu0 %v599
    %885 = vmatpush.bf16.msra.mxu0 %v595
    %886 = vmatpush.bf16.msra.mxu0 %v591
    %887 = vmatmul.bf16.gmra.mxu0 %v167
    %v888 = vpop.f32.mrf.mxu0
    %v889 = vadd.f32 %v876, %v888
    %v890 = vpop.f32.mrf.mxu0
    %891 = vdwg.mxu0
    %892 = vmatpush.bf16.msra.mxu0 %v651
    %893 = vmatpush.bf16.msra.mxu0 %v647
    %894 = vmatpush.bf16.msra.mxu0 %v643
    %895 = vmatpush.bf16.msra.mxu0 %v639
    %896 = vmatpush.bf16.msra.mxu0 %v635
    %897 = vmatpush.bf16.msra.mxu0 %v631
    %898 = vmatpush.bf16.msra.mxu0 %v627
    %899 = vmatpush.bf16.msra.mxu0 %v623
    %900 = vmatmul.bf16.gmra.mxu0 %v168
    %v901 = vpop.f32.mrf.mxu0
    %v902 = vadd.f32 %v889, %v901
    %v903 = vpop.f32.mrf.mxu0
    %904 = vdwg.mxu0
    %905 = vmatpush.bf16.msra.mxu0 %v683
    %906 = vmatpush.bf16.msra.mxu0 %v679
    %907 = vmatpush.bf16.msra.mxu0 %v675
    %908 = vmatpush.bf16.msra.mxu0 %v671
    %909 = vmatpush.bf16.msra.mxu0 %v667
    %910 = vmatpush.bf16.msra.mxu0 %v663
    %911 = vmatpush.bf16.msra.mxu0 %v659
    %912 = vmatpush.bf16.msra.mxu0 %v655
    %913 = vmatmul.bf16.gmra.mxu0 %v169
    %v914 = vpop.f32.mrf.mxu0
    %v915 = vadd.f32 %v902, %v914
    %v916 = vpop.f32.mrf.mxu0
    %917 = vdwg.mxu0
    %918 = vmatpush.bf16.msra.mxu0 %v588
    %919 = vmatpush.bf16.msra.mxu0 %v584
    %920 = vmatpush.bf16.msra.mxu0 %v580
    %921 = vmatpush.bf16.msra.mxu0 %v576
    %922 = vmatpush.bf16.msra.mxu0 %v572
    %923 = vmatpush.bf16.msra.mxu0 %v568
    %924 = vmatpush.bf16.msra.mxu0 %v564
    %925 = vmatpush.bf16.msra.mxu0 %v560
    %926 = vmatmul.bf16.gmra.mxu0 %v166
    %v927 = vpop.f32.mrf.mxu0
    %v928 = vadd.f32 %v162, %v927
    %v929 = vpop.f32.mrf.mxu0
    %930 = vdwg.mxu0
    %931 = vmatpush.bf16.msra.mxu0 %v620
    %932 = vmatpush.bf16.msra.mxu0 %v616
    %933 = vmatpush.bf16.msra.mxu0 %v612
    %934 = vmatpush.bf16.msra.mxu0 %v608
    %935 = vmatpush.bf16.msra.mxu0 %v604
    %936 = vmatpush.bf16.msra.mxu0 %v600
    %937 = vmatpush.bf16.msra.mxu0 %v596
    %938 = vmatpush.bf16.msra.mxu0 %v592
    %939 = vmatmul.bf16.gmra.mxu0 %v167
    %v940 = vpop.f32.mrf.mxu0
    %v941 = vadd.f32 %v928, %v940
    %v942 = vpop.f32.mrf.mxu0
    %943 = vdwg.mxu0
    %944 = vmatpush.bf16.msra.mxu0 %v652
    %945 = vmatpush.bf16.msra.mxu0 %v648
    %946 = vmatpush.bf16.msra.mxu0 %v644
    %947 = vmatpush.bf16.msra.mxu0 %v640
    %948 = vmatpush.bf16.msra.mxu0 %v636
    %949 = vmatpush.bf16.msra.mxu0 %v632
    %950 = vmatpush.bf16.msra.mxu0 %v628
    %951 = vmatpush.bf16.msra.mxu0 %v624
    %952 = vmatmul.bf16.gmra.mxu0 %v168
    %v953 = vpop.f32.mrf.mxu0
    %v954 = vadd.f32 %v941, %v953
    %v955 = vpop.f32.mrf.mxu0
    %956 = vdwg.mxu0
    %957 = vmatpush.bf16.msra.mxu0 %v684
    %958 = vmatpush.bf16.msra.mxu0 %v680
    %959 = vmatpush.bf16.msra.mxu0 %v676
    %960 = vmatpush.bf16.msra.mxu0 %v672
    %961 = vmatpush.bf16.msra.mxu0 %v668
    %962 = vmatpush.bf16.msra.mxu0 %v664
    %963 = vmatpush.bf16.msra.mxu0 %v660
    %964 = vmatpush.bf16.msra.mxu0 %v656
    %965 = vmatmul.bf16.gmra.mxu0 %v169
    %v966 = vpop.f32.mrf.mxu0
    %v967 = vadd.f32 %v954, %v966
    %v968 = vpop.f32.mrf.mxu0
    %969 = vdwg.mxu0
    %970 = vmatpush.bf16.msra.mxu0 %v589
    %971 = vmatpush.bf16.msra.mxu0 %v585
    %972 = vmatpush.bf16.msra.mxu0 %v581
    %973 = vmatpush.bf16.msra.mxu0 %v577
    %974 = vmatpush.bf16.msra.mxu0 %v573
    %975 = vmatpush.bf16.msra.mxu0 %v569
    %976 = vmatpush.bf16.msra.mxu0 %v565
    %977 = vmatpush.bf16.msra.mxu0 %v561
    %978 = vmatmul.bf16.gmra.mxu0 %v166
    %v979 = vpop.f32.mrf.mxu0
    %v980 = vadd.f32 %v163, %v979
    %v981 = vpop.f32.mrf.mxu0
    %982 = vdwg.mxu0
    %983 = vmatpush.bf16.msra.mxu0 %v621
    %984 = vmatpush.bf16.msra.mxu0 %v617
    %985 = vmatpush.bf16.msra.mxu0 %v613
    %986 = vmatpush.bf16.msra.mxu0 %v609
    %987 = vmatpush.bf16.msra.mxu0 %v605
    %988 = vmatpush.bf16.msra.mxu0 %v601
    %989 = vmatpush.bf16.msra.mxu0 %v597
    %990 = vmatpush.bf16.msra.mxu0 %v593
    %991 = vmatmul.bf16.gmra.mxu0 %v167
    %v992 = vpop.f32.mrf.mxu0
    %v993 = vadd.f32 %v980, %v992
    %v994 = vpop.f32.mrf.mxu0
    %995 = vdwg.mxu0
    %996 = vmatpush.bf16.msra.mxu0 %v653
    %997 = vmatpush.bf16.msra.mxu0 %v649
    %998 = vmatpush.bf16.msra.mxu0 %v645
    %999 = vmatpush.bf16.msra.mxu0 %v641
    %1000 = vmatpush.bf16.msra.mxu0 %v637
    %1001 = vmatpush.bf16.msra.mxu0 %v633
    %1002 = vmatpush.bf16.msra.mxu0 %v629
    %1003 = vmatpush.bf16.msra.mxu0 %v625
    %1004 = vmatmul.bf16.gmra.mxu0 %v168
    %v1005 = vpop.f32.mrf.mxu0
    %v1006 = vadd.f32 %v993, %v1005
    %v1007 = vpop.f32.mrf.mxu0
    %1008 = vdwg.mxu0
    %1009 = vmatpush.bf16.msra.mxu0 %v685
    %1010 = vmatpush.bf16.msra.mxu0 %v681
    %1011 = vmatpush.bf16.msra.mxu0 %v677
    %1012 = vmatpush.bf16.msra.mxu0 %v673
    %1013 = vmatpush.bf16.msra.mxu0 %v669
    %1014 = vmatpush.bf16.msra.mxu0 %v665
    %1015 = vmatpush.bf16.msra.mxu0 %v661
    %1016 = vmatpush.bf16.msra.mxu0 %v657
    %1017 = vmatmul.bf16.gmra.mxu0 %v169
    %v1018 = vpop.f32.mrf.mxu0
    %v1019 = vadd.f32 %v1006, %v1018
    %v1020 = vpop.f32.mrf.mxu0
    %1021 = vdwg.mxu0
    %v1022 = vmax.f32 %v863, 0.0
    %v1023 = vmax.f32 %v915, 0.0
    %v1024 = vmax.f32 %v967, 0.0
    %v1025 = vmax.f32 %v1019, 0.0
    %v1026 = vperm.slane %v28, 1
    %v1027 = vperm.slane %v29, 1
    %v1028 = vperm.slane %v30, 1
    %v1029 = vperm.slane %v31, 1
    %v1030 = vmul.f32 %v1022, %v1026
    %v1031 = vmul.f32 %v1023, %v1027
    %v1032 = vmul.f32 %v1024, %v1028
    %v1033 = vmul.f32 %v1025, %v1029
    %v1034 = vperm.slane %v28, 2
    %v1035 = vperm.slane %v29, 2
    %v1036 = vperm.slane %v30, 2
    %v1037 = vperm.slane %v31, 2
    %v1038 = vadd.f32 %v1030, %v1034
    %v1039 = vadd.f32 %v1031, %v1035
    %v1040 = vadd.f32 %v1032, %v1036
    %v1041 = vadd.f32 %v1033, %v1037
    %v1042 = vpack.c.bf16 %v1038, %v1038
    %v1043 = vpack.c.bf16 %v1039, %v1039
    %v1044 = vpack.c.bf16 %v1040, %v1040
    %v1045 = vpack.c.bf16 %v1041, %v1041
    %v1046 = vld [vmem:[%s4] sm:$0xff]
    %v1047 = vld [vmem:[%s4 + $0x8] sm:$0xff]
    %v1048 = vld [vmem:[%s4 + $0x10] sm:$0xff]
    %v1049 = vld [vmem:[%s4 + $0x18] sm:$0xff]
    %v1050 = vld [vmem:[%s3] sm:$0xff]
    %v1051 = vld [vmem:[%s3 + $0x8] sm:$0xff]
    %v1052 = vld [vmem:[%s3 + $0x10] sm:$0xff]
    %v1053 = vld [vmem:[%s3 + $0x18] sm:$0xff]
    %v1054 = vld [vmem:[%s3 + $0x20] sm:$0xff]
    %v1055 = vld [vmem:[%s3 + $0x28] sm:$0xff]
    %v1056 = vld [vmem:[%s3 + $0x30] sm:$0xff]
    %v1057 = vld [vmem:[%s3 + $0x38] sm:$0xff]
    %v1058 = vld [vmem:[%s3 + $0x40] sm:$0xff]
    %v1059 = vld [vmem:[%s3 + $0x48] sm:$0xff]
    %v1060 = vld [vmem:[%s3 + $0x50] sm:$0xff]
    %v1061 = vld [vmem:[%s3 + $0x58] sm:$0xff]
    %v1062 = vld [vmem:[%s3 + $0x60] sm:$0xff]
    %v1063 = vld [vmem:[%s3 + $0x68] sm:$0xff]
    %v1064 = vld [vmem:[%s3 + $0x70] sm:$0xff]
    %v1065 = vld [vmem:[%s3 + $0x78] sm:$0xff]
    %v1066 = vld [vmem:[%s3 + $0x80] sm:$0xff]
    %v1067 = vld [vmem:[%s3 + $0x88] sm:$0xff]
    %v1068 = vld [vmem:[%s3 + $0x90] sm:$0xff]
    %v1069 = vld [vmem:[%s3 + $0x98] sm:$0xff]
    %v1070 = vld [vmem:[%s3 + $0xa0] sm:$0xff]
    %v1071 = vld [vmem:[%s3 + $0xa8] sm:$0xff]
    %v1072 = vld [vmem:[%s3 + $0xb0] sm:$0xff]
    %v1073 = vld [vmem:[%s3 + $0xb8] sm:$0xff]
    %v1074 = vld [vmem:[%s3 + $0xc0] sm:$0xff]
    %v1075 = vld [vmem:[%s3 + $0xc8] sm:$0xff]
    %v1076 = vld [vmem:[%s3 + $0xd0] sm:$0xff]
    %v1077 = vld [vmem:[%s3 + $0xd8] sm:$0xff]
    %v1078 = vld [vmem:[%s3 + $0xe0] sm:$0xff]
    %v1079 = vld [vmem:[%s3 + $0xe8] sm:$0xff]
    %v1080 = vld [vmem:[%s3 + $0xf0] sm:$0xff]
    %v1081 = vld [vmem:[%s3 + $0xf8] sm:$0xff]
    %v1082 = vld [vmem:[%s3 + $0x100] sm:$0xff]
    %v1083 = vld [vmem:[%s3 + $0x108] sm:$0xff]
    %v1084 = vld [vmem:[%s3 + $0x110] sm:$0xff]
    %v1085 = vld [vmem:[%s3 + $0x118] sm:$0xff]
    %v1086 = vld [vmem:[%s3 + $0x120] sm:$0xff]
    %v1087 = vld [vmem:[%s3 + $0x128] sm:$0xff]
    %v1088 = vld [vmem:[%s3 + $0x130] sm:$0xff]
    %v1089 = vld [vmem:[%s3 + $0x138] sm:$0xff]
    %v1090 = vld [vmem:[%s3 + $0x140] sm:$0xff]
    %v1091 = vld [vmem:[%s3 + $0x148] sm:$0xff]
    %v1092 = vld [vmem:[%s3 + $0x150] sm:$0xff]
    %v1093 = vld [vmem:[%s3 + $0x158] sm:$0xff]
    %v1094 = vld [vmem:[%s3 + $0x160] sm:$0xff]
    %v1095 = vld [vmem:[%s3 + $0x168] sm:$0xff]
    %v1096 = vld [vmem:[%s3 + $0x170] sm:$0xff]
    %v1097 = vld [vmem:[%s3 + $0x178] sm:$0xff]
    %v1098 = vld [vmem:[%s3 + $0x180] sm:$0xff]
    %v1099 = vld [vmem:[%s3 + $0x188] sm:$0xff]
    %v1100 = vld [vmem:[%s3 + $0x190] sm:$0xff]
    %v1101 = vld [vmem:[%s3 + $0x198] sm:$0xff]
    %v1102 = vld [vmem:[%s3 + $0x1a0] sm:$0xff]
    %v1103 = vld [vmem:[%s3 + $0x1a8] sm:$0xff]
    %v1104 = vld [vmem:[%s3 + $0x1b0] sm:$0xff]
    %v1105 = vld [vmem:[%s3 + $0x1b8] sm:$0xff]
    %v1106 = vld [vmem:[%s3 + $0x1c0] sm:$0xff]
    %v1107 = vld [vmem:[%s3 + $0x1c8] sm:$0xff]
    %v1108 = vld [vmem:[%s3 + $0x1d0] sm:$0xff]
    %v1109 = vld [vmem:[%s3 + $0x1d8] sm:$0xff]
    %v1110 = vld [vmem:[%s3 + $0x1e0] sm:$0xff]
    %v1111 = vld [vmem:[%s3 + $0x1e8] sm:$0xff]
    %v1112 = vld [vmem:[%s3 + $0x1f0] sm:$0xff]
    %v1113 = vld [vmem:[%s3 + $0x1f8] sm:$0xff]
    %v1114 = vld [vmem:[%s3 + $0x200] sm:$0xff]
    %v1115 = vld [vmem:[%s3 + $0x208] sm:$0xff]
    %v1116 = vld [vmem:[%s3 + $0x210] sm:$0xff]
    %v1117 = vld [vmem:[%s3 + $0x218] sm:$0xff]
    %v1118 = vld [vmem:[%s3 + $0x220] sm:$0xff]
    %v1119 = vld [vmem:[%s3 + $0x228] sm:$0xff]
    %v1120 = vld [vmem:[%s3 + $0x230] sm:$0xff]
    %v1121 = vld [vmem:[%s3 + $0x238] sm:$0xff]
    %v1122 = vld [vmem:[%s3 + $0x240] sm:$0xff]
    %v1123 = vld [vmem:[%s3 + $0x248] sm:$0xff]
    %v1124 = vld [vmem:[%s3 + $0x250] sm:$0xff]
    %v1125 = vld [vmem:[%s3 + $0x258] sm:$0xff]
    %v1126 = vld [vmem:[%s3 + $0x260] sm:$0xff]
    %v1127 = vld [vmem:[%s3 + $0x268] sm:$0xff]
    %v1128 = vld [vmem:[%s3 + $0x270] sm:$0xff]
    %v1129 = vld [vmem:[%s3 + $0x278] sm:$0xff]
    %v1130 = vld [vmem:[%s3 + $0x280] sm:$0xff]
    %v1131 = vld [vmem:[%s3 + $0x288] sm:$0xff]
    %v1132 = vld [vmem:[%s3 + $0x290] sm:$0xff]
    %v1133 = vld [vmem:[%s3 + $0x298] sm:$0xff]
    %v1134 = vld [vmem:[%s3 + $0x2a0] sm:$0xff]
    %v1135 = vld [vmem:[%s3 + $0x2a8] sm:$0xff]
    %v1136 = vld [vmem:[%s3 + $0x2b0] sm:$0xff]
    %v1137 = vld [vmem:[%s3 + $0x2b8] sm:$0xff]
    %v1138 = vld [vmem:[%s3 + $0x2c0] sm:$0xff]
    %v1139 = vld [vmem:[%s3 + $0x2c8] sm:$0xff]
    %v1140 = vld [vmem:[%s3 + $0x2d0] sm:$0xff]
    %v1141 = vld [vmem:[%s3 + $0x2d8] sm:$0xff]
    %v1142 = vld [vmem:[%s3 + $0x2e0] sm:$0xff]
    %v1143 = vld [vmem:[%s3 + $0x2e8] sm:$0xff]
    %v1144 = vld [vmem:[%s3 + $0x2f0] sm:$0xff]
    %v1145 = vld [vmem:[%s3 + $0x2f8] sm:$0xff]
    %v1146 = vld [vmem:[%s3 + $0x300] sm:$0xff]
    %v1147 = vld [vmem:[%s3 + $0x308] sm:$0xff]
    %v1148 = vld [vmem:[%s3 + $0x310] sm:$0xff]
    %v1149 = vld [vmem:[%s3 + $0x318] sm:$0xff]
    %v1150 = vld [vmem:[%s3 + $0x320] sm:$0xff]
    %v1151 = vld [vmem:[%s3 + $0x328] sm:$0xff]
    %v1152 = vld [vmem:[%s3 + $0x330] sm:$0xff]
    %v1153 = vld [vmem:[%s3 + $0x338] sm:$0xff]
    %v1154 = vld [vmem:[%s3 + $0x340] sm:$0xff]
    %v1155 = vld [vmem:[%s3 + $0x348] sm:$0xff]
    %v1156 = vld [vmem:[%s3 + $0x350] sm:$0xff]
    %v1157 = vld [vmem:[%s3 + $0x358] sm:$0xff]
    %v1158 = vld [vmem:[%s3 + $0x360] sm:$0xff]
    %v1159 = vld [vmem:[%s3 + $0x368] sm:$0xff]
    %v1160 = vld [vmem:[%s3 + $0x370] sm:$0xff]
    %v1161 = vld [vmem:[%s3 + $0x378] sm:$0xff]
    %v1162 = vld [vmem:[%s3 + $0x380] sm:$0xff]
    %v1163 = vld [vmem:[%s3 + $0x388] sm:$0xff]
    %v1164 = vld [vmem:[%s3 + $0x390] sm:$0xff]
    %v1165 = vld [vmem:[%s3 + $0x398] sm:$0xff]
    %v1166 = vld [vmem:[%s3 + $0x3a0] sm:$0xff]
    %v1167 = vld [vmem:[%s3 + $0x3a8] sm:$0xff]
    %v1168 = vld [vmem:[%s3 + $0x3b0] sm:$0xff]
    %v1169 = vld [vmem:[%s3 + $0x3b8] sm:$0xff]
    %v1170 = vld [vmem:[%s3 + $0x3c0] sm:$0xff]
    %v1171 = vld [vmem:[%s3 + $0x3c8] sm:$0xff]
    %v1172 = vld [vmem:[%s3 + $0x3d0] sm:$0xff]
    %v1173 = vld [vmem:[%s3 + $0x3d8] sm:$0xff]
    %v1174 = vld [vmem:[%s3 + $0x3e0] sm:$0xff]
    %v1175 = vld [vmem:[%s3 + $0x3e8] sm:$0xff]
    %v1176 = vld [vmem:[%s3 + $0x3f0] sm:$0xff]
    %v1177 = vld [vmem:[%s3 + $0x3f8] sm:$0xff]
    %v1178 = vperm.slane %v1046, 0
    %v1179 = vperm.slane %v1047, 0
    %v1180 = vperm.slane %v1048, 0
    %v1181 = vperm.slane %v1049, 0
    %v1310 = vunpack.c.l.b16 %v1050
    %v1311 = vunpack.c.h.b16 %v1050
    %v1312 = vunpack.c.l.b16 %v1051
    %v1313 = vunpack.c.h.b16 %v1051
    %v1314 = vunpack.c.l.b16 %v1052
    %v1315 = vunpack.c.h.b16 %v1052
    %v1316 = vunpack.c.l.b16 %v1053
    %v1317 = vunpack.c.h.b16 %v1053
    %v1318 = vunpack.c.l.b16 %v1054
    %v1319 = vunpack.c.h.b16 %v1054
    %v1320 = vunpack.c.l.b16 %v1055
    %v1321 = vunpack.c.h.b16 %v1055
    %v1322 = vunpack.c.l.b16 %v1056
    %v1323 = vunpack.c.h.b16 %v1056
    %v1324 = vunpack.c.l.b16 %v1057
    %v1325 = vunpack.c.h.b16 %v1057
    %v1326 = vunpack.c.l.b16 %v1058
    %v1327 = vunpack.c.h.b16 %v1058
    %v1328 = vunpack.c.l.b16 %v1059
    %v1329 = vunpack.c.h.b16 %v1059
    %v1330 = vunpack.c.l.b16 %v1060
    %v1331 = vunpack.c.h.b16 %v1060
    %v1332 = vunpack.c.l.b16 %v1061
    %v1333 = vunpack.c.h.b16 %v1061
    %v1334 = vunpack.c.l.b16 %v1062
    %v1335 = vunpack.c.h.b16 %v1062
    %v1336 = vunpack.c.l.b16 %v1063
    %v1337 = vunpack.c.h.b16 %v1063
    %v1338 = vunpack.c.l.b16 %v1064
    %v1339 = vunpack.c.h.b16 %v1064
    %v1340 = vunpack.c.l.b16 %v1065
    %v1341 = vunpack.c.h.b16 %v1065
    %v1342 = vunpack.c.l.b16 %v1066
    %v1343 = vunpack.c.h.b16 %v1066
    %v1344 = vunpack.c.l.b16 %v1067
    %v1345 = vunpack.c.h.b16 %v1067
    %v1346 = vunpack.c.l.b16 %v1068
    %v1347 = vunpack.c.h.b16 %v1068
    %v1348 = vunpack.c.l.b16 %v1069
    %v1349 = vunpack.c.h.b16 %v1069
    %v1350 = vunpack.c.l.b16 %v1070
    %v1351 = vunpack.c.h.b16 %v1070
    %v1352 = vunpack.c.l.b16 %v1071
    %v1353 = vunpack.c.h.b16 %v1071
    %v1354 = vunpack.c.l.b16 %v1072
    %v1355 = vunpack.c.h.b16 %v1072
    %v1356 = vunpack.c.l.b16 %v1073
    %v1357 = vunpack.c.h.b16 %v1073
    %v1358 = vunpack.c.l.b16 %v1074
    %v1359 = vunpack.c.h.b16 %v1074
    %v1360 = vunpack.c.l.b16 %v1075
    %v1361 = vunpack.c.h.b16 %v1075
    %v1362 = vunpack.c.l.b16 %v1076
    %v1363 = vunpack.c.h.b16 %v1076
    %v1364 = vunpack.c.l.b16 %v1077
    %v1365 = vunpack.c.h.b16 %v1077
    %v1366 = vunpack.c.l.b16 %v1078
    %v1367 = vunpack.c.h.b16 %v1078
    %v1368 = vunpack.c.l.b16 %v1079
    %v1369 = vunpack.c.h.b16 %v1079
    %v1370 = vunpack.c.l.b16 %v1080
    %v1371 = vunpack.c.h.b16 %v1080
    %v1372 = vunpack.c.l.b16 %v1081
    %v1373 = vunpack.c.h.b16 %v1081
    %v1374 = vunpack.c.l.b16 %v1082
    %v1375 = vunpack.c.h.b16 %v1082
    %v1376 = vunpack.c.l.b16 %v1083
    %v1377 = vunpack.c.h.b16 %v1083
    %v1378 = vunpack.c.l.b16 %v1084
    %v1379 = vunpack.c.h.b16 %v1084
    %v1380 = vunpack.c.l.b16 %v1085
    %v1381 = vunpack.c.h.b16 %v1085
    %v1382 = vunpack.c.l.b16 %v1086
    %v1383 = vunpack.c.h.b16 %v1086
    %v1384 = vunpack.c.l.b16 %v1087
    %v1385 = vunpack.c.h.b16 %v1087
    %v1386 = vunpack.c.l.b16 %v1088
    %v1387 = vunpack.c.h.b16 %v1088
    %v1388 = vunpack.c.l.b16 %v1089
    %v1389 = vunpack.c.h.b16 %v1089
    %v1390 = vunpack.c.l.b16 %v1090
    %v1391 = vunpack.c.h.b16 %v1090
    %v1392 = vunpack.c.l.b16 %v1091
    %v1393 = vunpack.c.h.b16 %v1091
    %v1394 = vunpack.c.l.b16 %v1092
    %v1395 = vunpack.c.h.b16 %v1092
    %v1396 = vunpack.c.l.b16 %v1093
    %v1397 = vunpack.c.h.b16 %v1093
    %v1398 = vunpack.c.l.b16 %v1094
    %v1399 = vunpack.c.h.b16 %v1094
    %v1400 = vunpack.c.l.b16 %v1095
    %v1401 = vunpack.c.h.b16 %v1095
    %v1402 = vunpack.c.l.b16 %v1096
    %v1403 = vunpack.c.h.b16 %v1096
    %v1404 = vunpack.c.l.b16 %v1097
    %v1405 = vunpack.c.h.b16 %v1097
    %v1406 = vunpack.c.l.b16 %v1098
    %v1407 = vunpack.c.h.b16 %v1098
    %v1408 = vunpack.c.l.b16 %v1099
    %v1409 = vunpack.c.h.b16 %v1099
    %v1410 = vunpack.c.l.b16 %v1100
    %v1411 = vunpack.c.h.b16 %v1100
    %v1412 = vunpack.c.l.b16 %v1101
    %v1413 = vunpack.c.h.b16 %v1101
    %v1414 = vunpack.c.l.b16 %v1102
    %v1415 = vunpack.c.h.b16 %v1102
    %v1416 = vunpack.c.l.b16 %v1103
    %v1417 = vunpack.c.h.b16 %v1103
    %v1418 = vunpack.c.l.b16 %v1104
    %v1419 = vunpack.c.h.b16 %v1104
    %v1420 = vunpack.c.l.b16 %v1105
    %v1421 = vunpack.c.h.b16 %v1105
    %v1422 = vunpack.c.l.b16 %v1106
    %v1423 = vunpack.c.h.b16 %v1106
    %v1424 = vunpack.c.l.b16 %v1107
    %v1425 = vunpack.c.h.b16 %v1107
    %v1426 = vunpack.c.l.b16 %v1108
    %v1427 = vunpack.c.h.b16 %v1108
    %v1428 = vunpack.c.l.b16 %v1109
    %v1429 = vunpack.c.h.b16 %v1109
    %v1430 = vunpack.c.l.b16 %v1110
    %v1431 = vunpack.c.h.b16 %v1110
    %v1432 = vunpack.c.l.b16 %v1111
    %v1433 = vunpack.c.h.b16 %v1111
    %v1434 = vunpack.c.l.b16 %v1112
    %v1435 = vunpack.c.h.b16 %v1112
    %v1436 = vunpack.c.l.b16 %v1113
    %v1437 = vunpack.c.h.b16 %v1113
    %v1438 = vunpack.c.l.b16 %v1114
    %v1439 = vunpack.c.h.b16 %v1114
    %v1440 = vunpack.c.l.b16 %v1115
    %v1441 = vunpack.c.h.b16 %v1115
    %v1442 = vunpack.c.l.b16 %v1116
    %v1443 = vunpack.c.h.b16 %v1116
    %v1444 = vunpack.c.l.b16 %v1117
    %v1445 = vunpack.c.h.b16 %v1117
    %v1446 = vunpack.c.l.b16 %v1118
    %v1447 = vunpack.c.h.b16 %v1118
    %v1448 = vunpack.c.l.b16 %v1119
    %v1449 = vunpack.c.h.b16 %v1119
    %v1450 = vunpack.c.l.b16 %v1120
    %v1451 = vunpack.c.h.b16 %v1120
    %v1452 = vunpack.c.l.b16 %v1121
    %v1453 = vunpack.c.h.b16 %v1121
    %v1454 = vunpack.c.l.b16 %v1122
    %v1455 = vunpack.c.h.b16 %v1122
    %v1456 = vunpack.c.l.b16 %v1123
    %v1457 = vunpack.c.h.b16 %v1123
    %v1458 = vunpack.c.l.b16 %v1124
    %v1459 = vunpack.c.h.b16 %v1124
    %v1460 = vunpack.c.l.b16 %v1125
    %v1461 = vunpack.c.h.b16 %v1125
    %v1462 = vunpack.c.l.b16 %v1126
    %v1463 = vunpack.c.h.b16 %v1126
    %v1464 = vunpack.c.l.b16 %v1127
    %v1465 = vunpack.c.h.b16 %v1127
    %v1466 = vunpack.c.l.b16 %v1128
    %v1467 = vunpack.c.h.b16 %v1128
    %v1468 = vunpack.c.l.b16 %v1129
    %v1469 = vunpack.c.h.b16 %v1129
    %v1470 = vunpack.c.l.b16 %v1130
    %v1471 = vunpack.c.h.b16 %v1130
    %v1472 = vunpack.c.l.b16 %v1131
    %v1473 = vunpack.c.h.b16 %v1131
    %v1474 = vunpack.c.l.b16 %v1132
    %v1475 = vunpack.c.h.b16 %v1132
    %v1476 = vunpack.c.l.b16 %v1133
    %v1477 = vunpack.c.h.b16 %v1133
    %v1478 = vunpack.c.l.b16 %v1134
    %v1479 = vunpack.c.h.b16 %v1134
    %v1480 = vunpack.c.l.b16 %v1135
    %v1481 = vunpack.c.h.b16 %v1135
    %v1482 = vunpack.c.l.b16 %v1136
    %v1483 = vunpack.c.h.b16 %v1136
    %v1484 = vunpack.c.l.b16 %v1137
    %v1485 = vunpack.c.h.b16 %v1137
    %v1486 = vunpack.c.l.b16 %v1138
    %v1487 = vunpack.c.h.b16 %v1138
    %v1488 = vunpack.c.l.b16 %v1139
    %v1489 = vunpack.c.h.b16 %v1139
    %v1490 = vunpack.c.l.b16 %v1140
    %v1491 = vunpack.c.h.b16 %v1140
    %v1492 = vunpack.c.l.b16 %v1141
    %v1493 = vunpack.c.h.b16 %v1141
    %v1494 = vunpack.c.l.b16 %v1142
    %v1495 = vunpack.c.h.b16 %v1142
    %v1496 = vunpack.c.l.b16 %v1143
    %v1497 = vunpack.c.h.b16 %v1143
    %v1498 = vunpack.c.l.b16 %v1144
    %v1499 = vunpack.c.h.b16 %v1144
    %v1500 = vunpack.c.l.b16 %v1145
    %v1501 = vunpack.c.h.b16 %v1145
    %v1502 = vunpack.c.l.b16 %v1146
    %v1503 = vunpack.c.h.b16 %v1146
    %v1504 = vunpack.c.l.b16 %v1147
    %v1505 = vunpack.c.h.b16 %v1147
    %v1506 = vunpack.c.l.b16 %v1148
    %v1507 = vunpack.c.h.b16 %v1148
    %v1508 = vunpack.c.l.b16 %v1149
    %v1509 = vunpack.c.h.b16 %v1149
    %v1510 = vunpack.c.l.b16 %v1150
    %v1511 = vunpack.c.h.b16 %v1150
    %v1512 = vunpack.c.l.b16 %v1151
    %v1513 = vunpack.c.h.b16 %v1151
    %v1514 = vunpack.c.l.b16 %v1152
    %v1515 = vunpack.c.h.b16 %v1152
    %v1516 = vunpack.c.l.b16 %v1153
    %v1517 = vunpack.c.h.b16 %v1153
    %v1518 = vunpack.c.l.b16 %v1154
    %v1519 = vunpack.c.h.b16 %v1154
    %v1520 = vunpack.c.l.b16 %v1155
    %v1521 = vunpack.c.h.b16 %v1155
    %v1522 = vunpack.c.l.b16 %v1156
    %v1523 = vunpack.c.h.b16 %v1156
    %v1524 = vunpack.c.l.b16 %v1157
    %v1525 = vunpack.c.h.b16 %v1157
    %v1526 = vunpack.c.l.b16 %v1158
    %v1527 = vunpack.c.h.b16 %v1158
    %v1528 = vunpack.c.l.b16 %v1159
    %v1529 = vunpack.c.h.b16 %v1159
    %v1530 = vunpack.c.l.b16 %v1160
    %v1531 = vunpack.c.h.b16 %v1160
    %v1532 = vunpack.c.l.b16 %v1161
    %v1533 = vunpack.c.h.b16 %v1161
    %v1534 = vunpack.c.l.b16 %v1162
    %v1535 = vunpack.c.h.b16 %v1162
    %v1536 = vunpack.c.l.b16 %v1163
    %v1537 = vunpack.c.h.b16 %v1163
    %v1538 = vunpack.c.l.b16 %v1164
    %v1539 = vunpack.c.h.b16 %v1164
    %v1540 = vunpack.c.l.b16 %v1165
    %v1541 = vunpack.c.h.b16 %v1165
    %v1542 = vunpack.c.l.b16 %v1166
    %v1543 = vunpack.c.h.b16 %v1166
    %v1544 = vunpack.c.l.b16 %v1167
    %v1545 = vunpack.c.h.b16 %v1167
    %v1546 = vunpack.c.l.b16 %v1168
    %v1547 = vunpack.c.h.b16 %v1168
    %v1548 = vunpack.c.l.b16 %v1169
    %v1549 = vunpack.c.h.b16 %v1169
    %v1550 = vunpack.c.l.b16 %v1170
    %v1551 = vunpack.c.h.b16 %v1170
    %v1552 = vunpack.c.l.b16 %v1171
    %v1553 = vunpack.c.h.b16 %v1171
    %v1554 = vunpack.c.l.b16 %v1172
    %v1555 = vunpack.c.h.b16 %v1172
    %v1556 = vunpack.c.l.b16 %v1173
    %v1557 = vunpack.c.h.b16 %v1173
    %v1558 = vunpack.c.l.b16 %v1174
    %v1559 = vunpack.c.h.b16 %v1174
    %v1560 = vunpack.c.l.b16 %v1175
    %v1561 = vunpack.c.h.b16 %v1175
    %v1562 = vunpack.c.l.b16 %v1176
    %v1563 = vunpack.c.h.b16 %v1176
    %v1564 = vunpack.c.l.b16 %v1177
    %v1565 = vunpack.c.h.b16 %v1177
    %v1566 = vpack.c.b16 %v1314, %v1310
    %v1567 = vpack.c.b16 %v1315, %v1311
    %v1568 = vpack.c.b16 %v1316, %v1312
    %v1569 = vpack.c.b16 %v1317, %v1313
    %v1570 = vpack.c.b16 %v1322, %v1318
    %v1571 = vpack.c.b16 %v1323, %v1319
    %v1572 = vpack.c.b16 %v1324, %v1320
    %v1573 = vpack.c.b16 %v1325, %v1321
    %v1574 = vpack.c.b16 %v1330, %v1326
    %v1575 = vpack.c.b16 %v1331, %v1327
    %v1576 = vpack.c.b16 %v1332, %v1328
    %v1577 = vpack.c.b16 %v1333, %v1329
    %v1578 = vpack.c.b16 %v1338, %v1334
    %v1579 = vpack.c.b16 %v1339, %v1335
    %v1580 = vpack.c.b16 %v1340, %v1336
    %v1581 = vpack.c.b16 %v1341, %v1337
    %v1582 = vpack.c.b16 %v1346, %v1342
    %v1583 = vpack.c.b16 %v1347, %v1343
    %v1584 = vpack.c.b16 %v1348, %v1344
    %v1585 = vpack.c.b16 %v1349, %v1345
    %v1586 = vpack.c.b16 %v1354, %v1350
    %v1587 = vpack.c.b16 %v1355, %v1351
    %v1588 = vpack.c.b16 %v1356, %v1352
    %v1589 = vpack.c.b16 %v1357, %v1353
    %v1590 = vpack.c.b16 %v1362, %v1358
    %v1591 = vpack.c.b16 %v1363, %v1359
    %v1592 = vpack.c.b16 %v1364, %v1360
    %v1593 = vpack.c.b16 %v1365, %v1361
    %v1594 = vpack.c.b16 %v1370, %v1366
    %v1595 = vpack.c.b16 %v1371, %v1367
    %v1596 = vpack.c.b16 %v1372, %v1368
    %v1597 = vpack.c.b16 %v1373, %v1369
    %v1598 = vpack.c.b16 %v1378, %v1374
    %v1599 = vpack.c.b16 %v1379, %v1375
    %v1600 = vpack.c.b16 %v1380, %v1376
    %v1601 = vpack.c.b16 %v1381, %v1377
    %v1602 = vpack.c.b16 %v1386, %v1382
    %v1603 = vpack.c.b16 %v1387, %v1383
    %v1604 = vpack.c.b16 %v1388, %v1384
    %v1605 = vpack.c.b16 %v1389, %v1385
    %v1606 = vpack.c.b16 %v1394, %v1390
    %v1607 = vpack.c.b16 %v1395, %v1391
    %v1608 = vpack.c.b16 %v1396, %v1392
    %v1609 = vpack.c.b16 %v1397, %v1393
    %v1610 = vpack.c.b16 %v1402, %v1398
    %v1611 = vpack.c.b16 %v1403, %v1399
    %v1612 = vpack.c.b16 %v1404, %v1400
    %v1613 = vpack.c.b16 %v1405, %v1401
    %v1614 = vpack.c.b16 %v1410, %v1406
    %v1615 = vpack.c.b16 %v1411, %v1407
    %v1616 = vpack.c.b16 %v1412, %v1408
    %v1617 = vpack.c.b16 %v1413, %v1409
    %v1618 = vpack.c.b16 %v1418, %v1414
    %v1619 = vpack.c.b16 %v1419, %v1415
    %v1620 = vpack.c.b16 %v1420, %v1416
    %v1621 = vpack.c.b16 %v1421, %v1417
    %v1622 = vpack.c.b16 %v1426, %v1422
    %v1623 = vpack.c.b16 %v1427, %v1423
    %v1624 = vpack.c.b16 %v1428, %v1424
    %v1625 = vpack.c.b16 %v1429, %v1425
    %v1626 = vpack.c.b16 %v1434, %v1430
    %v1627 = vpack.c.b16 %v1435, %v1431
    %v1628 = vpack.c.b16 %v1436, %v1432
    %v1629 = vpack.c.b16 %v1437, %v1433
    %v1630 = vpack.c.b16 %v1442, %v1438
    %v1631 = vpack.c.b16 %v1443, %v1439
    %v1632 = vpack.c.b16 %v1444, %v1440
    %v1633 = vpack.c.b16 %v1445, %v1441
    %v1634 = vpack.c.b16 %v1450, %v1446
    %v1635 = vpack.c.b16 %v1451, %v1447
    %v1636 = vpack.c.b16 %v1452, %v1448
    %v1637 = vpack.c.b16 %v1453, %v1449
    %v1638 = vpack.c.b16 %v1458, %v1454
    %v1639 = vpack.c.b16 %v1459, %v1455
    %v1640 = vpack.c.b16 %v1460, %v1456
    %v1641 = vpack.c.b16 %v1461, %v1457
    %v1642 = vpack.c.b16 %v1466, %v1462
    %v1643 = vpack.c.b16 %v1467, %v1463
    %v1644 = vpack.c.b16 %v1468, %v1464
    %v1645 = vpack.c.b16 %v1469, %v1465
    %v1646 = vpack.c.b16 %v1474, %v1470
    %v1647 = vpack.c.b16 %v1475, %v1471
    %v1648 = vpack.c.b16 %v1476, %v1472
    %v1649 = vpack.c.b16 %v1477, %v1473
    %v1650 = vpack.c.b16 %v1482, %v1478
    %v1651 = vpack.c.b16 %v1483, %v1479
    %v1652 = vpack.c.b16 %v1484, %v1480
    %v1653 = vpack.c.b16 %v1485, %v1481
    %v1654 = vpack.c.b16 %v1490, %v1486
    %v1655 = vpack.c.b16 %v1491, %v1487
    %v1656 = vpack.c.b16 %v1492, %v1488
    %v1657 = vpack.c.b16 %v1493, %v1489
    %v1658 = vpack.c.b16 %v1498, %v1494
    %v1659 = vpack.c.b16 %v1499, %v1495
    %v1660 = vpack.c.b16 %v1500, %v1496
    %v1661 = vpack.c.b16 %v1501, %v1497
    %v1662 = vpack.c.b16 %v1506, %v1502
    %v1663 = vpack.c.b16 %v1507, %v1503
    %v1664 = vpack.c.b16 %v1508, %v1504
    %v1665 = vpack.c.b16 %v1509, %v1505
    %v1666 = vpack.c.b16 %v1514, %v1510
    %v1667 = vpack.c.b16 %v1515, %v1511
    %v1668 = vpack.c.b16 %v1516, %v1512
    %v1669 = vpack.c.b16 %v1517, %v1513
    %v1670 = vpack.c.b16 %v1522, %v1518
    %v1671 = vpack.c.b16 %v1523, %v1519
    %v1672 = vpack.c.b16 %v1524, %v1520
    %v1673 = vpack.c.b16 %v1525, %v1521
    %v1674 = vpack.c.b16 %v1530, %v1526
    %v1675 = vpack.c.b16 %v1531, %v1527
    %v1676 = vpack.c.b16 %v1532, %v1528
    %v1677 = vpack.c.b16 %v1533, %v1529
    %v1678 = vpack.c.b16 %v1538, %v1534
    %v1679 = vpack.c.b16 %v1539, %v1535
    %v1680 = vpack.c.b16 %v1540, %v1536
    %v1681 = vpack.c.b16 %v1541, %v1537
    %v1682 = vpack.c.b16 %v1546, %v1542
    %v1683 = vpack.c.b16 %v1547, %v1543
    %v1684 = vpack.c.b16 %v1548, %v1544
    %v1685 = vpack.c.b16 %v1549, %v1545
    %v1686 = vpack.c.b16 %v1554, %v1550
    %v1687 = vpack.c.b16 %v1555, %v1551
    %v1688 = vpack.c.b16 %v1556, %v1552
    %v1689 = vpack.c.b16 %v1557, %v1553
    %v1690 = vpack.c.b16 %v1562, %v1558
    %v1691 = vpack.c.b16 %v1563, %v1559
    %v1692 = vpack.c.b16 %v1564, %v1560
    %v1693 = vpack.c.b16 %v1565, %v1561
    %1822 = vmatpush.bf16.msra.mxu0 %v1594
    %1823 = vmatpush.bf16.msra.mxu0 %v1590
    %1824 = vmatpush.bf16.msra.mxu0 %v1586
    %1825 = vmatpush.bf16.msra.mxu0 %v1582
    %1826 = vmatpush.bf16.msra.mxu0 %v1578
    %1827 = vmatpush.bf16.msra.mxu0 %v1574
    %1828 = vmatpush.bf16.msra.mxu0 %v1570
    %1829 = vmatpush.bf16.msra.mxu0 %v1566
    %1830 = vmatmul.bf16.gmra.mxu0 %v1042
    %v1831 = vpop.f32.mrf.mxu0
    %v1832 = vadd.f32 %v1178, %v1831
    %v1833 = vpop.f32.mrf.mxu0
    %1834 = vdwg.mxu0
    %1835 = vmatpush.bf16.msra.mxu0 %v1626
    %1836 = vmatpush.bf16.msra.mxu0 %v1622
    %1837 = vmatpush.bf16.msra.mxu0 %v1618
    %1838 = vmatpush.bf16.msra.mxu0 %v1614
    %1839 = vmatpush.bf16.msra.mxu0 %v1610
    %1840 = vmatpush.bf16.msra.mxu0 %v1606
    %1841 = vmatpush.bf16.msra.mxu0 %v1602
    %1842 = vmatpush.bf16.msra.mxu0 %v1598
    %1843 = vmatmul.bf16.gmra.mxu0 %v1043
    %v1844 = vpop.f32.mrf.mxu0
    %v1845 = vadd.f32 %v1832, %v1844
    %v1846 = vpop.f32.mrf.mxu0
    %1847 = vdwg.mxu0
    %1848 = vmatpush.bf16.msra.mxu0 %v1658
    %1849 = vmatpush.bf16.msra.mxu0 %v1654
    %1850 = vmatpush.bf16.msra.mxu0 %v1650
    %1851 = vmatpush.bf16.msra.mxu0 %v1646
    %1852 = vmatpush.bf16.msra.mxu0 %v1642
    %1853 = vmatpush.bf16.msra.mxu0 %v1638
    %1854 = vmatpush.bf16.msra.mxu0 %v1634
    %1855 = vmatpush.bf16.msra.mxu0 %v1630
    %1856 = vmatmul.bf16.gmra.mxu0 %v1044
    %v1857 = vpop.f32.mrf.mxu0
    %v1858 = vadd.f32 %v1845, %v1857
    %v1859 = vpop.f32.mrf.mxu0
    %1860 = vdwg.mxu0
    %1861 = vmatpush.bf16.msra.mxu0 %v1690
    %1862 = vmatpush.bf16.msra.mxu0 %v1686
    %1863 = vmatpush.bf16.msra.mxu0 %v1682
    %1864 = vmatpush.bf16.msra.mxu0 %v1678
    %1865 = vmatpush.bf16.msra.mxu0 %v1674
    %1866 = vmatpush.bf16.msra.mxu0 %v1670
    %1867 = vmatpush.bf16.msra.mxu0 %v1666
    %1868 = vmatpush.bf16.msra.mxu0 %v1662
    %1869 = vmatmul.bf16.gmra.mxu0 %v1045
    %v1870 = vpop.f32.mrf.mxu0
    %v1871 = vadd.f32 %v1858, %v1870
    %v1872 = vpop.f32.mrf.mxu0
    %1873 = vdwg.mxu0
    %1874 = vmatpush.bf16.msra.mxu0 %v1595
    %1875 = vmatpush.bf16.msra.mxu0 %v1591
    %1876 = vmatpush.bf16.msra.mxu0 %v1587
    %1877 = vmatpush.bf16.msra.mxu0 %v1583
    %1878 = vmatpush.bf16.msra.mxu0 %v1579
    %1879 = vmatpush.bf16.msra.mxu0 %v1575
    %1880 = vmatpush.bf16.msra.mxu0 %v1571
    %1881 = vmatpush.bf16.msra.mxu0 %v1567
    %1882 = vmatmul.bf16.gmra.mxu0 %v1042
    %v1883 = vpop.f32.mrf.mxu0
    %v1884 = vadd.f32 %v1179, %v1883
    %v1885 = vpop.f32.mrf.mxu0
    %1886 = vdwg.mxu0
    %1887 = vmatpush.bf16.msra.mxu0 %v1627
    %1888 = vmatpush.bf16.msra.mxu0 %v1623
    %1889 = vmatpush.bf16.msra.mxu0 %v1619
    %1890 = vmatpush.bf16.msra.mxu0 %v1615
    %1891 = vmatpush.bf16.msra.mxu0 %v1611
    %1892 = vmatpush.bf16.msra.mxu0 %v1607
    %1893 = vmatpush.bf16.msra.mxu0 %v1603
    %1894 = vmatpush.bf16.msra.mxu0 %v1599
    %1895 = vmatmul.bf16.gmra.mxu0 %v1043
    %v1896 = vpop.f32.mrf.mxu0
    %v1897 = vadd.f32 %v1884, %v1896
    %v1898 = vpop.f32.mrf.mxu0
    %1899 = vdwg.mxu0
    %1900 = vmatpush.bf16.msra.mxu0 %v1659
    %1901 = vmatpush.bf16.msra.mxu0 %v1655
    %1902 = vmatpush.bf16.msra.mxu0 %v1651
    %1903 = vmatpush.bf16.msra.mxu0 %v1647
    %1904 = vmatpush.bf16.msra.mxu0 %v1643
    %1905 = vmatpush.bf16.msra.mxu0 %v1639
    %1906 = vmatpush.bf16.msra.mxu0 %v1635
    %1907 = vmatpush.bf16.msra.mxu0 %v1631
    %1908 = vmatmul.bf16.gmra.mxu0 %v1044
    %v1909 = vpop.f32.mrf.mxu0
    %v1910 = vadd.f32 %v1897, %v1909
    %v1911 = vpop.f32.mrf.mxu0
    %1912 = vdwg.mxu0
    %1913 = vmatpush.bf16.msra.mxu0 %v1691
    %1914 = vmatpush.bf16.msra.mxu0 %v1687
    %1915 = vmatpush.bf16.msra.mxu0 %v1683
    %1916 = vmatpush.bf16.msra.mxu0 %v1679
    %1917 = vmatpush.bf16.msra.mxu0 %v1675
    %1918 = vmatpush.bf16.msra.mxu0 %v1671
    %1919 = vmatpush.bf16.msra.mxu0 %v1667
    %1920 = vmatpush.bf16.msra.mxu0 %v1663
    %1921 = vmatmul.bf16.gmra.mxu0 %v1045
    %v1922 = vpop.f32.mrf.mxu0
    %v1923 = vadd.f32 %v1910, %v1922
    %v1924 = vpop.f32.mrf.mxu0
    %1925 = vdwg.mxu0
    %1926 = vmatpush.bf16.msra.mxu0 %v1596
    %1927 = vmatpush.bf16.msra.mxu0 %v1592
    %1928 = vmatpush.bf16.msra.mxu0 %v1588
    %1929 = vmatpush.bf16.msra.mxu0 %v1584
    %1930 = vmatpush.bf16.msra.mxu0 %v1580
    %1931 = vmatpush.bf16.msra.mxu0 %v1576
    %1932 = vmatpush.bf16.msra.mxu0 %v1572
    %1933 = vmatpush.bf16.msra.mxu0 %v1568
    %1934 = vmatmul.bf16.gmra.mxu0 %v1042
    %v1935 = vpop.f32.mrf.mxu0
    %v1936 = vadd.f32 %v1180, %v1935
    %v1937 = vpop.f32.mrf.mxu0
    %1938 = vdwg.mxu0
    %1939 = vmatpush.bf16.msra.mxu0 %v1628
    %1940 = vmatpush.bf16.msra.mxu0 %v1624
    %1941 = vmatpush.bf16.msra.mxu0 %v1620
    %1942 = vmatpush.bf16.msra.mxu0 %v1616
    %1943 = vmatpush.bf16.msra.mxu0 %v1612
    %1944 = vmatpush.bf16.msra.mxu0 %v1608
    %1945 = vmatpush.bf16.msra.mxu0 %v1604
    %1946 = vmatpush.bf16.msra.mxu0 %v1600
    %1947 = vmatmul.bf16.gmra.mxu0 %v1043
    %v1948 = vpop.f32.mrf.mxu0
    %v1949 = vadd.f32 %v1936, %v1948
    %v1950 = vpop.f32.mrf.mxu0
    %1951 = vdwg.mxu0
    %1952 = vmatpush.bf16.msra.mxu0 %v1660
    %1953 = vmatpush.bf16.msra.mxu0 %v1656
    %1954 = vmatpush.bf16.msra.mxu0 %v1652
    %1955 = vmatpush.bf16.msra.mxu0 %v1648
    %1956 = vmatpush.bf16.msra.mxu0 %v1644
    %1957 = vmatpush.bf16.msra.mxu0 %v1640
    %1958 = vmatpush.bf16.msra.mxu0 %v1636
    %1959 = vmatpush.bf16.msra.mxu0 %v1632
    %1960 = vmatmul.bf16.gmra.mxu0 %v1044
    %v1961 = vpop.f32.mrf.mxu0
    %v1962 = vadd.f32 %v1949, %v1961
    %v1963 = vpop.f32.mrf.mxu0
    %1964 = vdwg.mxu0
    %1965 = vmatpush.bf16.msra.mxu0 %v1692
    %1966 = vmatpush.bf16.msra.mxu0 %v1688
    %1967 = vmatpush.bf16.msra.mxu0 %v1684
    %1968 = vmatpush.bf16.msra.mxu0 %v1680
    %1969 = vmatpush.bf16.msra.mxu0 %v1676
    %1970 = vmatpush.bf16.msra.mxu0 %v1672
    %1971 = vmatpush.bf16.msra.mxu0 %v1668
    %1972 = vmatpush.bf16.msra.mxu0 %v1664
    %1973 = vmatmul.bf16.gmra.mxu0 %v1045
    %v1974 = vpop.f32.mrf.mxu0
    %v1975 = vadd.f32 %v1962, %v1974
    %v1976 = vpop.f32.mrf.mxu0
    %1977 = vdwg.mxu0
    %1978 = vmatpush.bf16.msra.mxu0 %v1597
    %1979 = vmatpush.bf16.msra.mxu0 %v1593
    %1980 = vmatpush.bf16.msra.mxu0 %v1589
    %1981 = vmatpush.bf16.msra.mxu0 %v1585
    %1982 = vmatpush.bf16.msra.mxu0 %v1581
    %1983 = vmatpush.bf16.msra.mxu0 %v1577
    %1984 = vmatpush.bf16.msra.mxu0 %v1573
    %1985 = vmatpush.bf16.msra.mxu0 %v1569
    %1986 = vmatmul.bf16.gmra.mxu0 %v1042
    %v1987 = vpop.f32.mrf.mxu0
    %v1988 = vadd.f32 %v1181, %v1987
    %v1989 = vpop.f32.mrf.mxu0
    %1990 = vdwg.mxu0
    %1991 = vmatpush.bf16.msra.mxu0 %v1629
    %1992 = vmatpush.bf16.msra.mxu0 %v1625
    %1993 = vmatpush.bf16.msra.mxu0 %v1621
    %1994 = vmatpush.bf16.msra.mxu0 %v1617
    %1995 = vmatpush.bf16.msra.mxu0 %v1613
    %1996 = vmatpush.bf16.msra.mxu0 %v1609
    %1997 = vmatpush.bf16.msra.mxu0 %v1605
    %1998 = vmatpush.bf16.msra.mxu0 %v1601
    %1999 = vmatmul.bf16.gmra.mxu0 %v1043
    %v2000 = vpop.f32.mrf.mxu0
    %v2001 = vadd.f32 %v1988, %v2000
    %v2002 = vpop.f32.mrf.mxu0
    %2003 = vdwg.mxu0
    %2004 = vmatpush.bf16.msra.mxu0 %v1661
    %2005 = vmatpush.bf16.msra.mxu0 %v1657
    %2006 = vmatpush.bf16.msra.mxu0 %v1653
    %2007 = vmatpush.bf16.msra.mxu0 %v1649
    %2008 = vmatpush.bf16.msra.mxu0 %v1645
    %2009 = vmatpush.bf16.msra.mxu0 %v1641
    %2010 = vmatpush.bf16.msra.mxu0 %v1637
    %2011 = vmatpush.bf16.msra.mxu0 %v1633
    %2012 = vmatmul.bf16.gmra.mxu0 %v1044
    %v2013 = vpop.f32.mrf.mxu0
    %v2014 = vadd.f32 %v2001, %v2013
    %v2015 = vpop.f32.mrf.mxu0
    %2016 = vdwg.mxu0
    %2017 = vmatpush.bf16.msra.mxu0 %v1693
    %2018 = vmatpush.bf16.msra.mxu0 %v1689
    %2019 = vmatpush.bf16.msra.mxu0 %v1685
    %2020 = vmatpush.bf16.msra.mxu0 %v1681
    %2021 = vmatpush.bf16.msra.mxu0 %v1677
    %2022 = vmatpush.bf16.msra.mxu0 %v1673
    %2023 = vmatpush.bf16.msra.mxu0 %v1669
    %2024 = vmatpush.bf16.msra.mxu0 %v1665
    %2025 = vmatmul.bf16.gmra.mxu0 %v1045
    %v2026 = vpop.f32.mrf.mxu0
    %v2027 = vadd.f32 %v2014, %v2026
    %v2028 = vpop.f32.mrf.mxu0
    %2029 = vdwg.mxu0
    %v2030 = vmax.f32 %v1871, 0.0
    %v2031 = vmax.f32 %v1923, 0.0
    %v2032 = vmax.f32 %v1975, 0.0
    %v2033 = vmax.f32 %v2027, 0.0
    %v2034 = vperm.slane %v1046, 1
    %v2035 = vperm.slane %v1047, 1
    %v2036 = vperm.slane %v1048, 1
    %v2037 = vperm.slane %v1049, 1
    %v2038 = vmul.f32 %v2030, %v2034
    %v2039 = vmul.f32 %v2031, %v2035
    %v2040 = vmul.f32 %v2032, %v2036
    %v2041 = vmul.f32 %v2033, %v2037
    %v2042 = vperm.slane %v1046, 2
    %v2043 = vperm.slane %v1047, 2
    %v2044 = vperm.slane %v1048, 2
    %v2045 = vperm.slane %v1049, 2
    %v2046 = vadd.f32 %v2038, %v2042
    %v2047 = vadd.f32 %v2039, %v2043
    %v2048 = vadd.f32 %v2040, %v2044
    %v2049 = vadd.f32 %v2041, %v2045
    %v2050 = vpack.c.bf16 %v2046, %v2046
    %v2051 = vpack.c.bf16 %v2047, %v2047
    %v2052 = vpack.c.bf16 %v2048, %v2048
    %v2053 = vpack.c.bf16 %v2049, %v2049
    %v2054 = vld [vmem:[%s5] sm:$0xf]
    %v2055 = vld [vmem:[%s5 + $0x4] sm:$0xf]
    %v2056 = vld [vmem:[%s5 + $0x8] sm:$0xf]
    %v2057 = vld [vmem:[%s5 + $0xc] sm:$0xf]
    %v2058 = vld [vmem:[%s5 + $0x10] sm:$0xf]
    %v2059 = vld [vmem:[%s5 + $0x14] sm:$0xf]
    %v2060 = vld [vmem:[%s5 + $0x18] sm:$0xf]
    %v2061 = vld [vmem:[%s5 + $0x1c] sm:$0xf]
    %v2062 = vld [vmem:[%s5 + $0x20] sm:$0xf]
    %v2063 = vld [vmem:[%s5 + $0x24] sm:$0xf]
    %v2064 = vld [vmem:[%s5 + $0x28] sm:$0xf]
    %v2065 = vld [vmem:[%s5 + $0x2c] sm:$0xf]
    %v2066 = vld [vmem:[%s5 + $0x30] sm:$0xf]
    %v2067 = vld [vmem:[%s5 + $0x34] sm:$0xf]
    %v2068 = vld [vmem:[%s5 + $0x38] sm:$0xf]
    %v2069 = vld [vmem:[%s5 + $0x3c] sm:$0xf]
    %v2070 = vld [vmem:[%s5 + $0x40] sm:$0xf]
    %v2071 = vld [vmem:[%s5 + $0x44] sm:$0xf]
    %v2072 = vld [vmem:[%s5 + $0x48] sm:$0xf]
    %v2073 = vld [vmem:[%s5 + $0x4c] sm:$0xf]
    %v2074 = vld [vmem:[%s5 + $0x50] sm:$0xf]
    %v2075 = vld [vmem:[%s5 + $0x54] sm:$0xf]
    %v2076 = vld [vmem:[%s5 + $0x58] sm:$0xf]
    %v2077 = vld [vmem:[%s5 + $0x5c] sm:$0xf]
    %v2078 = vld [vmem:[%s5 + $0x60] sm:$0xf]
    %v2079 = vld [vmem:[%s5 + $0x64] sm:$0xf]
    %v2080 = vld [vmem:[%s5 + $0x68] sm:$0xf]
    %v2081 = vld [vmem:[%s5 + $0x6c] sm:$0xf]
    %v2082 = vld [vmem:[%s5 + $0x70] sm:$0xf]
    %v2083 = vld [vmem:[%s5 + $0x74] sm:$0xf]
    %v2084 = vld [vmem:[%s5 + $0x78] sm:$0xf]
    %v2085 = vld [vmem:[%s5 + $0x7c] sm:$0xf]
    %v2086 = vld [vmem:[%s5 + $0x80] sm:$0xf]
    %v2087 = vld [vmem:[%s5 + $0x84] sm:$0xf]
    %v2088 = vld [vmem:[%s5 + $0x88] sm:$0xf]
    %v2089 = vld [vmem:[%s5 + $0x8c] sm:$0xf]
    %v2090 = vld [vmem:[%s5 + $0x90] sm:$0xf]
    %v2091 = vld [vmem:[%s5 + $0x94] sm:$0xf]
    %v2092 = vld [vmem:[%s5 + $0x98] sm:$0xf]
    %v2093 = vld [vmem:[%s5 + $0x9c] sm:$0xf]
    %v2094 = vld [vmem:[%s5 + $0xa0] sm:$0xf]
    %v2095 = vld [vmem:[%s5 + $0xa4] sm:$0xf]
    %v2096 = vld [vmem:[%s5 + $0xa8] sm:$0xf]
    %v2097 = vld [vmem:[%s5 + $0xac] sm:$0xf]
    %v2098 = vld [vmem:[%s5 + $0xb0] sm:$0xf]
    %v2099 = vld [vmem:[%s5 + $0xb4] sm:$0xf]
    %v2100 = vld [vmem:[%s5 + $0xb8] sm:$0xf]
    %v2101 = vld [vmem:[%s5 + $0xbc] sm:$0xf]
    %v2102 = vld [vmem:[%s5 + $0xc0] sm:$0xf]
    %v2103 = vld [vmem:[%s5 + $0xc4] sm:$0xf]
    %v2104 = vld [vmem:[%s5 + $0xc8] sm:$0xf]
    %v2105 = vld [vmem:[%s5 + $0xcc] sm:$0xf]
    %v2106 = vld [vmem:[%s5 + $0xd0] sm:$0xf]
    %v2107 = vld [vmem:[%s5 + $0xd4] sm:$0xf]
    %v2108 = vld [vmem:[%s5 + $0xd8] sm:$0xf]
    %v2109 = vld [vmem:[%s5 + $0xdc] sm:$0xf]
    %v2110 = vld [vmem:[%s5 + $0xe0] sm:$0xf]
    %v2111 = vld [vmem:[%s5 + $0xe4] sm:$0xf]
    %v2112 = vld [vmem:[%s5 + $0xe8] sm:$0xf]
    %v2113 = vld [vmem:[%s5 + $0xec] sm:$0xf]
    %v2114 = vld [vmem:[%s5 + $0xf0] sm:$0xf]
    %v2115 = vld [vmem:[%s5 + $0xf4] sm:$0xf]
    %v2116 = vld [vmem:[%s5 + $0xf8] sm:$0xf]
    %v2117 = vld [vmem:[%s5 + $0xfc] sm:$0xf]
    %v2118 = vld [vmem:[%s6] sm:$0x1]
    %v2119 = vperm.slane %v2118, 0
    %v2184 = vunpack.c.l.b16 %v2054
    %v2185 = vunpack.c.l.b16 %v2055
    %v2186 = vunpack.c.l.b16 %v2056
    %v2187 = vunpack.c.l.b16 %v2057
    %v2188 = vunpack.c.l.b16 %v2058
    %v2189 = vunpack.c.l.b16 %v2059
    %v2190 = vunpack.c.l.b16 %v2060
    %v2191 = vunpack.c.l.b16 %v2061
    %v2192 = vunpack.c.l.b16 %v2062
    %v2193 = vunpack.c.l.b16 %v2063
    %v2194 = vunpack.c.l.b16 %v2064
    %v2195 = vunpack.c.l.b16 %v2065
    %v2196 = vunpack.c.l.b16 %v2066
    %v2197 = vunpack.c.l.b16 %v2067
    %v2198 = vunpack.c.l.b16 %v2068
    %v2199 = vunpack.c.l.b16 %v2069
    %v2200 = vunpack.c.l.b16 %v2070
    %v2201 = vunpack.c.l.b16 %v2071
    %v2202 = vunpack.c.l.b16 %v2072
    %v2203 = vunpack.c.l.b16 %v2073
    %v2204 = vunpack.c.l.b16 %v2074
    %v2205 = vunpack.c.l.b16 %v2075
    %v2206 = vunpack.c.l.b16 %v2076
    %v2207 = vunpack.c.l.b16 %v2077
    %v2208 = vunpack.c.l.b16 %v2078
    %v2209 = vunpack.c.l.b16 %v2079
    %v2210 = vunpack.c.l.b16 %v2080
    %v2211 = vunpack.c.l.b16 %v2081
    %v2212 = vunpack.c.l.b16 %v2082
    %v2213 = vunpack.c.l.b16 %v2083
    %v2214 = vunpack.c.l.b16 %v2084
    %v2215 = vunpack.c.l.b16 %v2085
    %v2216 = vunpack.c.l.b16 %v2086
    %v2217 = vunpack.c.l.b16 %v2087
    %v2218 = vunpack.c.l.b16 %v2088
    %v2219 = vunpack.c.l.b16 %v2089
    %v2220 = vunpack.c.l.b16 %v2090
    %v2221 = vunpack.c.l.b16 %v2091
    %v2222 = vunpack.c.l.b16 %v2092
    %v2223 = vunpack.c.l.b16 %v2093
    %v2224 = vunpack.c.l.b16 %v2094
    %v2225 = vunpack.c.l.b16 %v2095
    %v2226 = vunpack.c.l.b16 %v2096
    %v2227 = vunpack.c.l.b16 %v2097
    %v2228 = vunpack.c.l.b16 %v2098
    %v2229 = vunpack.c.l.b16 %v2099
    %v2230 = vunpack.c.l.b16 %v2100
    %v2231 = vunpack.c.l.b16 %v2101
    %v2232 = vunpack.c.l.b16 %v2102
    %v2233 = vunpack.c.l.b16 %v2103
    %v2234 = vunpack.c.l.b16 %v2104
    %v2235 = vunpack.c.l.b16 %v2105
    %v2236 = vunpack.c.l.b16 %v2106
    %v2237 = vunpack.c.l.b16 %v2107
    %v2238 = vunpack.c.l.b16 %v2108
    %v2239 = vunpack.c.l.b16 %v2109
    %v2240 = vunpack.c.l.b16 %v2110
    %v2241 = vunpack.c.l.b16 %v2111
    %v2242 = vunpack.c.l.b16 %v2112
    %v2243 = vunpack.c.l.b16 %v2113
    %v2244 = vunpack.c.l.b16 %v2114
    %v2245 = vunpack.c.l.b16 %v2115
    %v2246 = vunpack.c.l.b16 %v2116
    %v2247 = vunpack.c.l.b16 %v2117
    %v2248 = vpack.c.b16 %v2185, %v2184
    %v2249 = vpack.c.b16 %v2187, %v2186
    %v2250 = vpack.c.b16 %v2189, %v2188
    %v2251 = vpack.c.b16 %v2191, %v2190
    %v2252 = vpack.c.b16 %v2193, %v2192
    %v2253 = vpack.c.b16 %v2195, %v2194
    %v2254 = vpack.c.b16 %v2197, %v2196
    %v2255 = vpack.c.b16 %v2199, %v2198
    %v2256 = vpack.c.b16 %v2201, %v2200
    %v2257 = vpack.c.b16 %v2203, %v2202
    %v2258 = vpack.c.b16 %v2205, %v2204
    %v2259 = vpack.c.b16 %v2207, %v2206
    %v2260 = vpack.c.b16 %v2209, %v2208
    %v2261 = vpack.c.b16 %v2211, %v2210
    %v2262 = vpack.c.b16 %v2213, %v2212
    %v2263 = vpack.c.b16 %v2215, %v2214
    %v2264 = vpack.c.b16 %v2217, %v2216
    %v2265 = vpack.c.b16 %v2219, %v2218
    %v2266 = vpack.c.b16 %v2221, %v2220
    %v2267 = vpack.c.b16 %v2223, %v2222
    %v2268 = vpack.c.b16 %v2225, %v2224
    %v2269 = vpack.c.b16 %v2227, %v2226
    %v2270 = vpack.c.b16 %v2229, %v2228
    %v2271 = vpack.c.b16 %v2231, %v2230
    %v2272 = vpack.c.b16 %v2233, %v2232
    %v2273 = vpack.c.b16 %v2235, %v2234
    %v2274 = vpack.c.b16 %v2237, %v2236
    %v2275 = vpack.c.b16 %v2239, %v2238
    %v2276 = vpack.c.b16 %v2241, %v2240
    %v2277 = vpack.c.b16 %v2243, %v2242
    %v2278 = vpack.c.b16 %v2245, %v2244
    %v2279 = vpack.c.b16 %v2247, %v2246
    %2312 = vmatpush.bf16.msra.mxu0 %v2255
    %2313 = vmatpush.bf16.msra.mxu0 %v2254
    %2314 = vmatpush.bf16.msra.mxu0 %v2253
    %2315 = vmatpush.bf16.msra.mxu0 %v2252
    %2316 = vmatpush.bf16.msra.mxu0 %v2251
    %2317 = vmatpush.bf16.msra.mxu0 %v2250
    %2318 = vmatpush.bf16.msra.mxu0 %v2249
    %2319 = vmatpush.bf16.msra.mxu0 %v2248
    %2320 = vmatmul.bf16.gmra.mxu0 %v2050
    %v2321 = vpop.f32.mrf.mxu0
    %v2322 = vadd.f32 %v2119, %v2321
    %v2323 = vpop.f32.mrf.mxu0
    %2324 = vdwg.mxu0
    %2325 = vmatpush.bf16.msra.mxu0 %v2263
    %2326 = vmatpush.bf16.msra.mxu0 %v2262
    %2327 = vmatpush.bf16.msra.mxu0 %v2261
    %2328 = vmatpush.bf16.msra.mxu0 %v2260
    %2329 = vmatpush.bf16.msra.mxu0 %v2259
    %2330 = vmatpush.bf16.msra.mxu0 %v2258
    %2331 = vmatpush.bf16.msra.mxu0 %v2257
    %2332 = vmatpush.bf16.msra.mxu0 %v2256
    %2333 = vmatmul.bf16.gmra.mxu0 %v2051
    %v2334 = vpop.f32.mrf.mxu0
    %v2335 = vadd.f32 %v2322, %v2334
    %v2336 = vpop.f32.mrf.mxu0
    %2337 = vdwg.mxu0
    %2338 = vmatpush.bf16.msra.mxu0 %v2271
    %2339 = vmatpush.bf16.msra.mxu0 %v2270
    %2340 = vmatpush.bf16.msra.mxu0 %v2269
    %2341 = vmatpush.bf16.msra.mxu0 %v2268
    %2342 = vmatpush.bf16.msra.mxu0 %v2267
    %2343 = vmatpush.bf16.msra.mxu0 %v2266
    %2344 = vmatpush.bf16.msra.mxu0 %v2265
    %2345 = vmatpush.bf16.msra.mxu0 %v2264
    %2346 = vmatmul.bf16.gmra.mxu0 %v2052
    %v2347 = vpop.f32.mrf.mxu0
    %v2348 = vadd.f32 %v2335, %v2347
    %v2349 = vpop.f32.mrf.mxu0
    %2350 = vdwg.mxu0
    %2351 = vmatpush.bf16.msra.mxu0 %v2279
    %2352 = vmatpush.bf16.msra.mxu0 %v2278
    %2353 = vmatpush.bf16.msra.mxu0 %v2277
    %2354 = vmatpush.bf16.msra.mxu0 %v2276
    %2355 = vmatpush.bf16.msra.mxu0 %v2275
    %2356 = vmatpush.bf16.msra.mxu0 %v2274
    %2357 = vmatpush.bf16.msra.mxu0 %v2273
    %2358 = vmatpush.bf16.msra.mxu0 %v2272
    %2359 = vmatmul.bf16.gmra.mxu0 %v2053
    %v2360 = vpop.f32.mrf.mxu0
    %v2361 = vadd.f32 %v2348, %v2360
    %v2362 = vpop.f32.mrf.mxu0
    %2363 = vdwg.mxu0
    %v2364 = vxor.u32 %v2361, 2147483648
    %v2365 = vmul.f32 %v2364, 1.442695
    %v2366 = vpow.pop %v2365
    %v2367 = vadd.f32 %v2366, 1.0
    %v2368 = vrcp.pop %v2367
    %v2369 = vmul.f32 %v2367, %v2368
    %v2370 = vsub.f32 1.0, %v2369
    %v2371 = vmul.f32 %v2368, %v2370
    %v2372 = vadd.f32 %v2368, %v2371
    %vm2373 = vweird.f32 %v2367
    %vm2374 = vweird.f32 %v2368
    %vm2375 = vmor %vm2373, %vm2374
    %v2376 = vsel %vm2375, %v2368, %v2372
    %v2377 = vand.u32 2147483647, %v2367
    %vm2378 = vcmp.eq.f32.partialorder %v2377, 8.507059e+37
    %v2379 = vand.u32 %v2367, 2147483648
    %v2380 = vor.u32 1.1754944e-38, %v2379
    %v2381 = vsel %vm2378, %v2380, %v2376
    %v2382 = vmul.f32 1.0, %v2381
    %2383 = vst [vmem:[#allocation2] sm:$0x3] %v2382
    // Predicated region
    $region30: #{cnn_forward.7} parent=1 // pred_check
      _
    $region31: #{cnn_forward.7} parent=1 // pred_check_branch
      %2385 = sbr.rel (0) target = $region33
    $region32: #{cnn_forward.7} parent=1 // pred_region
      %2387 = vsyncadd [#allocation3], 0
      %s2389 = sshll.u32 [#allocation2], 4
      %s2390 = int_to_ptr.vmem [resolvable:$true] %s2389
      %s2391 = sshll.u32 %s7, 4
      %s2392 = int_to_ptr.hbm [resolvable:$true] %s2391
      %2394 = dma.vmem_to_hbm [thread:$0]  %s2390, 32, %s2392, [#allocation3]
    $region33: #{cnn_forward.7} parent=1 // pred_fallthru
      _
    // Predicated region
    $region34: #{cnn_forward.7} parent=1 // pred_check
      _
    $region35: #{cnn_forward.7} parent=1 // pred_check_branch
      %2396 = sbr.rel (0) target = $region37
    $region36: #{cnn_forward.7} parent=1 // pred_region
      %2398 = dma.done [#allocation3], 32
    $region37: #{cnn_forward.7} parent=1 // pred_fallthru
      _
    %2399 = vsyncpa [#allocation3], 1

// kernel: cnn_forward.6
$region0: #{cnn_forward.6}
  #allocation0 [shape = 'u32[]', space=smem, size = 0x4, offset = 0x4, fixed_abs, tag = 'smem constant byte address 0x4 - core index']
  #allocation1 [shape = 'u32[72,128]{1,0:T(1,128)}', space=vmem, size = 0x9000, scoped, tag = 'internal scratch']
  #allocation2 [shape = 'f32[2,512]{1,0:T(2,128)}', space=vmem, size = 0x1000, scoped, tag = 'scratch operand']
  %s0 = inlined_call_operand.vmem [shape: bf16[2,20480], index: 0, kind: input, shape index: {}]
  %s1 = inlined_call_operand.vmem [shape: bf16[20480,512], index: 1, kind: input, shape index: {}]
  %s2 = inlined_call_operand.vmem [shape: f32[8,512], index: 2, kind: input, shape index: {}]
  %s3 = inlined_call_operand.vmem [shape: bf16[2,512], index: 3, kind: output, shape index: {}]
  %s4 = sld [smem:[#allocation0]]
  $region53: #{cnn_forward.6} parent=0
    _
  %s6 = ssub.s32 1, %s4
  %s7 = scalar_select 0, %s6, %s4
  loop: start=0, step=1, limit=12
  $region2: #{cnn_forward.6} parent=0 // loop_pre_header
    _
  $region3: #{cnn_forward.6} parent=0 // loop_header
    %s9 = sphi 0, %s13
    %p10 = scmp.ge.s32.totalorder %s9, 12
    %s16 = sphi 0, %s28
    %s17 = sphi 0, %s24
    %s18 = sphi 0, %s16
    %s19 = sphi 0, %s17
    %s20 = sphi 0, %s18
    %s21 = sphi 0, %s19
    %s31 = sphi 0, %s33
    %s34 = sphi 0, %s31
    %s35 = sphi 0, %s34
    %s51 = sphi 0, %s35
    %s59 = sphi 0, %s61
    %s62 = sphi 0, %s59
    %s63 = sphi 0, %s62
    %s79 = sphi 0, %s63
    %s85 = sphi 0, %s87
    %s88 = sphi 0, %s85
    %s89 = sphi 0, %s88
    %s105 = sphi 0, %s89
    %s111 = sphi 0, %s113
    %s114 = sphi 0, %s111
    %s115 = sphi 0, %s114
    %s131 = sphi 0, %s115
  $region4: #{cnn_forward.6} parent=0 // loop_header_branch
    %12 = sbr.rel (%p10) target = $region8
  $region5: #{cnn_forward.6} parent=0 // loop_body
    %s14 = ssub.s32 %s9, 1
    %s15 = ssub.s32 %s9, 2
    %s22 = sadd.s32 1, %s17
    %p23 = scmp.ge.s32.totalorder %s22, 10
    %s24 = scalar_select %p23, 0, %s22
    %s25 = sadd.s32 1, %s16
    %s26 = scalar_select %p23, %s25, %s16
    %p27 = scmp.ge.s32.totalorder %s26, 1
    %s28 = scalar_select %p27, 0, %s26
    %s29 = ssub.s32 %s17, %s24
    %p30 = scmp.eq.s32.totalorder %s29, 0
    %s32 = sadd.s32 %s31, 1
    %s33 = scalar_select %p30, %s31, %s32
    %p36 = pneg %p30
    %p37 = scmp.eq.s32.totalorder %s9, 9
    %p38 = por %p36, %p37
    %p39 = scmp.ne.s32.totalorder %s31, %s34
    %p40 = scmp.eq.s32.totalorder %s9, 0
    %p41 = por %p39, %p40
    %p42 = scmp.ne.s32.totalorder %s31, %s34
    %p43 = scmp.eq.s32.totalorder %s14, 9
    %p44 = por %p42, %p43
    %p45 = scmp.ne.s32.totalorder %s34, %s35
    %p46 = scmp.eq.s32.totalorder %s14, 0
    %p47 = por %p45, %p46
    %p48 = scmp.ne.s32.totalorder %s34, %s35
    %p49 = scmp.eq.s32.totalorder %s15, 9
    %p50 = por %p48, %p49
    %p52 = scmp.ne.s32.totalorder %s35, %s51
    %p53 = scmp.eq.s32.totalorder %s15, 0
    %p54 = por %p52, %p53
    %s55 = ssub.s32 %s17, %s24
    %s56 = ssub.s32 %s16, %s28
    %s57 = sor.u32 %s55, %s56
    %p58 = scmp.eq.s32.totalorder %s57, 0
    %s60 = sadd.s32 %s59, 1
    %s61 = scalar_select %p58, %s59, %s60
    %p64 = pneg %p58
    %p65 = scmp.eq.s32.totalorder %s9, 9
    %p66 = por %p64, %p65
    %p67 = scmp.ne.s32.totalorder %s59, %s62
    %p68 = scmp.eq.s32.totalorder %s9, 0
    %p69 = por %p67, %p68
    %p70 = scmp.ne.s32.totalorder %s59, %s62
    %p71 = scmp.eq.s32.totalorder %s14, 9
    %p72 = por %p70, %p71
    %p73 = scmp.ne.s32.totalorder %s62, %s63
    %p74 = scmp.eq.s32.totalorder %s14, 0
    %p75 = por %p73, %p74
    %p76 = scmp.ne.s32.totalorder %s62, %s63
    %p77 = scmp.eq.s32.totalorder %s15, 9
    %p78 = por %p76, %p77
    %p80 = scmp.ne.s32.totalorder %s63, %s79
    %p81 = scmp.eq.s32.totalorder %s15, 0
    %p82 = por %p80, %p81
    %s83 = ssub.s32 %s16, %s28
    %p84 = scmp.eq.s32.totalorder %s83, 0
    %s86 = sadd.s32 %s85, 1
    %s87 = scalar_select %p84, %s85, %s86
    %p90 = pneg %p84
    %p91 = scmp.eq.s32.totalorder %s9, 9
    %p92 = por %p90, %p91
    %p93 = scmp.ne.s32.totalorder %s85, %s88
    %p94 = scmp.eq.s32.totalorder %s9, 0
    %p95 = por %p93, %p94
    %p96 = scmp.ne.s32.totalorder %s85, %s88
    %p97 = scmp.eq.s32.totalorder %s14, 9
    %p98 = por %p96, %p97
    %p99 = scmp.ne.s32.totalorder %s88, %s89
    %p100 = scmp.eq.s32.totalorder %s14, 0
    %p101 = por %p99, %p100
    %p102 = scmp.ne.s32.totalorder %s88, %s89
    %p103 = scmp.eq.s32.totalorder %s15, 9
    %p104 = por %p102, %p103
    %p106 = scmp.ne.s32.totalorder %s89, %s105
    %p107 = scmp.eq.s32.totalorder %s15, 0
    %p108 = por %p106, %p107
    %s109 = ssub.s32 %s16, %s28
    %p110 = scmp.eq.s32.totalorder %s109, 0
    %s112 = sadd.s32 %s111, 1
    %s113 = scalar_select %p110, %s111, %s112
    %p116 = pneg %p110
    %p117 = scmp.eq.s32.totalorder %s9, 9
    %p118 = por %p116, %p117
    %p119 = scmp.ne.s32.totalorder %s111, %s114
    %p120 = scmp.eq.s32.totalorder %s9, 0
    %p121 = por %p119, %p120
    %p122 = scmp.ne.s32.totalorder %s111, %s114
    %p123 = scmp.eq.s32.totalorder %s14, 9
    %p124 = por %p122, %p123
    %p125 = scmp.ne.s32.totalorder %s114, %s115
    %p126 = scmp.eq.s32.totalorder %s14, 0
    %p127 = por %p125, %p126
    %p128 = scmp.ne.s32.totalorder %s114, %s115
    %p129 = scmp.eq.s32.totalorder %s15, 9
    %p130 = por %p128, %p129
    %p132 = scmp.ne.s32.totalorder %s115, %s131
    %p133 = scmp.eq.s32.totalorder %s15, 0
    %p134 = por %p132, %p133
    %p135 = scmp.le.s32.totalorder 1, %s9
    %p136 = scmp.lt.s32.totalorder %s9, 11
    %p137 = pnand %p135, %p136
    %p138 = pneg %p137
    // Predicated region
    $region9: #{cnn_forward.6} parent=5 // pred_check
      _
    $region10: #{cnn_forward.6} parent=5 // pred_check_branch
      %140 = sbr.rel (%p137) target = $region12
    $region11: #{cnn_forward.6} parent=5 // pred_region
      %s141 = ssub.s32 %s9, 1
      // Predicated region
      $region13: #{cnn_forward.6} parent=11 // pred_check
        %p142 = pneg %p101
      $region14: #{cnn_forward.6} parent=11 // pred_check_branch
        %144 = sbr.rel (%p142) target = $region16
      $region15: #{cnn_forward.6} parent=11 // pred_region
        %s145 = smul.u32 4, %s18
        %p146 = scmp.lt.s32.totalorder %s145, 3
        %s147 = scalar_select %p146, %s145, 3
        %s148 = smul.addr %s147, 8
        %s149 = scalar_lea.vmem %s2, %s148
        %s150 = smul.u32 4, %s18
      $region16: #{cnn_forward.6} parent=11 // pred_fallthru
        _
    $region12: #{cnn_forward.6} parent=5 // pred_fallthru
      _
    %p151 = scmp.lt.s32.totalorder %s9, 10
    // Predicated region
    $region17: #{cnn_forward.6} parent=5 // pred_check
      %p152 = pneg %p151
    $region18: #{cnn_forward.6} parent=5 // pred_check_branch
      %154 = sbr.rel (%p152) target = $region20
    $region19: #{cnn_forward.6} parent=5 // pred_region
      // Predicated region
      $region21: #{cnn_forward.6} parent=19 // pred_check
        %p155 = pneg %p41
      $region22: #{cnn_forward.6} parent=19 // pred_check_branch
        %157 = sbr.rel (%p155) target = $region24
      $region23: #{cnn_forward.6} parent=19 // pred_region
        %s158 = smul.u32 16, %s17
        %p159 = scmp.lt.s32.totalorder %s158, 159
        %s160 = scalar_select %p159, %s158, 159
        %s161 = scalar_lea.vmem %s0, %s160
        %s162 = smul.u32 16, %s17
      $region24: #{cnn_forward.6} parent=19 // pred_fallthru
        _
      // Predicated region
      $region25: #{cnn_forward.6} parent=19 // pred_check
        %p163 = pneg %p69
      $region26: #{cnn_forward.6} parent=19 // pred_check_branch
        %165 = sbr.rel (%p163) target = $region28
      $region27: #{cnn_forward.6} parent=19 // pred_region
        %s166 = smul.u32 256, %s17
        %s167 = smul.u32 4, %s16
        %p168 = scmp.lt.s32.totalorder %s166, 2559
        %s169 = scalar_select %p168, %s166, 2559
        %p170 = scmp.lt.s32.totalorder %s167, 3
        %s171 = scalar_select %p170, %s167, 3
        %s172 = smul.addr %s169, 4
        %s173 = sadd.s32 %s171, %s172
        %s174 = smul.addr %s173, 4
        %s175 = scalar_lea.vmem %s1, %s174
        %s176 = smul.u32 256, %s17
        %s177 = smul.u32 4, %s16
      $region28: #{cnn_forward.6} parent=19 // pred_fallthru
        _
    $region20: #{cnn_forward.6} parent=5 // pred_fallthru
      _
    %p178 = scmp.le.s32.totalorder 1, %s9
    %p179 = scmp.lt.s32.totalorder %s9, 11
    %p180 = pnand %p178, %p179
    %p181 = pneg %p180
    // Predicated region
    $region29: #{cnn_forward.6} parent=5 // pred_check
      _
    $region30: #{cnn_forward.6} parent=5 // pred_check_branch
      %183 = sbr.rel (%p180) target = $region32
    $region31: #{cnn_forward.6} parent=5 // pred_region
      %s184 = ssub.s32 %s9, 1
      %s185 = smul.u32 16, %s19
      %p186 = scmp.lt.s32.totalorder %s185, 159
      %s187 = scalar_select %p186, %s185, 159
      %s188 = scalar_lea.vmem %s0, %s187
      %p189 = pneg %p47
      %p190 = pneg %p44
      %s191 = smul.u32 256, %s19
      %s192 = smul.u32 4, %s18
      %p193 = scmp.lt.s32.totalorder %s191, 2559
      %s194 = scalar_select %p193, %s191, 2559
      %p195 = scmp.lt.s32.totalorder %s192, 3
      %s196 = scalar_select %p195, %s192, 3
      %s197 = smul.addr %s194, 4
      %s198 = sadd.s32 %s196, %s197
      %s199 = smul.addr %s198, 4
      %s200 = scalar_lea.vmem %s1, %s199
      %p201 = pneg %p75
      %p202 = pneg %p72
      %s203 = smul.u32 4, %s18
      %p204 = scmp.lt.s32.totalorder %s203, 3
      %s205 = scalar_select %p204, %s203, 3
      %s206 = smul.addr %s205, 8
      %s207 = scalar_lea.vmem %s2, %s206
      %p208 = pneg %p101
      %p209 = pneg %p98
      %p210 = pneg %p127
      %p211 = pneg %p124
      %s212 = smul.u32 4, %s18
      %p213 = scmp.lt.s32.totalorder %s212, 3
      %s214 = scalar_select %p213, %s212, 3
      %s215 = scalar_lea.vmem %s3, %s214
      %s216 = smul.u32 16, %s19
      %p217 = scmp.lt.s32.totalorder %s216, 159
      %s218 = scalar_select %p217, %s216, 159
      %s219 = scalar_lea.vmem %s0, %s218
      %s220 = smul.u32 16, %s19
      %s221 = smul.u32 256, %s19
      %s222 = smul.u32 4, %s18
      %p223 = scmp.lt.s32.totalorder %s221, 2559
      %s224 = scalar_select %p223, %s221, 2559
      %p225 = scmp.lt.s32.totalorder %s222, 3
      %s226 = scalar_select %p225, %s222, 3
      %s227 = smul.addr %s224, 4
      %s228 = sadd.s32 %s226, %s227
      %s229 = smul.addr %s228, 4
      %s230 = scalar_lea.vmem %s1, %s229
      %s231 = smul.u32 256, %s19
      %s232 = smul.u32 4, %s18
      %s233 = smul.u32 4, %s18
      %p234 = scmp.lt.s32.totalorder %s233, 3
      %s235 = scalar_select %p234, %s233, 3
      %s236 = smul.addr %s235, 8
      %s237 = scalar_lea.vmem %s2, %s236
      %s238 = smul.u32 4, %s18
      %s239 = smul.u32 4, %s18
      %p240 = scmp.lt.s32.totalorder %s239, 3
      %s241 = scalar_select %p240, %s239, 3
      %s242 = scalar_lea.vmem %s3, %s241
      %s243 = smul.u32 4, %s18
      %p244 = scmp.eq.s32.totalorder %s19, 0
      // Predicated region
      $region33: #{cnn_forward.6} parent=31 // pred_check
        %p245 = pneg %p244
      $region34: #{cnn_forward.6} parent=31 // pred_check_branch
        %247 = sbr.rel (%p245) target = $region36
      $region35: #{cnn_forward.6} parent=31 // pred_region
        %248 = vst [vmem:[#allocation2] sm:$0xff] 0.0
      $region36: #{cnn_forward.6} parent=31 // pred_fallthru
        _
      %v249 = vld [vmem:[#allocation2] sm:$0xff]
      %v250 = vld [vmem:[%s219] sm:$0xff]
      %v251 = vld [vmem:[%s219 + $0x8] sm:$0xff]
      %v252 = vld [vmem:[%s230] sm:$0xff]
      %v253 = vld [vmem:[%s230 + $0x8] sm:$0xff]
      %v254 = vld [vmem:[%s230 + $0x10] sm:$0xff]
      %v255 = vld [vmem:[%s230 + $0x18] sm:$0xff]
      %v256 = vld [vmem:[%s230 + $0x20] sm:$0xff]
      %v257 = vld [vmem:[%s230 + $0x28] sm:$0xff]
      %v258 = vld [vmem:[%s230 + $0x30] sm:$0xff]
      %v259 = vld [vmem:[%s230 + $0x38] sm:$0xff]
      %v260 = vld [vmem:[%s230 + $0x40] sm:$0xff]
      %v261 = vld [vmem:[%s230 + $0x48] sm:$0xff]
      %v262 = vld [vmem:[%s230 + $0x50] sm:$0xff]
      %v263 = vld [vmem:[%s230 + $0x58] sm:$0xff]
      %v264 = vld [vmem:[%s230 + $0x60] sm:$0xff]
      %v265 = vld [vmem:[%s230 + $0x68] sm:$0xff]
      %v266 = vld [vmem:[%s230 + $0x70] sm:$0xff]
      %v267 = vld [vmem:[%s230 + $0x78] sm:$0xff]
      %v268 = vld [vmem:[%s230 + $0x80] sm:$0xff]
      %v269 = vld [vmem:[%s230 + $0x88] sm:$0xff]
      %v270 = vld [vmem:[%s230 + $0x90] sm:$0xff]
      %v271 = vld [vmem:[%s230 + $0x98] sm:$0xff]
      %v272 = vld [vmem:[%s230 + $0xa0] sm:$0xff]
      %v273 = vld [vmem:[%s230 + $0xa8] sm:$0xff]
      %v274 = vld [vmem:[%s230 + $0xb0] sm:$0xff]
      %v275 = vld [vmem:[%s230 + $0xb8] sm:$0xff]
      %v276 = vld [vmem:[%s230 + $0xc0] sm:$0xff]
      %v277 = vld [vmem:[%s230 + $0xc8] sm:$0xff]
      %v278 = vld [vmem:[%s230 + $0xd0] sm:$0xff]
      %v279 = vld [vmem:[%s230 + $0xd8] sm:$0xff]
      %v280 = vld [vmem:[%s230 + $0xe0] sm:$0xff]
      %v281 = vld [vmem:[%s230 + $0xe8] sm:$0xff]
      %v282 = vld [vmem:[%s230 + $0xf0] sm:$0xff]
      %v283 = vld [vmem:[%s230 + $0xf8] sm:$0xff]
      %v284 = vld [vmem:[%s230 + $0x100] sm:$0xff]
      %v285 = vld [vmem:[%s230 + $0x108] sm:$0xff]
      %v286 = vld [vmem:[%s230 + $0x110] sm:$0xff]
      %v287 = vld [vmem:[%s230 + $0x118] sm:$0xff]
      %v288 = vld [vmem:[%s230 + $0x120] sm:$0xff]
      %v289 = vld [vmem:[%s230 + $0x128] sm:$0xff]
      %v290 = vld [vmem:[%s230 + $0x130] sm:$0xff]
      %v291 = vld [vmem:[%s230 + $0x138] sm:$0xff]
      %v292 = vld [vmem:[%s230 + $0x140] sm:$0xff]
      %v293 = vld [vmem:[%s230 + $0x148] sm:$0xff]
      %v294 = vld [vmem:[%s230 + $0x150] sm:$0xff]
      %v295 = vld [vmem:[%s230 + $0x158] sm:$0xff]
      %v296 = vld [vmem:[%s230 + $0x160] sm:$0xff]
      %v297 = vld [vmem:[%s230 + $0x168] sm:$0xff]
      %v298 = vld [vmem:[%s230 + $0x170] sm:$0xff]
      %v299 = vld [vmem:[%s230 + $0x178] sm:$0xff]
      %v300 = vld [vmem:[%s230 + $0x180] sm:$0xff]
      %v301 = vld [vmem:[%s230 + $0x188] sm:$0xff]
      %v302 = vld [vmem:[%s230 + $0x190] sm:$0xff]
      %v303 = vld [vmem:[%s230 + $0x198] sm:$0xff]
      %v304 = vld [vmem:[%s230 + $0x1a0] sm:$0xff]
      %v305 = vld [vmem:[%s230 + $0x1a8] sm:$0xff]
      %v306 = vld [vmem:[%s230 + $0x1b0] sm:$0xff]
      %v307 = vld [vmem:[%s230 + $0x1b8] sm:$0xff]
      %v308 = vld [vmem:[%s230 + $0x1c0] sm:$0xff]
      %v309 = vld [vmem:[%s230 + $0x1c8] sm:$0xff]
      %v310 = vld [vmem:[%s230 + $0x1d0] sm:$0xff]
      %v311 = vld [vmem:[%s230 + $0x1d8] sm:$0xff]
      %v312 = vld [vmem:[%s230 + $0x1e0] sm:$0xff]
      %v313 = vld [vmem:[%s230 + $0x1e8] sm:$0xff]
      %v314 = vld [vmem:[%s230 + $0x1f0] sm:$0xff]
      %v315 = vld [vmem:[%s230 + $0x1f8] sm:$0xff]
      %v316 = vld [vmem:[%s230 + $0x200] sm:$0xff]
      %v317 = vld [vmem:[%s230 + $0x208] sm:$0xff]
      %v318 = vld [vmem:[%s230 + $0x210] sm:$0xff]
      %v319 = vld [vmem:[%s230 + $0x218] sm:$0xff]
      %v320 = vld [vmem:[%s230 + $0x220] sm:$0xff]
      %v321 = vld [vmem:[%s230 + $0x228] sm:$0xff]
      %v322 = vld [vmem:[%s230 + $0x230] sm:$0xff]
      %v323 = vld [vmem:[%s230 + $0x238] sm:$0xff]
      %v324 = vld [vmem:[%s230 + $0x240] sm:$0xff]
      %v325 = vld [vmem:[%s230 + $0x248] sm:$0xff]
      %v326 = vld [vmem:[%s230 + $0x250] sm:$0xff]
      %v327 = vld [vmem:[%s230 + $0x258] sm:$0xff]
      %v328 = vld [vmem:[%s230 + $0x260] sm:$0xff]
      %v329 = vld [vmem:[%s230 + $0x268] sm:$0xff]
      %v330 = vld [vmem:[%s230 + $0x270] sm:$0xff]
      %v331 = vld [vmem:[%s230 + $0x278] sm:$0xff]
      %v332 = vld [vmem:[%s230 + $0x280] sm:$0xff]
      %v333 = vld [vmem:[%s230 + $0x288] sm:$0xff]
      %v334 = vld [vmem:[%s230 + $0x290] sm:$0xff]
      %v335 = vld [vmem:[%s230 + $0x298] sm:$0xff]
      %v336 = vld [vmem:[%s230 + $0x2a0] sm:$0xff]
      %v337 = vld [vmem:[%s230 + $0x2a8] sm:$0xff]
      %v338 = vld [vmem:[%s230 + $0x2b0] sm:$0xff]
      %v339 = vld [vmem:[%s230 + $0x2b8] sm:$0xff]
      %v340 = vld [vmem:[%s230 + $0x2c0] sm:$0xff]
      %v341 = vld [vmem:[%s230 + $0x2c8] sm:$0xff]
      %v342 = vld [vmem:[%s230 + $0x2d0] sm:$0xff]
      %v343 = vld [vmem:[%s230 + $0x2d8] sm:$0xff]
      %v344 = vld [vmem:[%s230 + $0x2e0] sm:$0xff]
      %v345 = vld [vmem:[%s230 + $0x2e8] sm:$0xff]
      %v346 = vld [vmem:[%s230 + $0x2f0] sm:$0xff]
      %v347 = vld [vmem:[%s230 + $0x2f8] sm:$0xff]
      %v348 = vld [vmem:[%s230 + $0x300] sm:$0xff]
      %v349 = vld [vmem:[%s230 + $0x308] sm:$0xff]
      %v350 = vld [vmem:[%s230 + $0x310] sm:$0xff]
      %v351 = vld [vmem:[%s230 + $0x318] sm:$0xff]
      %v352 = vld [vmem:[%s230 + $0x320] sm:$0xff]
      %v353 = vld [vmem:[%s230 + $0x328] sm:$0xff]
      %v354 = vld [vmem:[%s230 + $0x330] sm:$0xff]
      %v355 = vld [vmem:[%s230 + $0x338] sm:$0xff]
      %v356 = vld [vmem:[%s230 + $0x340] sm:$0xff]
      %v357 = vld [vmem:[%s230 + $0x348] sm:$0xff]
      %v358 = vld [vmem:[%s230 + $0x350] sm:$0xff]
      %v359 = vld [vmem:[%s230 + $0x358] sm:$0xff]
      %v360 = vld [vmem:[%s230 + $0x360] sm:$0xff]
      %v361 = vld [vmem:[%s230 + $0x368] sm:$0xff]
      %v362 = vld [vmem:[%s230 + $0x370] sm:$0xff]
      %v363 = vld [vmem:[%s230 + $0x378] sm:$0xff]
      %v364 = vld [vmem:[%s230 + $0x380] sm:$0xff]
      %v365 = vld [vmem:[%s230 + $0x388] sm:$0xff]
      %v366 = vld [vmem:[%s230 + $0x390] sm:$0xff]
      %v367 = vld [vmem:[%s230 + $0x398] sm:$0xff]
      %v368 = vld [vmem:[%s230 + $0x3a0] sm:$0xff]
      %v369 = vld [vmem:[%s230 + $0x3a8] sm:$0xff]
      %v370 = vld [vmem:[%s230 + $0x3b0] sm:$0xff]
      %v371 = vld [vmem:[%s230 + $0x3b8] sm:$0xff]
      %v372 = vld [vmem:[%s230 + $0x3c0] sm:$0xff]
      %v373 = vld [vmem:[%s230 + $0x3c8] sm:$0xff]
      %v374 = vld [vmem:[%s230 + $0x3d0] sm:$0xff]
      %v375 = vld [vmem:[%s230 + $0x3d8] sm:$0xff]
      %v376 = vld [vmem:[%s230 + $0x3e0] sm:$0xff]
      %v377 = vld [vmem:[%s230 + $0x3e8] sm:$0xff]
      %v378 = vld [vmem:[%s230 + $0x3f0] sm:$0xff]
      %v379 = vld [vmem:[%s230 + $0x3f8] sm:$0xff]
      %v380 = vld [vmem:[%s230 + $0x400] sm:$0xff]
      %v381 = vld [vmem:[%s230 + $0x408] sm:$0xff]
      %v382 = vld [vmem:[%s230 + $0x410] sm:$0xff]
      %v383 = vld [vmem:[%s230 + $0x418] sm:$0xff]
      %v384 = vld [vmem:[%s230 + $0x420] sm:$0xff]
      %v385 = vld [vmem:[%s230 + $0x428] sm:$0xff]
      %v386 = vld [vmem:[%s230 + $0x430] sm:$0xff]
      %v387 = vld [vmem:[%s230 + $0x438] sm:$0xff]
      %v388 = vld [vmem:[%s230 + $0x440] sm:$0xff]
      %v389 = vld [vmem:[%s230 + $0x448] sm:$0xff]
      %v390 = vld [vmem:[%s230 + $0x450] sm:$0xff]
      %v391 = vld [vmem:[%s230 + $0x458] sm:$0xff]
      %v392 = vld [vmem:[%s230 + $0x460] sm:$0xff]
      %v393 = vld [vmem:[%s230 + $0x468] sm:$0xff]
      %v394 = vld [vmem:[%s230 + $0x470] sm:$0xff]
      %v395 = vld [vmem:[%s230 + $0x478] sm:$0xff]
      %v396 = vld [vmem:[%s230 + $0x480] sm:$0xff]
      %v397 = vld [vmem:[%s230 + $0x488] sm:$0xff]
      %v398 = vld [vmem:[%s230 + $0x490] sm:$0xff]
      %v399 = vld [vmem:[%s230 + $0x498] sm:$0xff]
      %v400 = vld [vmem:[%s230 + $0x4a0] sm:$0xff]
      %v401 = vld [vmem:[%s230 + $0x4a8] sm:$0xff]
      %v402 = vld [vmem:[%s230 + $0x4b0] sm:$0xff]
      %v403 = vld [vmem:[%s230 + $0x4b8] sm:$0xff]
      %v404 = vld [vmem:[%s230 + $0x4c0] sm:$0xff]
      %v405 = vld [vmem:[%s230 + $0x4c8] sm:$0xff]
      %v406 = vld [vmem:[%s230 + $0x4d0] sm:$0xff]
      %v407 = vld [vmem:[%s230 + $0x4d8] sm:$0xff]
      %v408 = vld [vmem:[%s230 + $0x4e0] sm:$0xff]
      %v409 = vld [vmem:[%s230 + $0x4e8] sm:$0xff]
      %v410 = vld [vmem:[%s230 + $0x4f0] sm:$0xff]
      %v411 = vld [vmem:[%s230 + $0x4f8] sm:$0xff]
      %v412 = vld [vmem:[%s230 + $0x500] sm:$0xff]
      %v413 = vld [vmem:[%s230 + $0x508] sm:$0xff]
      %v414 = vld [vmem:[%s230 + $0x510] sm:$0xff]
      %v415 = vld [vmem:[%s230 + $0x518] sm:$0xff]
      %v416 = vld [vmem:[%s230 + $0x520] sm:$0xff]
      %v417 = vld [vmem:[%s230 + $0x528] sm:$0xff]
      %v418 = vld [vmem:[%s230 + $0x530] sm:$0xff]
      %v419 = vld [vmem:[%s230 + $0x538] sm:$0xff]
      %v420 = vld [vmem:[%s230 + $0x540] sm:$0xff]
      %v421 = vld [vmem:[%s230 + $0x548] sm:$0xff]
      %v422 = vld [vmem:[%s230 + $0x550] sm:$0xff]
      %v423 = vld [vmem:[%s230 + $0x558] sm:$0xff]
      %v424 = vld [vmem:[%s230 + $0x560] sm:$0xff]
      %v425 = vld [vmem:[%s230 + $0x568] sm:$0xff]
      %v426 = vld [vmem:[%s230 + $0x570] sm:$0xff]
      %v427 = vld [vmem:[%s230 + $0x578] sm:$0xff]
      %v428 = vld [vmem:[%s230 + $0x580] sm:$0xff]
      %v429 = vld [vmem:[%s230 + $0x588] sm:$0xff]
      %v430 = vld [vmem:[%s230 + $0x590] sm:$0xff]
      %v431 = vld [vmem:[%s230 + $0x598] sm:$0xff]
      %v432 = vld [vmem:[%s230 + $0x5a0] sm:$0xff]
      %v433 = vld [vmem:[%s230 + $0x5a8] sm:$0xff]
      %v434 = vld [vmem:[%s230 + $0x5b0] sm:$0xff]
      %v435 = vld [vmem:[%s230 + $0x5b8] sm:$0xff]
      %v436 = vld [vmem:[%s230 + $0x5c0] sm:$0xff]
      %v437 = vld [vmem:[%s230 + $0x5c8] sm:$0xff]
      %v438 = vld [vmem:[%s230 + $0x5d0] sm:$0xff]
      %v439 = vld [vmem:[%s230 + $0x5d8] sm:$0xff]
      %v440 = vld [vmem:[%s230 + $0x5e0] sm:$0xff]
      %v441 = vld [vmem:[%s230 + $0x5e8] sm:$0xff]
      %v442 = vld [vmem:[%s230 + $0x5f0] sm:$0xff]
      %v443 = vld [vmem:[%s230 + $0x5f8] sm:$0xff]
      %v444 = vld [vmem:[%s230 + $0x600] sm:$0xff]
      %v445 = vld [vmem:[%s230 + $0x608] sm:$0xff]
      %v446 = vld [vmem:[%s230 + $0x610] sm:$0xff]
      %v447 = vld [vmem:[%s230 + $0x618] sm:$0xff]
      %v448 = vld [vmem:[%s230 + $0x620] sm:$0xff]
      %v449 = vld [vmem:[%s230 + $0x628] sm:$0xff]
      %v450 = vld [vmem:[%s230 + $0x630] sm:$0xff]
      %v451 = vld [vmem:[%s230 + $0x638] sm:$0xff]
      %v452 = vld [vmem:[%s230 + $0x640] sm:$0xff]
      %v453 = vld [vmem:[%s230 + $0x648] sm:$0xff]
      %v454 = vld [vmem:[%s230 + $0x650] sm:$0xff]
      %v455 = vld [vmem:[%s230 + $0x658] sm:$0xff]
      %v456 = vld [vmem:[%s230 + $0x660] sm:$0xff]
      %v457 = vld [vmem:[%s230 + $0x668] sm:$0xff]
      %v458 = vld [vmem:[%s230 + $0x670] sm:$0xff]
      %v459 = vld [vmem:[%s230 + $0x678] sm:$0xff]
      %v460 = vld [vmem:[%s230 + $0x680] sm:$0xff]
      %v461 = vld [vmem:[%s230 + $0x688] sm:$0xff]
      %v462 = vld [vmem:[%s230 + $0x690] sm:$0xff]
      %v463 = vld [vmem:[%s230 + $0x698] sm:$0xff]
      %v464 = vld [vmem:[%s230 + $0x6a0] sm:$0xff]
      %v465 = vld [vmem:[%s230 + $0x6a8] sm:$0xff]
      %v466 = vld [vmem:[%s230 + $0x6b0] sm:$0xff]
      %v467 = vld [vmem:[%s230 + $0x6b8] sm:$0xff]
      %v468 = vld [vmem:[%s230 + $0x6c0] sm:$0xff]
      %v469 = vld [vmem:[%s230 + $0x6c8] sm:$0xff]
      %v470 = vld [vmem:[%s230 + $0x6d0] sm:$0xff]
      %v471 = vld [vmem:[%s230 + $0x6d8] sm:$0xff]
      %v472 = vld [vmem:[%s230 + $0x6e0] sm:$0xff]
      %v473 = vld [vmem:[%s230 + $0x6e8] sm:$0xff]
      %v474 = vld [vmem:[%s230 + $0x6f0] sm:$0xff]
      %v475 = vld [vmem:[%s230 + $0x6f8] sm:$0xff]
      %v476 = vld [vmem:[%s230 + $0x700] sm:$0xff]
      %v477 = vld [vmem:[%s230 + $0x708] sm:$0xff]
      %v478 = vld [vmem:[%s230 + $0x710] sm:$0xff]
      %v479 = vld [vmem:[%s230 + $0x718] sm:$0xff]
      %v480 = vld [vmem:[%s230 + $0x720] sm:$0xff]
      %v481 = vld [vmem:[%s230 + $0x728] sm:$0xff]
      %v482 = vld [vmem:[%s230 + $0x730] sm:$0xff]
      %v483 = vld [vmem:[%s230 + $0x738] sm:$0xff]
      %v484 = vld [vmem:[%s230 + $0x740] sm:$0xff]
      %v485 = vld [vmem:[%s230 + $0x748] sm:$0xff]
      %v486 = vld [vmem:[%s230 + $0x750] sm:$0xff]
      %v487 = vld [vmem:[%s230 + $0x758] sm:$0xff]
      %v488 = vld [vmem:[%s230 + $0x760] sm:$0xff]
      %v489 = vld [vmem:[%s230 + $0x768] sm:$0xff]
      %v490 = vld [vmem:[%s230 + $0x770] sm:$0xff]
      %v491 = vld [vmem:[%s230 + $0x778] sm:$0xff]
      %v492 = vld [vmem:[%s230 + $0x780] sm:$0xff]
      %v493 = vld [vmem:[%s230 + $0x788] sm:$0xff]
      %v494 = vld [vmem:[%s230 + $0x790] sm:$0xff]
      %v495 = vld [vmem:[%s230 + $0x798] sm:$0xff]
      %v496 = vld [vmem:[%s230 + $0x7a0] sm:$0xff]
      %v497 = vld [vmem:[%s230 + $0x7a8] sm:$0xff]
      %v498 = vld [vmem:[%s230 + $0x7b0] sm:$0xff]
      %v499 = vld [vmem:[%s230 + $0x7b8] sm:$0xff]
      %v500 = vld [vmem:[%s230 + $0x7c0] sm:$0xff]
      %v501 = vld [vmem:[%s230 + $0x7c8] sm:$0xff]
      %v502 = vld [vmem:[%s230 + $0x7d0] sm:$0xff]
      %v503 = vld [vmem:[%s230 + $0x7d8] sm:$0xff]
      %v504 = vld [vmem:[%s230 + $0x7e0] sm:$0xff]
      %v505 = vld [vmem:[%s230 + $0x7e8] sm:$0xff]
      %v506 = vld [vmem:[%s230 + $0x7f0] sm:$0xff]
      %v507 = vld [vmem:[%s230 + $0x7f8] sm:$0xff]
      %v508 = vld [vmem:[%s230 + $0x800] sm:$0xff]
      %v509 = vld [vmem:[%s230 + $0x808] sm:$0xff]
      %v510 = vld [vmem:[%s230 + $0x810] sm:$0xff]
      %v511 = vld [vmem:[%s230 + $0x818] sm:$0xff]
      %v512 = vld [vmem:[%s230 + $0x820] sm:$0xff]
      %v513 = vld [vmem:[%s230 + $0x828] sm:$0xff]
      %v514 = vld [vmem:[%s230 + $0x830] sm:$0xff]
      %v515 = vld [vmem:[%s230 + $0x838] sm:$0xff]
      %v516 = vld [vmem:[%s230 + $0x840] sm:$0xff]
      %v517 = vld [vmem:[%s230 + $0x848] sm:$0xff]
      %v518 = vld [vmem:[%s230 + $0x850] sm:$0xff]
      %v519 = vld [vmem:[%s230 + $0x858] sm:$0xff]
      %v520 = vld [vmem:[%s230 + $0x860] sm:$0xff]
      %v521 = vld [vmem:[%s230 + $0x868] sm:$0xff]
      %v522 = vld [vmem:[%s230 + $0x870] sm:$0xff]
      %v523 = vld [vmem:[%s230 + $0x878] sm:$0xff]
      %v524 = vld [vmem:[%s230 + $0x880] sm:$0xff]
      %v525 = vld [vmem:[%s230 + $0x888] sm:$0xff]
      %v526 = vld [vmem:[%s230 + $0x890] sm:$0xff]
      %v527 = vld [vmem:[%s230 + $0x898] sm:$0xff]
      %v528 = vld [vmem:[%s230 + $0x8a0] sm:$0xff]
      %v529 = vld [vmem:[%s230 + $0x8a8] sm:$0xff]
      %v530 = vld [vmem:[%s230 + $0x8b0] sm:$0xff]
      %v531 = vld [vmem:[%s230 + $0x8b8] sm:$0xff]
      %v532 = vld [vmem:[%s230 + $0x8c0] sm:$0xff]
      %v533 = vld [vmem:[%s230 + $0x8c8] sm:$0xff]
      %v534 = vld [vmem:[%s230 + $0x8d0] sm:$0xff]
      %v535 = vld [vmem:[%s230 + $0x8d8] sm:$0xff]
      %v536 = vld [vmem:[%s230 + $0x8e0] sm:$0xff]
      %v537 = vld [vmem:[%s230 + $0x8e8] sm:$0xff]
      %v538 = vld [vmem:[%s230 + $0x8f0] sm:$0xff]
      %v539 = vld [vmem:[%s230 + $0x8f8] sm:$0xff]
      %v540 = vld [vmem:[%s230 + $0x900] sm:$0xff]
      %v541 = vld [vmem:[%s230 + $0x908] sm:$0xff]
      %v542 = vld [vmem:[%s230 + $0x910] sm:$0xff]
      %v543 = vld [vmem:[%s230 + $0x918] sm:$0xff]
      %v544 = vld [vmem:[%s230 + $0x920] sm:$0xff]
      %v545 = vld [vmem:[%s230 + $0x928] sm:$0xff]
      %v546 = vld [vmem:[%s230 + $0x930] sm:$0xff]
      %v547 = vld [vmem:[%s230 + $0x938] sm:$0xff]
      %v548 = vld [vmem:[%s230 + $0x940] sm:$0xff]
      %v549 = vld [vmem:[%s230 + $0x948] sm:$0xff]
      %v550 = vld [vmem:[%s230 + $0x950] sm:$0xff]
      %v551 = vld [vmem:[%s230 + $0x958] sm:$0xff]
      %v552 = vld [vmem:[%s230 + $0x960] sm:$0xff]
      %v553 = vld [vmem:[%s230 + $0x968] sm:$0xff]
      %v554 = vld [vmem:[%s230 + $0x970] sm:$0xff]
      %v555 = vld [vmem:[%s230 + $0x978] sm:$0xff]
      %v556 = vld [vmem:[%s230 + $0x980] sm:$0xff]
      %v557 = vld [vmem:[%s230 + $0x988] sm:$0xff]
      %v558 = vld [vmem:[%s230 + $0x990] sm:$0xff]
      %v559 = vld [vmem:[%s230 + $0x998] sm:$0xff]
      %v560 = vld [vmem:[%s230 + $0x9a0] sm:$0xff]
      %v561 = vld [vmem:[%s230 + $0x9a8] sm:$0xff]
      %v562 = vld [vmem:[%s230 + $0x9b0] sm:$0xff]
      %v563 = vld [vmem:[%s230 + $0x9b8] sm:$0xff]
      %v564 = vld [vmem:[%s230 + $0x9c0] sm:$0xff]
      %v565 = vld [vmem:[%s230 + $0x9c8] sm:$0xff]
      %v566 = vld [vmem:[%s230 + $0x9d0] sm:$0xff]
      %v567 = vld [vmem:[%s230 + $0x9d8] sm:$0xff]
      %v568 = vld [vmem:[%s230 + $0x9e0] sm:$0xff]
      %v569 = vld [vmem:[%s230 + $0x9e8] sm:$0xff]
      %v570 = vld [vmem:[%s230 + $0x9f0] sm:$0xff]
      %v571 = vld [vmem:[%s230 + $0x9f8] sm:$0xff]
      %v572 = vld [vmem:[%s230 + $0xa00] sm:$0xff]
      %v573 = vld [vmem:[%s230 + $0xa08] sm:$0xff]
      %v574 = vld [vmem:[%s230 + $0xa10] sm:$0xff]
      %v575 = vld [vmem:[%s230 + $0xa18] sm:$0xff]
      %v576 = vld [vmem:[%s230 + $0xa20] sm:$0xff]
      %v577 = vld [vmem:[%s230 + $0xa28] sm:$0xff]
      %v578 = vld [vmem:[%s230 + $0xa30] sm:$0xff]
      %v579 = vld [vmem:[%s230 + $0xa38] sm:$0xff]
      %v580 = vld [vmem:[%s230 + $0xa40] sm:$0xff]
      %v581 = vld [vmem:[%s230 + $0xa48] sm:$0xff]
      %v582 = vld [vmem:[%s230 + $0xa50] sm:$0xff]
      %v583 = vld [vmem:[%s230 + $0xa58] sm:$0xff]
      %v584 = vld [vmem:[%s230 + $0xa60] sm:$0xff]
      %v585 = vld [vmem:[%s230 + $0xa68] sm:$0xff]
      %v586 = vld [vmem:[%s230 + $0xa70] sm:$0xff]
      %v587 = vld [vmem:[%s230 + $0xa78] sm:$0xff]
      %v588 = vld [vmem:[%s230 + $0xa80] sm:$0xff]
      %v589 = vld [vmem:[%s230 + $0xa88] sm:$0xff]
      %v590 = vld [vmem:[%s230 + $0xa90] sm:$0xff]
      %v591 = vld [vmem:[%s230 + $0xa98] sm:$0xff]
      %v592 = vld [vmem:[%s230 + $0xaa0] sm:$0xff]
      %v593 = vld [vmem:[%s230 + $0xaa8] sm:$0xff]
      %v594 = vld [vmem:[%s230 + $0xab0] sm:$0xff]
      %v595 = vld [vmem:[%s230 + $0xab8] sm:$0xff]
      %v596 = vld [vmem:[%s230 + $0xac0] sm:$0xff]
      %v597 = vld [vmem:[%s230 + $0xac8] sm:$0xff]
      %v598 = vld [vmem:[%s230 + $0xad0] sm:$0xff]
      %v599 = vld [vmem:[%s230 + $0xad8] sm:$0xff]
      %v600 = vld [vmem:[%s230 + $0xae0] sm:$0xff]
      %v601 = vld [vmem:[%s230 + $0xae8] sm:$0xff]
      %v602 = vld [vmem:[%s230 + $0xaf0] sm:$0xff]
      %v603 = vld [vmem:[%s230 + $0xaf8] sm:$0xff]
      %v604 = vld [vmem:[%s230 + $0xb00] sm:$0xff]
      %v605 = vld [vmem:[%s230 + $0xb08] sm:$0xff]
      %v606 = vld [vmem:[%s230 + $0xb10] sm:$0xff]
      %v607 = vld [vmem:[%s230 + $0xb18] sm:$0xff]
      %v608 = vld [vmem:[%s230 + $0xb20] sm:$0xff]
      %v609 = vld [vmem:[%s230 + $0xb28] sm:$0xff]
      %v610 = vld [vmem:[%s230 + $0xb30] sm:$0xff]
      %v611 = vld [vmem:[%s230 + $0xb38] sm:$0xff]
      %v612 = vld [vmem:[%s230 + $0xb40] sm:$0xff]
      %v613 = vld [vmem:[%s230 + $0xb48] sm:$0xff]
      %v614 = vld [vmem:[%s230 + $0xb50] sm:$0xff]
      %v615 = vld [vmem:[%s230 + $0xb58] sm:$0xff]
      %v616 = vld [vmem:[%s230 + $0xb60] sm:$0xff]
      %v617 = vld [vmem:[%s230 + $0xb68] sm:$0xff]
      %v618 = vld [vmem:[%s230 + $0xb70] sm:$0xff]
      %v619 = vld [vmem:[%s230 + $0xb78] sm:$0xff]
      %v620 = vld [vmem:[%s230 + $0xb80] sm:$0xff]
      %v621 = vld [vmem:[%s230 + $0xb88] sm:$0xff]
      %v622 = vld [vmem:[%s230 + $0xb90] sm:$0xff]
      %v623 = vld [vmem:[%s230 + $0xb98] sm:$0xff]
      %v624 = vld [vmem:[%s230 + $0xba0] sm:$0xff]
      %v625 = vld [vmem:[%s230 + $0xba8] sm:$0xff]
      %v626 = vld [vmem:[%s230 + $0xbb0] sm:$0xff]
      %v627 = vld [vmem:[%s230 + $0xbb8] sm:$0xff]
      %v628 = vld [vmem:[%s230 + $0xbc0] sm:$0xff]
      %v629 = vld [vmem:[%s230 + $0xbc8] sm:$0xff]
      %v630 = vld [vmem:[%s230 + $0xbd0] sm:$0xff]
      %v631 = vld [vmem:[%s230 + $0xbd8] sm:$0xff]
      %v632 = vld [vmem:[%s230 + $0xbe0] sm:$0xff]
      %v633 = vld [vmem:[%s230 + $0xbe8] sm:$0xff]
      %v634 = vld [vmem:[%s230 + $0xbf0] sm:$0xff]
      %v635 = vld [vmem:[%s230 + $0xbf8] sm:$0xff]
      %v636 = vld [vmem:[%s230 + $0xc00] sm:$0xff]
      %v637 = vld [vmem:[%s230 + $0xc08] sm:$0xff]
      %v638 = vld [vmem:[%s230 + $0xc10] sm:$0xff]
      %v639 = vld [vmem:[%s230 + $0xc18] sm:$0xff]
      %v640 = vld [vmem:[%s230 + $0xc20] sm:$0xff]
      %v641 = vld [vmem:[%s230 + $0xc28] sm:$0xff]
      %v642 = vld [vmem:[%s230 + $0xc30] sm:$0xff]
      %v643 = vld [vmem:[%s230 + $0xc38] sm:$0xff]
      %v644 = vld [vmem:[%s230 + $0xc40] sm:$0xff]
      %v645 = vld [vmem:[%s230 + $0xc48] sm:$0xff]
      %v646 = vld [vmem:[%s230 + $0xc50] sm:$0xff]
      %v647 = vld [vmem:[%s230 + $0xc58] sm:$0xff]
      %v648 = vld [vmem:[%s230 + $0xc60] sm:$0xff]
      %v649 = vld [vmem:[%s230 + $0xc68] sm:$0xff]
      %v650 = vld [vmem:[%s230 + $0xc70] sm:$0xff]
      %v651 = vld [vmem:[%s230 + $0xc78] sm:$0xff]
      %v652 = vld [vmem:[%s230 + $0xc80] sm:$0xff]
      %v653 = vld [vmem:[%s230 + $0xc88] sm:$0xff]
      %v654 = vld [vmem:[%s230 + $0xc90] sm:$0xff]
      %v655 = vld [vmem:[%s230 + $0xc98] sm:$0xff]
      %v656 = vld [vmem:[%s230 + $0xca0] sm:$0xff]
      %v657 = vld [vmem:[%s230 + $0xca8] sm:$0xff]
      %v658 = vld [vmem:[%s230 + $0xcb0] sm:$0xff]
      %v659 = vld [vmem:[%s230 + $0xcb8] sm:$0xff]
      %v660 = vld [vmem:[%s230 + $0xcc0] sm:$0xff]
      %v661 = vld [vmem:[%s230 + $0xcc8] sm:$0xff]
      %v662 = vld [vmem:[%s230 + $0xcd0] sm:$0xff]
      %v663 = vld [vmem:[%s230 + $0xcd8] sm:$0xff]
      %v664 = vld [vmem:[%s230 + $0xce0] sm:$0xff]
      %v665 = vld [vmem:[%s230 + $0xce8] sm:$0xff]
      %v666 = vld [vmem:[%s230 + $0xcf0] sm:$0xff]
      %v667 = vld [vmem:[%s230 + $0xcf8] sm:$0xff]
      %v668 = vld [vmem:[%s230 + $0xd00] sm:$0xff]
      %v669 = vld [vmem:[%s230 + $0xd08] sm:$0xff]
      %v670 = vld [vmem:[%s230 + $0xd10] sm:$0xff]
      %v671 = vld [vmem:[%s230 + $0xd18] sm:$0xff]
      %v672 = vld [vmem:[%s230 + $0xd20] sm:$0xff]
      %v673 = vld [vmem:[%s230 + $0xd28] sm:$0xff]
      %v674 = vld [vmem:[%s230 + $0xd30] sm:$0xff]
      %v675 = vld [vmem:[%s230 + $0xd38] sm:$0xff]
      %v676 = vld [vmem:[%s230 + $0xd40] sm:$0xff]
      %v677 = vld [vmem:[%s230 + $0xd48] sm:$0xff]
      %v678 = vld [vmem:[%s230 + $0xd50] sm:$0xff]
      %v679 = vld [vmem:[%s230 + $0xd58] sm:$0xff]
      %v680 = vld [vmem:[%s230 + $0xd60] sm:$0xff]
      %v681 = vld [vmem:[%s230 + $0xd68] sm:$0xff]
      %v682 = vld [vmem:[%s230 + $0xd70] sm:$0xff]
      %v683 = vld [vmem:[%s230 + $0xd78] sm:$0xff]
      %v684 = vld [vmem:[%s230 + $0xd80] sm:$0xff]
      %v685 = vld [vmem:[%s230 + $0xd88] sm:$0xff]
      %v686 = vld [vmem:[%s230 + $0xd90] sm:$0xff]
      %v687 = vld [vmem:[%s230 + $0xd98] sm:$0xff]
      %v688 = vld [vmem:[%s230 + $0xda0] sm:$0xff]
      %v689 = vld [vmem:[%s230 + $0xda8] sm:$0xff]
      %v690 = vld [vmem:[%s230 + $0xdb0] sm:$0xff]
      %v691 = vld [vmem:[%s230 + $0xdb8] sm:$0xff]
      %v692 = vld [vmem:[%s230 + $0xdc0] sm:$0xff]
      %v693 = vld [vmem:[%s230 + $0xdc8] sm:$0xff]
      %v694 = vld [vmem:[%s230 + $0xdd0] sm:$0xff]
      %v695 = vld [vmem:[%s230 + $0xdd8] sm:$0xff]
      %v696 = vld [vmem:[%s230 + $0xde0] sm:$0xff]
      %v697 = vld [vmem:[%s230 + $0xde8] sm:$0xff]
      %v698 = vld [vmem:[%s230 + $0xdf0] sm:$0xff]
      %v699 = vld [vmem:[%s230 + $0xdf8] sm:$0xff]
      %v700 = vld [vmem:[%s230 + $0xe00] sm:$0xff]
      %v701 = vld [vmem:[%s230 + $0xe08] sm:$0xff]
      %v702 = vld [vmem:[%s230 + $0xe10] sm:$0xff]
      %v703 = vld [vmem:[%s230 + $0xe18] sm:$0xff]
      %v704 = vld [vmem:[%s230 + $0xe20] sm:$0xff]
      %v705 = vld [vmem:[%s230 + $0xe28] sm:$0xff]
      %v706 = vld [vmem:[%s230 + $0xe30] sm:$0xff]
      %v707 = vld [vmem:[%s230 + $0xe38] sm:$0xff]
      %v708 = vld [vmem:[%s230 + $0xe40] sm:$0xff]
      %v709 = vld [vmem:[%s230 + $0xe48] sm:$0xff]
      %v710 = vld [vmem:[%s230 + $0xe50] sm:$0xff]
      %v711 = vld [vmem:[%s230 + $0xe58] sm:$0xff]
      %v712 = vld [vmem:[%s230 + $0xe60] sm:$0xff]
      %v713 = vld [vmem:[%s230 + $0xe68] sm:$0xff]
      %v714 = vld [vmem:[%s230 + $0xe70] sm:$0xff]
      %v715 = vld [vmem:[%s230 + $0xe78] sm:$0xff]
      %v716 = vld [vmem:[%s230 + $0xe80] sm:$0xff]
      %v717 = vld [vmem:[%s230 + $0xe88] sm:$0xff]
      %v718 = vld [vmem:[%s230 + $0xe90] sm:$0xff]
      %v719 = vld [vmem:[%s230 + $0xe98] sm:$0xff]
      %v720 = vld [vmem:[%s230 + $0xea0] sm:$0xff]
      %v721 = vld [vmem:[%s230 + $0xea8] sm:$0xff]
      %v722 = vld [vmem:[%s230 + $0xeb0] sm:$0xff]
      %v723 = vld [vmem:[%s230 + $0xeb8] sm:$0xff]
      %v724 = vld [vmem:[%s230 + $0xec0] sm:$0xff]
      %v725 = vld [vmem:[%s230 + $0xec8] sm:$0xff]
      %v726 = vld [vmem:[%s230 + $0xed0] sm:$0xff]
      %v727 = vld [vmem:[%s230 + $0xed8] sm:$0xff]
      %v728 = vld [vmem:[%s230 + $0xee0] sm:$0xff]
      %v729 = vld [vmem:[%s230 + $0xee8] sm:$0xff]
      %v730 = vld [vmem:[%s230 + $0xef0] sm:$0xff]
      %v731 = vld [vmem:[%s230 + $0xef8] sm:$0xff]
      %v732 = vld [vmem:[%s230 + $0xf00] sm:$0xff]
      %v733 = vld [vmem:[%s230 + $0xf08] sm:$0xff]
      %v734 = vld [vmem:[%s230 + $0xf10] sm:$0xff]
      %v735 = vld [vmem:[%s230 + $0xf18] sm:$0xff]
      %v736 = vld [vmem:[%s230 + $0xf20] sm:$0xff]
      %v737 = vld [vmem:[%s230 + $0xf28] sm:$0xff]
      %v738 = vld [vmem:[%s230 + $0xf30] sm:$0xff]
      %v739 = vld [vmem:[%s230 + $0xf38] sm:$0xff]
      %v740 = vld [vmem:[%s230 + $0xf40] sm:$0xff]
      %v741 = vld [vmem:[%s230 + $0xf48] sm:$0xff]
      %v742 = vld [vmem:[%s230 + $0xf50] sm:$0xff]
      %v743 = vld [vmem:[%s230 + $0xf58] sm:$0xff]
      %v744 = vld [vmem:[%s230 + $0xf60] sm:$0xff]
      %v745 = vld [vmem:[%s230 + $0xf68] sm:$0xff]
      %v746 = vld [vmem:[%s230 + $0xf70] sm:$0xff]
      %v747 = vld [vmem:[%s230 + $0xf78] sm:$0xff]
      %v748 = vld [vmem:[%s230 + $0xf80] sm:$0xff]
      %v749 = vld [vmem:[%s230 + $0xf88] sm:$0xff]
      %v750 = vld [vmem:[%s230 + $0xf90] sm:$0xff]
      %v751 = vld [vmem:[%s230 + $0xf98] sm:$0xff]
      %v752 = vld [vmem:[%s230 + $0xfa0] sm:$0xff]
      %v753 = vld [vmem:[%s230 + $0xfa8] sm:$0xff]
      %v754 = vld [vmem:[%s230 + $0xfb0] sm:$0xff]
      %v755 = vld [vmem:[%s230 + $0xfb8] sm:$0xff]
      %v756 = vld [vmem:[%s230 + $0xfc0] sm:$0xff]
      %v757 = vld [vmem:[%s230 + $0xfc8] sm:$0xff]
      %v758 = vld [vmem:[%s230 + $0xfd0] sm:$0xff]
      %v759 = vld [vmem:[%s230 + $0xfd8] sm:$0xff]
      %v760 = vld [vmem:[%s230 + $0xfe0] sm:$0xff]
      %v761 = vld [vmem:[%s230 + $0xfe8] sm:$0xff]
      %v762 = vld [vmem:[%s230 + $0xff0] sm:$0xff]
      %v763 = vld [vmem:[%s230 + $0xff8] sm:$0xff]
      %765 = vst [vmem:[#allocation1] ss:$9 sm:$0xff] %v250
      %v766 = vld [vmem:[#allocation1] sm:$0xff]
      %v767 = vld [vmem:[#allocation1 + $0x9] sm:$0xff]
      %v768 = vld [vmem:[#allocation1 + $0x12] sm:$0xff]
      %v769 = vld [vmem:[#allocation1 + $0x1b] sm:$0xff]
      %v770 = vld [vmem:[#allocation1 + $0x24] sm:$0xff]
      %v771 = vld [vmem:[#allocation1 + $0x2d] sm:$0xff]
      %v772 = vld [vmem:[#allocation1 + $0x36] sm:$0xff]
      %v773 = vld [vmem:[#allocation1 + $0x3f] sm:$0xff]
      %775 = vst [vmem:[#allocation1] ss:$9 sm:$0xff] %v251
      %v776 = vld [vmem:[#allocation1] sm:$0xff]
      %v777 = vld [vmem:[#allocation1 + $0x9] sm:$0xff]
      %v778 = vld [vmem:[#allocation1 + $0x12] sm:$0xff]
      %v779 = vld [vmem:[#allocation1 + $0x1b] sm:$0xff]
      %v780 = vld [vmem:[#allocation1 + $0x24] sm:$0xff]
      %v781 = vld [vmem:[#allocation1 + $0x2d] sm:$0xff]
      %v782 = vld [vmem:[#allocation1 + $0x36] sm:$0xff]
      %v783 = vld [vmem:[#allocation1 + $0x3f] sm:$0xff]
      %v1312 = vunpack.c.l.b16 %v252
      %v1313 = vunpack.c.h.b16 %v252
      %v1314 = vunpack.c.l.b16 %v253
      %v1315 = vunpack.c.h.b16 %v253
      %v1316 = vunpack.c.l.b16 %v254
      %v1317 = vunpack.c.h.b16 %v254
      %v1318 = vunpack.c.l.b16 %v255
      %v1319 = vunpack.c.h.b16 %v255
      %v1320 = vunpack.c.l.b16 %v256
      %v1321 = vunpack.c.h.b16 %v256
      %v1322 = vunpack.c.l.b16 %v257
      %v1323 = vunpack.c.h.b16 %v257
      %v1324 = vunpack.c.l.b16 %v258
      %v1325 = vunpack.c.h.b16 %v258
      %v1326 = vunpack.c.l.b16 %v259
      %v1327 = vunpack.c.h.b16 %v259
      %v1328 = vunpack.c.l.b16 %v260
      %v1329 = vunpack.c.h.b16 %v260
      %v1330 = vunpack.c.l.b16 %v261
      %v1331 = vunpack.c.h.b16 %v261
      %v1332 = vunpack.c.l.b16 %v262
      %v1333 = vunpack.c.h.b16 %v262
      %v1334 = vunpack.c.l.b16 %v263
      %v1335 = vunpack.c.h.b16 %v263
      %v1336 = vunpack.c.l.b16 %v264
      %v1337 = vunpack.c.h.b16 %v264
      %v1338 = vunpack.c.l.b16 %v265
      %v1339 = vunpack.c.h.b16 %v265
      %v1340 = vunpack.c.l.b16 %v266
      %v1341 = vunpack.c.h.b16 %v266
      %v1342 = vunpack.c.l.b16 %v267
      %v1343 = vunpack.c.h.b16 %v267
      %v1344 = vunpack.c.l.b16 %v268
      %v1345 = vunpack.c.h.b16 %v268
      %v1346 = vunpack.c.l.b16 %v269
      %v1347 = vunpack.c.h.b16 %v269
      %v1348 = vunpack.c.l.b16 %v270
      %v1349 = vunpack.c.h.b16 %v270
      %v1350 = vunpack.c.l.b16 %v271
      %v1351 = vunpack.c.h.b16 %v271
      %v1352 = vunpack.c.l.b16 %v272
      %v1353 = vunpack.c.h.b16 %v272
      %v1354 = vunpack.c.l.b16 %v273
      %v1355 = vunpack.c.h.b16 %v273
      %v1356 = vunpack.c.l.b16 %v274
      %v1357 = vunpack.c.h.b16 %v274
      %v1358 = vunpack.c.l.b16 %v275
      %v1359 = vunpack.c.h.b16 %v275
      %v1360 = vunpack.c.l.b16 %v276
      %v1361 = vunpack.c.h.b16 %v276
      %v1362 = vunpack.c.l.b16 %v277
      %v1363 = vunpack.c.h.b16 %v277
      %v1364 = vunpack.c.l.b16 %v278
      %v1365 = vunpack.c.h.b16 %v278
      %v1366 = vunpack.c.l.b16 %v279
      %v1367 = vunpack.c.h.b16 %v279
      %v1368 = vunpack.c.l.b16 %v280
      %v1369 = vunpack.c.h.b16 %v280
      %v1370 = vunpack.c.l.b16 %v281
      %v1371 = vunpack.c.h.b16 %v281
      %v1372 = vunpack.c.l.b16 %v282
      %v1373 = vunpack.c.h.b16 %v282
      %v1374 = vunpack.c.l.b16 %v283
      %v1375 = vunpack.c.h.b16 %v283
      %v1376 = vunpack.c.l.b16 %v284
      %v1377 = vunpack.c.h.b16 %v284
      %v1378 = vunpack.c.l.b16 %v285
      %v1379 = vunpack.c.h.b16 %v285
      %v1380 = vunpack.c.l.b16 %v286
      %v1381 = vunpack.c.h.b16 %v286
      %v1382 = vunpack.c.l.b16 %v287
      %v1383 = vunpack.c.h.b16 %v287
      %v1384 = vunpack.c.l.b16 %v288
      %v1385 = vunpack.c.h.b16 %v288
      %v1386 = vunpack.c.l.b16 %v289
      %v1387 = vunpack.c.h.b16 %v289
      %v1388 = vunpack.c.l.b16 %v290
      %v1389 = vunpack.c.h.b16 %v290
      %v1390 = vunpack.c.l.b16 %v291
      %v1391 = vunpack.c.h.b16 %v291
      %v1392 = vunpack.c.l.b16 %v292
      %v1393 = vunpack.c.h.b16 %v292
      %v1394 = vunpack.c.l.b16 %v293
      %v1395 = vunpack.c.h.b16 %v293
      %v1396 = vunpack.c.l.b16 %v294
      %v1397 = vunpack.c.h.b16 %v294
      %v1398 = vunpack.c.l.b16 %v295
      %v1399 = vunpack.c.h.b16 %v295
      %v1400 = vunpack.c.l.b16 %v296
      %v1401 = vunpack.c.h.b16 %v296
      %v1402 = vunpack.c.l.b16 %v297
      %v1403 = vunpack.c.h.b16 %v297
      %v1404 = vunpack.c.l.b16 %v298
      %v1405 = vunpack.c.h.b16 %v298
      %v1406 = vunpack.c.l.b16 %v299
      %v1407 = vunpack.c.h.b16 %v299
      %v1408 = vunpack.c.l.b16 %v300
      %v1409 = vunpack.c.h.b16 %v300
      %v1410 = vunpack.c.l.b16 %v301
      %v1411 = vunpack.c.h.b16 %v301
      %v1412 = vunpack.c.l.b16 %v302
      %v1413 = vunpack.c.h.b16 %v302
      %v1414 = vunpack.c.l.b16 %v303
      %v1415 = vunpack.c.h.b16 %v303
      %v1416 = vunpack.c.l.b16 %v304
      %v1417 = vunpack.c.h.b16 %v304
      %v1418 = vunpack.c.l.b16 %v305
      %v1419 = vunpack.c.h.b16 %v305
      %v1420 = vunpack.c.l.b16 %v306
      %v1421 = vunpack.c.h.b16 %v306
      %v1422 = vunpack.c.l.b16 %v307
      %v1423 = vunpack.c.h.b16 %v307
      %v1424 = vunpack.c.l.b16 %v308
      %v1425 = vunpack.c.h.b16 %v308
      %v1426 = vunpack.c.l.b16 %v309
      %v1427 = vunpack.c.h.b16 %v309
      %v1428 = vunpack.c.l.b16 %v310
      %v1429 = vunpack.c.h.b16 %v310
      %v1430 = vunpack.c.l.b16 %v311
      %v1431 = vunpack.c.h.b16 %v311
      %v1432 = vunpack.c.l.b16 %v312
      %v1433 = vunpack.c.h.b16 %v312
      %v1434 = vunpack.c.l.b16 %v313
      %v1435 = vunpack.c.h.b16 %v313
      %v1436 = vunpack.c.l.b16 %v314
      %v1437 = vunpack.c.h.b16 %v314
      %v1438 = vunpack.c.l.b16 %v315
      %v1439 = vunpack.c.h.b16 %v315
      %v1440 = vunpack.c.l.b16 %v316
      %v1441 = vunpack.c.h.b16 %v316
      %v1442 = vunpack.c.l.b16 %v317
      %v1443 = vunpack.c.h.b16 %v317
      %v1444 = vunpack.c.l.b16 %v318
      %v1445 = vunpack.c.h.b16 %v318
      %v1446 = vunpack.c.l.b16 %v319
      %v1447 = vunpack.c.h.b16 %v319
      %v1448 = vunpack.c.l.b16 %v320
      %v1449 = vunpack.c.h.b16 %v320
      %v1450 = vunpack.c.l.b16 %v321
      %v1451 = vunpack.c.h.b16 %v321
      %v1452 = vunpack.c.l.b16 %v322
      %v1453 = vunpack.c.h.b16 %v322
      %v1454 = vunpack.c.l.b16 %v323
      %v1455 = vunpack.c.h.b16 %v323
      %v1456 = vunpack.c.l.b16 %v324
      %v1457 = vunpack.c.h.b16 %v324
      %v1458 = vunpack.c.l.b16 %v325
      %v1459 = vunpack.c.h.b16 %v325
      %v1460 = vunpack.c.l.b16 %v326
      %v1461 = vunpack.c.h.b16 %v326
      %v1462 = vunpack.c.l.b16 %v327
      %v1463 = vunpack.c.h.b16 %v327
      %v1464 = vunpack.c.l.b16 %v328
      %v1465 = vunpack.c.h.b16 %v328
      %v1466 = vunpack.c.l.b16 %v329
      %v1467 = vunpack.c.h.b16 %v329
      %v1468 = vunpack.c.l.b16 %v330
      %v1469 = vunpack.c.h.b16 %v330
      %v1470 = vunpack.c.l.b16 %v331
      %v1471 = vunpack.c.h.b16 %v331
      %v1472 = vunpack.c.l.b16 %v332
      %v1473 = vunpack.c.h.b16 %v332
      %v1474 = vunpack.c.l.b16 %v333
      %v1475 = vunpack.c.h.b16 %v333
      %v1476 = vunpack.c.l.b16 %v334
      %v1477 = vunpack.c.h.b16 %v334
      %v1478 = vunpack.c.l.b16 %v335
      %v1479 = vunpack.c.h.b16 %v335
      %v1480 = vunpack.c.l.b16 %v336
      %v1481 = vunpack.c.h.b16 %v336
      %v1482 = vunpack.c.l.b16 %v337
      %v1483 = vunpack.c.h.b16 %v337
      %v1484 = vunpack.c.l.b16 %v338
      %v1485 = vunpack.c.h.b16 %v338
      %v1486 = vunpack.c.l.b16 %v339
      %v1487 = vunpack.c.h.b16 %v339
      %v1488 = vunpack.c.l.b16 %v340
      %v1489 = vunpack.c.h.b16 %v340
      %v1490 = vunpack.c.l.b16 %v341
      %v1491 = vunpack.c.h.b16 %v341
      %v1492 = vunpack.c.l.b16 %v342
      %v1493 = vunpack.c.h.b16 %v342
      %v1494 = vunpack.c.l.b16 %v343
      %v1495 = vunpack.c.h.b16 %v343
      %v1496 = vunpack.c.l.b16 %v344
      %v1497 = vunpack.c.h.b16 %v344
      %v1498 = vunpack.c.l.b16 %v345
      %v1499 = vunpack.c.h.b16 %v345
      %v1500 = vunpack.c.l.b16 %v346
      %v1501 = vunpack.c.h.b16 %v346
      %v1502 = vunpack.c.l.b16 %v347
      %v1503 = vunpack.c.h.b16 %v347
      %v1504 = vunpack.c.l.b16 %v348
      %v1505 = vunpack.c.h.b16 %v348
      %v1506 = vunpack.c.l.b16 %v349
      %v1507 = vunpack.c.h.b16 %v349
      %v1508 = vunpack.c.l.b16 %v350
      %v1509 = vunpack.c.h.b16 %v350
      %v1510 = vunpack.c.l.b16 %v351
      %v1511 = vunpack.c.h.b16 %v351
      %v1512 = vunpack.c.l.b16 %v352
      %v1513 = vunpack.c.h.b16 %v352
      %v1514 = vunpack.c.l.b16 %v353
      %v1515 = vunpack.c.h.b16 %v353
      %v1516 = vunpack.c.l.b16 %v354
      %v1517 = vunpack.c.h.b16 %v354
      %v1518 = vunpack.c.l.b16 %v355
      %v1519 = vunpack.c.h.b16 %v355
      %v1520 = vunpack.c.l.b16 %v356
      %v1521 = vunpack.c.h.b16 %v356
      %v1522 = vunpack.c.l.b16 %v357
      %v1523 = vunpack.c.h.b16 %v357
      %v1524 = vunpack.c.l.b16 %v358
      %v1525 = vunpack.c.h.b16 %v358
      %v1526 = vunpack.c.l.b16 %v359
      %v1527 = vunpack.c.h.b16 %v359
      %v1528 = vunpack.c.l.b16 %v360
      %v1529 = vunpack.c.h.b16 %v360
      %v1530 = vunpack.c.l.b16 %v361
      %v1531 = vunpack.c.h.b16 %v361
      %v1532 = vunpack.c.l.b16 %v362
      %v1533 = vunpack.c.h.b16 %v362
      %v1534 = vunpack.c.l.b16 %v363
      %v1535 = vunpack.c.h.b16 %v363
      %v1536 = vunpack.c.l.b16 %v364
      %v1537 = vunpack.c.h.b16 %v364
      %v1538 = vunpack.c.l.b16 %v365
      %v1539 = vunpack.c.h.b16 %v365
      %v1540 = vunpack.c.l.b16 %v366
      %v1541 = vunpack.c.h.b16 %v366
      %v1542 = vunpack.c.l.b16 %v367
      %v1543 = vunpack.c.h.b16 %v367
      %v1544 = vunpack.c.l.b16 %v368
      %v1545 = vunpack.c.h.b16 %v368
      %v1546 = vunpack.c.l.b16 %v369
      %v1547 = vunpack.c.h.b16 %v369
      %v1548 = vunpack.c.l.b16 %v370
      %v1549 = vunpack.c.h.b16 %v370
      %v1550 = vunpack.c.l.b16 %v371
      %v1551 = vunpack.c.h.b16 %v371
      %v1552 = vunpack.c.l.b16 %v372
      %v1553 = vunpack.c.h.b16 %v372
      %v1554 = vunpack.c.l.b16 %v373
      %v1555 = vunpack.c.h.b16 %v373
      %v1556 = vunpack.c.l.b16 %v374
      %v1557 = vunpack.c.h.b16 %v374
      %v1558 = vunpack.c.l.b16 %v375
      %v1559 = vunpack.c.h.b16 %v375
      %v1560 = vunpack.c.l.b16 %v376
      %v1561 = vunpack.c.h.b16 %v376
      %v1562 = vunpack.c.l.b16 %v377
      %v1563 = vunpack.c.h.b16 %v377
      %v1564 = vunpack.c.l.b16 %v378
      %v1565 = vunpack.c.h.b16 %v378
      %v1566 = vunpack.c.l.b16 %v379
      %v1567 = vunpack.c.h.b16 %v379
      %v1568 = vunpack.c.l.b16 %v380
      %v1569 = vunpack.c.h.b16 %v380
      %v1570 = vunpack.c.l.b16 %v381
      %v1571 = vunpack.c.h.b16 %v381
      %v1572 = vunpack.c.l.b16 %v382
      %v1573 = vunpack.c.h.b16 %v382
      %v1574 = vunpack.c.l.b16 %v383
      %v1575 = vunpack.c.h.b16 %v383
      %v1576 = vunpack.c.l.b16 %v384
      %v1577 = vunpack.c.h.b16 %v384
      %v1578 = vunpack.c.l.b16 %v385
      %v1579 = vunpack.c.h.b16 %v385
      %v1580 = vunpack.c.l.b16 %v386
      %v1581 = vunpack.c.h.b16 %v386
      %v1582 = vunpack.c.l.b16 %v387
      %v1583 = vunpack.c.h.b16 %v387
      %v1584 = vunpack.c.l.b16 %v388
      %v1585 = vunpack.c.h.b16 %v388
      %v1586 = vunpack.c.l.b16 %v389
      %v1587 = vunpack.c.h.b16 %v389
      %v1588 = vunpack.c.l.b16 %v390
      %v1589 = vunpack.c.h.b16 %v390
      %v1590 = vunpack.c.l.b16 %v391
      %v1591 = vunpack.c.h.b16 %v391
      %v1592 = vunpack.c.l.b16 %v392
      %v1593 = vunpack.c.h.b16 %v392
      %v1594 = vunpack.c.l.b16 %v393
      %v1595 = vunpack.c.h.b16 %v393
      %v1596 = vunpack.c.l.b16 %v394
      %v1597 = vunpack.c.h.b16 %v394
      %v1598 = vunpack.c.l.b16 %v395
      %v1599 = vunpack.c.h.b16 %v395
      %v1600 = vunpack.c.l.b16 %v396
      %v1601 = vunpack.c.h.b16 %v396
      %v1602 = vunpack.c.l.b16 %v397
      %v1603 = vunpack.c.h.b16 %v397
      %v1604 = vunpack.c.l.b16 %v398
      %v1605 = vunpack.c.h.b16 %v398
      %v1606 = vunpack.c.l.b16 %v399
      %v1607 = vunpack.c.h.b16 %v399
      %v1608 = vunpack.c.l.b16 %v400
      %v1609 = vunpack.c.h.b16 %v400
      %v1610 = vunpack.c.l.b16 %v401
      %v1611 = vunpack.c.h.b16 %v401
      %v1612 = vunpack.c.l.b16 %v402
      %v1613 = vunpack.c.h.b16 %v402
      %v1614 = vunpack.c.l.b16 %v403
      %v1615 = vunpack.c.h.b16 %v403
      %v1616 = vunpack.c.l.b16 %v404
      %v1617 = vunpack.c.h.b16 %v404
      %v1618 = vunpack.c.l.b16 %v405
      %v1619 = vunpack.c.h.b16 %v405
      %v1620 = vunpack.c.l.b16 %v406
      %v1621 = vunpack.c.h.b16 %v406
      %v1622 = vunpack.c.l.b16 %v407
      %v1623 = vunpack.c.h.b16 %v407
      %v1624 = vunpack.c.l.b16 %v408
      %v1625 = vunpack.c.h.b16 %v408
      %v1626 = vunpack.c.l.b16 %v409
      %v1627 = vunpack.c.h.b16 %v409
      %v1628 = vunpack.c.l.b16 %v410
      %v1629 = vunpack.c.h.b16 %v410
      %v1630 = vunpack.c.l.b16 %v411
      %v1631 = vunpack.c.h.b16 %v411
      %v1632 = vunpack.c.l.b16 %v412
      %v1633 = vunpack.c.h.b16 %v412
      %v1634 = vunpack.c.l.b16 %v413
      %v1635 = vunpack.c.h.b16 %v413
      %v1636 = vunpack.c.l.b16 %v414
      %v1637 = vunpack.c.h.b16 %v414
      %v1638 = vunpack.c.l.b16 %v415
      %v1639 = vunpack.c.h.b16 %v415
      %v1640 = vunpack.c.l.b16 %v416
      %v1641 = vunpack.c.h.b16 %v416
      %v1642 = vunpack.c.l.b16 %v417
      %v1643 = vunpack.c.h.b16 %v417
      %v1644 = vunpack.c.l.b16 %v418
      %v1645 = vunpack.c.h.b16 %v418
      %v1646 = vunpack.c.l.b16 %v419
      %v1647 = vunpack.c.h.b16 %v419
      %v1648 = vunpack.c.l.b16 %v420
      %v1649 = vunpack.c.h.b16 %v420
      %v1650 = vunpack.c.l.b16 %v421
      %v1651 = vunpack.c.h.b16 %v421
      %v1652 = vunpack.c.l.b16 %v422
      %v1653 = vunpack.c.h.b16 %v422
      %v1654 = vunpack.c.l.b16 %v423
      %v1655 = vunpack.c.h.b16 %v423
      %v1656 = vunpack.c.l.b16 %v424
      %v1657 = vunpack.c.h.b16 %v424
      %v1658 = vunpack.c.l.b16 %v425
      %v1659 = vunpack.c.h.b16 %v425
      %v1660 = vunpack.c.l.b16 %v426
      %v1661 = vunpack.c.h.b16 %v426
      %v1662 = vunpack.c.l.b16 %v427
      %v1663 = vunpack.c.h.b16 %v427
      %v1664 = vunpack.c.l.b16 %v428
      %v1665 = vunpack.c.h.b16 %v428
      %v1666 = vunpack.c.l.b16 %v429
      %v1667 = vunpack.c.h.b16 %v429
      %v1668 = vunpack.c.l.b16 %v430
      %v1669 = vunpack.c.h.b16 %v430
      %v1670 = vunpack.c.l.b16 %v431
      %v1671 = vunpack.c.h.b16 %v431
      %v1672 = vunpack.c.l.b16 %v432
      %v1673 = vunpack.c.h.b16 %v432
      %v1674 = vunpack.c.l.b16 %v433
      %v1675 = vunpack.c.h.b16 %v433
      %v1676 = vunpack.c.l.b16 %v434
      %v1677 = vunpack.c.h.b16 %v434
      %v1678 = vunpack.c.l.b16 %v435
      %v1679 = vunpack.c.h.b16 %v435
      %v1680 = vunpack.c.l.b16 %v436
      %v1681 = vunpack.c.h.b16 %v436
      %v1682 = vunpack.c.l.b16 %v437
      %v1683 = vunpack.c.h.b16 %v437
      %v1684 = vunpack.c.l.b16 %v438
      %v1685 = vunpack.c.h.b16 %v438
      %v1686 = vunpack.c.l.b16 %v439
      %v1687 = vunpack.c.h.b16 %v439
      %v1688 = vunpack.c.l.b16 %v440
      %v1689 = vunpack.c.h.b16 %v440
      %v1690 = vunpack.c.l.b16 %v441
      %v1691 = vunpack.c.h.b16 %v441
      %v1692 = vunpack.c.l.b16 %v442
      %v1693 = vunpack.c.h.b16 %v442
      %v1694 = vunpack.c.l.b16 %v443
      %v1695 = vunpack.c.h.b16 %v443
      %v1696 = vunpack.c.l.b16 %v444
      %v1697 = vunpack.c.h.b16 %v444
      %v1698 = vunpack.c.l.b16 %v445
      %v1699 = vunpack.c.h.b16 %v445
      %v1700 = vunpack.c.l.b16 %v446
      %v1701 = vunpack.c.h.b16 %v446
      %v1702 = vunpack.c.l.b16 %v447
      %v1703 = vunpack.c.h.b16 %v447
      %v1704 = vunpack.c.l.b16 %v448
      %v1705 = vunpack.c.h.b16 %v448
      %v1706 = vunpack.c.l.b16 %v449
      %v1707 = vunpack.c.h.b16 %v449
      %v1708 = vunpack.c.l.b16 %v450
      %v1709 = vunpack.c.h.b16 %v450
      %v1710 = vunpack.c.l.b16 %v451
      %v1711 = vunpack.c.h.b16 %v451
      %v1712 = vunpack.c.l.b16 %v452
      %v1713 = vunpack.c.h.b16 %v452
      %v1714 = vunpack.c.l.b16 %v453
      %v1715 = vunpack.c.h.b16 %v453
      %v1716 = vunpack.c.l.b16 %v454
      %v1717 = vunpack.c.h.b16 %v454
      %v1718 = vunpack.c.l.b16 %v455
      %v1719 = vunpack.c.h.b16 %v455
      %v1720 = vunpack.c.l.b16 %v456
      %v1721 = vunpack.c.h.b16 %v456
      %v1722 = vunpack.c.l.b16 %v457
      %v1723 = vunpack.c.h.b16 %v457
      %v1724 = vunpack.c.l.b16 %v458
      %v1725 = vunpack.c.h.b16 %v458
      %v1726 = vunpack.c.l.b16 %v459
      %v1727 = vunpack.c.h.b16 %v459
      %v1728 = vunpack.c.l.b16 %v460
      %v1729 = vunpack.c.h.b16 %v460
      %v1730 = vunpack.c.l.b16 %v461
      %v1731 = vunpack.c.h.b16 %v461
      %v1732 = vunpack.c.l.b16 %v462
      %v1733 = vunpack.c.h.b16 %v462
      %v1734 = vunpack.c.l.b16 %v463
      %v1735 = vunpack.c.h.b16 %v463
      %v1736 = vunpack.c.l.b16 %v464
      %v1737 = vunpack.c.h.b16 %v464
      %v1738 = vunpack.c.l.b16 %v465
      %v1739 = vunpack.c.h.b16 %v465
      %v1740 = vunpack.c.l.b16 %v466
      %v1741 = vunpack.c.h.b16 %v466
      %v1742 = vunpack.c.l.b16 %v467
      %v1743 = vunpack.c.h.b16 %v467
      %v1744 = vunpack.c.l.b16 %v468
      %v1745 = vunpack.c.h.b16 %v468
      %v1746 = vunpack.c.l.b16 %v469
      %v1747 = vunpack.c.h.b16 %v469
      %v1748 = vunpack.c.l.b16 %v470
      %v1749 = vunpack.c.h.b16 %v470
      %v1750 = vunpack.c.l.b16 %v471
      %v1751 = vunpack.c.h.b16 %v471
      %v1752 = vunpack.c.l.b16 %v472
      %v1753 = vunpack.c.h.b16 %v472
      %v1754 = vunpack.c.l.b16 %v473
      %v1755 = vunpack.c.h.b16 %v473
      %v1756 = vunpack.c.l.b16 %v474
      %v1757 = vunpack.c.h.b16 %v474
      %v1758 = vunpack.c.l.b16 %v475
      %v1759 = vunpack.c.h.b16 %v475
      %v1760 = vunpack.c.l.b16 %v476
      %v1761 = vunpack.c.h.b16 %v476
      %v1762 = vunpack.c.l.b16 %v477
      %v1763 = vunpack.c.h.b16 %v477
      %v1764 = vunpack.c.l.b16 %v478
      %v1765 = vunpack.c.h.b16 %v478
      %v1766 = vunpack.c.l.b16 %v479
      %v1767 = vunpack.c.h.b16 %v479
      %v1768 = vunpack.c.l.b16 %v480
      %v1769 = vunpack.c.h.b16 %v480
      %v1770 = vunpack.c.l.b16 %v481
      %v1771 = vunpack.c.h.b16 %v481
      %v1772 = vunpack.c.l.b16 %v482
      %v1773 = vunpack.c.h.b16 %v482
      %v1774 = vunpack.c.l.b16 %v483
      %v1775 = vunpack.c.h.b16 %v483
      %v1776 = vunpack.c.l.b16 %v484
      %v1777 = vunpack.c.h.b16 %v484
      %v1778 = vunpack.c.l.b16 %v485
      %v1779 = vunpack.c.h.b16 %v485
      %v1780 = vunpack.c.l.b16 %v486
      %v1781 = vunpack.c.h.b16 %v486
      %v1782 = vunpack.c.l.b16 %v487
      %v1783 = vunpack.c.h.b16 %v487
      %v1784 = vunpack.c.l.b16 %v488
      %v1785 = vunpack.c.h.b16 %v488
      %v1786 = vunpack.c.l.b16 %v489
      %v1787 = vunpack.c.h.b16 %v489
      %v1788 = vunpack.c.l.b16 %v490
      %v1789 = vunpack.c.h.b16 %v490
      %v1790 = vunpack.c.l.b16 %v491
      %v1791 = vunpack.c.h.b16 %v491
      %v1792 = vunpack.c.l.b16 %v492
      %v1793 = vunpack.c.h.b16 %v492
      %v1794 = vunpack.c.l.b16 %v493
      %v1795 = vunpack.c.h.b16 %v493
      %v1796 = vunpack.c.l.b16 %v494
      %v1797 = vunpack.c.h.b16 %v494
      %v1798 = vunpack.c.l.b16 %v495
      %v1799 = vunpack.c.h.b16 %v495
      %v1800 = vunpack.c.l.b16 %v496
      %v1801 = vunpack.c.h.b16 %v496
      %v1802 = vunpack.c.l.b16 %v497
      %v1803 = vunpack.c.h.b16 %v497
      %v1804 = vunpack.c.l.b16 %v498
      %v1805 = vunpack.c.h.b16 %v498
      %v1806 = vunpack.c.l.b16 %v499
      %v1807 = vunpack.c.h.b16 %v499
      %v1808 = vunpack.c.l.b16 %v500
      %v1809 = vunpack.c.h.b16 %v500
      %v1810 = vunpack.c.l.b16 %v501
      %v1811 = vunpack.c.h.b16 %v501
      %v1812 = vunpack.c.l.b16 %v502
      %v1813 = vunpack.c.h.b16 %v502
      %v1814 = vunpack.c.l.b16 %v503
      %v1815 = vunpack.c.h.b16 %v503
      %v1816 = vunpack.c.l.b16 %v504
      %v1817 = vunpack.c.h.b16 %v504
      %v1818 = vunpack.c.l.b16 %v505
      %v1819 = vunpack.c.h.b16 %v505
      %v1820 = vunpack.c.l.b16 %v506
      %v1821 = vunpack.c.h.b16 %v506
      %v1822 = vunpack.c.l.b16 %v507
      %v1823 = vunpack.c.h.b16 %v507
      %v1824 = vunpack.c.l.b16 %v508
      %v1825 = vunpack.c.h.b16 %v508
      %v1826 = vunpack.c.l.b16 %v509
      %v1827 = vunpack.c.h.b16 %v509
      %v1828 = vunpack.c.l.b16 %v510
      %v1829 = vunpack.c.h.b16 %v510
      %v1830 = vunpack.c.l.b16 %v511
      %v1831 = vunpack.c.h.b16 %v511
      %v1832 = vunpack.c.l.b16 %v512
      %v1833 = vunpack.c.h.b16 %v512
      %v1834 = vunpack.c.l.b16 %v513
      %v1835 = vunpack.c.h.b16 %v513
      %v1836 = vunpack.c.l.b16 %v514
      %v1837 = vunpack.c.h.b16 %v514
      %v1838 = vunpack.c.l.b16 %v515
      %v1839 = vunpack.c.h.b16 %v515
      %v1840 = vunpack.c.l.b16 %v516
      %v1841 = vunpack.c.h.b16 %v516
      %v1842 = vunpack.c.l.b16 %v517
      %v1843 = vunpack.c.h.b16 %v517
      %v1844 = vunpack.c.l.b16 %v518
      %v1845 = vunpack.c.h.b16 %v518
      %v1846 = vunpack.c.l.b16 %v519
      %v1847 = vunpack.c.h.b16 %v519
      %v1848 = vunpack.c.l.b16 %v520
      %v1849 = vunpack.c.h.b16 %v520
      %v1850 = vunpack.c.l.b16 %v521
      %v1851 = vunpack.c.h.b16 %v521
      %v1852 = vunpack.c.l.b16 %v522
      %v1853 = vunpack.c.h.b16 %v522
      %v1854 = vunpack.c.l.b16 %v523
      %v1855 = vunpack.c.h.b16 %v523
      %v1856 = vunpack.c.l.b16 %v524
      %v1857 = vunpack.c.h.b16 %v524
      %v1858 = vunpack.c.l.b16 %v525
      %v1859 = vunpack.c.h.b16 %v525
      %v1860 = vunpack.c.l.b16 %v526
      %v1861 = vunpack.c.h.b16 %v526
      %v1862 = vunpack.c.l.b16 %v527
      %v1863 = vunpack.c.h.b16 %v527
      %v1864 = vunpack.c.l.b16 %v528
      %v1865 = vunpack.c.h.b16 %v528
      %v1866 = vunpack.c.l.b16 %v529
      %v1867 = vunpack.c.h.b16 %v529
      %v1868 = vunpack.c.l.b16 %v530
      %v1869 = vunpack.c.h.b16 %v530
      %v1870 = vunpack.c.l.b16 %v531
      %v1871 = vunpack.c.h.b16 %v531
      %v1872 = vunpack.c.l.b16 %v532
      %v1873 = vunpack.c.h.b16 %v532
      %v1874 = vunpack.c.l.b16 %v533
      %v1875 = vunpack.c.h.b16 %v533
      %v1876 = vunpack.c.l.b16 %v534
      %v1877 = vunpack.c.h.b16 %v534
      %v1878 = vunpack.c.l.b16 %v535
      %v1879 = vunpack.c.h.b16 %v535
      %v1880 = vunpack.c.l.b16 %v536
      %v1881 = vunpack.c.h.b16 %v536
      %v1882 = vunpack.c.l.b16 %v537
      %v1883 = vunpack.c.h.b16 %v537
      %v1884 = vunpack.c.l.b16 %v538
      %v1885 = vunpack.c.h.b16 %v538
      %v1886 = vunpack.c.l.b16 %v539
      %v1887 = vunpack.c.h.b16 %v539
      %v1888 = vunpack.c.l.b16 %v540
      %v1889 = vunpack.c.h.b16 %v540
      %v1890 = vunpack.c.l.b16 %v541
      %v1891 = vunpack.c.h.b16 %v541
      %v1892 = vunpack.c.l.b16 %v542
      %v1893 = vunpack.c.h.b16 %v542
      %v1894 = vunpack.c.l.b16 %v543
      %v1895 = vunpack.c.h.b16 %v543
      %v1896 = vunpack.c.l.b16 %v544
      %v1897 = vunpack.c.h.b16 %v544
      %v1898 = vunpack.c.l.b16 %v545
      %v1899 = vunpack.c.h.b16 %v545
      %v1900 = vunpack.c.l.b16 %v546
      %v1901 = vunpack.c.h.b16 %v546
      %v1902 = vunpack.c.l.b16 %v547
      %v1903 = vunpack.c.h.b16 %v547
      %v1904 = vunpack.c.l.b16 %v548
      %v1905 = vunpack.c.h.b16 %v548
      %v1906 = vunpack.c.l.b16 %v549
      %v1907 = vunpack.c.h.b16 %v549
      %v1908 = vunpack.c.l.b16 %v550
      %v1909 = vunpack.c.h.b16 %v550
      %v1910 = vunpack.c.l.b16 %v551
      %v1911 = vunpack.c.h.b16 %v551
      %v1912 = vunpack.c.l.b16 %v552
      %v1913 = vunpack.c.h.b16 %v552
      %v1914 = vunpack.c.l.b16 %v553
      %v1915 = vunpack.c.h.b16 %v553
      %v1916 = vunpack.c.l.b16 %v554
      %v1917 = vunpack.c.h.b16 %v554
      %v1918 = vunpack.c.l.b16 %v555
      %v1919 = vunpack.c.h.b16 %v555
      %v1920 = vunpack.c.l.b16 %v556
      %v1921 = vunpack.c.h.b16 %v556
      %v1922 = vunpack.c.l.b16 %v557
      %v1923 = vunpack.c.h.b16 %v557
      %v1924 = vunpack.c.l.b16 %v558
      %v1925 = vunpack.c.h.b16 %v558
      %v1926 = vunpack.c.l.b16 %v559
      %v1927 = vunpack.c.h.b16 %v559
      %v1928 = vunpack.c.l.b16 %v560
      %v1929 = vunpack.c.h.b16 %v560
      %v1930 = vunpack.c.l.b16 %v561
      %v1931 = vunpack.c.h.b16 %v561
      %v1932 = vunpack.c.l.b16 %v562
      %v1933 = vunpack.c.h.b16 %v562
      %v1934 = vunpack.c.l.b16 %v563
      %v1935 = vunpack.c.h.b16 %v563
      %v1936 = vunpack.c.l.b16 %v564
      %v1937 = vunpack.c.h.b16 %v564
      %v1938 = vunpack.c.l.b16 %v565
      %v1939 = vunpack.c.h.b16 %v565
      %v1940 = vunpack.c.l.b16 %v566
      %v1941 = vunpack.c.h.b16 %v566
      %v1942 = vunpack.c.l.b16 %v567
      %v1943 = vunpack.c.h.b16 %v567
      %v1944 = vunpack.c.l.b16 %v568
      %v1945 = vunpack.c.h.b16 %v568
      %v1946 = vunpack.c.l.b16 %v569
      %v1947 = vunpack.c.h.b16 %v569
      %v1948 = vunpack.c.l.b16 %v570
      %v1949 = vunpack.c.h.b16 %v570
      %v1950 = vunpack.c.l.b16 %v571
      %v1951 = vunpack.c.h.b16 %v571
      %v1952 = vunpack.c.l.b16 %v572
      %v1953 = vunpack.c.h.b16 %v572
      %v1954 = vunpack.c.l.b16 %v573
      %v1955 = vunpack.c.h.b16 %v573
      %v1956 = vunpack.c.l.b16 %v574
      %v1957 = vunpack.c.h.b16 %v574
      %v1958 = vunpack.c.l.b16 %v575
      %v1959 = vunpack.c.h.b16 %v575
      %v1960 = vunpack.c.l.b16 %v576
      %v1961 = vunpack.c.h.b16 %v576
      %v1962 = vunpack.c.l.b16 %v577
      %v1963 = vunpack.c.h.b16 %v577
      %v1964 = vunpack.c.l.b16 %v578
      %v1965 = vunpack.c.h.b16 %v578
      %v1966 = vunpack.c.l.b16 %v579
      %v1967 = vunpack.c.h.b16 %v579
      %v1968 = vunpack.c.l.b16 %v580
      %v1969 = vunpack.c.h.b16 %v580
      %v1970 = vunpack.c.l.b16 %v581
      %v1971 = vunpack.c.h.b16 %v581
      %v1972 = vunpack.c.l.b16 %v582
      %v1973 = vunpack.c.h.b16 %v582
      %v1974 = vunpack.c.l.b16 %v583
      %v1975 = vunpack.c.h.b16 %v583
      %v1976 = vunpack.c.l.b16 %v584
      %v1977 = vunpack.c.h.b16 %v584
      %v1978 = vunpack.c.l.b16 %v585
      %v1979 = vunpack.c.h.b16 %v585
      %v1980 = vunpack.c.l.b16 %v586
      %v1981 = vunpack.c.h.b16 %v586
      %v1982 = vunpack.c.l.b16 %v587
      %v1983 = vunpack.c.h.b16 %v587
      %v1984 = vunpack.c.l.b16 %v588
      %v1985 = vunpack.c.h.b16 %v588
      %v1986 = vunpack.c.l.b16 %v589
      %v1987 = vunpack.c.h.b16 %v589
      %v1988 = vunpack.c.l.b16 %v590
      %v1989 = vunpack.c.h.b16 %v590
      %v1990 = vunpack.c.l.b16 %v591
      %v1991 = vunpack.c.h.b16 %v591
      %v1992 = vunpack.c.l.b16 %v592
      %v1993 = vunpack.c.h.b16 %v592
      %v1994 = vunpack.c.l.b16 %v593
      %v1995 = vunpack.c.h.b16 %v593
      %v1996 = vunpack.c.l.b16 %v594
      %v1997 = vunpack.c.h.b16 %v594
      %v1998 = vunpack.c.l.b16 %v595
      %v1999 = vunpack.c.h.b16 %v595
      %v2000 = vunpack.c.l.b16 %v596
      %v2001 = vunpack.c.h.b16 %v596
      %v2002 = vunpack.c.l.b16 %v597
      %v2003 = vunpack.c.h.b16 %v597
      %v2004 = vunpack.c.l.b16 %v598
      %v2005 = vunpack.c.h.b16 %v598
      %v2006 = vunpack.c.l.b16 %v599
      %v2007 = vunpack.c.h.b16 %v599
      %v2008 = vunpack.c.l.b16 %v600
      %v2009 = vunpack.c.h.b16 %v600
      %v2010 = vunpack.c.l.b16 %v601
      %v2011 = vunpack.c.h.b16 %v601
      %v2012 = vunpack.c.l.b16 %v602
      %v2013 = vunpack.c.h.b16 %v602
      %v2014 = vunpack.c.l.b16 %v603
      %v2015 = vunpack.c.h.b16 %v603
      %v2016 = vunpack.c.l.b16 %v604
      %v2017 = vunpack.c.h.b16 %v604
      %v2018 = vunpack.c.l.b16 %v605
      %v2019 = vunpack.c.h.b16 %v605
      %v2020 = vunpack.c.l.b16 %v606
      %v2021 = vunpack.c.h.b16 %v606
      %v2022 = vunpack.c.l.b16 %v607
      %v2023 = vunpack.c.h.b16 %v607
      %v2024 = vunpack.c.l.b16 %v608
      %v2025 = vunpack.c.h.b16 %v608
      %v2026 = vunpack.c.l.b16 %v609
      %v2027 = vunpack.c.h.b16 %v609
      %v2028 = vunpack.c.l.b16 %v610
      %v2029 = vunpack.c.h.b16 %v610
      %v2030 = vunpack.c.l.b16 %v611
      %v2031 = vunpack.c.h.b16 %v611
      %v2032 = vunpack.c.l.b16 %v612
      %v2033 = vunpack.c.h.b16 %v612
      %v2034 = vunpack.c.l.b16 %v613
      %v2035 = vunpack.c.h.b16 %v613
      %v2036 = vunpack.c.l.b16 %v614
      %v2037 = vunpack.c.h.b16 %v614
      %v2038 = vunpack.c.l.b16 %v615
      %v2039 = vunpack.c.h.b16 %v615
      %v2040 = vunpack.c.l.b16 %v616
      %v2041 = vunpack.c.h.b16 %v616
      %v2042 = vunpack.c.l.b16 %v617
      %v2043 = vunpack.c.h.b16 %v617
      %v2044 = vunpack.c.l.b16 %v618
      %v2045 = vunpack.c.h.b16 %v618
      %v2046 = vunpack.c.l.b16 %v619
      %v2047 = vunpack.c.h.b16 %v619
      %v2048 = vunpack.c.l.b16 %v620
      %v2049 = vunpack.c.h.b16 %v620
      %v2050 = vunpack.c.l.b16 %v621
      %v2051 = vunpack.c.h.b16 %v621
      %v2052 = vunpack.c.l.b16 %v622
      %v2053 = vunpack.c.h.b16 %v622
      %v2054 = vunpack.c.l.b16 %v623
      %v2055 = vunpack.c.h.b16 %v623
      %v2056 = vunpack.c.l.b16 %v624
      %v2057 = vunpack.c.h.b16 %v624
      %v2058 = vunpack.c.l.b16 %v625
      %v2059 = vunpack.c.h.b16 %v625
      %v2060 = vunpack.c.l.b16 %v626
      %v2061 = vunpack.c.h.b16 %v626
      %v2062 = vunpack.c.l.b16 %v627
      %v2063 = vunpack.c.h.b16 %v627
      %v2064 = vunpack.c.l.b16 %v628
      %v2065 = vunpack.c.h.b16 %v628
      %v2066 = vunpack.c.l.b16 %v629
      %v2067 = vunpack.c.h.b16 %v629
      %v2068 = vunpack.c.l.b16 %v630
      %v2069 = vunpack.c.h.b16 %v630
      %v2070 = vunpack.c.l.b16 %v631
      %v2071 = vunpack.c.h.b16 %v631
      %v2072 = vunpack.c.l.b16 %v632
      %v2073 = vunpack.c.h.b16 %v632
      %v2074 = vunpack.c.l.b16 %v633
      %v2075 = vunpack.c.h.b16 %v633
      %v2076 = vunpack.c.l.b16 %v634
      %v2077 = vunpack.c.h.b16 %v634
      %v2078 = vunpack.c.l.b16 %v635
      %v2079 = vunpack.c.h.b16 %v635
      %v2080 = vunpack.c.l.b16 %v636
      %v2081 = vunpack.c.h.b16 %v636
      %v2082 = vunpack.c.l.b16 %v637
      %v2083 = vunpack.c.h.b16 %v637
      %v2084 = vunpack.c.l.b16 %v638
      %v2085 = vunpack.c.h.b16 %v638
      %v2086 = vunpack.c.l.b16 %v639
      %v2087 = vunpack.c.h.b16 %v639
      %v2088 = vunpack.c.l.b16 %v640
      %v2089 = vunpack.c.h.b16 %v640
      %v2090 = vunpack.c.l.b16 %v641
      %v2091 = vunpack.c.h.b16 %v641
      %v2092 = vunpack.c.l.b16 %v642
      %v2093 = vunpack.c.h.b16 %v642
      %v2094 = vunpack.c.l.b16 %v643
      %v2095 = vunpack.c.h.b16 %v643
      %v2096 = vunpack.c.l.b16 %v644
      %v2097 = vunpack.c.h.b16 %v644
      %v2098 = vunpack.c.l.b16 %v645
      %v2099 = vunpack.c.h.b16 %v645
      %v2100 = vunpack.c.l.b16 %v646
      %v2101 = vunpack.c.h.b16 %v646
      %v2102 = vunpack.c.l.b16 %v647
      %v2103 = vunpack.c.h.b16 %v647
      %v2104 = vunpack.c.l.b16 %v648
      %v2105 = vunpack.c.h.b16 %v648
      %v2106 = vunpack.c.l.b16 %v649
      %v2107 = vunpack.c.h.b16 %v649
      %v2108 = vunpack.c.l.b16 %v650
      %v2109 = vunpack.c.h.b16 %v650
      %v2110 = vunpack.c.l.b16 %v651
      %v2111 = vunpack.c.h.b16 %v651
      %v2112 = vunpack.c.l.b16 %v652
      %v2113 = vunpack.c.h.b16 %v652
      %v2114 = vunpack.c.l.b16 %v653
      %v2115 = vunpack.c.h.b16 %v653
      %v2116 = vunpack.c.l.b16 %v654
      %v2117 = vunpack.c.h.b16 %v654
      %v2118 = vunpack.c.l.b16 %v655
      %v2119 = vunpack.c.h.b16 %v655
      %v2120 = vunpack.c.l.b16 %v656
      %v2121 = vunpack.c.h.b16 %v656
      %v2122 = vunpack.c.l.b16 %v657
      %v2123 = vunpack.c.h.b16 %v657
      %v2124 = vunpack.c.l.b16 %v658
      %v2125 = vunpack.c.h.b16 %v658
      %v2126 = vunpack.c.l.b16 %v659
      %v2127 = vunpack.c.h.b16 %v659
      %v2128 = vunpack.c.l.b16 %v660
      %v2129 = vunpack.c.h.b16 %v660
      %v2130 = vunpack.c.l.b16 %v661
      %v2131 = vunpack.c.h.b16 %v661
      %v2132 = vunpack.c.l.b16 %v662
      %v2133 = vunpack.c.h.b16 %v662
      %v2134 = vunpack.c.l.b16 %v663
      %v2135 = vunpack.c.h.b16 %v663
      %v2136 = vunpack.c.l.b16 %v664
      %v2137 = vunpack.c.h.b16 %v664
      %v2138 = vunpack.c.l.b16 %v665
      %v2139 = vunpack.c.h.b16 %v665
      %v2140 = vunpack.c.l.b16 %v666
      %v2141 = vunpack.c.h.b16 %v666
      %v2142 = vunpack.c.l.b16 %v667
      %v2143 = vunpack.c.h.b16 %v667
      %v2144 = vunpack.c.l.b16 %v668
      %v2145 = vunpack.c.h.b16 %v668
      %v2146 = vunpack.c.l.b16 %v669
      %v2147 = vunpack.c.h.b16 %v669
      %v2148 = vunpack.c.l.b16 %v670
      %v2149 = vunpack.c.h.b16 %v670
      %v2150 = vunpack.c.l.b16 %v671
      %v2151 = vunpack.c.h.b16 %v671
      %v2152 = vunpack.c.l.b16 %v672
      %v2153 = vunpack.c.h.b16 %v672
      %v2154 = vunpack.c.l.b16 %v673
      %v2155 = vunpack.c.h.b16 %v673
      %v2156 = vunpack.c.l.b16 %v674
      %v2157 = vunpack.c.h.b16 %v674
      %v2158 = vunpack.c.l.b16 %v675
      %v2159 = vunpack.c.h.b16 %v675
      %v2160 = vunpack.c.l.b16 %v676
      %v2161 = vunpack.c.h.b16 %v676
      %v2162 = vunpack.c.l.b16 %v677
      %v2163 = vunpack.c.h.b16 %v677
      %v2164 = vunpack.c.l.b16 %v678
      %v2165 = vunpack.c.h.b16 %v678
      %v2166 = vunpack.c.l.b16 %v679
      %v2167 = vunpack.c.h.b16 %v679
      %v2168 = vunpack.c.l.b16 %v680
      %v2169 = vunpack.c.h.b16 %v680
      %v2170 = vunpack.c.l.b16 %v681
      %v2171 = vunpack.c.h.b16 %v681
      %v2172 = vunpack.c.l.b16 %v682
      %v2173 = vunpack.c.h.b16 %v682
      %v2174 = vunpack.c.l.b16 %v683
      %v2175 = vunpack.c.h.b16 %v683
      %v2176 = vunpack.c.l.b16 %v684
      %v2177 = vunpack.c.h.b16 %v684
      %v2178 = vunpack.c.l.b16 %v685
      %v2179 = vunpack.c.h.b16 %v685
      %v2180 = vunpack.c.l.b16 %v686
      %v2181 = vunpack.c.h.b16 %v686
      %v2182 = vunpack.c.l.b16 %v687
      %v2183 = vunpack.c.h.b16 %v687
      %v2184 = vunpack.c.l.b16 %v688
      %v2185 = vunpack.c.h.b16 %v688
      %v2186 = vunpack.c.l.b16 %v689
      %v2187 = vunpack.c.h.b16 %v689
      %v2188 = vunpack.c.l.b16 %v690
      %v2189 = vunpack.c.h.b16 %v690
      %v2190 = vunpack.c.l.b16 %v691
      %v2191 = vunpack.c.h.b16 %v691
      %v2192 = vunpack.c.l.b16 %v692
      %v2193 = vunpack.c.h.b16 %v692
      %v2194 = vunpack.c.l.b16 %v693
      %v2195 = vunpack.c.h.b16 %v693
      %v2196 = vunpack.c.l.b16 %v694
      %v2197 = vunpack.c.h.b16 %v694
      %v2198 = vunpack.c.l.b16 %v695
      %v2199 = vunpack.c.h.b16 %v695
      %v2200 = vunpack.c.l.b16 %v696
      %v2201 = vunpack.c.h.b16 %v696
      %v2202 = vunpack.c.l.b16 %v697
      %v2203 = vunpack.c.h.b16 %v697
      %v2204 = vunpack.c.l.b16 %v698
      %v2205 = vunpack.c.h.b16 %v698
      %v2206 = vunpack.c.l.b16 %v699
      %v2207 = vunpack.c.h.b16 %v699
      %v2208 = vunpack.c.l.b16 %v700
      %v2209 = vunpack.c.h.b16 %v700
      %v2210 = vunpack.c.l.b16 %v701
      %v2211 = vunpack.c.h.b16 %v701
      %v2212 = vunpack.c.l.b16 %v702
      %v2213 = vunpack.c.h.b16 %v702
      %v2214 = vunpack.c.l.b16 %v703
      %v2215 = vunpack.c.h.b16 %v703
      %v2216 = vunpack.c.l.b16 %v704
      %v2217 = vunpack.c.h.b16 %v704
      %v2218 = vunpack.c.l.b16 %v705
      %v2219 = vunpack.c.h.b16 %v705
      %v2220 = vunpack.c.l.b16 %v706
      %v2221 = vunpack.c.h.b16 %v706
      %v2222 = vunpack.c.l.b16 %v707
      %v2223 = vunpack.c.h.b16 %v707
      %v2224 = vunpack.c.l.b16 %v708
      %v2225 = vunpack.c.h.b16 %v708
      %v2226 = vunpack.c.l.b16 %v709
      %v2227 = vunpack.c.h.b16 %v709
      %v2228 = vunpack.c.l.b16 %v710
      %v2229 = vunpack.c.h.b16 %v710
      %v2230 = vunpack.c.l.b16 %v711
      %v2231 = vunpack.c.h.b16 %v711
      %v2232 = vunpack.c.l.b16 %v712
      %v2233 = vunpack.c.h.b16 %v712
      %v2234 = vunpack.c.l.b16 %v713
      %v2235 = vunpack.c.h.b16 %v713
      %v2236 = vunpack.c.l.b16 %v714
      %v2237 = vunpack.c.h.b16 %v714
      %v2238 = vunpack.c.l.b16 %v715
      %v2239 = vunpack.c.h.b16 %v715
      %v2240 = vunpack.c.l.b16 %v716
      %v2241 = vunpack.c.h.b16 %v716
      %v2242 = vunpack.c.l.b16 %v717
      %v2243 = vunpack.c.h.b16 %v717
      %v2244 = vunpack.c.l.b16 %v718
      %v2245 = vunpack.c.h.b16 %v718
      %v2246 = vunpack.c.l.b16 %v719
      %v2247 = vunpack.c.h.b16 %v719
      %v2248 = vunpack.c.l.b16 %v720
      %v2249 = vunpack.c.h.b16 %v720
      %v2250 = vunpack.c.l.b16 %v721
      %v2251 = vunpack.c.h.b16 %v721
      %v2252 = vunpack.c.l.b16 %v722
      %v2253 = vunpack.c.h.b16 %v722
      %v2254 = vunpack.c.l.b16 %v723
      %v2255 = vunpack.c.h.b16 %v723
      %v2256 = vunpack.c.l.b16 %v724
      %v2257 = vunpack.c.h.b16 %v724
      %v2258 = vunpack.c.l.b16 %v725
      %v2259 = vunpack.c.h.b16 %v725
      %v2260 = vunpack.c.l.b16 %v726
      %v2261 = vunpack.c.h.b16 %v726
      %v2262 = vunpack.c.l.b16 %v727
      %v2263 = vunpack.c.h.b16 %v727
      %v2264 = vunpack.c.l.b16 %v728
      %v2265 = vunpack.c.h.b16 %v728
      %v2266 = vunpack.c.l.b16 %v729
      %v2267 = vunpack.c.h.b16 %v729
      %v2268 = vunpack.c.l.b16 %v730
      %v2269 = vunpack.c.h.b16 %v730
      %v2270 = vunpack.c.l.b16 %v731
      %v2271 = vunpack.c.h.b16 %v731
      %v2272 = vunpack.c.l.b16 %v732
      %v2273 = vunpack.c.h.b16 %v732
      %v2274 = vunpack.c.l.b16 %v733
      %v2275 = vunpack.c.h.b16 %v733
      %v2276 = vunpack.c.l.b16 %v734
      %v2277 = vunpack.c.h.b16 %v734
      %v2278 = vunpack.c.l.b16 %v735
      %v2279 = vunpack.c.h.b16 %v735
      %v2280 = vunpack.c.l.b16 %v736
      %v2281 = vunpack.c.h.b16 %v736
      %v2282 = vunpack.c.l.b16 %v737
      %v2283 = vunpack.c.h.b16 %v737
      %v2284 = vunpack.c.l.b16 %v738
      %v2285 = vunpack.c.h.b16 %v738
      %v2286 = vunpack.c.l.b16 %v739
      %v2287 = vunpack.c.h.b16 %v739
      %v2288 = vunpack.c.l.b16 %v740
      %v2289 = vunpack.c.h.b16 %v740
      %v2290 = vunpack.c.l.b16 %v741
      %v2291 = vunpack.c.h.b16 %v741
      %v2292 = vunpack.c.l.b16 %v742
      %v2293 = vunpack.c.h.b16 %v742
      %v2294 = vunpack.c.l.b16 %v743
      %v2295 = vunpack.c.h.b16 %v743
      %v2296 = vunpack.c.l.b16 %v744
      %v2297 = vunpack.c.h.b16 %v744
      %v2298 = vunpack.c.l.b16 %v745
      %v2299 = vunpack.c.h.b16 %v745
      %v2300 = vunpack.c.l.b16 %v746
      %v2301 = vunpack.c.h.b16 %v746
      %v2302 = vunpack.c.l.b16 %v747
      %v2303 = vunpack.c.h.b16 %v747
      %v2304 = vunpack.c.l.b16 %v748
      %v2305 = vunpack.c.h.b16 %v748
      %v2306 = vunpack.c.l.b16 %v749
      %v2307 = vunpack.c.h.b16 %v749
      %v2308 = vunpack.c.l.b16 %v750
      %v2309 = vunpack.c.h.b16 %v750
      %v2310 = vunpack.c.l.b16 %v751
      %v2311 = vunpack.c.h.b16 %v751
      %v2312 = vunpack.c.l.b16 %v752
      %v2313 = vunpack.c.h.b16 %v752
      %v2314 = vunpack.c.l.b16 %v753
      %v2315 = vunpack.c.h.b16 %v753
      %v2316 = vunpack.c.l.b16 %v754
      %v2317 = vunpack.c.h.b16 %v754
      %v2318 = vunpack.c.l.b16 %v755
      %v2319 = vunpack.c.h.b16 %v755
      %v2320 = vunpack.c.l.b16 %v756
      %v2321 = vunpack.c.h.b16 %v756
      %v2322 = vunpack.c.l.b16 %v757
      %v2323 = vunpack.c.h.b16 %v757
      %v2324 = vunpack.c.l.b16 %v758
      %v2325 = vunpack.c.h.b16 %v758
      %v2326 = vunpack.c.l.b16 %v759
      %v2327 = vunpack.c.h.b16 %v759
      %v2328 = vunpack.c.l.b16 %v760
      %v2329 = vunpack.c.h.b16 %v760
      %v2330 = vunpack.c.l.b16 %v761
      %v2331 = vunpack.c.h.b16 %v761
      %v2332 = vunpack.c.l.b16 %v762
      %v2333 = vunpack.c.h.b16 %v762
      %v2334 = vunpack.c.l.b16 %v763
      %v2335 = vunpack.c.h.b16 %v763
      %v2336 = vpack.c.b16 %v1316, %v1312
      %v2337 = vpack.c.b16 %v1317, %v1313
      %v2338 = vpack.c.b16 %v1318, %v1314
      %v2339 = vpack.c.b16 %v1319, %v1315
      %v2340 = vpack.c.b16 %v1324, %v1320
      %v2341 = vpack.c.b16 %v1325, %v1321
      %v2342 = vpack.c.b16 %v1326, %v1322
      %v2343 = vpack.c.b16 %v1327, %v1323
      %v2344 = vpack.c.b16 %v1332, %v1328
      %v2345 = vpack.c.b16 %v1333, %v1329
      %v2346 = vpack.c.b16 %v1334, %v1330
      %v2347 = vpack.c.b16 %v1335, %v1331
      %v2348 = vpack.c.b16 %v1340, %v1336
      %v2349 = vpack.c.b16 %v1341, %v1337
      %v2350 = vpack.c.b16 %v1342, %v1338
      %v2351 = vpack.c.b16 %v1343, %v1339
      %v2352 = vpack.c.b16 %v1348, %v1344
      %v2353 = vpack.c.b16 %v1349, %v1345
      %v2354 = vpack.c.b16 %v1350, %v1346
      %v2355 = vpack.c.b16 %v1351, %v1347
      %v2356 = vpack.c.b16 %v1356, %v1352
      %v2357 = vpack.c.b16 %v1357, %v1353
      %v2358 = vpack.c.b16 %v1358, %v1354
      %v2359 = vpack.c.b16 %v1359, %v1355
      %v2360 = vpack.c.b16 %v1364, %v1360
      %v2361 = vpack.c.b16 %v1365, %v1361
      %v2362 = vpack.c.b16 %v1366, %v1362
      %v2363 = vpack.c.b16 %v1367, %v1363
      %v2364 = vpack.c.b16 %v1372, %v1368
      %v2365 = vpack.c.b16 %v1373, %v1369
      %v2366 = vpack.c.b16 %v1374, %v1370
      %v2367 = vpack.c.b16 %v1375, %v1371
      %v2368 = vpack.c.b16 %v1380, %v1376
      %v2369 = vpack.c.b16 %v1381, %v1377
      %v2370 = vpack.c.b16 %v1382, %v1378
      %v2371 = vpack.c.b16 %v1383, %v1379
      %v2372 = vpack.c.b16 %v1388, %v1384
      %v2373 = vpack.c.b16 %v1389, %v1385
      %v2374 = vpack.c.b16 %v1390, %v1386
      %v2375 = vpack.c.b16 %v1391, %v1387
      %v2376 = vpack.c.b16 %v1396, %v1392
      %v2377 = vpack.c.b16 %v1397, %v1393
      %v2378 = vpack.c.b16 %v1398, %v1394
      %v2379 = vpack.c.b16 %v1399, %v1395
      %v2380 = vpack.c.b16 %v1404, %v1400
      %v2381 = vpack.c.b16 %v1405, %v1401
      %v2382 = vpack.c.b16 %v1406, %v1402
      %v2383 = vpack.c.b16 %v1407, %v1403
      %v2384 = vpack.c.b16 %v1412, %v1408
      %v2385 = vpack.c.b16 %v1413, %v1409
      %v2386 = vpack.c.b16 %v1414, %v1410
      %v2387 = vpack.c.b16 %v1415, %v1411
      %v2388 = vpack.c.b16 %v1420, %v1416
      %v2389 = vpack.c.b16 %v1421, %v1417
      %v2390 = vpack.c.b16 %v1422, %v1418
      %v2391 = vpack.c.b16 %v1423, %v1419
      %v2392 = vpack.c.b16 %v1428, %v1424
      %v2393 = vpack.c.b16 %v1429, %v1425
      %v2394 = vpack.c.b16 %v1430, %v1426
      %v2395 = vpack.c.b16 %v1431, %v1427
      %v2396 = vpack.c.b16 %v1436, %v1432
      %v2397 = vpack.c.b16 %v1437, %v1433
      %v2398 = vpack.c.b16 %v1438, %v1434
      %v2399 = vpack.c.b16 %v1439, %v1435
      %v2400 = vpack.c.b16 %v1444, %v1440
      %v2401 = vpack.c.b16 %v1445, %v1441
      %v2402 = vpack.c.b16 %v1446, %v1442
      %v2403 = vpack.c.b16 %v1447, %v1443
      %v2404 = vpack.c.b16 %v1452, %v1448
      %v2405 = vpack.c.b16 %v1453, %v1449
      %v2406 = vpack.c.b16 %v1454, %v1450
      %v2407 = vpack.c.b16 %v1455, %v1451
      %v2408 = vpack.c.b16 %v1460, %v1456
      %v2409 = vpack.c.b16 %v1461, %v1457
      %v2410 = vpack.c.b16 %v1462, %v1458
      %v2411 = vpack.c.b16 %v1463, %v1459
      %v2412 = vpack.c.b16 %v1468, %v1464
      %v2413 = vpack.c.b16 %v1469, %v1465
      %v2414 = vpack.c.b16 %v1470, %v1466
      %v2415 = vpack.c.b16 %v1471, %v1467
      %v2416 = vpack.c.b16 %v1476, %v1472
      %v2417 = vpack.c.b16 %v1477, %v1473
      %v2418 = vpack.c.b16 %v1478, %v1474
      %v2419 = vpack.c.b16 %v1479, %v1475
      %v2420 = vpack.c.b16 %v1484, %v1480
      %v2421 = vpack.c.b16 %v1485, %v1481
      %v2422 = vpack.c.b16 %v1486, %v1482
      %v2423 = vpack.c.b16 %v1487, %v1483
      %v2424 = vpack.c.b16 %v1492, %v1488
      %v2425 = vpack.c.b16 %v1493, %v1489
      %v2426 = vpack.c.b16 %v1494, %v1490
      %v2427 = vpack.c.b16 %v1495, %v1491
      %v2428 = vpack.c.b16 %v1500, %v1496
      %v2429 = vpack.c.b16 %v1501, %v1497
      %v2430 = vpack.c.b16 %v1502, %v1498
      %v2431 = vpack.c.b16 %v1503, %v1499
      %v2432 = vpack.c.b16 %v1508, %v1504
      %v2433 = vpack.c.b16 %v1509, %v1505
      %v2434 = vpack.c.b16 %v1510, %v1506
      %v2435 = vpack.c.b16 %v1511, %v1507
      %v2436 = vpack.c.b16 %v1516, %v1512
      %v2437 = vpack.c.b16 %v1517, %v1513
      %v2438 = vpack.c.b16 %v1518, %v1514
      %v2439 = vpack.c.b16 %v1519, %v1515
      %v2440 = vpack.c.b16 %v1524, %v1520
      %v2441 = vpack.c.b16 %v1525, %v1521
      %v2442 = vpack.c.b16 %v1526, %v1522
      %v2443 = vpack.c.b16 %v1527, %v1523
      %v2444 = vpack.c.b16 %v1532, %v1528
      %v2445 = vpack.c.b16 %v1533, %v1529
      %v2446 = vpack.c.b16 %v1534, %v1530
      %v2447 = vpack.c.b16 %v1535, %v1531
      %v2448 = vpack.c.b16 %v1540, %v1536
      %v2449 = vpack.c.b16 %v1541, %v1537
      %v2450 = vpack.c.b16 %v1542, %v1538
      %v2451 = vpack.c.b16 %v1543, %v1539
      %v2452 = vpack.c.b16 %v1548, %v1544
      %v2453 = vpack.c.b16 %v1549, %v1545
      %v2454 = vpack.c.b16 %v1550, %v1546
      %v2455 = vpack.c.b16 %v1551, %v1547
      %v2456 = vpack.c.b16 %v1556, %v1552
      %v2457 = vpack.c.b16 %v1557, %v1553
      %v2458 = vpack.c.b16 %v1558, %v1554
      %v2459 = vpack.c.b16 %v1559, %v1555
      %v2460 = vpack.c.b16 %v1564, %v1560
      %v2461 = vpack.c.b16 %v1565, %v1561
      %v2462 = vpack.c.b16 %v1566, %v1562
      %v2463 = vpack.c.b16 %v1567, %v1563
      %v2464 = vpack.c.b16 %v1572, %v1568
      %v2465 = vpack.c.b16 %v1573, %v1569
      %v2466 = vpack.c.b16 %v1574, %v1570
      %v2467 = vpack.c.b16 %v1575, %v1571
      %v2468 = vpack.c.b16 %v1580, %v1576
      %v2469 = vpack.c.b16 %v1581, %v1577
      %v2470 = vpack.c.b16 %v1582, %v1578
      %v2471 = vpack.c.b16 %v1583, %v1579
      %v2472 = vpack.c.b16 %v1588, %v1584
      %v2473 = vpack.c.b16 %v1589, %v1585
      %v2474 = vpack.c.b16 %v1590, %v1586
      %v2475 = vpack.c.b16 %v1591, %v1587
      %v2476 = vpack.c.b16 %v1596, %v1592
      %v2477 = vpack.c.b16 %v1597, %v1593
      %v2478 = vpack.c.b16 %v1598, %v1594
      %v2479 = vpack.c.b16 %v1599, %v1595
      %v2480 = vpack.c.b16 %v1604, %v1600
      %v2481 = vpack.c.b16 %v1605, %v1601
      %v2482 = vpack.c.b16 %v1606, %v1602
      %v2483 = vpack.c.b16 %v1607, %v1603
      %v2484 = vpack.c.b16 %v1612, %v1608
      %v2485 = vpack.c.b16 %v1613, %v1609
      %v2486 = vpack.c.b16 %v1614, %v1610
      %v2487 = vpack.c.b16 %v1615, %v1611
      %v2488 = vpack.c.b16 %v1620, %v1616
      %v2489 = vpack.c.b16 %v1621, %v1617
      %v2490 = vpack.c.b16 %v1622, %v1618
      %v2491 = vpack.c.b16 %v1623, %v1619
      %v2492 = vpack.c.b16 %v1628, %v1624
      %v2493 = vpack.c.b16 %v1629, %v1625
      %v2494 = vpack.c.b16 %v1630, %v1626
      %v2495 = vpack.c.b16 %v1631, %v1627
      %v2496 = vpack.c.b16 %v1636, %v1632
      %v2497 = vpack.c.b16 %v1637, %v1633
      %v2498 = vpack.c.b16 %v1638, %v1634
      %v2499 = vpack.c.b16 %v1639, %v1635
      %v2500 = vpack.c.b16 %v1644, %v1640
      %v2501 = vpack.c.b16 %v1645, %v1641
      %v2502 = vpack.c.b16 %v1646, %v1642
      %v2503 = vpack.c.b16 %v1647, %v1643
      %v2504 = vpack.c.b16 %v1652, %v1648
      %v2505 = vpack.c.b16 %v1653, %v1649
      %v2506 = vpack.c.b16 %v1654, %v1650
      %v2507 = vpack.c.b16 %v1655, %v1651
      %v2508 = vpack.c.b16 %v1660, %v1656
      %v2509 = vpack.c.b16 %v1661, %v1657
      %v2510 = vpack.c.b16 %v1662, %v1658
      %v2511 = vpack.c.b16 %v1663, %v1659
      %v2512 = vpack.c.b16 %v1668, %v1664
      %v2513 = vpack.c.b16 %v1669, %v1665
      %v2514 = vpack.c.b16 %v1670, %v1666
      %v2515 = vpack.c.b16 %v1671, %v1667
      %v2516 = vpack.c.b16 %v1676, %v1672
      %v2517 = vpack.c.b16 %v1677, %v1673
      %v2518 = vpack.c.b16 %v1678, %v1674
      %v2519 = vpack.c.b16 %v1679, %v1675
      %v2520 = vpack.c.b16 %v1684, %v1680
      %v2521 = vpack.c.b16 %v1685, %v1681
      %v2522 = vpack.c.b16 %v1686, %v1682
      %v2523 = vpack.c.b16 %v1687, %v1683
      %v2524 = vpack.c.b16 %v1692, %v1688
      %v2525 = vpack.c.b16 %v1693, %v1689
      %v2526 = vpack.c.b16 %v1694, %v1690
      %v2527 = vpack.c.b16 %v1695, %v1691
      %v2528 = vpack.c.b16 %v1700, %v1696
      %v2529 = vpack.c.b16 %v1701, %v1697
      %v2530 = vpack.c.b16 %v1702, %v1698
      %v2531 = vpack.c.b16 %v1703, %v1699
      %v2532 = vpack.c.b16 %v1708, %v1704
      %v2533 = vpack.c.b16 %v1709, %v1705
      %v2534 = vpack.c.b16 %v1710, %v1706
      %v2535 = vpack.c.b16 %v1711, %v1707
      %v2536 = vpack.c.b16 %v1716, %v1712
      %v2537 = vpack.c.b16 %v1717, %v1713
      %v2538 = vpack.c.b16 %v1718, %v1714
      %v2539 = vpack.c.b16 %v1719, %v1715
      %v2540 = vpack.c.b16 %v1724, %v1720
      %v2541 = vpack.c.b16 %v1725, %v1721
      %v2542 = vpack.c.b16 %v1726, %v1722
      %v2543 = vpack.c.b16 %v1727, %v1723
      %v2544 = vpack.c.b16 %v1732, %v1728
      %v2545 = vpack.c.b16 %v1733, %v1729
      %v2546 = vpack.c.b16 %v1734, %v1730
      %v2547 = vpack.c.b16 %v1735, %v1731
      %v2548 = vpack.c.b16 %v1740, %v1736
      %v2549 = vpack.c.b16 %v1741, %v1737
      %v2550 = vpack.c.b16 %v1742, %v1738
      %v2551 = vpack.c.b16 %v1743, %v1739
      %v2552 = vpack.c.b16 %v1748, %v1744
      %v2553 = vpack.c.b16 %v1749, %v1745
      %v2554 = vpack.c.b16 %v1750, %v1746
      %v2555 = vpack.c.b16 %v1751, %v1747
      %v2556 = vpack.c.b16 %v1756, %v1752
      %v2557 = vpack.c.b16 %v1757, %v1753
      %v2558 = vpack.c.b16 %v1758, %v1754
      %v2559 = vpack.c.b16 %v1759, %v1755
      %v2560 = vpack.c.b16 %v1764, %v1760
      %v2561 = vpack.c.b16 %v1765, %v1761
      %v2562 = vpack.c.b16 %v1766, %v1762
      %v2563 = vpack.c.b16 %v1767, %v1763
      %v2564 = vpack.c.b16 %v1772, %v1768
      %v2565 = vpack.c.b16 %v1773, %v1769
      %v2566 = vpack.c.b16 %v1774, %v1770
      %v2567 = vpack.c.b16 %v1775, %v1771
      %v2568 = vpack.c.b16 %v1780, %v1776
      %v2569 = vpack.c.b16 %v1781, %v1777
      %v2570 = vpack.c.b16 %v1782, %v1778
      %v2571 = vpack.c.b16 %v1783, %v1779
      %v2572 = vpack.c.b16 %v1788, %v1784
      %v2573 = vpack.c.b16 %v1789, %v1785
      %v2574 = vpack.c.b16 %v1790, %v1786
      %v2575 = vpack.c.b16 %v1791, %v1787
      %v2576 = vpack.c.b16 %v1796, %v1792
      %v2577 = vpack.c.b16 %v1797, %v1793
      %v2578 = vpack.c.b16 %v1798, %v1794
      %v2579 = vpack.c.b16 %v1799, %v1795
      %v2580 = vpack.c.b16 %v1804, %v1800
      %v2581 = vpack.c.b16 %v1805, %v1801
      %v2582 = vpack.c.b16 %v1806, %v1802
      %v2583 = vpack.c.b16 %v1807, %v1803
      %v2584 = vpack.c.b16 %v1812, %v1808
      %v2585 = vpack.c.b16 %v1813, %v1809
      %v2586 = vpack.c.b16 %v1814, %v1810
      %v2587 = vpack.c.b16 %v1815, %v1811
      %v2588 = vpack.c.b16 %v1820, %v1816
      %v2589 = vpack.c.b16 %v1821, %v1817
      %v2590 = vpack.c.b16 %v1822, %v1818
      %v2591 = vpack.c.b16 %v1823, %v1819
      %v2592 = vpack.c.b16 %v1828, %v1824
      %v2593 = vpack.c.b16 %v1829, %v1825
      %v2594 = vpack.c.b16 %v1830, %v1826
      %v2595 = vpack.c.b16 %v1831, %v1827
      %v2596 = vpack.c.b16 %v1836, %v1832
      %v2597 = vpack.c.b16 %v1837, %v1833
      %v2598 = vpack.c.b16 %v1838, %v1834
      %v2599 = vpack.c.b16 %v1839, %v1835
      %v2600 = vpack.c.b16 %v1844, %v1840
      %v2601 = vpack.c.b16 %v1845, %v1841
      %v2602 = vpack.c.b16 %v1846, %v1842
      %v2603 = vpack.c.b16 %v1847, %v1843
      %v2604 = vpack.c.b16 %v1852, %v1848
      %v2605 = vpack.c.b16 %v1853, %v1849
      %v2606 = vpack.c.b16 %v1854, %v1850
      %v2607 = vpack.c.b16 %v1855, %v1851
      %v2608 = vpack.c.b16 %v1860, %v1856
      %v2609 = vpack.c.b16 %v1861, %v1857
      %v2610 = vpack.c.b16 %v1862, %v1858
      %v2611 = vpack.c.b16 %v1863, %v1859
      %v2612 = vpack.c.b16 %v1868, %v1864
      %v2613 = vpack.c.b16 %v1869, %v1865
      %v2614 = vpack.c.b16 %v1870, %v1866
      %v2615 = vpack.c.b16 %v1871, %v1867
      %v2616 = vpack.c.b16 %v1876, %v1872
      %v2617 = vpack.c.b16 %v1877, %v1873
      %v2618 = vpack.c.b16 %v1878, %v1874
      %v2619 = vpack.c.b16 %v1879, %v1875
      %v2620 = vpack.c.b16 %v1884, %v1880
      %v2621 = vpack.c.b16 %v1885, %v1881
      %v2622 = vpack.c.b16 %v1886, %v1882
      %v2623 = vpack.c.b16 %v1887, %v1883
      %v2624 = vpack.c.b16 %v1892, %v1888
      %v2625 = vpack.c.b16 %v1893, %v1889
      %v2626 = vpack.c.b16 %v1894, %v1890
      %v2627 = vpack.c.b16 %v1895, %v1891
      %v2628 = vpack.c.b16 %v1900, %v1896
      %v2629 = vpack.c.b16 %v1901, %v1897
      %v2630 = vpack.c.b16 %v1902, %v1898
      %v2631 = vpack.c.b16 %v1903, %v1899
      %v2632 = vpack.c.b16 %v1908, %v1904
      %v2633 = vpack.c.b16 %v1909, %v1905
      %v2634 = vpack.c.b16 %v1910, %v1906
      %v2635 = vpack.c.b16 %v1911, %v1907
      %v2636 = vpack.c.b16 %v1916, %v1912
      %v2637 = vpack.c.b16 %v1917, %v1913
      %v2638 = vpack.c.b16 %v1918, %v1914
      %v2639 = vpack.c.b16 %v1919, %v1915
      %v2640 = vpack.c.b16 %v1924, %v1920
      %v2641 = vpack.c.b16 %v1925, %v1921
      %v2642 = vpack.c.b16 %v1926, %v1922
      %v2643 = vpack.c.b16 %v1927, %v1923
      %v2644 = vpack.c.b16 %v1932, %v1928
      %v2645 = vpack.c.b16 %v1933, %v1929
      %v2646 = vpack.c.b16 %v1934, %v1930
      %v2647 = vpack.c.b16 %v1935, %v1931
      %v2648 = vpack.c.b16 %v1940, %v1936
      %v2649 = vpack.c.b16 %v1941, %v1937
      %v2650 = vpack.c.b16 %v1942, %v1938
      %v2651 = vpack.c.b16 %v1943, %v1939
      %v2652 = vpack.c.b16 %v1948, %v1944
      %v2653 = vpack.c.b16 %v1949, %v1945
      %v2654 = vpack.c.b16 %v1950, %v1946
      %v2655 = vpack.c.b16 %v1951, %v1947
      %v2656 = vpack.c.b16 %v1956, %v1952
      %v2657 = vpack.c.b16 %v1957, %v1953
      %v2658 = vpack.c.b16 %v1958, %v1954
      %v2659 = vpack.c.b16 %v1959, %v1955
      %v2660 = vpack.c.b16 %v1964, %v1960
      %v2661 = vpack.c.b16 %v1965, %v1961
      %v2662 = vpack.c.b16 %v1966, %v1962
      %v2663 = vpack.c.b16 %v1967, %v1963
      %v2664 = vpack.c.b16 %v1972, %v1968
      %v2665 = vpack.c.b16 %v1973, %v1969
      %v2666 = vpack.c.b16 %v1974, %v1970
      %v2667 = vpack.c.b16 %v1975, %v1971
      %v2668 = vpack.c.b16 %v1980, %v1976
      %v2669 = vpack.c.b16 %v1981, %v1977
      %v2670 = vpack.c.b16 %v1982, %v1978
      %v2671 = vpack.c.b16 %v1983, %v1979
      %v2672 = vpack.c.b16 %v1988, %v1984
      %v2673 = vpack.c.b16 %v1989, %v1985
      %v2674 = vpack.c.b16 %v1990, %v1986
      %v2675 = vpack.c.b16 %v1991, %v1987
      %v2676 = vpack.c.b16 %v1996, %v1992
      %v2677 = vpack.c.b16 %v1997, %v1993
      %v2678 = vpack.c.b16 %v1998, %v1994
      %v2679 = vpack.c.b16 %v1999, %v1995
      %v2680 = vpack.c.b16 %v2004, %v2000
      %v2681 = vpack.c.b16 %v2005, %v2001
      %v2682 = vpack.c.b16 %v2006, %v2002
      %v2683 = vpack.c.b16 %v2007, %v2003
      %v2684 = vpack.c.b16 %v2012, %v2008
      %v2685 = vpack.c.b16 %v2013, %v2009
      %v2686 = vpack.c.b16 %v2014, %v2010
      %v2687 = vpack.c.b16 %v2015, %v2011
      %v2688 = vpack.c.b16 %v2020, %v2016
      %v2689 = vpack.c.b16 %v2021, %v2017
      %v2690 = vpack.c.b16 %v2022, %v2018
      %v2691 = vpack.c.b16 %v2023, %v2019
      %v2692 = vpack.c.b16 %v2028, %v2024
      %v2693 = vpack.c.b16 %v2029, %v2025
      %v2694 = vpack.c.b16 %v2030, %v2026
      %v2695 = vpack.c.b16 %v2031, %v2027
      %v2696 = vpack.c.b16 %v2036, %v2032
      %v2697 = vpack.c.b16 %v2037, %v2033
      %v2698 = vpack.c.b16 %v2038, %v2034
      %v2699 = vpack.c.b16 %v2039, %v2035
      %v2700 = vpack.c.b16 %v2044, %v2040
      %v2701 = vpack.c.b16 %v2045, %v2041
      %v2702 = vpack.c.b16 %v2046, %v2042
      %v2703 = vpack.c.b16 %v2047, %v2043
      %v2704 = vpack.c.b16 %v2052, %v2048
      %v2705 = vpack.c.b16 %v2053, %v2049
      %v2706 = vpack.c.b16 %v2054, %v2050
      %v2707 = vpack.c.b16 %v2055, %v2051
      %v2708 = vpack.c.b16 %v2060, %v2056
      %v2709 = vpack.c.b16 %v2061, %v2057
      %v2710 = vpack.c.b16 %v2062, %v2058
      %v2711 = vpack.c.b16 %v2063, %v2059
      %v2712 = vpack.c.b16 %v2068, %v2064
      %v2713 = vpack.c.b16 %v2069, %v2065
      %v2714 = vpack.c.b16 %v2070, %v2066
      %v2715 = vpack.c.b16 %v2071, %v2067
      %v2716 = vpack.c.b16 %v2076, %v2072
      %v2717 = vpack.c.b16 %v2077, %v2073
      %v2718 = vpack.c.b16 %v2078, %v2074
      %v2719 = vpack.c.b16 %v2079, %v2075
      %v2720 = vpack.c.b16 %v2084, %v2080
      %v2721 = vpack.c.b16 %v2085, %v2081
      %v2722 = vpack.c.b16 %v2086, %v2082
      %v2723 = vpack.c.b16 %v2087, %v2083
      %v2724 = vpack.c.b16 %v2092, %v2088
      %v2725 = vpack.c.b16 %v2093, %v2089
      %v2726 = vpack.c.b16 %v2094, %v2090
      %v2727 = vpack.c.b16 %v2095, %v2091
      %v2728 = vpack.c.b16 %v2100, %v2096
      %v2729 = vpack.c.b16 %v2101, %v2097
      %v2730 = vpack.c.b16 %v2102, %v2098
      %v2731 = vpack.c.b16 %v2103, %v2099
      %v2732 = vpack.c.b16 %v2108, %v2104
      %v2733 = vpack.c.b16 %v2109, %v2105
      %v2734 = vpack.c.b16 %v2110, %v2106
      %v2735 = vpack.c.b16 %v2111, %v2107
      %v2736 = vpack.c.b16 %v2116, %v2112
      %v2737 = vpack.c.b16 %v2117, %v2113
      %v2738 = vpack.c.b16 %v2118, %v2114
      %v2739 = vpack.c.b16 %v2119, %v2115
      %v2740 = vpack.c.b16 %v2124, %v2120
      %v2741 = vpack.c.b16 %v2125, %v2121
      %v2742 = vpack.c.b16 %v2126, %v2122
      %v2743 = vpack.c.b16 %v2127, %v2123
      %v2744 = vpack.c.b16 %v2132, %v2128
      %v2745 = vpack.c.b16 %v2133, %v2129
      %v2746 = vpack.c.b16 %v2134, %v2130
      %v2747 = vpack.c.b16 %v2135, %v2131
      %v2748 = vpack.c.b16 %v2140, %v2136
      %v2749 = vpack.c.b16 %v2141, %v2137
      %v2750 = vpack.c.b16 %v2142, %v2138
      %v2751 = vpack.c.b16 %v2143, %v2139
      %v2752 = vpack.c.b16 %v2148, %v2144
      %v2753 = vpack.c.b16 %v2149, %v2145
      %v2754 = vpack.c.b16 %v2150, %v2146
      %v2755 = vpack.c.b16 %v2151, %v2147
      %v2756 = vpack.c.b16 %v2156, %v2152
      %v2757 = vpack.c.b16 %v2157, %v2153
      %v2758 = vpack.c.b16 %v2158, %v2154
      %v2759 = vpack.c.b16 %v2159, %v2155
      %v2760 = vpack.c.b16 %v2164, %v2160
      %v2761 = vpack.c.b16 %v2165, %v2161
      %v2762 = vpack.c.b16 %v2166, %v2162
      %v2763 = vpack.c.b16 %v2167, %v2163
      %v2764 = vpack.c.b16 %v2172, %v2168
      %v2765 = vpack.c.b16 %v2173, %v2169
      %v2766 = vpack.c.b16 %v2174, %v2170
      %v2767 = vpack.c.b16 %v2175, %v2171
      %v2768 = vpack.c.b16 %v2180, %v2176
      %v2769 = vpack.c.b16 %v2181, %v2177
      %v2770 = vpack.c.b16 %v2182, %v2178
      %v2771 = vpack.c.b16 %v2183, %v2179
      %v2772 = vpack.c.b16 %v2188, %v2184
      %v2773 = vpack.c.b16 %v2189, %v2185
      %v2774 = vpack.c.b16 %v2190, %v2186
      %v2775 = vpack.c.b16 %v2191, %v2187
      %v2776 = vpack.c.b16 %v2196, %v2192
      %v2777 = vpack.c.b16 %v2197, %v2193
      %v2778 = vpack.c.b16 %v2198, %v2194
      %v2779 = vpack.c.b16 %v2199, %v2195
      %v2780 = vpack.c.b16 %v2204, %v2200
      %v2781 = vpack.c.b16 %v2205, %v2201
      %v2782 = vpack.c.b16 %v2206, %v2202
      %v2783 = vpack.c.b16 %v2207, %v2203
      %v2784 = vpack.c.b16 %v2212, %v2208
      %v2785 = vpack.c.b16 %v2213, %v2209
      %v2786 = vpack.c.b16 %v2214, %v2210
      %v2787 = vpack.c.b16 %v2215, %v2211
      %v2788 = vpack.c.b16 %v2220, %v2216
      %v2789 = vpack.c.b16 %v2221, %v2217
      %v2790 = vpack.c.b16 %v2222, %v2218
      %v2791 = vpack.c.b16 %v2223, %v2219
      %v2792 = vpack.c.b16 %v2228, %v2224
      %v2793 = vpack.c.b16 %v2229, %v2225
      %v2794 = vpack.c.b16 %v2230, %v2226
      %v2795 = vpack.c.b16 %v2231, %v2227
      %v2796 = vpack.c.b16 %v2236, %v2232
      %v2797 = vpack.c.b16 %v2237, %v2233
      %v2798 = vpack.c.b16 %v2238, %v2234
      %v2799 = vpack.c.b16 %v2239, %v2235
      %v2800 = vpack.c.b16 %v2244, %v2240
      %v2801 = vpack.c.b16 %v2245, %v2241
      %v2802 = vpack.c.b16 %v2246, %v2242
      %v2803 = vpack.c.b16 %v2247, %v2243
      %v2804 = vpack.c.b16 %v2252, %v2248
      %v2805 = vpack.c.b16 %v2253, %v2249
      %v2806 = vpack.c.b16 %v2254, %v2250
      %v2807 = vpack.c.b16 %v2255, %v2251
      %v2808 = vpack.c.b16 %v2260, %v2256
      %v2809 = vpack.c.b16 %v2261, %v2257
      %v2810 = vpack.c.b16 %v2262, %v2258
      %v2811 = vpack.c.b16 %v2263, %v2259
      %v2812 = vpack.c.b16 %v2268, %v2264
      %v2813 = vpack.c.b16 %v2269, %v2265
      %v2814 = vpack.c.b16 %v2270, %v2266
      %v2815 = vpack.c.b16 %v2271, %v2267
      %v2816 = vpack.c.b16 %v2276, %v2272
      %v2817 = vpack.c.b16 %v2277, %v2273
      %v2818 = vpack.c.b16 %v2278, %v2274
      %v2819 = vpack.c.b16 %v2279, %v2275
      %v2820 = vpack.c.b16 %v2284, %v2280
      %v2821 = vpack.c.b16 %v2285, %v2281
      %v2822 = vpack.c.b16 %v2286, %v2282
      %v2823 = vpack.c.b16 %v2287, %v2283
      %v2824 = vpack.c.b16 %v2292, %v2288
      %v2825 = vpack.c.b16 %v2293, %v2289
      %v2826 = vpack.c.b16 %v2294, %v2290
      %v2827 = vpack.c.b16 %v2295, %v2291
      %v2828 = vpack.c.b16 %v2300, %v2296
      %v2829 = vpack.c.b16 %v2301, %v2297
      %v2830 = vpack.c.b16 %v2302, %v2298
      %v2831 = vpack.c.b16 %v2303, %v2299
      %v2832 = vpack.c.b16 %v2308, %v2304
      %v2833 = vpack.c.b16 %v2309, %v2305
      %v2834 = vpack.c.b16 %v2310, %v2306
      %v2835 = vpack.c.b16 %v2311, %v2307
      %v2836 = vpack.c.b16 %v2316, %v2312
      %v2837 = vpack.c.b16 %v2317, %v2313
      %v2838 = vpack.c.b16 %v2318, %v2314
      %v2839 = vpack.c.b16 %v2319, %v2315
      %v2840 = vpack.c.b16 %v2324, %v2320
      %v2841 = vpack.c.b16 %v2325, %v2321
      %v2842 = vpack.c.b16 %v2326, %v2322
      %v2843 = vpack.c.b16 %v2327, %v2323
      %v2844 = vpack.c.b16 %v2332, %v2328
      %v2845 = vpack.c.b16 %v2333, %v2329
      %v2846 = vpack.c.b16 %v2334, %v2330
      %v2847 = vpack.c.b16 %v2335, %v2331
      %3360 = vmatpush.bf16.msra.mxu0 %v2364
      %3361 = vmatpush.bf16.msra.mxu0 %v2360
      %3362 = vmatpush.bf16.msra.mxu0 %v2356
      %3363 = vmatpush.bf16.msra.mxu0 %v2352
      %3364 = vmatpush.bf16.msra.mxu0 %v2348
      %3365 = vmatpush.bf16.msra.mxu0 %v2344
      %3366 = vmatpush.bf16.msra.mxu0 %v2340
      %3367 = vmatpush.bf16.msra.mxu0 %v2336
      %3368 = vmatmul.bf16.gmra.mxu0 %v766
      %v3369 = vpop.f32.mrf.mxu0
      %v3370 = vadd.f32 0.0, %v3369
      %v3371 = vpop.f32.mrf.mxu0
      %3372 = vdwg.mxu0
      %3373 = vmatpush.bf16.msra.mxu0 %v2396
      %3374 = vmatpush.bf16.msra.mxu0 %v2392
      %3375 = vmatpush.bf16.msra.mxu0 %v2388
      %3376 = vmatpush.bf16.msra.mxu0 %v2384
      %3377 = vmatpush.bf16.msra.mxu0 %v2380
      %3378 = vmatpush.bf16.msra.mxu0 %v2376
      %3379 = vmatpush.bf16.msra.mxu0 %v2372
      %3380 = vmatpush.bf16.msra.mxu0 %v2368
      %3381 = vmatmul.bf16.gmra.mxu0 %v767
      %v3382 = vpop.f32.mrf.mxu0
      %v3383 = vadd.f32 %v3370, %v3382
      %v3384 = vpop.f32.mrf.mxu0
      %3385 = vdwg.mxu0
      %3386 = vmatpush.bf16.msra.mxu0 %v2428
      %3387 = vmatpush.bf16.msra.mxu0 %v2424
      %3388 = vmatpush.bf16.msra.mxu0 %v2420
      %3389 = vmatpush.bf16.msra.mxu0 %v2416
      %3390 = vmatpush.bf16.msra.mxu0 %v2412
      %3391 = vmatpush.bf16.msra.mxu0 %v2408
      %3392 = vmatpush.bf16.msra.mxu0 %v2404
      %3393 = vmatpush.bf16.msra.mxu0 %v2400
      %3394 = vmatmul.bf16.gmra.mxu0 %v768
      %v3395 = vpop.f32.mrf.mxu0
      %v3396 = vadd.f32 %v3383, %v3395
      %v3397 = vpop.f32.mrf.mxu0
      %3398 = vdwg.mxu0
      %3399 = vmatpush.bf16.msra.mxu0 %v2460
      %3400 = vmatpush.bf16.msra.mxu0 %v2456
      %3401 = vmatpush.bf16.msra.mxu0 %v2452
      %3402 = vmatpush.bf16.msra.mxu0 %v2448
      %3403 = vmatpush.bf16.msra.mxu0 %v2444
      %3404 = vmatpush.bf16.msra.mxu0 %v2440
      %3405 = vmatpush.bf16.msra.mxu0 %v2436
      %3406 = vmatpush.bf16.msra.mxu0 %v2432
      %3407 = vmatmul.bf16.gmra.mxu0 %v769
      %v3408 = vpop.f32.mrf.mxu0
      %v3409 = vadd.f32 %v3396, %v3408
      %v3410 = vpop.f32.mrf.mxu0
      %3411 = vdwg.mxu0
      %3412 = vmatpush.bf16.msra.mxu0 %v2492
      %3413 = vmatpush.bf16.msra.mxu0 %v2488
      %3414 = vmatpush.bf16.msra.mxu0 %v2484
      %3415 = vmatpush.bf16.msra.mxu0 %v2480
      %3416 = vmatpush.bf16.msra.mxu0 %v2476
      %3417 = vmatpush.bf16.msra.mxu0 %v2472
      %3418 = vmatpush.bf16.msra.mxu0 %v2468
      %3419 = vmatpush.bf16.msra.mxu0 %v2464
      %3420 = vmatmul.bf16.gmra.mxu0 %v770
      %v3421 = vpop.f32.mrf.mxu0
      %v3422 = vadd.f32 %v3409, %v3421
      %v3423 = vpop.f32.mrf.mxu0
      %3424 = vdwg.mxu0
      %3425 = vmatpush.bf16.msra.mxu0 %v2524
      %3426 = vmatpush.bf16.msra.mxu0 %v2520
      %3427 = vmatpush.bf16.msra.mxu0 %v2516
      %3428 = vmatpush.bf16.msra.mxu0 %v2512
      %3429 = vmatpush.bf16.msra.mxu0 %v2508
      %3430 = vmatpush.bf16.msra.mxu0 %v2504
      %3431 = vmatpush.bf16.msra.mxu0 %v2500
      %3432 = vmatpush.bf16.msra.mxu0 %v2496
      %3433 = vmatmul.bf16.gmra.mxu0 %v771
      %v3434 = vpop.f32.mrf.mxu0
      %v3435 = vadd.f32 %v3422, %v3434
      %v3436 = vpop.f32.mrf.mxu0
      %3437 = vdwg.mxu0
      %3438 = vmatpush.bf16.msra.mxu0 %v2556
      %3439 = vmatpush.bf16.msra.mxu0 %v2552
      %3440 = vmatpush.bf16.msra.mxu0 %v2548
      %3441 = vmatpush.bf16.msra.mxu0 %v2544
      %3442 = vmatpush.bf16.msra.mxu0 %v2540
      %3443 = vmatpush.bf16.msra.mxu0 %v2536
      %3444 = vmatpush.bf16.msra.mxu0 %v2532
      %3445 = vmatpush.bf16.msra.mxu0 %v2528
      %3446 = vmatmul.bf16.gmra.mxu0 %v772
      %v3447 = vpop.f32.mrf.mxu0
      %v3448 = vadd.f32 %v3435, %v3447
      %v3449 = vpop.f32.mrf.mxu0
      %3450 = vdwg.mxu0
      %3451 = vmatpush.bf16.msra.mxu0 %v2588
      %3452 = vmatpush.bf16.msra.mxu0 %v2584
      %3453 = vmatpush.bf16.msra.mxu0 %v2580
      %3454 = vmatpush.bf16.msra.mxu0 %v2576
      %3455 = vmatpush.bf16.msra.mxu0 %v2572
      %3456 = vmatpush.bf16.msra.mxu0 %v2568
      %3457 = vmatpush.bf16.msra.mxu0 %v2564
      %3458 = vmatpush.bf16.msra.mxu0 %v2560
      %3459 = vmatmul.bf16.gmra.mxu0 %v773
      %v3460 = vpop.f32.mrf.mxu0
      %v3461 = vadd.f32 %v3448, %v3460
      %v3462 = vpop.f32.mrf.mxu0
      %3463 = vdwg.mxu0
      %3464 = vmatpush.bf16.msra.mxu0 %v2620
      %3465 = vmatpush.bf16.msra.mxu0 %v2616
      %3466 = vmatpush.bf16.msra.mxu0 %v2612
      %3467 = vmatpush.bf16.msra.mxu0 %v2608
      %3468 = vmatpush.bf16.msra.mxu0 %v2604
      %3469 = vmatpush.bf16.msra.mxu0 %v2600
      %3470 = vmatpush.bf16.msra.mxu0 %v2596
      %3471 = vmatpush.bf16.msra.mxu0 %v2592
      %3472 = vmatmul.bf16.gmra.mxu0 %v776
      %v3473 = vpop.f32.mrf.mxu0
      %v3474 = vadd.f32 %v3461, %v3473
      %v3475 = vpop.f32.mrf.mxu0
      %3476 = vdwg.mxu0
      %3477 = vmatpush.bf16.msra.mxu0 %v2652
      %3478 = vmatpush.bf16.msra.mxu0 %v2648
      %3479 = vmatpush.bf16.msra.mxu0 %v2644
      %3480 = vmatpush.bf16.msra.mxu0 %v2640
      %3481 = vmatpush.bf16.msra.mxu0 %v2636
      %3482 = vmatpush.bf16.msra.mxu0 %v2632
      %3483 = vmatpush.bf16.msra.mxu0 %v2628
      %3484 = vmatpush.bf16.msra.mxu0 %v2624
      %3485 = vmatmul.bf16.gmra.mxu0 %v777
      %v3486 = vpop.f32.mrf.mxu0
      %v3487 = vadd.f32 %v3474, %v3486
      %v3488 = vpop.f32.mrf.mxu0
      %3489 = vdwg.mxu0
      %3490 = vmatpush.bf16.msra.mxu0 %v2684
      %3491 = vmatpush.bf16.msra.mxu0 %v2680
      %3492 = vmatpush.bf16.msra.mxu0 %v2676
      %3493 = vmatpush.bf16.msra.mxu0 %v2672
      %3494 = vmatpush.bf16.msra.mxu0 %v2668
      %3495 = vmatpush.bf16.msra.mxu0 %v2664
      %3496 = vmatpush.bf16.msra.mxu0 %v2660
      %3497 = vmatpush.bf16.msra.mxu0 %v2656
      %3498 = vmatmul.bf16.gmra.mxu0 %v778
      %v3499 = vpop.f32.mrf.mxu0
      %v3500 = vadd.f32 %v3487, %v3499
      %v3501 = vpop.f32.mrf.mxu0
      %3502 = vdwg.mxu0
      %3503 = vmatpush.bf16.msra.mxu0 %v2716
      %3504 = vmatpush.bf16.msra.mxu0 %v2712
      %3505 = vmatpush.bf16.msra.mxu0 %v2708
      %3506 = vmatpush.bf16.msra.mxu0 %v2704
      %3507 = vmatpush.bf16.msra.mxu0 %v2700
      %3508 = vmatpush.bf16.msra.mxu0 %v2696
      %3509 = vmatpush.bf16.msra.mxu0 %v2692
      %3510 = vmatpush.bf16.msra.mxu0 %v2688
      %3511 = vmatmul.bf16.gmra.mxu0 %v779
      %v3512 = vpop.f32.mrf.mxu0
      %v3513 = vadd.f32 %v3500, %v3512
      %v3514 = vpop.f32.mrf.mxu0
      %3515 = vdwg.mxu0
      %3516 = vmatpush.bf16.msra.mxu0 %v2748
      %3517 = vmatpush.bf16.msra.mxu0 %v2744
      %3518 = vmatpush.bf16.msra.mxu0 %v2740
      %3519 = vmatpush.bf16.msra.mxu0 %v2736
      %3520 = vmatpush.bf16.msra.mxu0 %v2732
      %3521 = vmatpush.bf16.msra.mxu0 %v2728
      %3522 = vmatpush.bf16.msra.mxu0 %v2724
      %3523 = vmatpush.bf16.msra.mxu0 %v2720
      %3524 = vmatmul.bf16.gmra.mxu0 %v780
      %v3525 = vpop.f32.mrf.mxu0
      %v3526 = vadd.f32 %v3513, %v3525
      %v3527 = vpop.f32.mrf.mxu0
      %3528 = vdwg.mxu0
      %3529 = vmatpush.bf16.msra.mxu0 %v2780
      %3530 = vmatpush.bf16.msra.mxu0 %v2776
      %3531 = vmatpush.bf16.msra.mxu0 %v2772
      %3532 = vmatpush.bf16.msra.mxu0 %v2768
      %3533 = vmatpush.bf16.msra.mxu0 %v2764
      %3534 = vmatpush.bf16.msra.mxu0 %v2760
      %3535 = vmatpush.bf16.msra.mxu0 %v2756
      %3536 = vmatpush.bf16.msra.mxu0 %v2752
      %3537 = vmatmul.bf16.gmra.mxu0 %v781
      %v3538 = vpop.f32.mrf.mxu0
      %v3539 = vadd.f32 %v3526, %v3538
      %v3540 = vpop.f32.mrf.mxu0
      %3541 = vdwg.mxu0
      %3542 = vmatpush.bf16.msra.mxu0 %v2812
      %3543 = vmatpush.bf16.msra.mxu0 %v2808
      %3544 = vmatpush.bf16.msra.mxu0 %v2804
      %3545 = vmatpush.bf16.msra.mxu0 %v2800
      %3546 = vmatpush.bf16.msra.mxu0 %v2796
      %3547 = vmatpush.bf16.msra.mxu0 %v2792
      %3548 = vmatpush.bf16.msra.mxu0 %v2788
      %3549 = vmatpush.bf16.msra.mxu0 %v2784
      %3550 = vmatmul.bf16.gmra.mxu0 %v782
      %v3551 = vpop.f32.mrf.mxu0
      %v3552 = vadd.f32 %v3539, %v3551
      %v3553 = vpop.f32.mrf.mxu0
      %3554 = vdwg.mxu0
      %3555 = vmatpush.bf16.msra.mxu0 %v2844
      %3556 = vmatpush.bf16.msra.mxu0 %v2840
      %3557 = vmatpush.bf16.msra.mxu0 %v2836
      %3558 = vmatpush.bf16.msra.mxu0 %v2832
      %3559 = vmatpush.bf16.msra.mxu0 %v2828
      %3560 = vmatpush.bf16.msra.mxu0 %v2824
      %3561 = vmatpush.bf16.msra.mxu0 %v2820
      %3562 = vmatpush.bf16.msra.mxu0 %v2816
      %3563 = vmatmul.bf16.gmra.mxu0 %v783
      %v3564 = vpop.f32.mrf.mxu0
      %v3565 = vadd.f32 %v3552, %v3564
      %v3566 = vpop.f32.mrf.mxu0
      %3567 = vdwg.mxu0
      %3568 = vmatpush.bf16.msra.mxu0 %v2365
      %3569 = vmatpush.bf16.msra.mxu0 %v2361
      %3570 = vmatpush.bf16.msra.mxu0 %v2357
      %3571 = vmatpush.bf16.msra.mxu0 %v2353
      %3572 = vmatpush.bf16.msra.mxu0 %v2349
      %3573 = vmatpush.bf16.msra.mxu0 %v2345
      %3574 = vmatpush.bf16.msra.mxu0 %v2341
      %3575 = vmatpush.bf16.msra.mxu0 %v2337
      %3576 = vmatmul.bf16.gmra.mxu0 %v766
      %v3577 = vpop.f32.mrf.mxu0
      %v3578 = vadd.f32 0.0, %v3577
      %v3579 = vpop.f32.mrf.mxu0
      %3580 = vdwg.mxu0
      %3581 = vmatpush.bf16.msra.mxu0 %v2397
      %3582 = vmatpush.bf16.msra.mxu0 %v2393
      %3583 = vmatpush.bf16.msra.mxu0 %v2389
      %3584 = vmatpush.bf16.msra.mxu0 %v2385
      %3585 = vmatpush.bf16.msra.mxu0 %v2381
      %3586 = vmatpush.bf16.msra.mxu0 %v2377
      %3587 = vmatpush.bf16.msra.mxu0 %v2373
      %3588 = vmatpush.bf16.msra.mxu0 %v2369
      %3589 = vmatmul.bf16.gmra.mxu0 %v767
      %v3590 = vpop.f32.mrf.mxu0
      %v3591 = vadd.f32 %v3578, %v3590
      %v3592 = vpop.f32.mrf.mxu0
      %3593 = vdwg.mxu0
      %3594 = vmatpush.bf16.msra.mxu0 %v2429
      %3595 = vmatpush.bf16.msra.mxu0 %v2425
      %3596 = vmatpush.bf16.msra.mxu0 %v2421
      %3597 = vmatpush.bf16.msra.mxu0 %v2417
      %3598 = vmatpush.bf16.msra.mxu0 %v2413
      %3599 = vmatpush.bf16.msra.mxu0 %v2409
      %3600 = vmatpush.bf16.msra.mxu0 %v2405
      %3601 = vmatpush.bf16.msra.mxu0 %v2401
      %3602 = vmatmul.bf16.gmra.mxu0 %v768
      %v3603 = vpop.f32.mrf.mxu0
      %v3604 = vadd.f32 %v3591, %v3603
      %v3605 = vpop.f32.mrf.mxu0
      %3606 = vdwg.mxu0
      %3607 = vmatpush.bf16.msra.mxu0 %v2461
      %3608 = vmatpush.bf16.msra.mxu0 %v2457
      %3609 = vmatpush.bf16.msra.mxu0 %v2453
      %3610 = vmatpush.bf16.msra.mxu0 %v2449
      %3611 = vmatpush.bf16.msra.mxu0 %v2445
      %3612 = vmatpush.bf16.msra.mxu0 %v2441
      %3613 = vmatpush.bf16.msra.mxu0 %v2437
      %3614 = vmatpush.bf16.msra.mxu0 %v2433
      %3615 = vmatmul.bf16.gmra.mxu0 %v769
      %v3616 = vpop.f32.mrf.mxu0
      %v3617 = vadd.f32 %v3604, %v3616
      %v3618 = vpop.f32.mrf.mxu0
      %3619 = vdwg.mxu0
      %3620 = vmatpush.bf16.msra.mxu0 %v2493
      %3621 = vmatpush.bf16.msra.mxu0 %v2489
      %3622 = vmatpush.bf16.msra.mxu0 %v2485
      %3623 = vmatpush.bf16.msra.mxu0 %v2481
      %3624 = vmatpush.bf16.msra.mxu0 %v2477
      %3625 = vmatpush.bf16.msra.mxu0 %v2473
      %3626 = vmatpush.bf16.msra.mxu0 %v2469
      %3627 = vmatpush.bf16.msra.mxu0 %v2465
      %3628 = vmatmul.bf16.gmra.mxu0 %v770
      %v3629 = vpop.f32.mrf.mxu0
      %v3630 = vadd.f32 %v3617, %v3629
      %v3631 = vpop.f32.mrf.mxu0
      %3632 = vdwg.mxu0
      %3633 = vmatpush.bf16.msra.mxu0 %v2525
      %3634 = vmatpush.bf16.msra.mxu0 %v2521
      %3635 = vmatpush.bf16.msra.mxu0 %v2517
      %3636 = vmatpush.bf16.msra.mxu0 %v2513
      %3637 = vmatpush.bf16.msra.mxu0 %v2509
      %3638 = vmatpush.bf16.msra.mxu0 %v2505
      %3639 = vmatpush.bf16.msra.mxu0 %v2501
      %3640 = vmatpush.bf16.msra.mxu0 %v2497
      %3641 = vmatmul.bf16.gmra.mxu0 %v771
      %v3642 = vpop.f32.mrf.mxu0
      %v3643 = vadd.f32 %v3630, %v3642
      %v3644 = vpop.f32.mrf.mxu0
      %3645 = vdwg.mxu0
      %3646 = vmatpush.bf16.msra.mxu0 %v2557
      %3647 = vmatpush.bf16.msra.mxu0 %v2553
      %3648 = vmatpush.bf16.msra.mxu0 %v2549
      %3649 = vmatpush.bf16.msra.mxu0 %v2545
      %3650 = vmatpush.bf16.msra.mxu0 %v2541
      %3651 = vmatpush.bf16.msra.mxu0 %v2537
      %3652 = vmatpush.bf16.msra.mxu0 %v2533
      %3653 = vmatpush.bf16.msra.mxu0 %v2529
      %3654 = vmatmul.bf16.gmra.mxu0 %v772
      %v3655 = vpop.f32.mrf.mxu0
      %v3656 = vadd.f32 %v3643, %v3655
      %v3657 = vpop.f32.mrf.mxu0
      %3658 = vdwg.mxu0
      %3659 = vmatpush.bf16.msra.mxu0 %v2589
      %3660 = vmatpush.bf16.msra.mxu0 %v2585
      %3661 = vmatpush.bf16.msra.mxu0 %v2581
      %3662 = vmatpush.bf16.msra.mxu0 %v2577
      %3663 = vmatpush.bf16.msra.mxu0 %v2573
      %3664 = vmatpush.bf16.msra.mxu0 %v2569
      %3665 = vmatpush.bf16.msra.mxu0 %v2565
      %3666 = vmatpush.bf16.msra.mxu0 %v2561
      %3667 = vmatmul.bf16.gmra.mxu0 %v773
      %v3668 = vpop.f32.mrf.mxu0
      %v3669 = vadd.f32 %v3656, %v3668
      %v3670 = vpop.f32.mrf.mxu0
      %3671 = vdwg.mxu0
      %3672 = vmatpush.bf16.msra.mxu0 %v2621
      %3673 = vmatpush.bf16.msra.mxu0 %v2617
      %3674 = vmatpush.bf16.msra.mxu0 %v2613
      %3675 = vmatpush.bf16.msra.mxu0 %v2609
      %3676 = vmatpush.bf16.msra.mxu0 %v2605
      %3677 = vmatpush.bf16.msra.mxu0 %v2601
      %3678 = vmatpush.bf16.msra.mxu0 %v2597
      %3679 = vmatpush.bf16.msra.mxu0 %v2593
      %3680 = vmatmul.bf16.gmra.mxu0 %v776
      %v3681 = vpop.f32.mrf.mxu0
      %v3682 = vadd.f32 %v3669, %v3681
      %v3683 = vpop.f32.mrf.mxu0
      %3684 = vdwg.mxu0
      %3685 = vmatpush.bf16.msra.mxu0 %v2653
      %3686 = vmatpush.bf16.msra.mxu0 %v2649
      %3687 = vmatpush.bf16.msra.mxu0 %v2645
      %3688 = vmatpush.bf16.msra.mxu0 %v2641
      %3689 = vmatpush.bf16.msra.mxu0 %v2637
      %3690 = vmatpush.bf16.msra.mxu0 %v2633
      %3691 = vmatpush.bf16.msra.mxu0 %v2629
      %3692 = vmatpush.bf16.msra.mxu0 %v2625
      %3693 = vmatmul.bf16.gmra.mxu0 %v777
      %v3694 = vpop.f32.mrf.mxu0
      %v3695 = vadd.f32 %v3682, %v3694
      %v3696 = vpop.f32.mrf.mxu0
      %3697 = vdwg.mxu0
      %3698 = vmatpush.bf16.msra.mxu0 %v2685
      %3699 = vmatpush.bf16.msra.mxu0 %v2681
      %3700 = vmatpush.bf16.msra.mxu0 %v2677
      %3701 = vmatpush.bf16.msra.mxu0 %v2673
      %3702 = vmatpush.bf16.msra.mxu0 %v2669
      %3703 = vmatpush.bf16.msra.mxu0 %v2665
      %3704 = vmatpush.bf16.msra.mxu0 %v2661
      %3705 = vmatpush.bf16.msra.mxu0 %v2657
      %3706 = vmatmul.bf16.gmra.mxu0 %v778
      %v3707 = vpop.f32.mrf.mxu0
      %v3708 = vadd.f32 %v3695, %v3707
      %v3709 = vpop.f32.mrf.mxu0
      %3710 = vdwg.mxu0
      %3711 = vmatpush.bf16.msra.mxu0 %v2717
      %3712 = vmatpush.bf16.msra.mxu0 %v2713
      %3713 = vmatpush.bf16.msra.mxu0 %v2709
      %3714 = vmatpush.bf16.msra.mxu0 %v2705
      %3715 = vmatpush.bf16.msra.mxu0 %v2701
      %3716 = vmatpush.bf16.msra.mxu0 %v2697
      %3717 = vmatpush.bf16.msra.mxu0 %v2693
      %3718 = vmatpush.bf16.msra.mxu0 %v2689
      %3719 = vmatmul.bf16.gmra.mxu0 %v779
      %v3720 = vpop.f32.mrf.mxu0
      %v3721 = vadd.f32 %v3708, %v3720
      %v3722 = vpop.f32.mrf.mxu0
      %3723 = vdwg.mxu0
      %3724 = vmatpush.bf16.msra.mxu0 %v2749
      %3725 = vmatpush.bf16.msra.mxu0 %v2745
      %3726 = vmatpush.bf16.msra.mxu0 %v2741
      %3727 = vmatpush.bf16.msra.mxu0 %v2737
      %3728 = vmatpush.bf16.msra.mxu0 %v2733
      %3729 = vmatpush.bf16.msra.mxu0 %v2729
      %3730 = vmatpush.bf16.msra.mxu0 %v2725
      %3731 = vmatpush.bf16.msra.mxu0 %v2721
      %3732 = vmatmul.bf16.gmra.mxu0 %v780
      %v3733 = vpop.f32.mrf.mxu0
      %v3734 = vadd.f32 %v3721, %v3733
      %v3735 = vpop.f32.mrf.mxu0
      %3736 = vdwg.mxu0
      %3737 = vmatpush.bf16.msra.mxu0 %v2781
      %3738 = vmatpush.bf16.msra.mxu0 %v2777
      %3739 = vmatpush.bf16.msra.mxu0 %v2773
      %3740 = vmatpush.bf16.msra.mxu0 %v2769
      %3741 = vmatpush.bf16.msra.mxu0 %v2765
      %3742 = vmatpush.bf16.msra.mxu0 %v2761
      %3743 = vmatpush.bf16.msra.mxu0 %v2757
      %3744 = vmatpush.bf16.msra.mxu0 %v2753
      %3745 = vmatmul.bf16.gmra.mxu0 %v781
      %v3746 = vpop.f32.mrf.mxu0
      %v3747 = vadd.f32 %v3734, %v3746
      %v3748 = vpop.f32.mrf.mxu0
      %3749 = vdwg.mxu0
      %3750 = vmatpush.bf16.msra.mxu0 %v2813
      %3751 = vmatpush.bf16.msra.mxu0 %v2809
      %3752 = vmatpush.bf16.msra.mxu0 %v2805
      %3753 = vmatpush.bf16.msra.mxu0 %v2801
      %3754 = vmatpush.bf16.msra.mxu0 %v2797
      %3755 = vmatpush.bf16.msra.mxu0 %v2793
      %3756 = vmatpush.bf16.msra.mxu0 %v2789
      %3757 = vmatpush.bf16.msra.mxu0 %v2785
      %3758 = vmatmul.bf16.gmra.mxu0 %v782
      %v3759 = vpop.f32.mrf.mxu0
      %v3760 = vadd.f32 %v3747, %v3759
      %v3761 = vpop.f32.mrf.mxu0
      %3762 = vdwg.mxu0
      %3763 = vmatpush.bf16.msra.mxu0 %v2845
      %3764 = vmatpush.bf16.msra.mxu0 %v2841
      %3765 = vmatpush.bf16.msra.mxu0 %v2837
      %3766 = vmatpush.bf16.msra.mxu0 %v2833
      %3767 = vmatpush.bf16.msra.mxu0 %v2829
      %3768 = vmatpush.bf16.msra.mxu0 %v2825
      %3769 = vmatpush.bf16.msra.mxu0 %v2821
      %3770 = vmatpush.bf16.msra.mxu0 %v2817
      %3771 = vmatmul.bf16.gmra.mxu0 %v783
      %v3772 = vpop.f32.mrf.mxu0
      %v3773 = vadd.f32 %v3760, %v3772
      %v3774 = vpop.f32.mrf.mxu0
      %3775 = vdwg.mxu0
      %3776 = vmatpush.bf16.msra.mxu0 %v2366
      %3777 = vmatpush.bf16.msra.mxu0 %v2362
      %3778 = vmatpush.bf16.msra.mxu0 %v2358
      %3779 = vmatpush.bf16.msra.mxu0 %v2354
      %3780 = vmatpush.bf16.msra.mxu0 %v2350
      %3781 = vmatpush.bf16.msra.mxu0 %v2346
      %3782 = vmatpush.bf16.msra.mxu0 %v2342
      %3783 = vmatpush.bf16.msra.mxu0 %v2338
      %3784 = vmatmul.bf16.gmra.mxu0 %v766
      %v3785 = vpop.f32.mrf.mxu0
      %v3786 = vadd.f32 0.0, %v3785
      %v3787 = vpop.f32.mrf.mxu0
      %3788 = vdwg.mxu0
      %3789 = vmatpush.bf16.msra.mxu0 %v2398
      %3790 = vmatpush.bf16.msra.mxu0 %v2394
      %3791 = vmatpush.bf16.msra.mxu0 %v2390
      %3792 = vmatpush.bf16.msra.mxu0 %v2386
      %3793 = vmatpush.bf16.msra.mxu0 %v2382
      %3794 = vmatpush.bf16.msra.mxu0 %v2378
      %3795 = vmatpush.bf16.msra.mxu0 %v2374
      %3796 = vmatpush.bf16.msra.mxu0 %v2370
      %3797 = vmatmul.bf16.gmra.mxu0 %v767
      %v3798 = vpop.f32.mrf.mxu0
      %v3799 = vadd.f32 %v3786, %v3798
      %v3800 = vpop.f32.mrf.mxu0
      %3801 = vdwg.mxu0
      %3802 = vmatpush.bf16.msra.mxu0 %v2430
      %3803 = vmatpush.bf16.msra.mxu0 %v2426
      %3804 = vmatpush.bf16.msra.mxu0 %v2422
      %3805 = vmatpush.bf16.msra.mxu0 %v2418
      %3806 = vmatpush.bf16.msra.mxu0 %v2414
      %3807 = vmatpush.bf16.msra.mxu0 %v2410
      %3808 = vmatpush.bf16.msra.mxu0 %v2406
      %3809 = vmatpush.bf16.msra.mxu0 %v2402
      %3810 = vmatmul.bf16.gmra.mxu0 %v768
      %v3811 = vpop.f32.mrf.mxu0
      %v3812 = vadd.f32 %v3799, %v3811
      %v3813 = vpop.f32.mrf.mxu0
      %3814 = vdwg.mxu0
      %3815 = vmatpush.bf16.msra.mxu0 %v2462
      %3816 = vmatpush.bf16.msra.mxu0 %v2458
      %3817 = vmatpush.bf16.msra.mxu0 %v2454
      %3818 = vmatpush.bf16.msra.mxu0 %v2450
      %3819 = vmatpush.bf16.msra.mxu0 %v2446
      %3820 = vmatpush.bf16.msra.mxu0 %v2442
      %3821 = vmatpush.bf16.msra.mxu0 %v2438
      %3822 = vmatpush.bf16.msra.mxu0 %v2434
      %3823 = vmatmul.bf16.gmra.mxu0 %v769
      %v3824 = vpop.f32.mrf.mxu0
      %v3825 = vadd.f32 %v3812, %v3824
      %v3826 = vpop.f32.mrf.mxu0
      %3827 = vdwg.mxu0
      %3828 = vmatpush.bf16.msra.mxu0 %v2494
      %3829 = vmatpush.bf16.msra.mxu0 %v2490
      %3830 = vmatpush.bf16.msra.mxu0 %v2486
      %3831 = vmatpush.bf16.msra.mxu0 %v2482
      %3832 = vmatpush.bf16.msra.mxu0 %v2478
      %3833 = vmatpush.bf16.msra.mxu0 %v2474
      %3834 = vmatpush.bf16.msra.mxu0 %v2470
      %3835 = vmatpush.bf16.msra.mxu0 %v2466
      %3836 = vmatmul.bf16.gmra.mxu0 %v770
      %v3837 = vpop.f32.mrf.mxu0
      %v3838 = vadd.f32 %v3825, %v3837
      %v3839 = vpop.f32.mrf.mxu0
      %3840 = vdwg.mxu0
      %3841 = vmatpush.bf16.msra.mxu0 %v2526
      %3842 = vmatpush.bf16.msra.mxu0 %v2522
      %3843 = vmatpush.bf16.msra.mxu0 %v2518
      %3844 = vmatpush.bf16.msra.mxu0 %v2514
      %3845 = vmatpush.bf16.msra.mxu0 %v2510
      %3846 = vmatpush.bf16.msra.mxu0 %v2506
      %3847 = vmatpush.bf16.msra.mxu0 %v2502
      %3848 = vmatpush.bf16.msra.mxu0 %v2498
      %3849 = vmatmul.bf16.gmra.mxu0 %v771
      %v3850 = vpop.f32.mrf.mxu0
      %v3851 = vadd.f32 %v3838, %v3850
      %v3852 = vpop.f32.mrf.mxu0
      %3853 = vdwg.mxu0
      %3854 = vmatpush.bf16.msra.mxu0 %v2558
      %3855 = vmatpush.bf16.msra.mxu0 %v2554
      %3856 = vmatpush.bf16.msra.mxu0 %v2550
      %3857 = vmatpush.bf16.msra.mxu0 %v2546
      %3858 = vmatpush.bf16.msra.mxu0 %v2542
      %3859 = vmatpush.bf16.msra.mxu0 %v2538
      %3860 = vmatpush.bf16.msra.mxu0 %v2534
      %3861 = vmatpush.bf16.msra.mxu0 %v2530
      %3862 = vmatmul.bf16.gmra.mxu0 %v772
      %v3863 = vpop.f32.mrf.mxu0
      %v3864 = vadd.f32 %v3851, %v3863
      %v3865 = vpop.f32.mrf.mxu0
      %3866 = vdwg.mxu0
      %3867 = vmatpush.bf16.msra.mxu0 %v2590
      %3868 = vmatpush.bf16.msra.mxu0 %v2586
      %3869 = vmatpush.bf16.msra.mxu0 %v2582
      %3870 = vmatpush.bf16.msra.mxu0 %v2578
      %3871 = vmatpush.bf16.msra.mxu0 %v2574
      %3872 = vmatpush.bf16.msra.mxu0 %v2570
      %3873 = vmatpush.bf16.msra.mxu0 %v2566
      %3874 = vmatpush.bf16.msra.mxu0 %v2562
      %3875 = vmatmul.bf16.gmra.mxu0 %v773
      %v3876 = vpop.f32.mrf.mxu0
      %v3877 = vadd.f32 %v3864, %v3876
      %v3878 = vpop.f32.mrf.mxu0
      %3879 = vdwg.mxu0
      %3880 = vmatpush.bf16.msra.mxu0 %v2622
      %3881 = vmatpush.bf16.msra.mxu0 %v2618
      %3882 = vmatpush.bf16.msra.mxu0 %v2614
      %3883 = vmatpush.bf16.msra.mxu0 %v2610
      %3884 = vmatpush.bf16.msra.mxu0 %v2606
      %3885 = vmatpush.bf16.msra.mxu0 %v2602
      %3886 = vmatpush.bf16.msra.mxu0 %v2598
      %3887 = vmatpush.bf16.msra.mxu0 %v2594
      %3888 = vmatmul.bf16.gmra.mxu0 %v776
      %v3889 = vpop.f32.mrf.mxu0
      %v3890 = vadd.f32 %v3877, %v3889
      %v3891 = vpop.f32.mrf.mxu0
      %3892 = vdwg.mxu0
      %3893 = vmatpush.bf16.msra.mxu0 %v2654
      %3894 = vmatpush.bf16.msra.mxu0 %v2650
      %3895 = vmatpush.bf16.msra.mxu0 %v2646
      %3896 = vmatpush.bf16.msra.mxu0 %v2642
      %3897 = vmatpush.bf16.msra.mxu0 %v2638
      %3898 = vmatpush.bf16.msra.mxu0 %v2634
      %3899 = vmatpush.bf16.msra.mxu0 %v2630
      %3900 = vmatpush.bf16.msra.mxu0 %v2626
      %3901 = vmatmul.bf16.gmra.mxu0 %v777
      %v3902 = vpop.f32.mrf.mxu0
      %v3903 = vadd.f32 %v3890, %v3902
      %v3904 = vpop.f32.mrf.mxu0
      %3905 = vdwg.mxu0
      %3906 = vmatpush.bf16.msra.mxu0 %v2686
      %3907 = vmatpush.bf16.msra.mxu0 %v2682
      %3908 = vmatpush.bf16.msra.mxu0 %v2678
      %3909 = vmatpush.bf16.msra.mxu0 %v2674
      %3910 = vmatpush.bf16.msra.mxu0 %v2670
      %3911 = vmatpush.bf16.msra.mxu0 %v2666
      %3912 = vmatpush.bf16.msra.mxu0 %v2662
      %3913 = vmatpush.bf16.msra.mxu0 %v2658
      %3914 = vmatmul.bf16.gmra.mxu0 %v778
      %v3915 = vpop.f32.mrf.mxu0
      %v3916 = vadd.f32 %v3903, %v3915
      %v3917 = vpop.f32.mrf.mxu0
      %3918 = vdwg.mxu0
      %3919 = vmatpush.bf16.msra.mxu0 %v2718
      %3920 = vmatpush.bf16.msra.mxu0 %v2714
      %3921 = vmatpush.bf16.msra.mxu0 %v2710
      %3922 = vmatpush.bf16.msra.mxu0 %v2706
      %3923 = vmatpush.bf16.msra.mxu0 %v2702
      %3924 = vmatpush.bf16.msra.mxu0 %v2698
      %3925 = vmatpush.bf16.msra.mxu0 %v2694
      %3926 = vmatpush.bf16.msra.mxu0 %v2690
      %3927 = vmatmul.bf16.gmra.mxu0 %v779
      %v3928 = vpop.f32.mrf.mxu0
      %v3929 = vadd.f32 %v3916, %v3928
      %v3930 = vpop.f32.mrf.mxu0
      %3931 = vdwg.mxu0
      %3932 = vmatpush.bf16.msra.mxu0 %v2750
      %3933 = vmatpush.bf16.msra.mxu0 %v2746
      %3934 = vmatpush.bf16.msra.mxu0 %v2742
      %3935 = vmatpush.bf16.msra.mxu0 %v2738
      %3936 = vmatpush.bf16.msra.mxu0 %v2734
      %3937 = vmatpush.bf16.msra.mxu0 %v2730
      %3938 = vmatpush.bf16.msra.mxu0 %v2726
      %3939 = vmatpush.bf16.msra.mxu0 %v2722
      %3940 = vmatmul.bf16.gmra.mxu0 %v780
      %v3941 = vpop.f32.mrf.mxu0
      %v3942 = vadd.f32 %v3929, %v3941
      %v3943 = vpop.f32.mrf.mxu0
      %3944 = vdwg.mxu0
      %3945 = vmatpush.bf16.msra.mxu0 %v2782
      %3946 = vmatpush.bf16.msra.mxu0 %v2778
      %3947 = vmatpush.bf16.msra.mxu0 %v2774
      %3948 = vmatpush.bf16.msra.mxu0 %v2770
      %3949 = vmatpush.bf16.msra.mxu0 %v2766
      %3950 = vmatpush.bf16.msra.mxu0 %v2762
      %3951 = vmatpush.bf16.msra.mxu0 %v2758
      %3952 = vmatpush.bf16.msra.mxu0 %v2754
      %3953 = vmatmul.bf16.gmra.mxu0 %v781
      %v3954 = vpop.f32.mrf.mxu0
      %v3955 = vadd.f32 %v3942, %v3954
      %v3956 = vpop.f32.mrf.mxu0
      %3957 = vdwg.mxu0
      %3958 = vmatpush.bf16.msra.mxu0 %v2814
      %3959 = vmatpush.bf16.msra.mxu0 %v2810
      %3960 = vmatpush.bf16.msra.mxu0 %v2806
      %3961 = vmatpush.bf16.msra.mxu0 %v2802
      %3962 = vmatpush.bf16.msra.mxu0 %v2798
      %3963 = vmatpush.bf16.msra.mxu0 %v2794
      %3964 = vmatpush.bf16.msra.mxu0 %v2790
      %3965 = vmatpush.bf16.msra.mxu0 %v2786
      %3966 = vmatmul.bf16.gmra.mxu0 %v782
      %v3967 = vpop.f32.mrf.mxu0
      %v3968 = vadd.f32 %v3955, %v3967
      %v3969 = vpop.f32.mrf.mxu0
      %3970 = vdwg.mxu0
      %3971 = vmatpush.bf16.msra.mxu0 %v2846
      %3972 = vmatpush.bf16.msra.mxu0 %v2842
      %3973 = vmatpush.bf16.msra.mxu0 %v2838
      %3974 = vmatpush.bf16.msra.mxu0 %v2834
      %3975 = vmatpush.bf16.msra.mxu0 %v2830
      %3976 = vmatpush.bf16.msra.mxu0 %v2826
      %3977 = vmatpush.bf16.msra.mxu0 %v2822
      %3978 = vmatpush.bf16.msra.mxu0 %v2818
      %3979 = vmatmul.bf16.gmra.mxu0 %v783
      %v3980 = vpop.f32.mrf.mxu0
      %v3981 = vadd.f32 %v3968, %v3980
      %v3982 = vpop.f32.mrf.mxu0
      %3983 = vdwg.mxu0
      %3984 = vmatpush.bf16.msra.mxu0 %v2367
      %3985 = vmatpush.bf16.msra.mxu0 %v2363
      %3986 = vmatpush.bf16.msra.mxu0 %v2359
      %3987 = vmatpush.bf16.msra.mxu0 %v2355
      %3988 = vmatpush.bf16.msra.mxu0 %v2351
      %3989 = vmatpush.bf16.msra.mxu0 %v2347
      %3990 = vmatpush.bf16.msra.mxu0 %v2343
      %3991 = vmatpush.bf16.msra.mxu0 %v2339
      %3992 = vmatmul.bf16.gmra.mxu0 %v766
      %v3993 = vpop.f32.mrf.mxu0
      %v3994 = vadd.f32 0.0, %v3993
      %v3995 = vpop.f32.mrf.mxu0
      %3996 = vdwg.mxu0
      %3997 = vmatpush.bf16.msra.mxu0 %v2399
      %3998 = vmatpush.bf16.msra.mxu0 %v2395
      %3999 = vmatpush.bf16.msra.mxu0 %v2391
      %4000 = vmatpush.bf16.msra.mxu0 %v2387
      %4001 = vmatpush.bf16.msra.mxu0 %v2383
      %4002 = vmatpush.bf16.msra.mxu0 %v2379
      %4003 = vmatpush.bf16.msra.mxu0 %v2375
      %4004 = vmatpush.bf16.msra.mxu0 %v2371
      %4005 = vmatmul.bf16.gmra.mxu0 %v767
      %v4006 = vpop.f32.mrf.mxu0
      %v4007 = vadd.f32 %v3994, %v4006
      %v4008 = vpop.f32.mrf.mxu0
      %4009 = vdwg.mxu0
      %4010 = vmatpush.bf16.msra.mxu0 %v2431
      %4011 = vmatpush.bf16.msra.mxu0 %v2427
      %4012 = vmatpush.bf16.msra.mxu0 %v2423
      %4013 = vmatpush.bf16.msra.mxu0 %v2419
      %4014 = vmatpush.bf16.msra.mxu0 %v2415
      %4015 = vmatpush.bf16.msra.mxu0 %v2411
      %4016 = vmatpush.bf16.msra.mxu0 %v2407
      %4017 = vmatpush.bf16.msra.mxu0 %v2403
      %4018 = vmatmul.bf16.gmra.mxu0 %v768
      %v4019 = vpop.f32.mrf.mxu0
      %v4020 = vadd.f32 %v4007, %v4019
      %v4021 = vpop.f32.mrf.mxu0
      %4022 = vdwg.mxu0
      %4023 = vmatpush.bf16.msra.mxu0 %v2463
      %4024 = vmatpush.bf16.msra.mxu0 %v2459
      %4025 = vmatpush.bf16.msra.mxu0 %v2455
      %4026 = vmatpush.bf16.msra.mxu0 %v2451
      %4027 = vmatpush.bf16.msra.mxu0 %v2447
      %4028 = vmatpush.bf16.msra.mxu0 %v2443
      %4029 = vmatpush.bf16.msra.mxu0 %v2439
      %4030 = vmatpush.bf16.msra.mxu0 %v2435
      %4031 = vmatmul.bf16.gmra.mxu0 %v769
      %v4032 = vpop.f32.mrf.mxu0
      %v4033 = vadd.f32 %v4020, %v4032
      %v4034 = vpop.f32.mrf.mxu0
      %4035 = vdwg.mxu0
      %4036 = vmatpush.bf16.msra.mxu0 %v2495
      %4037 = vmatpush.bf16.msra.mxu0 %v2491
      %4038 = vmatpush.bf16.msra.mxu0 %v2487
      %4039 = vmatpush.bf16.msra.mxu0 %v2483
      %4040 = vmatpush.bf16.msra.mxu0 %v2479
      %4041 = vmatpush.bf16.msra.mxu0 %v2475
      %4042 = vmatpush.bf16.msra.mxu0 %v2471
      %4043 = vmatpush.bf16.msra.mxu0 %v2467
      %4044 = vmatmul.bf16.gmra.mxu0 %v770
      %v4045 = vpop.f32.mrf.mxu0
      %v4046 = vadd.f32 %v4033, %v4045
      %v4047 = vpop.f32.mrf.mxu0
      %4048 = vdwg.mxu0
      %4049 = vmatpush.bf16.msra.mxu0 %v2527
      %4050 = vmatpush.bf16.msra.mxu0 %v2523
      %4051 = vmatpush.bf16.msra.mxu0 %v2519
      %4052 = vmatpush.bf16.msra.mxu0 %v2515
      %4053 = vmatpush.bf16.msra.mxu0 %v2511
      %4054 = vmatpush.bf16.msra.mxu0 %v2507
      %4055 = vmatpush.bf16.msra.mxu0 %v2503
      %4056 = vmatpush.bf16.msra.mxu0 %v2499
      %4057 = vmatmul.bf16.gmra.mxu0 %v771
      %v4058 = vpop.f32.mrf.mxu0
      %v4059 = vadd.f32 %v4046, %v4058
      %v4060 = vpop.f32.mrf.mxu0
      %4061 = vdwg.mxu0
      %4062 = vmatpush.bf16.msra.mxu0 %v2559
      %4063 = vmatpush.bf16.msra.mxu0 %v2555
      %4064 = vmatpush.bf16.msra.mxu0 %v2551
      %4065 = vmatpush.bf16.msra.mxu0 %v2547
      %4066 = vmatpush.bf16.msra.mxu0 %v2543
      %4067 = vmatpush.bf16.msra.mxu0 %v2539
      %4068 = vmatpush.bf16.msra.mxu0 %v2535
      %4069 = vmatpush.bf16.msra.mxu0 %v2531
      %4070 = vmatmul.bf16.gmra.mxu0 %v772
      %v4071 = vpop.f32.mrf.mxu0
      %v4072 = vadd.f32 %v4059, %v4071
      %v4073 = vpop.f32.mrf.mxu0
      %4074 = vdwg.mxu0
      %4075 = vmatpush.bf16.msra.mxu0 %v2591
      %4076 = vmatpush.bf16.msra.mxu0 %v2587
      %4077 = vmatpush.bf16.msra.mxu0 %v2583
      %4078 = vmatpush.bf16.msra.mxu0 %v2579
      %4079 = vmatpush.bf16.msra.mxu0 %v2575
      %4080 = vmatpush.bf16.msra.mxu0 %v2571
      %4081 = vmatpush.bf16.msra.mxu0 %v2567
      %4082 = vmatpush.bf16.msra.mxu0 %v2563
      %4083 = vmatmul.bf16.gmra.mxu0 %v773
      %v4084 = vpop.f32.mrf.mxu0
      %v4085 = vadd.f32 %v4072, %v4084
      %v4086 = vpop.f32.mrf.mxu0
      %4087 = vdwg.mxu0
      %4088 = vmatpush.bf16.msra.mxu0 %v2623
      %4089 = vmatpush.bf16.msra.mxu0 %v2619
      %4090 = vmatpush.bf16.msra.mxu0 %v2615
      %4091 = vmatpush.bf16.msra.mxu0 %v2611
      %4092 = vmatpush.bf16.msra.mxu0 %v2607
      %4093 = vmatpush.bf16.msra.mxu0 %v2603
      %4094 = vmatpush.bf16.msra.mxu0 %v2599
      %4095 = vmatpush.bf16.msra.mxu0 %v2595
      %4096 = vmatmul.bf16.gmra.mxu0 %v776
      %v4097 = vpop.f32.mrf.mxu0
      %v4098 = vadd.f32 %v4085, %v4097
      %v4099 = vpop.f32.mrf.mxu0
      %4100 = vdwg.mxu0
      %4101 = vmatpush.bf16.msra.mxu0 %v2655
      %4102 = vmatpush.bf16.msra.mxu0 %v2651
      %4103 = vmatpush.bf16.msra.mxu0 %v2647
      %4104 = vmatpush.bf16.msra.mxu0 %v2643
      %4105 = vmatpush.bf16.msra.mxu0 %v2639
      %4106 = vmatpush.bf16.msra.mxu0 %v2635
      %4107 = vmatpush.bf16.msra.mxu0 %v2631
      %4108 = vmatpush.bf16.msra.mxu0 %v2627
      %4109 = vmatmul.bf16.gmra.mxu0 %v777
      %v4110 = vpop.f32.mrf.mxu0
      %v4111 = vadd.f32 %v4098, %v4110
      %v4112 = vpop.f32.mrf.mxu0
      %4113 = vdwg.mxu0
      %4114 = vmatpush.bf16.msra.mxu0 %v2687
      %4115 = vmatpush.bf16.msra.mxu0 %v2683
      %4116 = vmatpush.bf16.msra.mxu0 %v2679
      %4117 = vmatpush.bf16.msra.mxu0 %v2675
      %4118 = vmatpush.bf16.msra.mxu0 %v2671
      %4119 = vmatpush.bf16.msra.mxu0 %v2667
      %4120 = vmatpush.bf16.msra.mxu0 %v2663
      %4121 = vmatpush.bf16.msra.mxu0 %v2659
      %4122 = vmatmul.bf16.gmra.mxu0 %v778
      %v4123 = vpop.f32.mrf.mxu0
      %v4124 = vadd.f32 %v4111, %v4123
      %v4125 = vpop.f32.mrf.mxu0
      %4126 = vdwg.mxu0
      %4127 = vmatpush.bf16.msra.mxu0 %v2719
      %4128 = vmatpush.bf16.msra.mxu0 %v2715
      %4129 = vmatpush.bf16.msra.mxu0 %v2711
      %4130 = vmatpush.bf16.msra.mxu0 %v2707
      %4131 = vmatpush.bf16.msra.mxu0 %v2703
      %4132 = vmatpush.bf16.msra.mxu0 %v2699
      %4133 = vmatpush.bf16.msra.mxu0 %v2695
      %4134 = vmatpush.bf16.msra.mxu0 %v2691
      %4135 = vmatmul.bf16.gmra.mxu0 %v779
      %v4136 = vpop.f32.mrf.mxu0
      %v4137 = vadd.f32 %v4124, %v4136
      %v4138 = vpop.f32.mrf.mxu0
      %4139 = vdwg.mxu0
      %4140 = vmatpush.bf16.msra.mxu0 %v2751
      %4141 = vmatpush.bf16.msra.mxu0 %v2747
      %4142 = vmatpush.bf16.msra.mxu0 %v2743
      %4143 = vmatpush.bf16.msra.mxu0 %v2739
      %4144 = vmatpush.bf16.msra.mxu0 %v2735
      %4145 = vmatpush.bf16.msra.mxu0 %v2731
      %4146 = vmatpush.bf16.msra.mxu0 %v2727
      %4147 = vmatpush.bf16.msra.mxu0 %v2723
      %4148 = vmatmul.bf16.gmra.mxu0 %v780
      %v4149 = vpop.f32.mrf.mxu0
      %v4150 = vadd.f32 %v4137, %v4149
      %v4151 = vpop.f32.mrf.mxu0
      %4152 = vdwg.mxu0
      %4153 = vmatpush.bf16.msra.mxu0 %v2783
      %4154 = vmatpush.bf16.msra.mxu0 %v2779
      %4155 = vmatpush.bf16.msra.mxu0 %v2775
      %4156 = vmatpush.bf16.msra.mxu0 %v2771
      %4157 = vmatpush.bf16.msra.mxu0 %v2767
      %4158 = vmatpush.bf16.msra.mxu0 %v2763
      %4159 = vmatpush.bf16.msra.mxu0 %v2759
      %4160 = vmatpush.bf16.msra.mxu0 %v2755
      %4161 = vmatmul.bf16.gmra.mxu0 %v781
      %v4162 = vpop.f32.mrf.mxu0
      %v4163 = vadd.f32 %v4150, %v4162
      %v4164 = vpop.f32.mrf.mxu0
      %4165 = vdwg.mxu0
      %4166 = vmatpush.bf16.msra.mxu0 %v2815
      %4167 = vmatpush.bf16.msra.mxu0 %v2811
      %4168 = vmatpush.bf16.msra.mxu0 %v2807
      %4169 = vmatpush.bf16.msra.mxu0 %v2803
      %4170 = vmatpush.bf16.msra.mxu0 %v2799
      %4171 = vmatpush.bf16.msra.mxu0 %v2795
      %4172 = vmatpush.bf16.msra.mxu0 %v2791
      %4173 = vmatpush.bf16.msra.mxu0 %v2787
      %4174 = vmatmul.bf16.gmra.mxu0 %v782
      %v4175 = vpop.f32.mrf.mxu0
      %v4176 = vadd.f32 %v4163, %v4175
      %v4177 = vpop.f32.mrf.mxu0
      %4178 = vdwg.mxu0
      %4179 = vmatpush.bf16.msra.mxu0 %v2847
      %4180 = vmatpush.bf16.msra.mxu0 %v2843
      %4181 = vmatpush.bf16.msra.mxu0 %v2839
      %4182 = vmatpush.bf16.msra.mxu0 %v2835
      %4183 = vmatpush.bf16.msra.mxu0 %v2831
      %4184 = vmatpush.bf16.msra.mxu0 %v2827
      %4185 = vmatpush.bf16.msra.mxu0 %v2823
      %4186 = vmatpush.bf16.msra.mxu0 %v2819
      %4187 = vmatmul.bf16.gmra.mxu0 %v783
      %v4188 = vpop.f32.mrf.mxu0
      %v4189 = vadd.f32 %v4176, %v4188
      %v4190 = vpop.f32.mrf.mxu0
      %4191 = vdwg.mxu0
      %v4196 = vrot.slane %v3773, 6
      %v4197 = vrot.slane %v3981, 4
      %v4198 = vrot.slane %v4189, 2
      %vm4199 = vcmask 1041408
      %v4200 = vsel %vm4199, %v3565, %v4196
      %vm4201 = vcmask 1045508
      %v4202 = vsel %vm4201, %v4197, %v4198
      %vm4203 = vcmask 1043456
      %v4204 = vsel %vm4203, %v4200, %v4202
      %v4206 = vadd.f32 %v249, %v4204
      %4207 = vst [vmem:[#allocation2] sm:$0xff] %v4206
      %p4208 = scmp.eq.s32.totalorder %s19, 9
      // Predicated region
      $region37: #{cnn_forward.6} parent=31 // pred_check
        %p4209 = pneg %p4208
      $region38: #{cnn_forward.6} parent=31 // pred_check_branch
        %4211 = sbr.rel (%p4209) target = $region40
      $region39: #{cnn_forward.6} parent=31 // pred_region
        %v4212 = vld [vmem:[%s237] sm:$0xff]
        %v4213 = vld [vmem:[%s237 + $0x8] sm:$0xff]
        %v4214 = vld [vmem:[%s237 + $0x10] sm:$0xff]
        %v4215 = vld [vmem:[%s237 + $0x18] sm:$0xff]
        %v4216 = vld [vmem:[#allocation2] sm:$0xff]
        %v4217 = vperm.slane %v4212, 0
        %v4218 = vperm.slane %v4213, 0
        %v4219 = vperm.slane %v4214, 0
        %v4220 = vperm.slane %v4215, 0
        %v4225 = vrot.slane %v4218, 6
        %v4226 = vrot.slane %v4219, 4
        %v4227 = vrot.slane %v4220, 2
        %v4228 = vsel %vm4199, %v4217, %v4225
        %v4229 = vsel %vm4201, %v4226, %v4227
        %v4230 = vsel %vm4203, %v4228, %v4229
        %v4232 = vadd.f32 %v4216, %v4230
        %v4233 = vmax.f32 %v4232, 0.0
        %v4234 = vperm.slane %v4212, 1
        %v4235 = vperm.slane %v4213, 1
        %v4236 = vperm.slane %v4214, 1
        %v4237 = vperm.slane %v4215, 1
        %v4242 = vrot.slane %v4235, 6
        %v4243 = vrot.slane %v4236, 4
        %v4244 = vrot.slane %v4237, 2
        %v4245 = vsel %vm4199, %v4234, %v4242
        %v4246 = vsel %vm4201, %v4243, %v4244
        %v4247 = vsel %vm4203, %v4245, %v4246
        %v4249 = vmul.f32 %v4233, %v4247
        %v4250 = vperm.slane %v4212, 2
        %v4251 = vperm.slane %v4213, 2
        %v4252 = vperm.slane %v4214, 2
        %v4253 = vperm.slane %v4215, 2
        %v4258 = vrot.slane %v4251, 6
        %v4259 = vrot.slane %v4252, 4
        %v4260 = vrot.slane %v4253, 2
        %v4261 = vsel %vm4199, %v4250, %v4258
        %v4262 = vsel %vm4201, %v4259, %v4260
        %v4263 = vsel %vm4203, %v4261, %v4262
        %v4265 = vadd.f32 %v4249, %v4263
        %4267 = vst [vmem:[#allocation1] ss:$4 sm:$0xff] %v4265
        %v4268 = vld.sshfl [vmem:[#allocation1] sm:$0xff pattern:$0x73625140]
        %v4269 = vld.sshfl [vmem:[#allocation1 + $0x8] sm:$0xff pattern:$0x73625140]
        %v4270 = vld.sshfl [vmem:[#allocation1 + $0x10] sm:$0xff pattern:$0x73625140]
        %v4271 = vld.sshfl [vmem:[#allocation1 + $0x18] sm:$0xff pattern:$0x73625140]
        %v4276 = vpack.c.bf16 %v4269, %v4268
        %v4277 = vpack.c.bf16 %v4271, %v4270
        %v4280 = vrot.slane %v4276, 3
        %v4281 = vrot.slane %v4277, 6
        %v4282 = vrot.slane %v4277, 1
        %vm4283 = vcmask 1040384
        %v4286 = vsel %vm4283, %v4276, %v4280
        %vm4287 = vcmask 1042434
        %v4290 = vsel %vm4287, %v4281, %v4282
        %v4291 = vsel %vm4199, %v4286, %v4290
        %4293 = vst [vmem:[%s242] sm:$0xf] %v4291
      $region40: #{cnn_forward.6} parent=31 // pred_fallthru
        _
      %s4294 = smul.u32 4, %s18
      %p4295 = scmp.lt.s32.totalorder %s4294, 3
      %s4296 = scalar_select %p4295, %s4294, 3
      %s4297 = scalar_lea.vmem %s3, %s4296
      // Predicated region
      $region41: #{cnn_forward.6} parent=31 // pred_check
        %p4298 = pneg %p124
      $region42: #{cnn_forward.6} parent=31 // pred_check_branch
        %4300 = sbr.rel (%p4298) target = $region44
      $region43: #{cnn_forward.6} parent=31 // pred_region
        %s4301 = smul.u32 4, %s18
      $region44: #{cnn_forward.6} parent=31 // pred_fallthru
        _
      // Predicated region
      $region45: #{cnn_forward.6} parent=31 // pred_check
        %p4302 = pneg %p124
      $region46: #{cnn_forward.6} parent=31 // pred_check_branch
        %4304 = sbr.rel (%p4302) target = $region48
      $region47: #{cnn_forward.6} parent=31 // pred_region
        %s4305 = smul.u32 4, %s18
        %p4306 = scmp.lt.s32.totalorder %s4305, 3
        %s4307 = scalar_select %p4306, %s4305, 3
        %s4308 = scalar_lea.vmem %s3, %s4307
      $region48: #{cnn_forward.6} parent=31 // pred_fallthru
        _
    $region32: #{cnn_forward.6} parent=5 // pred_fallthru
      _
    %p4309 = scmp.le.s32.totalorder 2, %s9
    // Predicated region
    $region49: #{cnn_forward.6} parent=5 // pred_check
      %p4310 = pneg %p4309
    $region50: #{cnn_forward.6} parent=5 // pred_check_branch
      %4312 = sbr.rel (%p4310) target = $region52
    $region51: #{cnn_forward.6} parent=5 // pred_region
      %s4313 = ssub.s32 %s9, 2
    $region52: #{cnn_forward.6} parent=5 // pred_fallthru
      _
  $region6: #{cnn_forward.6} parent=0 // loop_footer
    %s13 = sadd.s32 1, %s9
  $region7: #{cnn_forward.6} parent=0 // loop_footer_branch
    %8 = sbr.rel target = $region3
  $region8: #{cnn_forward.6} parent=0 // loop_exit
    _

</llo_original>
